<compile_context>
chip_gen: v7x
topology: tpu7x:2x2x1
jax: 0.10.0
libtpu: 0.0.40
codegen_flags: <defaults>
</compile_context>

<pallas_src>
import numpy as np
import jax
import jax.numpy as jnp
from jax.experimental import pallas as pl
from jax.experimental.pallas import tpu as pltpu


def _bilinear_matrix(out_size, in_size):
    """1D bilinear interpolation matrix (out_size, in_size), align_corners=True,
    matching PyTorch nn.Upsample(mode='bilinear', align_corners=True)."""
    A = np.zeros((out_size, in_size), dtype=np.float32)
    if in_size == 1 or out_size == 1:
        A[:, 0] = 1.0
        return A
    scale = (in_size - 1) / (out_size - 1)
    for i in range(out_size):
        src = i * scale
        i0 = min(int(np.floor(src)), in_size - 2)
        t = src - i0
        A[i, i0] += 1.0 - t
        A[i, i0 + 1] += t
    return A


def up_forward(x, conv1_w, conv1_b, bn1_gamma, bn1_beta, bn1_mean, bn1_var,
               conv2_w, conv2_b, bn2_gamma, bn2_beta, bn2_mean, bn2_var,
               eps=1e-5):
    """Forward pass of Up(bilinear=True): 2x bilinear upsample -> (conv3x3+BN+ReLU) x2.

    x       : (N, C_in, H, W) f32
    conv1_w : (C_mid, C_in, 3, 3), conv1_b/bn1_*: (C_mid,)
    conv2_w : (C_out, C_mid, 3, 3), conv2_b/bn2_*: (C_out,)
    returns : (N, C_out, 2H, 2W) f32
    """
    N, C_in, H, W = x.shape
    C_mid = conv1_w.shape[0]
    C_out = conv2_w.shape[0]
    Ho, Wo = 2 * H, 2 * W            # upsampled spatial size
    Hp, Wp = Ho + 4, Wo + 4          # upsampled plane with a 2-px zero frame
    Hc, Wc = Ho + 2, Wo + 2          # conv1 output frame (= zero-padded conv2 input)

    # ---- fold inference-mode BatchNorm into conv weights / biases ----
    s1 = bn1_gamma / jnp.sqrt(bn1_var + eps)
    w1f = (conv1_w * s1[:, None, None, None]).reshape(-1)       # (C_mid*C_in*9,)
    b1f = (conv1_b - bn1_mean) * s1 + bn1_beta                  # (C_mid,)
    s2 = bn2_gamma / jnp.sqrt(bn2_var + eps)
    w2f = (conv2_w * s2[:, None, None, None]).reshape(-1)       # (C_out*C_mid*9,)
    b2f = (conv2_b - bn2_mean) * s2 + bn2_beta                  # (C_out,)

    # ---- bilinear weights with the 2-px zero frame folded in (static, tiny) ----
    ah = np.zeros((Hp, H), dtype=np.float32)                    # rows 0,1 & Ho+2,Ho+3 = 0
    ah[2:Ho + 2, :] = _bilinear_matrix(Ho, H)
    awt = np.zeros((W, Wp), dtype=np.float32)                   # cols 0,1 & Wo+2,Wo+3 = 0
    awt[:, 2:Wo + 2] = _bilinear_matrix(Wo, W).T

    HIGHEST = jax.lax.Precision.HIGHEST

    def kernel(x_ref, ah_ref, awt_ref, w1_ref, b1_ref, w2_ref, b2_ref,
               o_ref, upad_ref, mpad_ref):
        f32 = jnp.float32

        # ---- Stage A: 2x bilinear upsample (align_corners=True) as two small MXU
        #      matmuls per channel; exact enough at HIGHEST precision.  Result is
        #      stored with a 2-px zero frame (folded into ah/awt) so the following
        #      3x3 convs need no padding ops.
        ah_m = ah_ref[...]                                      # (Hp, H)
        awt_m = awt_ref[...]                                    # (W, Wp)
        for ci in range(C_in):
            v = jnp.dot(ah_m, x_ref[ci],                        # (Hp, W)
                        preferred_element_type=f32, precision=HIGHEST)
            upad_ref[ci, :, :] = jnp.dot(v, awt_m,              # (Hp, Wp)
                                         preferred_element_type=f32,
                                         precision=HIGHEST)

        # Interior mask of the conv1 output frame: 1 inside, 0 on the 1-px border
        # (the border IS the zero padding conv2 sees).
        row_i = jax.lax.broadcasted_iota(jnp.int32, (Hc, Wc), 0)
        col_j = jax.lax.broadcasted_iota(jnp.int32, (Hc, Wc), 1)
        interior = ((row_i >= 1) & (row_i <= Ho) &
                    (col_j >= 1) & (col_j <= Wo)).astype(f32)

        # ---- Stage B: conv1 (3x3, pad=1) + folded BN + ReLU, computed directly in
        #      the zero-padded frame.  ci-outer / co-inner: each shifted slice of the
        #      padded upsample plane is loaded exactly once; tiny channel counts ->
        #      unrolled scalar FMAs with SMEM weights.
        acc1 = [jnp.full((Hc, Wc), b1_ref[co], dtype=f32) for co in range(C_mid)]
        for ci in range(C_in):
            for ky in range(3):
                for kx in range(3):
                    sl = upad_ref[ci, ky:ky + Hc, kx:kx + Wc]   # read once
                    for co in range(C_mid):
                        wv = w1_ref[(co * C_in + ci) * 9 + ky * 3 + kx]
                        acc1[co] = acc1[co] + wv * sl
        for co in range(C_mid):
            mpad_ref[co, :, :] = jnp.maximum(acc1[co], 0.0) * interior

        # ---- Stage C: conv2 (3x3, pad=1) + folded BN + ReLU, same structure ----
        acc2 = [jnp.full((Ho, Wo), b2_ref[co], dtype=f32) for co in range(C_out)]
        for ci in range(C_mid):
            for ky in range(3):
                for kx in range(3):
                    sl = mpad_ref[ci, ky:ky + Ho, kx:kx + Wo]   # read once
                    for co in range(C_out):
                        wv = w2_ref[(co * C_mid + ci) * 9 + ky * 3 + kx]
                        acc2[co] = acc2[co] + wv * sl
        for co in range(C_out):
            o_ref[co, :, :] = jnp.maximum(acc2[co], 0.0).astype(o_ref.dtype)

    return pl.pallas_call(
        kernel,
        out_shape=jax.ShapeDtypeStruct((N, C_out, Ho, Wo), x.dtype),
        grid=(N,),
        in_specs=[
            pl.BlockSpec((None, C_in, H, W), lambda n: (n, 0, 0, 0)),   # x (one sample)
            pl.BlockSpec((Hp, H), lambda n: (0, 0)),                    # H interp weights
            pl.BlockSpec((W, Wp), lambda n: (0, 0)),                    # W interp weights
            pl.BlockSpec(memory_space=pltpu.MemorySpace.SMEM),          # conv1 weights
            pl.BlockSpec(memory_space=pltpu.MemorySpace.SMEM),          # conv1 bias
            pl.BlockSpec(memory_space=pltpu.MemorySpace.SMEM),          # conv2 weights
            pl.BlockSpec(memory_space=pltpu.MemorySpace.SMEM),          # conv2 bias
        ],
        out_specs=pl.BlockSpec((None, C_out, Ho, Wo), lambda n: (n, 0, 0, 0)),
        scratch_shapes=[
            pltpu.VMEM((C_in, Hp, Wp), jnp.float32),    # upsampled + 2-px zero frame
            pltpu.VMEM((C_mid, Hc, Wc), jnp.float32),   # conv1 output + 1-px zero frame
        ],
        compiler_params=pltpu.CompilerParams(
            dimension_semantics=("parallel",),
        ),
    )(x, jnp.asarray(ah), jnp.asarray(awt), w1f, b1f, w2f, b2f)


def up_reference(x, conv1_w, conv1_b, bn1_gamma, bn1_beta, bn1_mean, bn1_var,
                 conv2_w, conv2_b, bn2_gamma, bn2_beta, bn2_mean, bn2_var,
                 eps=1e-5):
    """Plain-JAX reference: bilinear (align_corners=True) upsample + DoubleConv."""
    N, C_in, H, W = x.shape
    Ho, Wo = 2 * H, 2 * W
    ah = jnp.asarray(_bilinear_matrix(Ho, H))
    aw = jnp.asarray(_bilinear_matrix(Wo, W))
    up = jnp.einsum('uh,nchw,vw->ncuv', ah, x, aw,
                    precision=jax.lax.Precision.HIGHEST)

    def conv_bn_relu(z, w, b, g, beta, mean, var):
        y = jax.lax.conv_general_dilated(
            z, w, window_strides=(1, 1), padding='SAME',
            dimension_numbers=('NCHW', 'OIHW', 'NCHW'),
            precision=jax.lax.Precision.HIGHEST)
        y = y + b[None, :, None, None]
        y = (y - mean[None, :, None, None]) / jnp.sqrt(var[None, :, None, None] + eps)
        y = y * g[None, :, None, None] + beta[None, :, None, None]
        return jnp.maximum(y, 0.0)

    h1 = conv_bn_relu(up, conv1_w, conv1_b, bn1_gamma, bn1_beta, bn1_mean, bn1_var)
    return conv_bn_relu(h1, conv2_w, conv2_b, bn2_gamma, bn2_beta, bn2_mean, bn2_var)


if __name__ == "__main__":
    N, C_in, C_out, H, W = 2, 4, 3, 16, 16
    C_mid = C_in // 2          # DoubleConv(in, out, mid=in//2) on the bilinear path

    key = jax.random.PRNGKey(0)
    ks = jax.random.split(key, 12)
    x = jax.random.normal(ks[0], (N, C_in, H, W), dtype=jnp.float32)

    conv1_w = 0.3 * jax.random.normal(ks[1], (C_mid, C_in, 3, 3), dtype=jnp.float32)
    conv1_b = 0.1 * jax.random.normal(ks[2], (C_mid,), dtype=jnp.float32)
    bn1_gamma = 1.0 + 0.1 * jax.random.normal(ks[3], (C_mid,), dtype=jnp.float32)
    bn1_beta = 0.1 * jax.random.normal(ks[4], (C_mid,), dtype=jnp.float32)
    bn1_mean = 0.1 * jax.random.normal(ks[5], (C_mid,), dtype=jnp.float32)
    bn1_var = jax.random.uniform(ks[6], (C_mid,), dtype=jnp.float32,
                                 minval=0.5, maxval=1.5)

    conv2_w = 0.3 * jax.random.normal(ks[7], (C_out, C_mid, 3, 3), dtype=jnp.float32)
    conv2_b = 0.1 * jax.random.normal(ks[8], (C_out,), dtype=jnp.float32)
    bn2_gamma = 1.0 + 0.1 * jax.random.normal(ks[9], (C_out,), dtype=jnp.float32)
    bn2_beta = 0.1 * jax.random.normal(ks[10], (C_out,), dtype=jnp.float32)
    bn2_mean = 0.1 * jax.random.normal(ks[11], (C_out,), dtype=jnp.float32)
    bn2_var = jax.random.uniform(jax.random.PRNGKey(1), (C_out,), dtype=jnp.float32,
                                 minval=0.5, maxval=1.5)

    args = (x, conv1_w, conv1_b, bn1_gamma, bn1_beta, bn1_mean, bn1_var,
            conv2_w, conv2_b, bn2_gamma, bn2_beta, bn2_mean, bn2_var)

    y = jax.jit(up_forward)(*args)
    y = jax.block_until_ready(y)

    y_ref = up_reference(*args)
    assert y.shape == (N, C_out, 2 * H, 2 * W), y.shape
    err = float(jnp.max(jnp.abs(y - y_ref)))
    assert jnp.allclose(y, y_ref, atol=1e-4, rtol=1e-4), f"max abs err = {err}"

    print("KERNEL_OK")
</pallas_src>

<mosaic_0001>
module attributes {stable_mosaic.version = 11 : i64} {
  func.func @kernel(%arg0: i32, %arg1: memref<1x4x16x16xf32, #tpu.memory_space<vmem>>, %arg2: memref<36x16xf32, #tpu.memory_space<vmem>>, %arg3: memref<16x36xf32, #tpu.memory_space<vmem>>, %arg4: memref<72xf32, #tpu.memory_space<smem>>, %arg5: memref<2xf32, #tpu.memory_space<smem>>, %arg6: memref<54xf32, #tpu.memory_space<smem>>, %arg7: memref<3xf32, #tpu.memory_space<smem>>, %arg8: memref<1x3x32x32xf32, #tpu.memory_space<vmem>>, %arg9: memref<4x36x36xf32, #tpu.memory_space<vmem>>, %arg10: memref<2x34x34xf32, #tpu.memory_space<vmem>>) attributes {dimension_semantics = [#tpu.dimension_semantics<parallel>], iteration_bounds = array<i64: 2>, scalar_prefetch = 0 : i64, scratch_operands = 2 : i64, tpu.core_type = #tpu.core_type<tc>, window_params = [{transform_indices = @transform_0, window_bounds = array<i64: 1, 4, 16, 16>}, {pipeline_mode = #tpu.pipeline_mode<synchronous>, transform_indices = @transform_1, window_bounds = array<i64: 36, 16>}, {pipeline_mode = #tpu.pipeline_mode<synchronous>, transform_indices = @transform_2, window_bounds = array<i64: 16, 36>}, {transform_indices = @transform_3, window_bounds = array<i64: 72>}, {transform_indices = @transform_4, window_bounds = array<i64: 2>}, {transform_indices = @transform_5, window_bounds = array<i64: 54>}, {transform_indices = @transform_6, window_bounds = array<i64: 3>}, {transform_indices = @transform_7, window_bounds = array<i64: 1, 3, 32, 32>}]} {
    %c0 = arith.constant 0 : index
    %c0_0 = arith.constant 0 : index
    %0 = vector.load %arg2[%c0, %c0_0] : memref<36x16xf32, #tpu.memory_space<vmem>>, vector<36x16xf32>
    %c0_1 = arith.constant 0 : index
    %c0_2 = arith.constant 0 : index
    %1 = vector.load %arg3[%c0_1, %c0_2] : memref<16x36xf32, #tpu.memory_space<vmem>>, vector<16x36xf32>
    %c0_3 = arith.constant 0 : index
    %c0_4 = arith.constant 0 : index
    %c0_5 = arith.constant 0 : index
    %c0_6 = arith.constant 0 : index
    %2 = vector.load %arg1[%c0_3, %c0_4, %c0_5, %c0_6] : memref<1x4x16x16xf32, #tpu.memory_space<vmem>>, vector<1x1x16x16xf32>
    %3 = vector.shape_cast %2 : vector<1x1x16x16xf32> to vector<16x16xf32>
    %cst = arith.constant dense<0.000000e+00> : vector<36x16xf32>
    %4 = tpu.matmul %0, %3, %cst {dimension_numbers = #tpu.dot_dimension_numbers<[1], [0], [0], [1], [0, 0, 1, 1], [], []>, precision = #tpu.contract_precision<fp32>} : vector<36x16xf32>, vector<16x16xf32>, vector<36x16xf32> -> vector<36x16xf32>
    %cst_7 = arith.constant dense<0.000000e+00> : vector<36x36xf32>
    %5 = tpu.matmul %4, %1, %cst_7 {dimension_numbers = #tpu.dot_dimension_numbers<[1], [0], [0], [1], [0, 0, 1, 1], [], []>, precision = #tpu.contract_precision<fp32>} : vector<36x16xf32>, vector<16x36xf32>, vector<36x36xf32> -> vector<36x36xf32>
    %c0_8 = arith.constant 0 : index
    %c0_9 = arith.constant 0 : index
    %c0_10 = arith.constant 0 : index
    %6 = vector.load %arg9[%c0_8, %c0_9, %c0_10] : memref<4x36x36xf32, #tpu.memory_space<vmem>>, vector<1x36x36xf32>
    %7 = vector.shape_cast %6 : vector<1x36x36xf32> to vector<36x36xf32>
    %8 = vector.shape_cast %5 : vector<36x36xf32> to vector<1x36x36xf32>
    tpu.vector_store %arg9[%c0_8, %c0_9, %c0_10], %8 {strides = array<i32>} : memref<4x36x36xf32, #tpu.memory_space<vmem>>, vector<1x36x36xf32>,
    %c0_11 = arith.constant 0 : index
    %c1 = arith.constant 1 : index
    %c0_12 = arith.constant 0 : index
    %c0_13 = arith.constant 0 : index
    %9 = vector.load %arg1[%c0_11, %c1, %c0_12, %c0_13] : memref<1x4x16x16xf32, #tpu.memory_space<vmem>>, vector<1x1x16x16xf32>
    %10 = vector.shape_cast %9 : vector<1x1x16x16xf32> to vector<16x16xf32>
    %cst_14 = arith.constant dense<0.000000e+00> : vector<36x16xf32>
    %11 = tpu.matmul %0, %10, %cst_14 {dimension_numbers = #tpu.dot_dimension_numbers<[1], [0], [0], [1], [0, 0, 1, 1], [], []>, precision = #tpu.contract_precision<fp32>} : vector<36x16xf32>, vector<16x16xf32>, vector<36x16xf32> -> vector<36x16xf32>
    %cst_15 = arith.constant dense<0.000000e+00> : vector<36x36xf32>
    %12 = tpu.matmul %11, %1, %cst_15 {dimension_numbers = #tpu.dot_dimension_numbers<[1], [0], [0], [1], [0, 0, 1, 1], [], []>, precision = #tpu.contract_precision<fp32>} : vector<36x16xf32>, vector<16x36xf32>, vector<36x36xf32> -> vector<36x36xf32>
    %c1_16 = arith.constant 1 : index
    %c0_17 = arith.constant 0 : index
    %c0_18 = arith.constant 0 : index
    %13 = vector.load %arg9[%c1_16, %c0_17, %c0_18] : memref<4x36x36xf32, #tpu.memory_space<vmem>>, vector<1x36x36xf32>
    %14 = vector.shape_cast %13 : vector<1x36x36xf32> to vector<36x36xf32>
    %15 = vector.shape_cast %12 : vector<36x36xf32> to vector<1x36x36xf32>
    tpu.vector_store %arg9[%c1_16, %c0_17, %c0_18], %15 {strides = array<i32>} : memref<4x36x36xf32, #tpu.memory_space<vmem>>, vector<1x36x36xf32>,
    %c0_19 = arith.constant 0 : index
    %c2 = arith.constant 2 : index
    %c0_20 = arith.constant 0 : index
    %c0_21 = arith.constant 0 : index
    %16 = vector.load %arg1[%c0_19, %c2, %c0_20, %c0_21] : memref<1x4x16x16xf32, #tpu.memory_space<vmem>>, vector<1x1x16x16xf32>
    %17 = vector.shape_cast %16 : vector<1x1x16x16xf32> to vector<16x16xf32>
    %cst_22 = arith.constant dense<0.000000e+00> : vector<36x16xf32>
    %18 = tpu.matmul %0, %17, %cst_22 {dimension_numbers = #tpu.dot_dimension_numbers<[1], [0], [0], [1], [0, 0, 1, 1], [], []>, precision = #tpu.contract_precision<fp32>} : vector<36x16xf32>, vector<16x16xf32>, vector<36x16xf32> -> vector<36x16xf32>
    %cst_23 = arith.constant dense<0.000000e+00> : vector<36x36xf32>
    %19 = tpu.matmul %18, %1, %cst_23 {dimension_numbers = #tpu.dot_dimension_numbers<[1], [0], [0], [1], [0, 0, 1, 1], [], []>, precision = #tpu.contract_precision<fp32>} : vector<36x16xf32>, vector<16x36xf32>, vector<36x36xf32> -> vector<36x36xf32>
    %c2_24 = arith.constant 2 : index
    %c0_25 = arith.constant 0 : index
    %c0_26 = arith.constant 0 : index
    %20 = vector.load %arg9[%c2_24, %c0_25, %c0_26] : memref<4x36x36xf32, #tpu.memory_space<vmem>>, vector<1x36x36xf32>
    %21 = vector.shape_cast %20 : vector<1x36x36xf32> to vector<36x36xf32>
    %22 = vector.shape_cast %19 : vector<36x36xf32> to vector<1x36x36xf32>
    tpu.vector_store %arg9[%c2_24, %c0_25, %c0_26], %22 {strides = array<i32>} : memref<4x36x36xf32, #tpu.memory_space<vmem>>, vector<1x36x36xf32>,
    %c0_27 = arith.constant 0 : index
    %c3 = arith.constant 3 : index
    %c0_28 = arith.constant 0 : index
    %c0_29 = arith.constant 0 : index
    %23 = vector.load %arg1[%c0_27, %c3, %c0_28, %c0_29] : memref<1x4x16x16xf32, #tpu.memory_space<vmem>>, vector<1x1x16x16xf32>
    %24 = vector.shape_cast %23 : vector<1x1x16x16xf32> to vector<16x16xf32>
    %cst_30 = arith.constant dense<0.000000e+00> : vector<36x16xf32>
    %25 = tpu.matmul %0, %24, %cst_30 {dimension_numbers = #tpu.dot_dimension_numbers<[1], [0], [0], [1], [0, 0, 1, 1], [], []>, precision = #tpu.contract_precision<fp32>} : vector<36x16xf32>, vector<16x16xf32>, vector<36x16xf32> -> vector<36x16xf32>
    %cst_31 = arith.constant dense<0.000000e+00> : vector<36x36xf32>
    %26 = tpu.matmul %25, %1, %cst_31 {dimension_numbers = #tpu.dot_dimension_numbers<[1], [0], [0], [1], [0, 0, 1, 1], [], []>, precision = #tpu.contract_precision<fp32>} : vector<36x16xf32>, vector<16x36xf32>, vector<36x36xf32> -> vector<36x36xf32>
    %c3_32 = arith.constant 3 : index
    %c0_33 = arith.constant 0 : index
    %c0_34 = arith.constant 0 : index
    %27 = vector.load %arg9[%c3_32, %c0_33, %c0_34] : memref<4x36x36xf32, #tpu.memory_space<vmem>>, vector<1x36x36xf32>
    %28 = vector.shape_cast %27 : vector<1x36x36xf32> to vector<36x36xf32>
    %29 = vector.shape_cast %26 : vector<36x36xf32> to vector<1x36x36xf32>
    tpu.vector_store %arg9[%c3_32, %c0_33, %c0_34], %29 {strides = array<i32>} : memref<4x36x36xf32, #tpu.memory_space<vmem>>, vector<1x36x36xf32>,
    %30 = tpu.iota {dimensions = array<i32: 0>} : vector<34x34xi32>
    %31 = tpu.iota {dimensions = array<i32: 1>} : vector<34x34xi32>
    %c1_i32 = arith.constant 1 : i32
    %32 = vector.broadcast %c1_i32 : i32 to vector<34x34xi32>
    %33 = arith.cmpi sge, %30, %32 : vector<34x34xi32>
    %c32_i32 = arith.constant 32 : i32
    %34 = vector.broadcast %c32_i32 : i32 to vector<34x34xi32>
    %35 = arith.cmpi sle, %30, %34 : vector<34x34xi32>
    %36 = arith.andi %33, %35 : vector<34x34xi1>
    %c1_i32_35 = arith.constant 1 : i32
    %37 = vector.broadcast %c1_i32_35 : i32 to vector<34x34xi32>
    %38 = arith.cmpi sge, %31, %37 : vector<34x34xi32>
    %39 = arith.andi %36, %38 : vector<34x34xi1>
    %c32_i32_36 = arith.constant 32 : i32
    %40 = vector.broadcast %c32_i32_36 : i32 to vector<34x34xi32>
    %41 = arith.cmpi sle, %31, %40 : vector<34x34xi32>
    %42 = arith.andi %39, %41 : vector<34x34xi1>
    %43 = arith.extui %42 : vector<34x34xi1> to vector<34x34xi32>
    %44 = arith.sitofp %43 : vector<34x34xi32> to vector<34x34xf32>
    %c0_37 = arith.constant 0 : index
    %45 = memref.load %arg5[%c0_37] : memref<2xf32, #tpu.memory_space<smem>>
    %46 = vector.broadcast %45 : f32 to vector<34x34xf32>
    %c1_38 = arith.constant 1 : index
    %47 = memref.load %arg5[%c1_38] : memref<2xf32, #tpu.memory_space<smem>>
    %48 = vector.broadcast %47 : f32 to vector<34x34xf32>
    %c0_39 = arith.constant 0 : index
    %c0_40 = arith.constant 0 : index
    %c0_41 = arith.constant 0 : index
    %49 = vector.load %arg9[%c0_39, %c0_40, %c0_41] : memref<4x36x36xf32, #tpu.memory_space<vmem>>, vector<1x34x34xf32>
    %50 = vector.shape_cast %49 : vector<1x34x34xf32> to vector<34x34xf32>
    %c0_42 = arith.constant 0 : index
    %51 = memref.load %arg4[%c0_42] : memref<72xf32, #tpu.memory_space<smem>>
    %52 = vector.broadcast %51 : f32 to vector<34x34xf32>
    %53 = arith.mulf %52, %50 : vector<34x34xf32>
    %54 = arith.addf %46, %53 : vector<34x34xf32>
    %c36 = arith.constant 36 : index
    %55 = memref.load %arg4[%c36] : memref<72xf32, #tpu.memory_space<smem>>
    %56 = vector.broadcast %55 : f32 to vector<34x34xf32>
    %57 = arith.mulf %56, %50 : vector<34x34xf32>
    %58 = arith.addf %48, %57 : vector<34x34xf32>
    %c0_43 = arith.constant 0 : index
    %c0_44 = arith.constant 0 : index
    %c1_45 = arith.constant 1 : index
    %59 = vector.load %arg9[%c0_43, %c0_44, %c1_45] : memref<4x36x36xf32, #tpu.memory_space<vmem>>, vector<1x34x34xf32>
    %60 = vector.shape_cast %59 : vector<1x34x34xf32> to vector<34x34xf32>
    %c1_46 = arith.constant 1 : index
    %61 = memref.load %arg4[%c1_46] : memref<72xf32, #tpu.memory_space<smem>>
    %62 = vector.broadcast %61 : f32 to vector<34x34xf32>
    %63 = arith.mulf %62, %60 : vector<34x34xf32>
    %64 = arith.addf %54, %63 : vector<34x34xf32>
    %c37 = arith.constant 37 : index
    %65 = memref.load %arg4[%c37] : memref<72xf32, #tpu.memory_space<smem>>
    %66 = vector.broadcast %65 : f32 to vector<34x34xf32>
    %67 = arith.mulf %66, %60 : vector<34x34xf32>
    %68 = arith.addf %58, %67 : vector<34x34xf32>
    %c0_47 = arith.constant 0 : index
    %c0_48 = arith.constant 0 : index
    %c2_49 = arith.constant 2 : index
    %69 = vector.load %arg9[%c0_47, %c0_48, %c2_49] : memref<4x36x36xf32, #tpu.memory_space<vmem>>, vector<1x34x34xf32>
    %70 = vector.shape_cast %69 : vector<1x34x34xf32> to vector<34x34xf32>
    %c2_50 = arith.constant 2 : index
    %71 = memref.load %arg4[%c2_50] : memref<72xf32, #tpu.memory_space<smem>>
    %72 = vector.broadcast %71 : f32 to vector<34x34xf32>
    %73 = arith.mulf %72, %70 : vector<34x34xf32>
    %74 = arith.addf %64, %73 : vector<34x34xf32>
    %c38 = arith.constant 38 : index
    %75 = memref.load %arg4[%c38] : memref<72xf32, #tpu.memory_space<smem>>
    %76 = vector.broadcast %75 : f32 to vector<34x34xf32>
    %77 = arith.mulf %76, %70 : vector<34x34xf32>
    %78 = arith.addf %68, %77 : vector<34x34xf32>
    %c0_51 = arith.constant 0 : index
    %c1_52 = arith.constant 1 : index
    %c0_53 = arith.constant 0 : index
    %79 = vector.load %arg9[%c0_51, %c1_52, %c0_53] : memref<4x36x36xf32, #tpu.memory_space<vmem>>, vector<1x34x34xf32>
    %80 = vector.shape_cast %79 : vector<1x34x34xf32> to vector<34x34xf32>
    %c3_54 = arith.constant 3 : index
    %81 = memref.load %arg4[%c3_54] : memref<72xf32, #tpu.memory_space<smem>>
    %82 = vector.broadcast %81 : f32 to vector<34x34xf32>
    %83 = arith.mulf %82, %80 : vector<34x34xf32>
    %84 = arith.addf %74, %83 : vector<34x34xf32>
    %c39 = arith.constant 39 : index
    %85 = memref.load %arg4[%c39] : memref<72xf32, #tpu.memory_space<smem>>
    %86 = vector.broadcast %85 : f32 to vector<34x34xf32>
    %87 = arith.mulf %86, %80 : vector<34x34xf32>
    %88 = arith.addf %78, %87 : vector<34x34xf32>
    %c0_55 = arith.constant 0 : index
    %c1_56 = arith.constant 1 : index
    %c1_57 = arith.constant 1 : index
    %89 = vector.load %arg9[%c0_55, %c1_56, %c1_57] : memref<4x36x36xf32, #tpu.memory_space<vmem>>, vector<1x34x34xf32>
    %90 = vector.shape_cast %89 : vector<1x34x34xf32> to vector<34x34xf32>
    %c4 = arith.constant 4 : index
    %91 = memref.load %arg4[%c4] : memref<72xf32, #tpu.memory_space<smem>>
    %92 = vector.broadcast %91 : f32 to vector<34x34xf32>
    %93 = arith.mulf %92, %90 : vector<34x34xf32>
    %94 = arith.addf %84, %93 : vector<34x34xf32>
    %c40 = arith.constant 40 : index
    %95 = memref.load %arg4[%c40] : memref<72xf32, #tpu.memory_space<smem>>
    %96 = vector.broadcast %95 : f32 to vector<34x34xf32>
    %97 = arith.mulf %96, %90 : vector<34x34xf32>
    %98 = arith.addf %88, %97 : vector<34x34xf32>
    %c0_58 = arith.constant 0 : index
    %c1_59 = arith.constant 1 : index
    %c2_60 = arith.constant 2 : index
    %99 = vector.load %arg9[%c0_58, %c1_59, %c2_60] : memref<4x36x36xf32, #tpu.memory_space<vmem>>, vector<1x34x34xf32>
    %100 = vector.shape_cast %99 : vector<1x34x34xf32> to vector<34x34xf32>
    %c5 = arith.constant 5 : index
    %101 = memref.load %arg4[%c5] : memref<72xf32, #tpu.memory_space<smem>>
    %102 = vector.broadcast %101 : f32 to vector<34x34xf32>
    %103 = arith.mulf %102, %100 : vector<34x34xf32>
    %104 = arith.addf %94, %103 : vector<34x34xf32>
    %c41 = arith.constant 41 : index
    %105 = memref.load %arg4[%c41] : memref<72xf32, #tpu.memory_space<smem>>
    %106 = vector.broadcast %105 : f32 to vector<34x34xf32>
    %107 = arith.mulf %106, %100 : vector<34x34xf32>
    %108 = arith.addf %98, %107 : vector<34x34xf32>
    %c0_61 = arith.constant 0 : index
    %c2_62 = arith.constant 2 : index
    %c0_63 = arith.constant 0 : index
    %109 = vector.load %arg9[%c0_61, %c2_62, %c0_63] : memref<4x36x36xf32, #tpu.memory_space<vmem>>, vector<1x34x34xf32>
    %110 = vector.shape_cast %109 : vector<1x34x34xf32> to vector<34x34xf32>
    %c6 = arith.constant 6 : index
    %111 = memref.load %arg4[%c6] : memref<72xf32, #tpu.memory_space<smem>>
    %112 = vector.broadcast %111 : f32 to vector<34x34xf32>
    %113 = arith.mulf %112, %110 : vector<34x34xf32>
    %114 = arith.addf %104, %113 : vector<34x34xf32>
    %c42 = arith.constant 42 : index
    %115 = memref.load %arg4[%c42] : memref<72xf32, #tpu.memory_space<smem>>
    %116 = vector.broadcast %115 : f32 to vector<34x34xf32>
    %117 = arith.mulf %116, %110 : vector<34x34xf32>
    %118 = arith.addf %108, %117 : vector<34x34xf32>
    %c0_64 = arith.constant 0 : index
    %c2_65 = arith.constant 2 : index
    %c1_66 = arith.constant 1 : index
    %119 = vector.load %arg9[%c0_64, %c2_65, %c1_66] : memref<4x36x36xf32, #tpu.memory_space<vmem>>, vector<1x34x34xf32>
    %120 = vector.shape_cast %119 : vector<1x34x34xf32> to vector<34x34xf32>
    %c7 = arith.constant 7 : index
    %121 = memref.load %arg4[%c7] : memref<72xf32, #tpu.memory_space<smem>>
    %122 = vector.broadcast %121 : f32 to vector<34x34xf32>
    %123 = arith.mulf %122, %120 : vector<34x34xf32>
    %124 = arith.addf %114, %123 : vector<34x34xf32>
    %c43 = arith.constant 43 : index
    %125 = memref.load %arg4[%c43] : memref<72xf32, #tpu.memory_space<smem>>
    %126 = vector.broadcast %125 : f32 to vector<34x34xf32>
    %127 = arith.mulf %126, %120 : vector<34x34xf32>
    %128 = arith.addf %118, %127 : vector<34x34xf32>
    %c0_67 = arith.constant 0 : index
    %c2_68 = arith.constant 2 : index
    %c2_69 = arith.constant 2 : index
    %129 = vector.load %arg9[%c0_67, %c2_68, %c2_69] : memref<4x36x36xf32, #tpu.memory_space<vmem>>, vector<1x34x34xf32>
    %130 = vector.shape_cast %129 : vector<1x34x34xf32> to vector<34x34xf32>
    %c8 = arith.constant 8 : index
    %131 = memref.load %arg4[%c8] : memref<72xf32, #tpu.memory_space<smem>>
    %132 = vector.broadcast %131 : f32 to vector<34x34xf32>
    %133 = arith.mulf %132, %130 : vector<34x34xf32>
    %134 = arith.addf %124, %133 : vector<34x34xf32>
    %c44 = arith.constant 44 : index
    %135 = memref.load %arg4[%c44] : memref<72xf32, #tpu.memory_space<smem>>
    %136 = vector.broadcast %135 : f32 to vector<34x34xf32>
    %137 = arith.mulf %136, %130 : vector<34x34xf32>
    %138 = arith.addf %128, %137 : vector<34x34xf32>
    %c1_70 = arith.constant 1 : index
    %c0_71 = arith.constant 0 : index
    %c0_72 = arith.constant 0 : index
    %139 = vector.load %arg9[%c1_70, %c0_71, %c0_72] : memref<4x36x36xf32, #tpu.memory_space<vmem>>, vector<1x34x34xf32>
    %140 = vector.shape_cast %139 : vector<1x34x34xf32> to vector<34x34xf32>
    %c9 = arith.constant 9 : index
    %141 = memref.load %arg4[%c9] : memref<72xf32, #tpu.memory_space<smem>>
    %142 = vector.broadcast %141 : f32 to vector<34x34xf32>
    %143 = arith.mulf %142, %140 : vector<34x34xf32>
    %144 = arith.addf %134, %143 : vector<34x34xf32>
    %c45 = arith.constant 45 : index
    %145 = memref.load %arg4[%c45] : memref<72xf32, #tpu.memory_space<smem>>
    %146 = vector.broadcast %145 : f32 to vector<34x34xf32>
    %147 = arith.mulf %146, %140 : vector<34x34xf32>
    %148 = arith.addf %138, %147 : vector<34x34xf32>
    %c1_73 = arith.constant 1 : index
    %c0_74 = arith.constant 0 : index
    %c1_75 = arith.constant 1 : index
    %149 = vector.load %arg9[%c1_73, %c0_74, %c1_75] : memref<4x36x36xf32, #tpu.memory_space<vmem>>, vector<1x34x34xf32>
    %150 = vector.shape_cast %149 : vector<1x34x34xf32> to vector<34x34xf32>
    %c10 = arith.constant 10 : index
    %151 = memref.load %arg4[%c10] : memref<72xf32, #tpu.memory_space<smem>>
    %152 = vector.broadcast %151 : f32 to vector<34x34xf32>
    %153 = arith.mulf %152, %150 : vector<34x34xf32>
    %154 = arith.addf %144, %153 : vector<34x34xf32>
    %c46 = arith.constant 46 : index
    %155 = memref.load %arg4[%c46] : memref<72xf32, #tpu.memory_space<smem>>
    %156 = vector.broadcast %155 : f32 to vector<34x34xf32>
    %157 = arith.mulf %156, %150 : vector<34x34xf32>
    %158 = arith.addf %148, %157 : vector<34x34xf32>
    %c1_76 = arith.constant 1 : index
    %c0_77 = arith.constant 0 : index
    %c2_78 = arith.constant 2 : index
    %159 = vector.load %arg9[%c1_76, %c0_77, %c2_78] : memref<4x36x36xf32, #tpu.memory_space<vmem>>, vector<1x34x34xf32>
    %160 = vector.shape_cast %159 : vector<1x34x34xf32> to vector<34x34xf32>
    %c11 = arith.constant 11 : index
    %161 = memref.load %arg4[%c11] : memref<72xf32, #tpu.memory_space<smem>>
    %162 = vector.broadcast %161 : f32 to vector<34x34xf32>
    %163 = arith.mulf %162, %160 : vector<34x34xf32>
    %164 = arith.addf %154, %163 : vector<34x34xf32>
    %c47 = arith.constant 47 : index
    %165 = memref.load %arg4[%c47] : memref<72xf32, #tpu.memory_space<smem>>
    %166 = vector.broadcast %165 : f32 to vector<34x34xf32>
    %167 = arith.mulf %166, %160 : vector<34x34xf32>
    %168 = arith.addf %158, %167 : vector<34x34xf32>
    %c1_79 = arith.constant 1 : index
    %c1_80 = arith.constant 1 : index
    %c0_81 = arith.constant 0 : index
    %169 = vector.load %arg9[%c1_79, %c1_80, %c0_81] : memref<4x36x36xf32, #tpu.memory_space<vmem>>, vector<1x34x34xf32>
    %170 = vector.shape_cast %169 : vector<1x34x34xf32> to vector<34x34xf32>
    %c12 = arith.constant 12 : index
    %171 = memref.load %arg4[%c12] : memref<72xf32, #tpu.memory_space<smem>>
    %172 = vector.broadcast %171 : f32 to vector<34x34xf32>
    %173 = arith.mulf %172, %170 : vector<34x34xf32>
    %174 = arith.addf %164, %173 : vector<34x34xf32>
    %c48 = arith.constant 48 : index
    %175 = memref.load %arg4[%c48] : memref<72xf32, #tpu.memory_space<smem>>
    %176 = vector.broadcast %175 : f32 to vector<34x34xf32>
    %177 = arith.mulf %176, %170 : vector<34x34xf32>
    %178 = arith.addf %168, %177 : vector<34x34xf32>
    %c1_82 = arith.constant 1 : index
    %c1_83 = arith.constant 1 : index
    %c1_84 = arith.constant 1 : index
    %179 = vector.load %arg9[%c1_82, %c1_83, %c1_84] : memref<4x36x36xf32, #tpu.memory_space<vmem>>, vector<1x34x34xf32>
    %180 = vector.shape_cast %179 : vector<1x34x34xf32> to vector<34x34xf32>
    %c13 = arith.constant 13 : index
    %181 = memref.load %arg4[%c13] : memref<72xf32, #tpu.memory_space<smem>>
    %182 = vector.broadcast %181 : f32 to vector<34x34xf32>
    %183 = arith.mulf %182, %180 : vector<34x34xf32>
    %184 = arith.addf %174, %183 : vector<34x34xf32>
    %c49 = arith.constant 49 : index
    %185 = memref.load %arg4[%c49] : memref<72xf32, #tpu.memory_space<smem>>
    %186 = vector.broadcast %185 : f32 to vector<34x34xf32>
    %187 = arith.mulf %186, %180 : vector<34x34xf32>
    %188 = arith.addf %178, %187 : vector<34x34xf32>
    %c1_85 = arith.constant 1 : index
    %c1_86 = arith.constant 1 : index
    %c2_87 = arith.constant 2 : index
    %189 = vector.load %arg9[%c1_85, %c1_86, %c2_87] : memref<4x36x36xf32, #tpu.memory_space<vmem>>, vector<1x34x34xf32>
    %190 = vector.shape_cast %189 : vector<1x34x34xf32> to vector<34x34xf32>
    %c14 = arith.constant 14 : index
    %191 = memref.load %arg4[%c14] : memref<72xf32, #tpu.memory_space<smem>>
    %192 = vector.broadcast %191 : f32 to vector<34x34xf32>
    %193 = arith.mulf %192, %190 : vector<34x34xf32>
    %194 = arith.addf %184, %193 : vector<34x34xf32>
    %c50 = arith.constant 50 : index
    %195 = memref.load %arg4[%c50] : memref<72xf32, #tpu.memory_space<smem>>
    %196 = vector.broadcast %195 : f32 to vector<34x34xf32>
    %197 = arith.mulf %196, %190 : vector<34x34xf32>
    %198 = arith.addf %188, %197 : vector<34x34xf32>
    %c1_88 = arith.constant 1 : index
    %c2_89 = arith.constant 2 : index
    %c0_90 = arith.constant 0 : index
    %199 = vector.load %arg9[%c1_88, %c2_89, %c0_90] : memref<4x36x36xf32, #tpu.memory_space<vmem>>, vector<1x34x34xf32>
    %200 = vector.shape_cast %199 : vector<1x34x34xf32> to vector<34x34xf32>
    %c15 = arith.constant 15 : index
    %201 = memref.load %arg4[%c15] : memref<72xf32, #tpu.memory_space<smem>>
    %202 = vector.broadcast %201 : f32 to vector<34x34xf32>
    %203 = arith.mulf %202, %200 : vector<34x34xf32>
    %204 = arith.addf %194, %203 : vector<34x34xf32>
    %c51 = arith.constant 51 : index
    %205 = memref.load %arg4[%c51] : memref<72xf32, #tpu.memory_space<smem>>
    %206 = vector.broadcast %205 : f32 to vector<34x34xf32>
    %207 = arith.mulf %206, %200 : vector<34x34xf32>
    %208 = arith.addf %198, %207 : vector<34x34xf32>
    %c1_91 = arith.constant 1 : index
    %c2_92 = arith.constant 2 : index
    %c1_93 = arith.constant 1 : index
    %209 = vector.load %arg9[%c1_91, %c2_92, %c1_93] : memref<4x36x36xf32, #tpu.memory_space<vmem>>, vector<1x34x34xf32>
    %210 = vector.shape_cast %209 : vector<1x34x34xf32> to vector<34x34xf32>
    %c16 = arith.constant 16 : index
    %211 = memref.load %arg4[%c16] : memref<72xf32, #tpu.memory_space<smem>>
    %212 = vector.broadcast %211 : f32 to vector<34x34xf32>
    %213 = arith.mulf %212, %210 : vector<34x34xf32>
    %214 = arith.addf %204, %213 : vector<34x34xf32>
    %c52 = arith.constant 52 : index
    %215 = memref.load %arg4[%c52] : memref<72xf32, #tpu.memory_space<smem>>
    %216 = vector.broadcast %215 : f32 to vector<34x34xf32>
    %217 = arith.mulf %216, %210 : vector<34x34xf32>
    %218 = arith.addf %208, %217 : vector<34x34xf32>
    %c1_94 = arith.constant 1 : index
    %c2_95 = arith.constant 2 : index
    %c2_96 = arith.constant 2 : index
    %219 = vector.load %arg9[%c1_94, %c2_95, %c2_96] : memref<4x36x36xf32, #tpu.memory_space<vmem>>, vector<1x34x34xf32>
    %220 = vector.shape_cast %219 : vector<1x34x34xf32> to vector<34x34xf32>
    %c17 = arith.constant 17 : index
    %221 = memref.load %arg4[%c17] : memref<72xf32, #tpu.memory_space<smem>>
    %222 = vector.broadcast %221 : f32 to vector<34x34xf32>
    %223 = arith.mulf %222, %220 : vector<34x34xf32>
    %224 = arith.addf %214, %223 : vector<34x34xf32>
    %c53 = arith.constant 53 : index
    %225 = memref.load %arg4[%c53] : memref<72xf32, #tpu.memory_space<smem>>
    %226 = vector.broadcast %225 : f32 to vector<34x34xf32>
    %227 = arith.mulf %226, %220 : vector<34x34xf32>
    %228 = arith.addf %218, %227 : vector<34x34xf32>
    %c2_97 = arith.constant 2 : index
    %c0_98 = arith.constant 0 : index
    %c0_99 = arith.constant 0 : index
    %229 = vector.load %arg9[%c2_97, %c0_98, %c0_99] : memref<4x36x36xf32, #tpu.memory_space<vmem>>, vector<1x34x34xf32>
    %230 = vector.shape_cast %229 : vector<1x34x34xf32> to vector<34x34xf32>
    %c18 = arith.constant 18 : index
    %231 = memref.load %arg4[%c18] : memref<72xf32, #tpu.memory_space<smem>>
    %232 = vector.broadcast %231 : f32 to vector<34x34xf32>
    %233 = arith.mulf %232, %230 : vector<34x34xf32>
    %234 = arith.addf %224, %233 : vector<34x34xf32>
    %c54 = arith.constant 54 : index
    %235 = memref.load %arg4[%c54] : memref<72xf32, #tpu.memory_space<smem>>
    %236 = vector.broadcast %235 : f32 to vector<34x34xf32>
    %237 = arith.mulf %236, %230 : vector<34x34xf32>
    %238 = arith.addf %228, %237 : vector<34x34xf32>
    %c2_100 = arith.constant 2 : index
    %c0_101 = arith.constant 0 : index
    %c1_102 = arith.constant 1 : index
    %239 = vector.load %arg9[%c2_100, %c0_101, %c1_102] : memref<4x36x36xf32, #tpu.memory_space<vmem>>, vector<1x34x34xf32>
    %240 = vector.shape_cast %239 : vector<1x34x34xf32> to vector<34x34xf32>
    %c19 = arith.constant 19 : index
    %241 = memref.load %arg4[%c19] : memref<72xf32, #tpu.memory_space<smem>>
    %242 = vector.broadcast %241 : f32 to vector<34x34xf32>
    %243 = arith.mulf %242, %240 : vector<34x34xf32>
    %244 = arith.addf %234, %243 : vector<34x34xf32>
    %c55 = arith.constant 55 : index
    %245 = memref.load %arg4[%c55] : memref<72xf32, #tpu.memory_space<smem>>
    %246 = vector.broadcast %245 : f32 to vector<34x34xf32>
    %247 = arith.mulf %246, %240 : vector<34x34xf32>
    %248 = arith.addf %238, %247 : vector<34x34xf32>
    %c2_103 = arith.constant 2 : index
    %c0_104 = arith.constant 0 : index
    %c2_105 = arith.constant 2 : index
    %249 = vector.load %arg9[%c2_103, %c0_104, %c2_105] : memref<4x36x36xf32, #tpu.memory_space<vmem>>, vector<1x34x34xf32>
    %250 = vector.shape_cast %249 : vector<1x34x34xf32> to vector<34x34xf32>
    %c20 = arith.constant 20 : index
    %251 = memref.load %arg4[%c20] : memref<72xf32, #tpu.memory_space<smem>>
    %252 = vector.broadcast %251 : f32 to vector<34x34xf32>
    %253 = arith.mulf %252, %250 : vector<34x34xf32>
    %254 = arith.addf %244, %253 : vector<34x34xf32>
    %c56 = arith.constant 56 : index
    %255 = memref.load %arg4[%c56] : memref<72xf32, #tpu.memory_space<smem>>
    %256 = vector.broadcast %255 : f32 to vector<34x34xf32>
    %257 = arith.mulf %256, %250 : vector<34x34xf32>
    %258 = arith.addf %248, %257 : vector<34x34xf32>
    %c2_106 = arith.constant 2 : index
    %c1_107 = arith.constant 1 : index
    %c0_108 = arith.constant 0 : index
    %259 = vector.load %arg9[%c2_106, %c1_107, %c0_108] : memref<4x36x36xf32, #tpu.memory_space<vmem>>, vector<1x34x34xf32>
    %260 = vector.shape_cast %259 : vector<1x34x34xf32> to vector<34x34xf32>
    %c21 = arith.constant 21 : index
    %261 = memref.load %arg4[%c21] : memref<72xf32, #tpu.memory_space<smem>>
    %262 = vector.broadcast %261 : f32 to vector<34x34xf32>
    %263 = arith.mulf %262, %260 : vector<34x34xf32>
    %264 = arith.addf %254, %263 : vector<34x34xf32>
    %c57 = arith.constant 57 : index
    %265 = memref.load %arg4[%c57] : memref<72xf32, #tpu.memory_space<smem>>
    %266 = vector.broadcast %265 : f32 to vector<34x34xf32>
    %267 = arith.mulf %266, %260 : vector<34x34xf32>
    %268 = arith.addf %258, %267 : vector<34x34xf32>
    %c2_109 = arith.constant 2 : index
    %c1_110 = arith.constant 1 : index
    %c1_111 = arith.constant 1 : index
    %269 = vector.load %arg9[%c2_109, %c1_110, %c1_111] : memref<4x36x36xf32, #tpu.memory_space<vmem>>, vector<1x34x34xf32>
    %270 = vector.shape_cast %269 : vector<1x34x34xf32> to vector<34x34xf32>
    %c22 = arith.constant 22 : index
    %271 = memref.load %arg4[%c22] : memref<72xf32, #tpu.memory_space<smem>>
    %272 = vector.broadcast %271 : f32 to vector<34x34xf32>
    %273 = arith.mulf %272, %270 : vector<34x34xf32>
    %274 = arith.addf %264, %273 : vector<34x34xf32>
    %c58 = arith.constant 58 : index
    %275 = memref.load %arg4[%c58] : memref<72xf32, #tpu.memory_space<smem>>
    %276 = vector.broadcast %275 : f32 to vector<34x34xf32>
    %277 = arith.mulf %276, %270 : vector<34x34xf32>
    %278 = arith.addf %268, %277 : vector<34x34xf32>
    %c2_112 = arith.constant 2 : index
    %c1_113 = arith.constant 1 : index
    %c2_114 = arith.constant 2 : index
    %279 = vector.load %arg9[%c2_112, %c1_113, %c2_114] : memref<4x36x36xf32, #tpu.memory_space<vmem>>, vector<1x34x34xf32>
    %280 = vector.shape_cast %279 : vector<1x34x34xf32> to vector<34x34xf32>
    %c23 = arith.constant 23 : index
    %281 = memref.load %arg4[%c23] : memref<72xf32, #tpu.memory_space<smem>>
    %282 = vector.broadcast %281 : f32 to vector<34x34xf32>
    %283 = arith.mulf %282, %280 : vector<34x34xf32>
    %284 = arith.addf %274, %283 : vector<34x34xf32>
    %c59 = arith.constant 59 : index
    %285 = memref.load %arg4[%c59] : memref<72xf32, #tpu.memory_space<smem>>
    %286 = vector.broadcast %285 : f32 to vector<34x34xf32>
    %287 = arith.mulf %286, %280 : vector<34x34xf32>
    %288 = arith.addf %278, %287 : vector<34x34xf32>
    %c2_115 = arith.constant 2 : index
    %c2_116 = arith.constant 2 : index
    %c0_117 = arith.constant 0 : index
    %289 = vector.load %arg9[%c2_115, %c2_116, %c0_117] : memref<4x36x36xf32, #tpu.memory_space<vmem>>, vector<1x34x34xf32>
    %290 = vector.shape_cast %289 : vector<1x34x34xf32> to vector<34x34xf32>
    %c24 = arith.constant 24 : index
    %291 = memref.load %arg4[%c24] : memref<72xf32, #tpu.memory_space<smem>>
    %292 = vector.broadcast %291 : f32 to vector<34x34xf32>
    %293 = arith.mulf %292, %290 : vector<34x34xf32>
    %294 = arith.addf %284, %293 : vector<34x34xf32>
    %c60 = arith.constant 60 : index
    %295 = memref.load %arg4[%c60] : memref<72xf32, #tpu.memory_space<smem>>
    %296 = vector.broadcast %295 : f32 to vector<34x34xf32>
    %297 = arith.mulf %296, %290 : vector<34x34xf32>
    %298 = arith.addf %288, %297 : vector<34x34xf32>
    %c2_118 = arith.constant 2 : index
    %c2_119 = arith.constant 2 : index
    %c1_120 = arith.constant 1 : index
    %299 = vector.load %arg9[%c2_118, %c2_119, %c1_120] : memref<4x36x36xf32, #tpu.memory_space<vmem>>, vector<1x34x34xf32>
    %300 = vector.shape_cast %299 : vector<1x34x34xf32> to vector<34x34xf32>
    %c25 = arith.constant 25 : index
    %301 = memref.load %arg4[%c25] : memref<72xf32, #tpu.memory_space<smem>>
    %302 = vector.broadcast %301 : f32 to vector<34x34xf32>
    %303 = arith.mulf %302, %300 : vector<34x34xf32>
    %304 = arith.addf %294, %303 : vector<34x34xf32>
    %c61 = arith.constant 61 : index
    %305 = memref.load %arg4[%c61] : memref<72xf32, #tpu.memory_space<smem>>
    %306 = vector.broadcast %305 : f32 to vector<34x34xf32>
    %307 = arith.mulf %306, %300 : vector<34x34xf32>
    %308 = arith.addf %298, %307 : vector<34x34xf32>
    %c2_121 = arith.constant 2 : index
    %c2_122 = arith.constant 2 : index
    %c2_123 = arith.constant 2 : index
    %309 = vector.load %arg9[%c2_121, %c2_122, %c2_123] : memref<4x36x36xf32, #tpu.memory_space<vmem>>, vector<1x34x34xf32>
    %310 = vector.shape_cast %309 : vector<1x34x34xf32> to vector<34x34xf32>
    %c26 = arith.constant 26 : index
    %311 = memref.load %arg4[%c26] : memref<72xf32, #tpu.memory_space<smem>>
    %312 = vector.broadcast %311 : f32 to vector<34x34xf32>
    %313 = arith.mulf %312, %310 : vector<34x34xf32>
    %314 = arith.addf %304, %313 : vector<34x34xf32>
    %c62 = arith.constant 62 : index
    %315 = memref.load %arg4[%c62] : memref<72xf32, #tpu.memory_space<smem>>
    %316 = vector.broadcast %315 : f32 to vector<34x34xf32>
    %317 = arith.mulf %316, %310 : vector<34x34xf32>
    %318 = arith.addf %308, %317 : vector<34x34xf32>
    %c3_124 = arith.constant 3 : index
    %c0_125 = arith.constant 0 : index
    %c0_126 = arith.constant 0 : index
    %319 = vector.load %arg9[%c3_124, %c0_125, %c0_126] : memref<4x36x36xf32, #tpu.memory_space<vmem>>, vector<1x34x34xf32>
    %320 = vector.shape_cast %319 : vector<1x34x34xf32> to vector<34x34xf32>
    %c27 = arith.constant 27 : index
    %321 = memref.load %arg4[%c27] : memref<72xf32, #tpu.memory_space<smem>>
    %322 = vector.broadcast %321 : f32 to vector<34x34xf32>
    %323 = arith.mulf %322, %320 : vector<34x34xf32>
    %324 = arith.addf %314, %323 : vector<34x34xf32>
    %c63 = arith.constant 63 : index
    %325 = memref.load %arg4[%c63] : memref<72xf32, #tpu.memory_space<smem>>
    %326 = vector.broadcast %325 : f32 to vector<34x34xf32>
    %327 = arith.mulf %326, %320 : vector<34x34xf32>
    %328 = arith.addf %318, %327 : vector<34x34xf32>
    %c3_127 = arith.constant 3 : index
    %c0_128 = arith.constant 0 : index
    %c1_129 = arith.constant 1 : index
    %329 = vector.load %arg9[%c3_127, %c0_128, %c1_129] : memref<4x36x36xf32, #tpu.memory_space<vmem>>, vector<1x34x34xf32>
    %330 = vector.shape_cast %329 : vector<1x34x34xf32> to vector<34x34xf32>
    %c28 = arith.constant 28 : index
    %331 = memref.load %arg4[%c28] : memref<72xf32, #tpu.memory_space<smem>>
    %332 = vector.broadcast %331 : f32 to vector<34x34xf32>
    %333 = arith.mulf %332, %330 : vector<34x34xf32>
    %334 = arith.addf %324, %333 : vector<34x34xf32>
    %c64 = arith.constant 64 : index
    %335 = memref.load %arg4[%c64] : memref<72xf32, #tpu.memory_space<smem>>
    %336 = vector.broadcast %335 : f32 to vector<34x34xf32>
    %337 = arith.mulf %336, %330 : vector<34x34xf32>
    %338 = arith.addf %328, %337 : vector<34x34xf32>
    %c3_130 = arith.constant 3 : index
    %c0_131 = arith.constant 0 : index
    %c2_132 = arith.constant 2 : index
    %339 = vector.load %arg9[%c3_130, %c0_131, %c2_132] : memref<4x36x36xf32, #tpu.memory_space<vmem>>, vector<1x34x34xf32>
    %340 = vector.shape_cast %339 : vector<1x34x34xf32> to vector<34x34xf32>
    %c29 = arith.constant 29 : index
    %341 = memref.load %arg4[%c29] : memref<72xf32, #tpu.memory_space<smem>>
    %342 = vector.broadcast %341 : f32 to vector<34x34xf32>
    %343 = arith.mulf %342, %340 : vector<34x34xf32>
    %344 = arith.addf %334, %343 : vector<34x34xf32>
    %c65 = arith.constant 65 : index
    %345 = memref.load %arg4[%c65] : memref<72xf32, #tpu.memory_space<smem>>
    %346 = vector.broadcast %345 : f32 to vector<34x34xf32>
    %347 = arith.mulf %346, %340 : vector<34x34xf32>
    %348 = arith.addf %338, %347 : vector<34x34xf32>
    %c3_133 = arith.constant 3 : index
    %c1_134 = arith.constant 1 : index
    %c0_135 = arith.constant 0 : index
    %349 = vector.load %arg9[%c3_133, %c1_134, %c0_135] : memref<4x36x36xf32, #tpu.memory_space<vmem>>, vector<1x34x34xf32>
    %350 = vector.shape_cast %349 : vector<1x34x34xf32> to vector<34x34xf32>
    %c30 = arith.constant 30 : index
    %351 = memref.load %arg4[%c30] : memref<72xf32, #tpu.memory_space<smem>>
    %352 = vector.broadcast %351 : f32 to vector<34x34xf32>
    %353 = arith.mulf %352, %350 : vector<34x34xf32>
    %354 = arith.addf %344, %353 : vector<34x34xf32>
    %c66 = arith.constant 66 : index
    %355 = memref.load %arg4[%c66] : memref<72xf32, #tpu.memory_space<smem>>
    %356 = vector.broadcast %355 : f32 to vector<34x34xf32>
    %357 = arith.mulf %356, %350 : vector<34x34xf32>
    %358 = arith.addf %348, %357 : vector<34x34xf32>
    %c3_136 = arith.constant 3 : index
    %c1_137 = arith.constant 1 : index
    %c1_138 = arith.constant 1 : index
    %359 = vector.load %arg9[%c3_136, %c1_137, %c1_138] : memref<4x36x36xf32, #tpu.memory_space<vmem>>, vector<1x34x34xf32>
    %360 = vector.shape_cast %359 : vector<1x34x34xf32> to vector<34x34xf32>
    %c31 = arith.constant 31 : index
    %361 = memref.load %arg4[%c31] : memref<72xf32, #tpu.memory_space<smem>>
    %362 = vector.broadcast %361 : f32 to vector<34x34xf32>
    %363 = arith.mulf %362, %360 : vector<34x34xf32>
    %364 = arith.addf %354, %363 : vector<34x34xf32>
    %c67 = arith.constant 67 : index
    %365 = memref.load %arg4[%c67] : memref<72xf32, #tpu.memory_space<smem>>
    %366 = vector.broadcast %365 : f32 to vector<34x34xf32>
    %367 = arith.mulf %366, %360 : vector<34x34xf32>
    %368 = arith.addf %358, %367 : vector<34x34xf32>
    %c3_139 = arith.constant 3 : index
    %c1_140 = arith.constant 1 : index
    %c2_141 = arith.constant 2 : index
    %369 = vector.load %arg9[%c3_139, %c1_140, %c2_141] : memref<4x36x36xf32, #tpu.memory_space<vmem>>, vector<1x34x34xf32>
    %370 = vector.shape_cast %369 : vector<1x34x34xf32> to vector<34x34xf32>
    %c32 = arith.constant 32 : index
    %371 = memref.load %arg4[%c32] : memref<72xf32, #tpu.memory_space<smem>>
    %372 = vector.broadcast %371 : f32 to vector<34x34xf32>
    %373 = arith.mulf %372, %370 : vector<34x34xf32>
    %374 = arith.addf %364, %373 : vector<34x34xf32>
    %c68 = arith.constant 68 : index
    %375 = memref.load %arg4[%c68] : memref<72xf32, #tpu.memory_space<smem>>
    %376 = vector.broadcast %375 : f32 to vector<34x34xf32>
    %377 = arith.mulf %376, %370 : vector<34x34xf32>
    %378 = arith.addf %368, %377 : vector<34x34xf32>
    %c3_142 = arith.constant 3 : index
    %c2_143 = arith.constant 2 : index
    %c0_144 = arith.constant 0 : index
    %379 = vector.load %arg9[%c3_142, %c2_143, %c0_144] : memref<4x36x36xf32, #tpu.memory_space<vmem>>, vector<1x34x34xf32>
    %380 = vector.shape_cast %379 : vector<1x34x34xf32> to vector<34x34xf32>
    %c33 = arith.constant 33 : index
    %381 = memref.load %arg4[%c33] : memref<72xf32, #tpu.memory_space<smem>>
    %382 = vector.broadcast %381 : f32 to vector<34x34xf32>
    %383 = arith.mulf %382, %380 : vector<34x34xf32>
    %384 = arith.addf %374, %383 : vector<34x34xf32>
    %c69 = arith.constant 69 : index
    %385 = memref.load %arg4[%c69] : memref<72xf32, #tpu.memory_space<smem>>
    %386 = vector.broadcast %385 : f32 to vector<34x34xf32>
    %387 = arith.mulf %386, %380 : vector<34x34xf32>
    %388 = arith.addf %378, %387 : vector<34x34xf32>
    %c3_145 = arith.constant 3 : index
    %c2_146 = arith.constant 2 : index
    %c1_147 = arith.constant 1 : index
    %389 = vector.load %arg9[%c3_145, %c2_146, %c1_147] : memref<4x36x36xf32, #tpu.memory_space<vmem>>, vector<1x34x34xf32>
    %390 = vector.shape_cast %389 : vector<1x34x34xf32> to vector<34x34xf32>
    %c34 = arith.constant 34 : index
    %391 = memref.load %arg4[%c34] : memref<72xf32, #tpu.memory_space<smem>>
    %392 = vector.broadcast %391 : f32 to vector<34x34xf32>
    %393 = arith.mulf %392, %390 : vector<34x34xf32>
    %394 = arith.addf %384, %393 : vector<34x34xf32>
    %c70 = arith.constant 70 : index
    %395 = memref.load %arg4[%c70] : memref<72xf32, #tpu.memory_space<smem>>
    %396 = vector.broadcast %395 : f32 to vector<34x34xf32>
    %397 = arith.mulf %396, %390 : vector<34x34xf32>
    %398 = arith.addf %388, %397 : vector<34x34xf32>
    %c3_148 = arith.constant 3 : index
    %c2_149 = arith.constant 2 : index
    %c2_150 = arith.constant 2 : index
    %399 = vector.load %arg9[%c3_148, %c2_149, %c2_150] : memref<4x36x36xf32, #tpu.memory_space<vmem>>, vector<1x34x34xf32>
    %400 = vector.shape_cast %399 : vector<1x34x34xf32> to vector<34x34xf32>
    %c35 = arith.constant 35 : index
    %401 = memref.load %arg4[%c35] : memref<72xf32, #tpu.memory_space<smem>>
    %402 = vector.broadcast %401 : f32 to vector<34x34xf32>
    %403 = arith.mulf %402, %400 : vector<34x34xf32>
    %404 = arith.addf %394, %403 : vector<34x34xf32>
    %c71 = arith.constant 71 : index
    %405 = memref.load %arg4[%c71] : memref<72xf32, #tpu.memory_space<smem>>
    %406 = vector.broadcast %405 : f32 to vector<34x34xf32>
    %407 = arith.mulf %406, %400 : vector<34x34xf32>
    %408 = arith.addf %398, %407 : vector<34x34xf32>
    %cst_151 = arith.constant 0.000000e+00 : f32
    %409 = vector.broadcast %cst_151 : f32 to vector<34x34xf32>
    %410 = arith.maximumf %404, %409 : vector<34x34xf32>
    %411 = arith.mulf %410, %44 : vector<34x34xf32>
    %c0_152 = arith.constant 0 : index
    %c0_153 = arith.constant 0 : index
    %c0_154 = arith.constant 0 : index
    %412 = vector.load %arg10[%c0_152, %c0_153, %c0_154] : memref<2x34x34xf32, #tpu.memory_space<vmem>>, vector<1x34x34xf32>
    %413 = vector.shape_cast %412 : vector<1x34x34xf32> to vector<34x34xf32>
    %414 = vector.shape_cast %411 : vector<34x34xf32> to vector<1x34x34xf32>
    tpu.vector_store %arg10[%c0_152, %c0_153, %c0_154], %414 {strides = array<i32>} : memref<2x34x34xf32, #tpu.memory_space<vmem>>, vector<1x34x34xf32>,
    %cst_155 = arith.constant 0.000000e+00 : f32
    %415 = vector.broadcast %cst_155 : f32 to vector<34x34xf32>
    %416 = arith.maximumf %408, %415 : vector<34x34xf32>
    %417 = arith.mulf %416, %44 : vector<34x34xf32>
    %c1_156 = arith.constant 1 : index
    %c0_157 = arith.constant 0 : index
    %c0_158 = arith.constant 0 : index
    %418 = vector.load %arg10[%c1_156, %c0_157, %c0_158] : memref<2x34x34xf32, #tpu.memory_space<vmem>>, vector<1x34x34xf32>
    %419 = vector.shape_cast %418 : vector<1x34x34xf32> to vector<34x34xf32>
    %420 = vector.shape_cast %417 : vector<34x34xf32> to vector<1x34x34xf32>
    tpu.vector_store %arg10[%c1_156, %c0_157, %c0_158], %420 {strides = array<i32>} : memref<2x34x34xf32, #tpu.memory_space<vmem>>, vector<1x34x34xf32>,
    %c0_159 = arith.constant 0 : index
    %421 = memref.load %arg7[%c0_159] : memref<3xf32, #tpu.memory_space<smem>>
    %422 = vector.broadcast %421 : f32 to vector<32x32xf32>
    %c1_160 = arith.constant 1 : index
    %423 = memref.load %arg7[%c1_160] : memref<3xf32, #tpu.memory_space<smem>>
    %424 = vector.broadcast %423 : f32 to vector<32x32xf32>
    %c2_161 = arith.constant 2 : index
    %425 = memref.load %arg7[%c2_161] : memref<3xf32, #tpu.memory_space<smem>>
    %426 = vector.broadcast %425 : f32 to vector<32x32xf32>
    %c0_162 = arith.constant 0 : index
    %c0_163 = arith.constant 0 : index
    %c0_164 = arith.constant 0 : index
    %427 = vector.load %arg10[%c0_162, %c0_163, %c0_164] : memref<2x34x34xf32, #tpu.memory_space<vmem>>, vector<1x32x32xf32>
    %428 = vector.shape_cast %427 : vector<1x32x32xf32> to vector<32x32xf32>
    %c0_165 = arith.constant 0 : index
    %429 = memref.load %arg6[%c0_165] : memref<54xf32, #tpu.memory_space<smem>>
    %430 = vector.broadcast %429 : f32 to vector<32x32xf32>
    %431 = arith.mulf %430, %428 : vector<32x32xf32>
    %432 = arith.addf %422, %431 : vector<32x32xf32>
    %c18_166 = arith.constant 18 : index
    %433 = memref.load %arg6[%c18_166] : memref<54xf32, #tpu.memory_space<smem>>
    %434 = vector.broadcast %433 : f32 to vector<32x32xf32>
    %435 = arith.mulf %434, %428 : vector<32x32xf32>
    %436 = arith.addf %424, %435 : vector<32x32xf32>
    %c36_167 = arith.constant 36 : index
    %437 = memref.load %arg6[%c36_167] : memref<54xf32, #tpu.memory_space<smem>>
    %438 = vector.broadcast %437 : f32 to vector<32x32xf32>
    %439 = arith.mulf %438, %428 : vector<32x32xf32>
    %440 = arith.addf %426, %439 : vector<32x32xf32>
    %c0_168 = arith.constant 0 : index
    %c0_169 = arith.constant 0 : index
    %c1_170 = arith.constant 1 : index
    %441 = vector.load %arg10[%c0_168, %c0_169, %c1_170] : memref<2x34x34xf32, #tpu.memory_space<vmem>>, vector<1x32x32xf32>
    %442 = vector.shape_cast %441 : vector<1x32x32xf32> to vector<32x32xf32>
    %c1_171 = arith.constant 1 : index
    %443 = memref.load %arg6[%c1_171] : memref<54xf32, #tpu.memory_space<smem>>
    %444 = vector.broadcast %443 : f32 to vector<32x32xf32>
    %445 = arith.mulf %444, %442 : vector<32x32xf32>
    %446 = arith.addf %432, %445 : vector<32x32xf32>
    %c19_172 = arith.constant 19 : index
    %447 = memref.load %arg6[%c19_172] : memref<54xf32, #tpu.memory_space<smem>>
    %448 = vector.broadcast %447 : f32 to vector<32x32xf32>
    %449 = arith.mulf %448, %442 : vector<32x32xf32>
    %450 = arith.addf %436, %449 : vector<32x32xf32>
    %c37_173 = arith.constant 37 : index
    %451 = memref.load %arg6[%c37_173] : memref<54xf32, #tpu.memory_space<smem>>
    %452 = vector.broadcast %451 : f32 to vector<32x32xf32>
    %453 = arith.mulf %452, %442 : vector<32x32xf32>
    %454 = arith.addf %440, %453 : vector<32x32xf32>
    %c0_174 = arith.constant 0 : index
    %c0_175 = arith.constant 0 : index
    %c2_176 = arith.constant 2 : index
    %455 = vector.load %arg10[%c0_174, %c0_175, %c2_176] : memref<2x34x34xf32, #tpu.memory_space<vmem>>, vector<1x32x32xf32>
    %456 = vector.shape_cast %455 : vector<1x32x32xf32> to vector<32x32xf32>
    %c2_177 = arith.constant 2 : index
    %457 = memref.load %arg6[%c2_177] : memref<54xf32, #tpu.memory_space<smem>>
    %458 = vector.broadcast %457 : f32 to vector<32x32xf32>
    %459 = arith.mulf %458, %456 : vector<32x32xf32>
    %460 = arith.addf %446, %459 : vector<32x32xf32>
    %c20_178 = arith.constant 20 : index
    %461 = memref.load %arg6[%c20_178] : memref<54xf32, #tpu.memory_space<smem>>
    %462 = vector.broadcast %461 : f32 to vector<32x32xf32>
    %463 = arith.mulf %462, %456 : vector<32x32xf32>
    %464 = arith.addf %450, %463 : vector<32x32xf32>
    %c38_179 = arith.constant 38 : index
    %465 = memref.load %arg6[%c38_179] : memref<54xf32, #tpu.memory_space<smem>>
    %466 = vector.broadcast %465 : f32 to vector<32x32xf32>
    %467 = arith.mulf %466, %456 : vector<32x32xf32>
    %468 = arith.addf %454, %467 : vector<32x32xf32>
    %c0_180 = arith.constant 0 : index
    %c1_181 = arith.constant 1 : index
    %c0_182 = arith.constant 0 : index
    %469 = vector.load %arg10[%c0_180, %c1_181, %c0_182] : memref<2x34x34xf32, #tpu.memory_space<vmem>>, vector<1x32x32xf32>
    %470 = vector.shape_cast %469 : vector<1x32x32xf32> to vector<32x32xf32>
    %c3_183 = arith.constant 3 : index
    %471 = memref.load %arg6[%c3_183] : memref<54xf32, #tpu.memory_space<smem>>
    %472 = vector.broadcast %471 : f32 to vector<32x32xf32>
    %473 = arith.mulf %472, %470 : vector<32x32xf32>
    %474 = arith.addf %460, %473 : vector<32x32xf32>
    %c21_184 = arith.constant 21 : index
    %475 = memref.load %arg6[%c21_184] : memref<54xf32, #tpu.memory_space<smem>>
    %476 = vector.broadcast %475 : f32 to vector<32x32xf32>
    %477 = arith.mulf %476, %470 : vector<32x32xf32>
    %478 = arith.addf %464, %477 : vector<32x32xf32>
    %c39_185 = arith.constant 39 : index
    %479 = memref.load %arg6[%c39_185] : memref<54xf32, #tpu.memory_space<smem>>
    %480 = vector.broadcast %479 : f32 to vector<32x32xf32>
    %481 = arith.mulf %480, %470 : vector<32x32xf32>
    %482 = arith.addf %468, %481 : vector<32x32xf32>
    %c0_186 = arith.constant 0 : index
    %c1_187 = arith.constant 1 : index
    %c1_188 = arith.constant 1 : index
    %483 = vector.load %arg10[%c0_186, %c1_187, %c1_188] : memref<2x34x34xf32, #tpu.memory_space<vmem>>, vector<1x32x32xf32>
    %484 = vector.shape_cast %483 : vector<1x32x32xf32> to vector<32x32xf32>
    %c4_189 = arith.constant 4 : index
    %485 = memref.load %arg6[%c4_189] : memref<54xf32, #tpu.memory_space<smem>>
    %486 = vector.broadcast %485 : f32 to vector<32x32xf32>
    %487 = arith.mulf %486, %484 : vector<32x32xf32>
    %488 = arith.addf %474, %487 : vector<32x32xf32>
    %c22_190 = arith.constant 22 : index
    %489 = memref.load %arg6[%c22_190] : memref<54xf32, #tpu.memory_space<smem>>
    %490 = vector.broadcast %489 : f32 to vector<32x32xf32>
    %491 = arith.mulf %490, %484 : vector<32x32xf32>
    %492 = arith.addf %478, %491 : vector<32x32xf32>
    %c40_191 = arith.constant 40 : index
    %493 = memref.load %arg6[%c40_191] : memref<54xf32, #tpu.memory_space<smem>>
    %494 = vector.broadcast %493 : f32 to vector<32x32xf32>
    %495 = arith.mulf %494, %484 : vector<32x32xf32>
    %496 = arith.addf %482, %495 : vector<32x32xf32>
    %c0_192 = arith.constant 0 : index
    %c1_193 = arith.constant 1 : index
    %c2_194 = arith.constant 2 : index
    %497 = vector.load %arg10[%c0_192, %c1_193, %c2_194] : memref<2x34x34xf32, #tpu.memory_space<vmem>>, vector<1x32x32xf32>
    %498 = vector.shape_cast %497 : vector<1x32x32xf32> to vector<32x32xf32>
    %c5_195 = arith.constant 5 : index
    %499 = memref.load %arg6[%c5_195] : memref<54xf32, #tpu.memory_space<smem>>
    %500 = vector.broadcast %499 : f32 to vector<32x32xf32>
    %501 = arith.mulf %500, %498 : vector<32x32xf32>
    %502 = arith.addf %488, %501 : vector<32x32xf32>
    %c23_196 = arith.constant 23 : index
    %503 = memref.load %arg6[%c23_196] : memref<54xf32, #tpu.memory_space<smem>>
    %504 = vector.broadcast %503 : f32 to vector<32x32xf32>
    %505 = arith.mulf %504, %498 : vector<32x32xf32>
    %506 = arith.addf %492, %505 : vector<32x32xf32>
    %c41_197 = arith.constant 41 : index
    %507 = memref.load %arg6[%c41_197] : memref<54xf32, #tpu.memory_space<smem>>
    %508 = vector.broadcast %507 : f32 to vector<32x32xf32>
    %509 = arith.mulf %508, %498 : vector<32x32xf32>
    %510 = arith.addf %496, %509 : vector<32x32xf32>
    %c0_198 = arith.constant 0 : index
    %c2_199 = arith.constant 2 : index
    %c0_200 = arith.constant 0 : index
    %511 = vector.load %arg10[%c0_198, %c2_199, %c0_200] : memref<2x34x34xf32, #tpu.memory_space<vmem>>, vector<1x32x32xf32>
    %512 = vector.shape_cast %511 : vector<1x32x32xf32> to vector<32x32xf32>
    %c6_201 = arith.constant 6 : index
    %513 = memref.load %arg6[%c6_201] : memref<54xf32, #tpu.memory_space<smem>>
    %514 = vector.broadcast %513 : f32 to vector<32x32xf32>
    %515 = arith.mulf %514, %512 : vector<32x32xf32>
    %516 = arith.addf %502, %515 : vector<32x32xf32>
    %c24_202 = arith.constant 24 : index
    %517 = memref.load %arg6[%c24_202] : memref<54xf32, #tpu.memory_space<smem>>
    %518 = vector.broadcast %517 : f32 to vector<32x32xf32>
    %519 = arith.mulf %518, %512 : vector<32x32xf32>
    %520 = arith.addf %506, %519 : vector<32x32xf32>
    %c42_203 = arith.constant 42 : index
    %521 = memref.load %arg6[%c42_203] : memref<54xf32, #tpu.memory_space<smem>>
    %522 = vector.broadcast %521 : f32 to vector<32x32xf32>
    %523 = arith.mulf %522, %512 : vector<32x32xf32>
    %524 = arith.addf %510, %523 : vector<32x32xf32>
    %c0_204 = arith.constant 0 : index
    %c2_205 = arith.constant 2 : index
    %c1_206 = arith.constant 1 : index
    %525 = vector.load %arg10[%c0_204, %c2_205, %c1_206] : memref<2x34x34xf32, #tpu.memory_space<vmem>>, vector<1x32x32xf32>
    %526 = vector.shape_cast %525 : vector<1x32x32xf32> to vector<32x32xf32>
    %c7_207 = arith.constant 7 : index
    %527 = memref.load %arg6[%c7_207] : memref<54xf32, #tpu.memory_space<smem>>
    %528 = vector.broadcast %527 : f32 to vector<32x32xf32>
    %529 = arith.mulf %528, %526 : vector<32x32xf32>
    %530 = arith.addf %516, %529 : vector<32x32xf32>
    %c25_208 = arith.constant 25 : index
    %531 = memref.load %arg6[%c25_208] : memref<54xf32, #tpu.memory_space<smem>>
    %532 = vector.broadcast %531 : f32 to vector<32x32xf32>
    %533 = arith.mulf %532, %526 : vector<32x32xf32>
    %534 = arith.addf %520, %533 : vector<32x32xf32>
    %c43_209 = arith.constant 43 : index
    %535 = memref.load %arg6[%c43_209] : memref<54xf32, #tpu.memory_space<smem>>
    %536 = vector.broadcast %535 : f32 to vector<32x32xf32>
    %537 = arith.mulf %536, %526 : vector<32x32xf32>
    %538 = arith.addf %524, %537 : vector<32x32xf32>
    %c0_210 = arith.constant 0 : index
    %c2_211 = arith.constant 2 : index
    %c2_212 = arith.constant 2 : index
    %539 = vector.load %arg10[%c0_210, %c2_211, %c2_212] : memref<2x34x34xf32, #tpu.memory_space<vmem>>, vector<1x32x32xf32>
    %540 = vector.shape_cast %539 : vector<1x32x32xf32> to vector<32x32xf32>
    %c8_213 = arith.constant 8 : index
    %541 = memref.load %arg6[%c8_213] : memref<54xf32, #tpu.memory_space<smem>>
    %542 = vector.broadcast %541 : f32 to vector<32x32xf32>
    %543 = arith.mulf %542, %540 : vector<32x32xf32>
    %544 = arith.addf %530, %543 : vector<32x32xf32>
    %c26_214 = arith.constant 26 : index
    %545 = memref.load %arg6[%c26_214] : memref<54xf32, #tpu.memory_space<smem>>
    %546 = vector.broadcast %545 : f32 to vector<32x32xf32>
    %547 = arith.mulf %546, %540 : vector<32x32xf32>
    %548 = arith.addf %534, %547 : vector<32x32xf32>
    %c44_215 = arith.constant 44 : index
    %549 = memref.load %arg6[%c44_215] : memref<54xf32, #tpu.memory_space<smem>>
    %550 = vector.broadcast %549 : f32 to vector<32x32xf32>
    %551 = arith.mulf %550, %540 : vector<32x32xf32>
    %552 = arith.addf %538, %551 : vector<32x32xf32>
    %c1_216 = arith.constant 1 : index
    %c0_217 = arith.constant 0 : index
    %c0_218 = arith.constant 0 : index
    %553 = vector.load %arg10[%c1_216, %c0_217, %c0_218] : memref<2x34x34xf32, #tpu.memory_space<vmem>>, vector<1x32x32xf32>
    %554 = vector.shape_cast %553 : vector<1x32x32xf32> to vector<32x32xf32>
    %c9_219 = arith.constant 9 : index
    %555 = memref.load %arg6[%c9_219] : memref<54xf32, #tpu.memory_space<smem>>
    %556 = vector.broadcast %555 : f32 to vector<32x32xf32>
    %557 = arith.mulf %556, %554 : vector<32x32xf32>
    %558 = arith.addf %544, %557 : vector<32x32xf32>
    %c27_220 = arith.constant 27 : index
    %559 = memref.load %arg6[%c27_220] : memref<54xf32, #tpu.memory_space<smem>>
    %560 = vector.broadcast %559 : f32 to vector<32x32xf32>
    %561 = arith.mulf %560, %554 : vector<32x32xf32>
    %562 = arith.addf %548, %561 : vector<32x32xf32>
    %c45_221 = arith.constant 45 : index
    %563 = memref.load %arg6[%c45_221] : memref<54xf32, #tpu.memory_space<smem>>
    %564 = vector.broadcast %563 : f32 to vector<32x32xf32>
    %565 = arith.mulf %564, %554 : vector<32x32xf32>
    %566 = arith.addf %552, %565 : vector<32x32xf32>
    %c1_222 = arith.constant 1 : index
    %c0_223 = arith.constant 0 : index
    %c1_224 = arith.constant 1 : index
    %567 = vector.load %arg10[%c1_222, %c0_223, %c1_224] : memref<2x34x34xf32, #tpu.memory_space<vmem>>, vector<1x32x32xf32>
    %568 = vector.shape_cast %567 : vector<1x32x32xf32> to vector<32x32xf32>
    %c10_225 = arith.constant 10 : index
    %569 = memref.load %arg6[%c10_225] : memref<54xf32, #tpu.memory_space<smem>>
    %570 = vector.broadcast %569 : f32 to vector<32x32xf32>
    %571 = arith.mulf %570, %568 : vector<32x32xf32>
    %572 = arith.addf %558, %571 : vector<32x32xf32>
    %c28_226 = arith.constant 28 : index
    %573 = memref.load %arg6[%c28_226] : memref<54xf32, #tpu.memory_space<smem>>
    %574 = vector.broadcast %573 : f32 to vector<32x32xf32>
    %575 = arith.mulf %574, %568 : vector<32x32xf32>
    %576 = arith.addf %562, %575 : vector<32x32xf32>
    %c46_227 = arith.constant 46 : index
    %577 = memref.load %arg6[%c46_227] : memref<54xf32, #tpu.memory_space<smem>>
    %578 = vector.broadcast %577 : f32 to vector<32x32xf32>
    %579 = arith.mulf %578, %568 : vector<32x32xf32>
    %580 = arith.addf %566, %579 : vector<32x32xf32>
    %c1_228 = arith.constant 1 : index
    %c0_229 = arith.constant 0 : index
    %c2_230 = arith.constant 2 : index
    %581 = vector.load %arg10[%c1_228, %c0_229, %c2_230] : memref<2x34x34xf32, #tpu.memory_space<vmem>>, vector<1x32x32xf32>
    %582 = vector.shape_cast %581 : vector<1x32x32xf32> to vector<32x32xf32>
    %c11_231 = arith.constant 11 : index
    %583 = memref.load %arg6[%c11_231] : memref<54xf32, #tpu.memory_space<smem>>
    %584 = vector.broadcast %583 : f32 to vector<32x32xf32>
    %585 = arith.mulf %584, %582 : vector<32x32xf32>
    %586 = arith.addf %572, %585 : vector<32x32xf32>
    %c29_232 = arith.constant 29 : index
    %587 = memref.load %arg6[%c29_232] : memref<54xf32, #tpu.memory_space<smem>>
    %588 = vector.broadcast %587 : f32 to vector<32x32xf32>
    %589 = arith.mulf %588, %582 : vector<32x32xf32>
    %590 = arith.addf %576, %589 : vector<32x32xf32>
    %c47_233 = arith.constant 47 : index
    %591 = memref.load %arg6[%c47_233] : memref<54xf32, #tpu.memory_space<smem>>
    %592 = vector.broadcast %591 : f32 to vector<32x32xf32>
    %593 = arith.mulf %592, %582 : vector<32x32xf32>
    %594 = arith.addf %580, %593 : vector<32x32xf32>
    %c1_234 = arith.constant 1 : index
    %c1_235 = arith.constant 1 : index
    %c0_236 = arith.constant 0 : index
    %595 = vector.load %arg10[%c1_234, %c1_235, %c0_236] : memref<2x34x34xf32, #tpu.memory_space<vmem>>, vector<1x32x32xf32>
    %596 = vector.shape_cast %595 : vector<1x32x32xf32> to vector<32x32xf32>
    %c12_237 = arith.constant 12 : index
    %597 = memref.load %arg6[%c12_237] : memref<54xf32, #tpu.memory_space<smem>>
    %598 = vector.broadcast %597 : f32 to vector<32x32xf32>
    %599 = arith.mulf %598, %596 : vector<32x32xf32>
    %600 = arith.addf %586, %599 : vector<32x32xf32>
    %c30_238 = arith.constant 30 : index
    %601 = memref.load %arg6[%c30_238] : memref<54xf32, #tpu.memory_space<smem>>
    %602 = vector.broadcast %601 : f32 to vector<32x32xf32>
    %603 = arith.mulf %602, %596 : vector<32x32xf32>
    %604 = arith.addf %590, %603 : vector<32x32xf32>
    %c48_239 = arith.constant 48 : index
    %605 = memref.load %arg6[%c48_239] : memref<54xf32, #tpu.memory_space<smem>>
    %606 = vector.broadcast %605 : f32 to vector<32x32xf32>
    %607 = arith.mulf %606, %596 : vector<32x32xf32>
    %608 = arith.addf %594, %607 : vector<32x32xf32>
    %c1_240 = arith.constant 1 : index
    %c1_241 = arith.constant 1 : index
    %c1_242 = arith.constant 1 : index
    %609 = vector.load %arg10[%c1_240, %c1_241, %c1_242] : memref<2x34x34xf32, #tpu.memory_space<vmem>>, vector<1x32x32xf32>
    %610 = vector.shape_cast %609 : vector<1x32x32xf32> to vector<32x32xf32>
    %c13_243 = arith.constant 13 : index
    %611 = memref.load %arg6[%c13_243] : memref<54xf32, #tpu.memory_space<smem>>
    %612 = vector.broadcast %611 : f32 to vector<32x32xf32>
    %613 = arith.mulf %612, %610 : vector<32x32xf32>
    %614 = arith.addf %600, %613 : vector<32x32xf32>
    %c31_244 = arith.constant 31 : index
    %615 = memref.load %arg6[%c31_244] : memref<54xf32, #tpu.memory_space<smem>>
    %616 = vector.broadcast %615 : f32 to vector<32x32xf32>
    %617 = arith.mulf %616, %610 : vector<32x32xf32>
    %618 = arith.addf %604, %617 : vector<32x32xf32>
    %c49_245 = arith.constant 49 : index
    %619 = memref.load %arg6[%c49_245] : memref<54xf32, #tpu.memory_space<smem>>
    %620 = vector.broadcast %619 : f32 to vector<32x32xf32>
    %621 = arith.mulf %620, %610 : vector<32x32xf32>
    %622 = arith.addf %608, %621 : vector<32x32xf32>
    %c1_246 = arith.constant 1 : index
    %c1_247 = arith.constant 1 : index
    %c2_248 = arith.constant 2 : index
    %623 = vector.load %arg10[%c1_246, %c1_247, %c2_248] : memref<2x34x34xf32, #tpu.memory_space<vmem>>, vector<1x32x32xf32>
    %624 = vector.shape_cast %623 : vector<1x32x32xf32> to vector<32x32xf32>
    %c14_249 = arith.constant 14 : index
    %625 = memref.load %arg6[%c14_249] : memref<54xf32, #tpu.memory_space<smem>>
    %626 = vector.broadcast %625 : f32 to vector<32x32xf32>
    %627 = arith.mulf %626, %624 : vector<32x32xf32>
    %628 = arith.addf %614, %627 : vector<32x32xf32>
    %c32_250 = arith.constant 32 : index
    %629 = memref.load %arg6[%c32_250] : memref<54xf32, #tpu.memory_space<smem>>
    %630 = vector.broadcast %629 : f32 to vector<32x32xf32>
    %631 = arith.mulf %630, %624 : vector<32x32xf32>
    %632 = arith.addf %618, %631 : vector<32x32xf32>
    %c50_251 = arith.constant 50 : index
    %633 = memref.load %arg6[%c50_251] : memref<54xf32, #tpu.memory_space<smem>>
    %634 = vector.broadcast %633 : f32 to vector<32x32xf32>
    %635 = arith.mulf %634, %624 : vector<32x32xf32>
    %636 = arith.addf %622, %635 : vector<32x32xf32>
    %c1_252 = arith.constant 1 : index
    %c2_253 = arith.constant 2 : index
    %c0_254 = arith.constant 0 : index
    %637 = vector.load %arg10[%c1_252, %c2_253, %c0_254] : memref<2x34x34xf32, #tpu.memory_space<vmem>>, vector<1x32x32xf32>
    %638 = vector.shape_cast %637 : vector<1x32x32xf32> to vector<32x32xf32>
    %c15_255 = arith.constant 15 : index
    %639 = memref.load %arg6[%c15_255] : memref<54xf32, #tpu.memory_space<smem>>
    %640 = vector.broadcast %639 : f32 to vector<32x32xf32>
    %641 = arith.mulf %640, %638 : vector<32x32xf32>
    %642 = arith.addf %628, %641 : vector<32x32xf32>
    %c33_256 = arith.constant 33 : index
    %643 = memref.load %arg6[%c33_256] : memref<54xf32, #tpu.memory_space<smem>>
    %644 = vector.broadcast %643 : f32 to vector<32x32xf32>
    %645 = arith.mulf %644, %638 : vector<32x32xf32>
    %646 = arith.addf %632, %645 : vector<32x32xf32>
    %c51_257 = arith.constant 51 : index
    %647 = memref.load %arg6[%c51_257] : memref<54xf32, #tpu.memory_space<smem>>
    %648 = vector.broadcast %647 : f32 to vector<32x32xf32>
    %649 = arith.mulf %648, %638 : vector<32x32xf32>
    %650 = arith.addf %636, %649 : vector<32x32xf32>
    %c1_258 = arith.constant 1 : index
    %c2_259 = arith.constant 2 : index
    %c1_260 = arith.constant 1 : index
    %651 = vector.load %arg10[%c1_258, %c2_259, %c1_260] : memref<2x34x34xf32, #tpu.memory_space<vmem>>, vector<1x32x32xf32>
    %652 = vector.shape_cast %651 : vector<1x32x32xf32> to vector<32x32xf32>
    %c16_261 = arith.constant 16 : index
    %653 = memref.load %arg6[%c16_261] : memref<54xf32, #tpu.memory_space<smem>>
    %654 = vector.broadcast %653 : f32 to vector<32x32xf32>
    %655 = arith.mulf %654, %652 : vector<32x32xf32>
    %656 = arith.addf %642, %655 : vector<32x32xf32>
    %c34_262 = arith.constant 34 : index
    %657 = memref.load %arg6[%c34_262] : memref<54xf32, #tpu.memory_space<smem>>
    %658 = vector.broadcast %657 : f32 to vector<32x32xf32>
    %659 = arith.mulf %658, %652 : vector<32x32xf32>
    %660 = arith.addf %646, %659 : vector<32x32xf32>
    %c52_263 = arith.constant 52 : index
    %661 = memref.load %arg6[%c52_263] : memref<54xf32, #tpu.memory_space<smem>>
    %662 = vector.broadcast %661 : f32 to vector<32x32xf32>
    %663 = arith.mulf %662, %652 : vector<32x32xf32>
    %664 = arith.addf %650, %663 : vector<32x32xf32>
    %c1_264 = arith.constant 1 : index
    %c2_265 = arith.constant 2 : index
    %c2_266 = arith.constant 2 : index
    %665 = vector.load %arg10[%c1_264, %c2_265, %c2_266] : memref<2x34x34xf32, #tpu.memory_space<vmem>>, vector<1x32x32xf32>
    %666 = vector.shape_cast %665 : vector<1x32x32xf32> to vector<32x32xf32>
    %c17_267 = arith.constant 17 : index
    %667 = memref.load %arg6[%c17_267] : memref<54xf32, #tpu.memory_space<smem>>
    %668 = vector.broadcast %667 : f32 to vector<32x32xf32>
    %669 = arith.mulf %668, %666 : vector<32x32xf32>
    %670 = arith.addf %656, %669 : vector<32x32xf32>
    %c35_268 = arith.constant 35 : index
    %671 = memref.load %arg6[%c35_268] : memref<54xf32, #tpu.memory_space<smem>>
    %672 = vector.broadcast %671 : f32 to vector<32x32xf32>
    %673 = arith.mulf %672, %666 : vector<32x32xf32>
    %674 = arith.addf %660, %673 : vector<32x32xf32>
    %c53_269 = arith.constant 53 : index
    %675 = memref.load %arg6[%c53_269] : memref<54xf32, #tpu.memory_space<smem>>
    %676 = vector.broadcast %675 : f32 to vector<32x32xf32>
    %677 = arith.mulf %676, %666 : vector<32x32xf32>
    %678 = arith.addf %664, %677 : vector<32x32xf32>
    %cst_270 = arith.constant 0.000000e+00 : f32
    %679 = vector.broadcast %cst_270 : f32 to vector<32x32xf32>
    %680 = arith.maximumf %670, %679 : vector<32x32xf32>
    %c0_271 = arith.constant 0 : index
    %c0_272 = arith.constant 0 : index
    %c0_273 = arith.constant 0 : index
    %c0_274 = arith.constant 0 : index
    %681 = vector.load %arg8[%c0_271, %c0_272, %c0_273, %c0_274] : memref<1x3x32x32xf32, #tpu.memory_space<vmem>>, vector<1x1x32x32xf32>
    %682 = vector.shape_cast %681 : vector<1x1x32x32xf32> to vector<32x32xf32>
    %683 = vector.shape_cast %680 : vector<32x32xf32> to vector<1x1x32x32xf32>
    tpu.vector_store %arg8[%c0_271, %c0_272, %c0_273, %c0_274], %683 {strides = array<i32>} : memref<1x3x32x32xf32, #tpu.memory_space<vmem>>, vector<1x1x32x32xf32>,
    %cst_275 = arith.constant 0.000000e+00 : f32
    %684 = vector.broadcast %cst_275 : f32 to vector<32x32xf32>
    %685 = arith.maximumf %674, %684 : vector<32x32xf32>
    %c0_276 = arith.constant 0 : index
    %c1_277 = arith.constant 1 : index
    %c0_278 = arith.constant 0 : index
    %c0_279 = arith.constant 0 : index
    %686 = vector.load %arg8[%c0_276, %c1_277, %c0_278, %c0_279] : memref<1x3x32x32xf32, #tpu.memory_space<vmem>>, vector<1x1x32x32xf32>
    %687 = vector.shape_cast %686 : vector<1x1x32x32xf32> to vector<32x32xf32>
    %688 = vector.shape_cast %685 : vector<32x32xf32> to vector<1x1x32x32xf32>
    tpu.vector_store %arg8[%c0_276, %c1_277, %c0_278, %c0_279], %688 {strides = array<i32>} : memref<1x3x32x32xf32, #tpu.memory_space<vmem>>, vector<1x1x32x32xf32>,
    %cst_280 = arith.constant 0.000000e+00 : f32
    %689 = vector.broadcast %cst_280 : f32 to vector<32x32xf32>
    %690 = arith.maximumf %678, %689 : vector<32x32xf32>
    %c0_281 = arith.constant 0 : index
    %c2_282 = arith.constant 2 : index
    %c0_283 = arith.constant 0 : index
    %c0_284 = arith.constant 0 : index
    %691 = vector.load %arg8[%c0_281, %c2_282, %c0_283, %c0_284] : memref<1x3x32x32xf32, #tpu.memory_space<vmem>>, vector<1x1x32x32xf32>
    %692 = vector.shape_cast %691 : vector<1x1x32x32xf32> to vector<32x32xf32>
    %693 = vector.shape_cast %690 : vector<32x32xf32> to vector<1x1x32x32xf32>
    tpu.vector_store %arg8[%c0_281, %c2_282, %c0_283, %c0_284], %693 {strides = array<i32>} : memref<1x3x32x32xf32, #tpu.memory_space<vmem>>, vector<1x1x32x32xf32>,
    return
  }
  func.func @transform_0(%arg0: i32) -> (i32, i32, i32, i32) {
    %c0_i32 = arith.constant 0 : i32
    %c0_i32_0 = arith.constant 0 : i32
    %c0_i32_1 = arith.constant 0 : i32
    %c0_i32_2 = arith.constant 0 : i32
    return %arg0, %c0_i32, %c0_i32_0, %c0_i32_1 : i32, i32, i32, i32
  }
  func.func @transform_1(%arg0: i32) -> (i32, i32) {
    %c0_i32 = arith.constant 0 : i32
    %c0_i32_0 = arith.constant 0 : i32
    %c0_i32_1 = arith.constant 0 : i32
    return %c0_i32, %c0_i32_0 : i32, i32
  }
  func.func @transform_2(%arg0: i32) -> (i32, i32) {
    %c0_i32 = arith.constant 0 : i32
    %c0_i32_0 = arith.constant 0 : i32
    %c0_i32_1 = arith.constant 0 : i32
    return %c0_i32, %c0_i32_0 : i32, i32
  }
  func.func @transform_3(%arg0: i32) -> i32 {
    %c0_i32 = arith.constant 0 : i32
    %c0_i32_0 = arith.constant 0 : i32
    return %c0_i32 : i32
  }
  func.func @transform_4(%arg0: i32) -> i32 {
    %c0_i32 = arith.constant 0 : i32
    %c0_i32_0 = arith.constant 0 : i32
    return %c0_i32 : i32
  }
  func.func @transform_5(%arg0: i32) -> i32 {
    %c0_i32 = arith.constant 0 : i32
    %c0_i32_0 = arith.constant 0 : i32
    return %c0_i32 : i32
  }
  func.func @transform_6(%arg0: i32) -> i32 {
    %c0_i32 = arith.constant 0 : i32
    %c0_i32_0 = arith.constant 0 : i32
    return %c0_i32 : i32
  }
  func.func @transform_7(%arg0: i32) -> (i32, i32, i32, i32) {
    %c0_i32 = arith.constant 0 : i32
    %c0_i32_0 = arith.constant 0 : i32
    %c0_i32_1 = arith.constant 0 : i32
    %c0_i32_2 = arith.constant 0 : i32
    return %arg0, %c0_i32, %c0_i32_0, %c0_i32_1 : i32, i32, i32, i32
  }
}

</mosaic_0001>

<llo_original>
// kernel: up_forward.1
$region0: #{up_forward.1}
  #allocation0 [shape = 'u32[]', space=smem, size = 0x4, offset = 0x4, fixed_abs, tag = 'smem constant byte address 0x4 - core index']
  #allocation1 [shape = 'u32[144,128]{1,0:T(1,128)}', space=vmem, size = 0x12000, scoped, tag = 'internal scratch']
  #allocation2 [shape = 'f32[4,36,36]{2,1,0:T(8,128)}', space=vmem, size = 0x14000, scoped, tag = 'scratch operand']
  #allocation3 [shape = 'f32[2,34,34]{2,1,0:T(8,128)}', space=vmem, size = 0xa000, scoped, tag = 'scratch operand']
  %s0 = inlined_call_operand.vmem [shape: f32[2,4,16,16], index: 0, kind: input, shape index: {}]
  %s1 = inlined_call_operand.vmem [shape: f32[36,16], index: 1, kind: input, shape index: {}]
  %s2 = inlined_call_operand.vmem [shape: f32[16,36], index: 2, kind: input, shape index: {}]
  %s3 = inlined_call_operand.vmem [shape: f32[72], index: 3, kind: input, shape index: {}]
  %s4 = inlined_call_operand.vmem [shape: f32[2], index: 4, kind: input, shape index: {}]
  %s5 = inlined_call_operand.vmem [shape: f32[54], index: 5, kind: input, shape index: {}]
  %s6 = inlined_call_operand.vmem [shape: f32[3], index: 6, kind: input, shape index: {}]
  %s7 = inlined_call_operand.hbm [shape: f32[2,3,32,32], index: 7, kind: output, shape index: {}]
  %s8 = sld [smem:[#allocation0]]
  $region77: #{up_forward.1} parent=0
    _
  %s10 = ssub.s32 1, %s8
  %s11 = scalar_select 0, %s10, %s8
  $region1: #{up_forward.1} parent=0
    #allocation4 [shape = 'u8[512]{0}', space=smem, size = 0x200, scoped, tag = 'input window, operand 3, single buffered']
    #allocation5 [shape = 's32[2]{0}', space=sflag, size = 0x8, scoped, tag = 'scoped memory for up_forward.1']
    #allocation6 [shape = 's32[2]{0}', space=sflag, size = 0x8, scoped, tag = 'scoped memory for up_forward.1']
    #allocation7 [shape = 'u8[512]{0}', space=smem, size = 0x200, scoped, tag = 'input window, operand 4, single buffered']
    #allocation8 [shape = 's32[1]{0}', space=sflag, size = 0x4, scoped, tag = 'scoped memory for up_forward.1']
    #allocation9 [shape = 'u8[512]{0}', space=smem, size = 0x200, scoped, tag = 'input window, operand 5, single buffered']
    #allocation10 [shape = 'u8[512]{0}', space=smem, size = 0x200, scoped, tag = 'input window, operand 6, single buffered']
    #allocation11 [shape = 's32[1]{0}', space=sflag, size = 0x4, scoped, tag = 'scoped memory for up_forward.1']
    #allocation12 [shape = 'u8[98304]{0}', space=vmem, size = 0x18000, scoped, tag = 'output window, operand 0']
    %12 = vsyncpa [#allocation6], 0
    %13 = vsyncpa [#allocation8], 0
    %14 = vsyncpa [#allocation11], 0
    %15 = vsyncpa [#allocation5], 0
    %s16 = scalar_lea.sflag [#allocation5], 1
    %17 = vsyncpa %s16, 0
    loop: start=0, step=1, limit=4
    $region2: #{up_forward.1} parent=1 // loop_pre_header
      _
    $region3: #{up_forward.1} parent=1 // loop_header
      %s19 = sphi 0, %s23
      %p20 = scmp.ge.s32.totalorder %s19, 4
      %s29 = sphi 0, %s31
      %s32 = sphi 0, %s29
      %s33 = sphi 0, %s32
      %s49 = sphi 0, %s33
      %s53 = sphi 0, %s53
      %s55 = sphi 0, %s53
      %s56 = sphi 0, %s55
      %s70 = sphi 0, %s56
      %s74 = sphi 0, %s74
      %s76 = sphi 0, %s74
      %s77 = sphi 0, %s76
      %s91 = sphi 0, %s77
      %s95 = sphi 0, %s95
      %s97 = sphi 0, %s95
      %s98 = sphi 0, %s97
      %s112 = sphi 0, %s98
      %s116 = sphi 0, %s116
      %s118 = sphi 0, %s116
      %s119 = sphi 0, %s118
      %s133 = sphi 0, %s119
      %s137 = sphi 0, %s137
      %s139 = sphi 0, %s137
      %s140 = sphi 0, %s139
      %s154 = sphi 0, %s140
      %s158 = sphi 0, %s158
      %s160 = sphi 0, %s158
      %s161 = sphi 0, %s160
      %s175 = sphi 0, %s161
      %s181 = sphi 0, %s183
      %s184 = sphi 0, %s181
      %s185 = sphi 0, %s184
      %s201 = sphi 0, %s185
    $region4: #{up_forward.1} parent=1 // loop_header_branch
      %22 = sbr.rel (%p20) target = $region8
    $region5: #{up_forward.1} parent=1 // loop_body
      %s24 = ssub.s32 %s19, 1
      %s25 = ssub.s32 %s19, 2
      %s26 = sadd.s32 %s19, 1
      %s27 = ssub.s32 %s19, %s26
      %p28 = scmp.eq.s32.totalorder %s27, 0
      %s30 = sadd.s32 %s29, 1
      %s31 = scalar_select %p28, %s29, %s30
      %p34 = pneg %p28
      %p35 = scmp.eq.s32.totalorder %s19, 1
      %p36 = por %p34, %p35
      %p37 = scmp.ne.s32.totalorder %s29, %s32
      %p38 = scmp.eq.s32.totalorder %s19, 0
      %p39 = por %p37, %p38
      %p40 = scmp.ne.s32.totalorder %s29, %s32
      %p41 = scmp.eq.s32.totalorder %s24, 1
      %p42 = por %p40, %p41
      %p43 = scmp.ne.s32.totalorder %s32, %s33
      %p44 = scmp.eq.s32.totalorder %s24, 0
      %p45 = por %p43, %p44
      %p46 = scmp.ne.s32.totalorder %s32, %s33
      %p47 = scmp.eq.s32.totalorder %s25, 1
      %p48 = por %p46, %p47
      %p50 = scmp.ne.s32.totalorder %s33, %s49
      %p51 = scmp.eq.s32.totalorder %s25, 0
      %p52 = por %p50, %p51
      %s54 = sadd.s32 %s53, 1
      %p57 = scmp.eq.s32.totalorder %s19, 1
      %p58 = scmp.ne.s32.totalorder %s53, %s55
      %p59 = scmp.eq.s32.totalorder %s19, 0
      %p60 = por %p58, %p59
      %p61 = scmp.ne.s32.totalorder %s53, %s55
      %p62 = scmp.eq.s32.totalorder %s24, 1
      %p63 = por %p61, %p62
      %p64 = scmp.ne.s32.totalorder %s55, %s56
      %p65 = scmp.eq.s32.totalorder %s24, 0
      %p66 = por %p64, %p65
      %p67 = scmp.ne.s32.totalorder %s55, %s56
      %p68 = scmp.eq.s32.totalorder %s25, 1
      %p69 = por %p67, %p68
      %p71 = scmp.ne.s32.totalorder %s56, %s70
      %p72 = scmp.eq.s32.totalorder %s25, 0
      %p73 = por %p71, %p72
      %s75 = sadd.s32 %s74, 1
      %p78 = scmp.eq.s32.totalorder %s19, 1
      %p79 = scmp.ne.s32.totalorder %s74, %s76
      %p80 = scmp.eq.s32.totalorder %s19, 0
      %p81 = por %p79, %p80
      %p82 = scmp.ne.s32.totalorder %s74, %s76
      %p83 = scmp.eq.s32.totalorder %s24, 1
      %p84 = por %p82, %p83
      %p85 = scmp.ne.s32.totalorder %s76, %s77
      %p86 = scmp.eq.s32.totalorder %s24, 0
      %p87 = por %p85, %p86
      %p88 = scmp.ne.s32.totalorder %s76, %s77
      %p89 = scmp.eq.s32.totalorder %s25, 1
      %p90 = por %p88, %p89
      %p92 = scmp.ne.s32.totalorder %s77, %s91
      %p93 = scmp.eq.s32.totalorder %s25, 0
      %p94 = por %p92, %p93
      %s96 = sadd.s32 %s95, 1
      %p99 = scmp.eq.s32.totalorder %s19, 1
      %p100 = scmp.ne.s32.totalorder %s95, %s97
      %p101 = scmp.eq.s32.totalorder %s19, 0
      %p102 = por %p100, %p101
      %p103 = scmp.ne.s32.totalorder %s95, %s97
      %p104 = scmp.eq.s32.totalorder %s24, 1
      %p105 = por %p103, %p104
      %p106 = scmp.ne.s32.totalorder %s97, %s98
      %p107 = scmp.eq.s32.totalorder %s24, 0
      %p108 = por %p106, %p107
      %p109 = scmp.ne.s32.totalorder %s97, %s98
      %p110 = scmp.eq.s32.totalorder %s25, 1
      %p111 = por %p109, %p110
      %p113 = scmp.ne.s32.totalorder %s98, %s112
      %p114 = scmp.eq.s32.totalorder %s25, 0
      %p115 = por %p113, %p114
      %s117 = sadd.s32 %s116, 1
      %p120 = scmp.eq.s32.totalorder %s19, 1
      %p121 = scmp.ne.s32.totalorder %s116, %s118
      %p122 = scmp.eq.s32.totalorder %s19, 0
      %p123 = por %p121, %p122
      %p124 = scmp.ne.s32.totalorder %s116, %s118
      %p125 = scmp.eq.s32.totalorder %s24, 1
      %p126 = por %p124, %p125
      %p127 = scmp.ne.s32.totalorder %s118, %s119
      %p128 = scmp.eq.s32.totalorder %s24, 0
      %p129 = por %p127, %p128
      %p130 = scmp.ne.s32.totalorder %s118, %s119
      %p131 = scmp.eq.s32.totalorder %s25, 1
      %p132 = por %p130, %p131
      %p134 = scmp.ne.s32.totalorder %s119, %s133
      %p135 = scmp.eq.s32.totalorder %s25, 0
      %p136 = por %p134, %p135
      %s138 = sadd.s32 %s137, 1
      %p141 = scmp.eq.s32.totalorder %s19, 1
      %p142 = scmp.ne.s32.totalorder %s137, %s139
      %p143 = scmp.eq.s32.totalorder %s19, 0
      %p144 = por %p142, %p143
      %p145 = scmp.ne.s32.totalorder %s137, %s139
      %p146 = scmp.eq.s32.totalorder %s24, 1
      %p147 = por %p145, %p146
      %p148 = scmp.ne.s32.totalorder %s139, %s140
      %p149 = scmp.eq.s32.totalorder %s24, 0
      %p150 = por %p148, %p149
      %p151 = scmp.ne.s32.totalorder %s139, %s140
      %p152 = scmp.eq.s32.totalorder %s25, 1
      %p153 = por %p151, %p152
      %p155 = scmp.ne.s32.totalorder %s140, %s154
      %p156 = scmp.eq.s32.totalorder %s25, 0
      %p157 = por %p155, %p156
      %s159 = sadd.s32 %s158, 1
      %p162 = scmp.eq.s32.totalorder %s19, 1
      %p163 = scmp.ne.s32.totalorder %s158, %s160
      %p164 = scmp.eq.s32.totalorder %s19, 0
      %p165 = por %p163, %p164
      %p166 = scmp.ne.s32.totalorder %s158, %s160
      %p167 = scmp.eq.s32.totalorder %s24, 1
      %p168 = por %p166, %p167
      %p169 = scmp.ne.s32.totalorder %s160, %s161
      %p170 = scmp.eq.s32.totalorder %s24, 0
      %p171 = por %p169, %p170
      %p172 = scmp.ne.s32.totalorder %s160, %s161
      %p173 = scmp.eq.s32.totalorder %s25, 1
      %p174 = por %p172, %p173
      %p176 = scmp.ne.s32.totalorder %s161, %s175
      %p177 = scmp.eq.s32.totalorder %s25, 0
      %p178 = por %p176, %p177
      %s179 = ssub.s32 %s19, %s26
      %p180 = scmp.eq.s32.totalorder %s179, 0
      %s182 = sadd.s32 %s181, 1
      %s183 = scalar_select %p180, %s181, %s182
      %p186 = pneg %p180
      %p187 = scmp.eq.s32.totalorder %s19, 1
      %p188 = por %p186, %p187
      %p189 = scmp.ne.s32.totalorder %s181, %s184
      %p190 = scmp.eq.s32.totalorder %s19, 0
      %p191 = por %p189, %p190
      %p192 = scmp.ne.s32.totalorder %s181, %s184
      %p193 = scmp.eq.s32.totalorder %s24, 1
      %p194 = por %p192, %p193
      %p195 = scmp.ne.s32.totalorder %s184, %s185
      %p196 = scmp.eq.s32.totalorder %s24, 0
      %p197 = por %p195, %p196
      %p198 = scmp.ne.s32.totalorder %s184, %s185
      %p199 = scmp.eq.s32.totalorder %s25, 1
      %p200 = por %p198, %p199
      %p202 = scmp.ne.s32.totalorder %s185, %s201
      %p203 = scmp.eq.s32.totalorder %s25, 0
      %p204 = por %p202, %p203
      %p205 = scmp.le.s32.totalorder 1, %s19
      %p206 = scmp.lt.s32.totalorder %s19, 3
      %p207 = pnand %p205, %p206
      %p208 = pneg %p207
      // Predicated region
      $region9: #{up_forward.1} parent=5 // pred_check
        _
      $region10: #{up_forward.1} parent=5 // pred_check_branch
        %210 = sbr.rel (%p207) target = $region12
      $region11: #{up_forward.1} parent=5 // pred_region
        %s211 = ssub.s32 %s19, 1
        // Predicated region
        $region13: #{up_forward.1} parent=11 // pred_check
          %p212 = pneg %p66
        $region14: #{up_forward.1} parent=11 // pred_check_branch
          %214 = sbr.rel (%p212) target = $region16
        $region15: #{up_forward.1} parent=11 // pred_region
          _
        $region16: #{up_forward.1} parent=11 // pred_fallthru
          _
        // Predicated region
        $region17: #{up_forward.1} parent=11 // pred_check
          %p215 = pneg %p87
        $region18: #{up_forward.1} parent=11 // pred_check_branch
          %217 = sbr.rel (%p215) target = $region20
        $region19: #{up_forward.1} parent=11 // pred_region
          _
        $region20: #{up_forward.1} parent=11 // pred_fallthru
          _
        // Predicated region
        $region21: #{up_forward.1} parent=11 // pred_check
          %p218 = pneg %p108
        $region22: #{up_forward.1} parent=11 // pred_check_branch
          %220 = sbr.rel (%p218) target = $region24
        $region23: #{up_forward.1} parent=11 // pred_region
          %s222 = ssub.s32 16, 16
          %223 = vsyncadd [#allocation6], %s222
          %s225 = sshll.u32 %s3, 4
          %s226 = int_to_ptr.vmem [resolvable:$true] %s225
          %228 = dma.vmem_to_smem %s226, 16, [#allocation4], [#allocation6]
        $region24: #{up_forward.1} parent=11 // pred_fallthru
          _
        // Predicated region
        $region25: #{up_forward.1} parent=11 // pred_check
          %p229 = pneg %p129
        $region26: #{up_forward.1} parent=11 // pred_check_branch
          %231 = sbr.rel (%p229) target = $region28
        $region27: #{up_forward.1} parent=11 // pred_region
          %s233 = ssub.s32 16, 16
          %234 = vsyncadd [#allocation8], %s233
          %s236 = sshll.u32 %s4, 4
          %s237 = int_to_ptr.vmem [resolvable:$true] %s236
          %239 = dma.vmem_to_smem %s237, 16, [#allocation7], [#allocation8]
        $region28: #{up_forward.1} parent=11 // pred_fallthru
          _
        // Predicated region
        $region29: #{up_forward.1} parent=11 // pred_check
          %p240 = pneg %p150
        $region30: #{up_forward.1} parent=11 // pred_check_branch
          %242 = sbr.rel (%p240) target = $region32
        $region31: #{up_forward.1} parent=11 // pred_region
          %s244 = ssub.s32 16, 16
          %245 = vsyncadd [#allocation8], %s244
          %s247 = sshll.u32 %s5, 4
          %s248 = int_to_ptr.vmem [resolvable:$true] %s247
          %250 = dma.vmem_to_smem %s248, 16, [#allocation9], [#allocation8]
        $region32: #{up_forward.1} parent=11 // pred_fallthru
          _
        // Predicated region
        $region33: #{up_forward.1} parent=11 // pred_check
          %p251 = pneg %p171
        $region34: #{up_forward.1} parent=11 // pred_check_branch
          %253 = sbr.rel (%p251) target = $region36
        $region35: #{up_forward.1} parent=11 // pred_region
          %s255 = ssub.s32 16, 16
          %256 = vsyncadd [#allocation11], %s255
          %s258 = sshll.u32 %s6, 4
          %s259 = int_to_ptr.vmem [resolvable:$true] %s258
          %261 = dma.vmem_to_smem %s259, 16, [#allocation10], [#allocation11]
        $region36: #{up_forward.1} parent=11 // pred_fallthru
          _
      $region12: #{up_forward.1} parent=5 // pred_fallthru
        _
      %p262 = scmp.lt.s32.totalorder %s19, 2
      // Predicated region
      $region37: #{up_forward.1} parent=5 // pred_check
        %p263 = pneg %p262
      $region38: #{up_forward.1} parent=5 // pred_check_branch
        %265 = sbr.rel (%p263) target = $region40
      $region39: #{up_forward.1} parent=5 // pred_region
        // Predicated region
        $region41: #{up_forward.1} parent=39 // pred_check
          %p266 = pneg %p39
        $region42: #{up_forward.1} parent=39 // pred_check_branch
          %268 = sbr.rel (%p266) target = $region44
        $region43: #{up_forward.1} parent=39 // pred_region
          %p269 = scmp.lt.s32.totalorder %s19, 1
          %s270 = scalar_select %p269, %s19, 1
          %s271 = smul.addr %s270, 8
          %s272 = smul.addr %s271, 8
          %s273 = scalar_lea.vmem %s0, %s272
        $region44: #{up_forward.1} parent=39 // pred_fallthru
          _
      $region40: #{up_forward.1} parent=5 // pred_fallthru
        _
      %p274 = scmp.le.s32.totalorder 1, %s19
      %p275 = scmp.lt.s32.totalorder %s19, 3
      %p276 = pnand %p274, %p275
      %p277 = pneg %p276
      // Predicated region
      $region45: #{up_forward.1} parent=5 // pred_check
        _
      $region46: #{up_forward.1} parent=5 // pred_check_branch
        %279 = sbr.rel (%p276) target = $region48
      $region47: #{up_forward.1} parent=5 // pred_region
        %s280 = ssub.s32 %s19, 1
        // Predicated region
        $region49: #{up_forward.1} parent=47 // pred_check
          %p281 = pneg %p108
        $region50: #{up_forward.1} parent=47 // pred_check_branch
          %283 = sbr.rel (%p281) target = $region52
        $region51: #{up_forward.1} parent=47 // pred_region
          %284 = dma.done [#allocation6], 16
        $region52: #{up_forward.1} parent=47 // pred_fallthru
          _
        // Predicated region
        $region53: #{up_forward.1} parent=47 // pred_check
          %p285 = pneg %p129
        $region54: #{up_forward.1} parent=47 // pred_check_branch
          %287 = sbr.rel (%p285) target = $region56
        $region55: #{up_forward.1} parent=47 // pred_region
          %288 = dma.done [#allocation8], 16
        $region56: #{up_forward.1} parent=47 // pred_fallthru
          _
        // Predicated region
        $region57: #{up_forward.1} parent=47 // pred_check
          %p289 = pneg %p150
        $region58: #{up_forward.1} parent=47 // pred_check_branch
          %291 = sbr.rel (%p289) target = $region60
        $region59: #{up_forward.1} parent=47 // pred_region
          %292 = dma.done [#allocation8], 16
        $region60: #{up_forward.1} parent=47 // pred_fallthru
          _
        // Predicated region
        $region61: #{up_forward.1} parent=47 // pred_check
          %p293 = pneg %p171
        $region62: #{up_forward.1} parent=47 // pred_check_branch
          %295 = sbr.rel (%p293) target = $region64
        $region63: #{up_forward.1} parent=47 // pred_region
          %296 = dma.done [#allocation11], 16
        $region64: #{up_forward.1} parent=47 // pred_fallthru
          _
        %297 = sfence
        %p298 = scmp.lt.s32.totalorder %s24, 1
        %s299 = scalar_select %p298, %s24, 1
        %s300 = smul.addr %s299, 8
        %s301 = smul.addr %s300, 8
        %s302 = scalar_lea.vmem %s0, %s301
        %p303 = pneg %p45
        %p304 = pneg %p42
        %p305 = pneg %p66
        %p306 = pneg %p63
        %p307 = pneg %p87
        %p308 = pneg %p84
        %p309 = pneg %p108
        %p310 = pneg %p105
        %p311 = pneg %p129
        %p312 = pneg %p126
        %p313 = pneg %p150
        %p314 = pneg %p147
        %p315 = pneg %p171
        %p316 = pneg %p168
        %p317 = pneg %p197
        %p318 = pneg %p194
        %s319 = sand.u32 %s184, 1
        %s320 = scalar_lea.sflag [#allocation5], %s319
        %s321 = sand.u32 %s184, 1
        %s322 = smul.addr %s321, 96
        %s323 = scalar_lea.vmem [#allocation12], %s322
        %p324 = scmp.lt.s32.totalorder %s24, 1
        %s325 = scalar_select %p324, %s24, 1
        %s326 = smul.addr %s325, 8
        %s327 = smul.addr %s326, 8
        %s328 = scalar_lea.vmem %s0, %s327
        %v329 = vld [vmem:[%s1] sm:$0xff]
        %v330 = vld [vmem:[%s1 + $0x8] sm:$0xff]
        %v331 = vld [vmem:[%s1 + $0x10] sm:$0xff]
        %v332 = vld [vmem:[%s1 + $0x18] sm:$0xff]
        %v333 = vld [vmem:[%s1 + $0x20] sm:$0xf]
        %v334 = vld [vmem:[%s2] sm:$0xff]
        %v335 = vld [vmem:[%s2 + $0x8] sm:$0xff]
        %v336 = vld [vmem:[%s328] sm:$0xff]
        %v337 = vld [vmem:[%s328 + $0x8] sm:$0xff]
        %vm338 = vcmask 130048
        %v340 = vsel %vm338, %v329, 0
        %v343 = vsel %vm338, %v330, 0
        %v346 = vsel %vm338, %v331, 0
        %v349 = vsel %vm338, %v332, 0
        %v352 = vsel %vm338, %v333, 0
        %354 = vmatprep.subr.mxu0 0.0
        %v355 = vand.u32 %v336, 4294901760
        %356 = vmatpush1.msra.mxu0 %v355
        %357 = vmatprep.subr.mxu0 0.0
        %v358 = vand.u32 %v337, 4294901760
        %359 = vmatpush1.msra.mxu0 %v358
        %360 = vmatprep.subr.mxu0 0.0
        %361 = vmatpush1.msra.mxu0 0.0
        %362 = vmatprep.subr.mxu0 0.0
        %363 = vmatpush1.msra.mxu0 0.0
        %364 = vmatprep.subr.mxu0 0.0
        %365 = vmatpush1.msra.mxu0 0.0
        %366 = vmatprep.subr.mxu0 0.0
        %367 = vmatpush1.msra.mxu0 0.0
        %368 = vmatprep.subr.mxu0 0.0
        %369 = vmatpush1.msra.mxu0 0.0
        %370 = vmatprep.subr.mxu0 0.0
        %371 = vmatpush1.msra.mxu0 0.0
        %372 = vmatprep.subr.mxu0 0.0
        %373 = vmatpush1.msra.mxu0 0.0
        %374 = vmatprep.subr.mxu0 0.0
        %375 = vmatpush1.msra.mxu0 0.0
        %376 = vmatprep.subr.mxu0 0.0
        %377 = vmatpush1.msra.mxu0 0.0
        %378 = vmatprep.subr.mxu0 0.0
        %379 = vmatpush1.msra.mxu0 0.0
        %380 = vmatprep.subr.mxu0 0.0
        %381 = vmatpush1.msra.mxu0 0.0
        %382 = vmatprep.subr.mxu0 0.0
        %383 = vmatpush1.msra.mxu0 0.0
        %384 = vmatprep.subr.mxu0 0.0
        %385 = vmatpush1.msra.mxu0 0.0
        %386 = vmatprep.subr.mxu0 0.0
        %387 = vmatpush1.msra.mxu0 0.0
        %388 = vmatprep.subr.mxu0 0.0
        %389 = vmatpush1.msra.mxu0 0.0
        %390 = vmatprep.subr.mxu0 0.0
        %391 = vmatpush1.msra.mxu0 0.0
        %392 = vmatprep.subr.mxu0 0.0
        %393 = vmatpush1.msra.mxu0 0.0
        %394 = vmatprep.subr.mxu0 0.0
        %395 = vmatpush1.msra.mxu0 0.0
        %396 = vmatprep.subr.mxu0 0.0
        %397 = vmatpush1.msra.mxu0 0.0
        %398 = vmatprep.subr.mxu0 0.0
        %399 = vmatpush1.msra.mxu0 0.0
        %400 = vmatprep.subr.mxu0 0.0
        %401 = vmatpush1.msra.mxu0 0.0
        %402 = vmatprep.subr.mxu0 0.0
        %403 = vmatpush1.msra.mxu0 0.0
        %404 = vmatprep.subr.mxu0 0.0
        %405 = vmatpush1.msra.mxu0 0.0
        %406 = vmatprep.subr.mxu0 0.0
        %407 = vmatpush1.msra.mxu0 0.0
        %408 = vmatprep.subr.mxu0 0.0
        %409 = vmatpush1.msra.mxu0 0.0
        %410 = vmatprep.subr.mxu0 0.0
        %411 = vmatpush1.msra.mxu0 0.0
        %412 = vmatprep.subr.mxu0 0.0
        %413 = vmatpush1.msra.mxu0 0.0
        %414 = vmatprep.subr.mxu0 0.0
        %415 = vmatpush1.msra.mxu0 0.0
        %416 = vmatprep.subr.mxu0 0.0
        %417 = vmatpush1.msra.mxu0 0.0
        %418 = vmatprep.subr.mxu0 0.0
        %419 = vmatpush1.msra.mxu0 0.0
        %420 = vmatprep.mubr.f32.mxu0 0.0
        %v421 = vand.u32 %v340, 4294901760
        %v422 = vsub.f32 %v340, %v421
        %v423 = vand.u32 %v422, 4294901760
        %v424 = vsub.f32 %v422, %v423
        %v425 = vand.u32 %v424, 4294901760
        %426 = vmatmul.mubr.f32.gmra.mrb[0].mxu0 %v425
        %v427 = vpop.f32.mrb[0].mxu0
        %v428 = vadd.f32 0.0, %v427
        %v429 = vpop.f32.mrb[0].mxu0
        %430 = vmatprep.mubr.f32.mxu0 0.0
        %v431 = vand.u32 %v343, 4294901760
        %v432 = vsub.f32 %v343, %v431
        %v433 = vand.u32 %v432, 4294901760
        %v434 = vsub.f32 %v432, %v433
        %v435 = vand.u32 %v434, 4294901760
        %436 = vmatmul.mubr.f32.gmra.mrb[0].mxu0 %v435
        %v437 = vpop.f32.mrb[0].mxu0
        %v438 = vadd.f32 0.0, %v437
        %v439 = vpop.f32.mrb[0].mxu0
        %440 = vmatprep.mubr.f32.mxu0 0.0
        %v441 = vand.u32 %v346, 4294901760
        %v442 = vsub.f32 %v346, %v441
        %v443 = vand.u32 %v442, 4294901760
        %v444 = vsub.f32 %v442, %v443
        %v445 = vand.u32 %v444, 4294901760
        %446 = vmatmul.mubr.f32.gmra.mrb[0].mxu0 %v445
        %v447 = vpop.f32.mrb[0].mxu0
        %v448 = vadd.f32 0.0, %v447
        %v449 = vpop.f32.mrb[0].mxu0
        %450 = vmatprep.mubr.f32.mxu0 0.0
        %v451 = vand.u32 %v349, 4294901760
        %v452 = vsub.f32 %v349, %v451
        %v453 = vand.u32 %v452, 4294901760
        %v454 = vsub.f32 %v452, %v453
        %v455 = vand.u32 %v454, 4294901760
        %456 = vmatmul.mubr.f32.gmra.mrb[0].mxu0 %v455
        %v457 = vpop.f32.mrb[0].mxu0
        %v458 = vadd.f32 0.0, %v457
        %v459 = vpop.f32.mrb[0].mxu0
        %460 = vmatprep.mubr.f32.mxu0 0.0
        %v461 = vand.u32 %v352, 4294901760
        %v462 = vsub.f32 %v352, %v461
        %v463 = vand.u32 %v462, 4294901760
        %v464 = vsub.f32 %v462, %v463
        %v465 = vand.u32 %v464, 4294901760
        %466 = vmatmul.mubr.f32.gmra.mrb[0].mxu0 %v465
        %v467 = vpop.f32.mrb[0].mxu0
        %v468 = vadd.f32 0.0, %v467
        %v469 = vpop.f32.mrb[0].mxu0
        %470 = vdwg.mxu0
        %471 = vmatprep.subr.mxu0 0.0
        %v472 = vand.u32 %v336, 4294901760
        %v473 = vsub.f32 %v336, %v472
        %v474 = vand.u32 %v473, 4294901760
        %v475 = vsub.f32 %v473, %v474
        %v476 = vand.u32 %v475, 4294901760
        %477 = vmatpush1.msra.mxu0 %v476
        %478 = vmatprep.subr.mxu0 0.0
        %v479 = vand.u32 %v337, 4294901760
        %v480 = vsub.f32 %v337, %v479
        %v481 = vand.u32 %v480, 4294901760
        %v482 = vsub.f32 %v480, %v481
        %v483 = vand.u32 %v482, 4294901760
        %484 = vmatpush1.msra.mxu0 %v483
        %485 = vmatprep.subr.mxu0 0.0
        %486 = vmatpush1.msra.mxu0 0.0
        %487 = vmatprep.subr.mxu0 0.0
        %488 = vmatpush1.msra.mxu0 0.0
        %489 = vmatprep.subr.mxu0 0.0
        %490 = vmatpush1.msra.mxu0 0.0
        %491 = vmatprep.subr.mxu0 0.0
        %492 = vmatpush1.msra.mxu0 0.0
        %493 = vmatprep.subr.mxu0 0.0
        %494 = vmatpush1.msra.mxu0 0.0
        %495 = vmatprep.subr.mxu0 0.0
        %496 = vmatpush1.msra.mxu0 0.0
        %497 = vmatprep.subr.mxu0 0.0
        %498 = vmatpush1.msra.mxu0 0.0
        %499 = vmatprep.subr.mxu0 0.0
        %500 = vmatpush1.msra.mxu0 0.0
        %501 = vmatprep.subr.mxu0 0.0
        %502 = vmatpush1.msra.mxu0 0.0
        %503 = vmatprep.subr.mxu0 0.0
        %504 = vmatpush1.msra.mxu0 0.0
        %505 = vmatprep.subr.mxu0 0.0
        %506 = vmatpush1.msra.mxu0 0.0
        %507 = vmatprep.subr.mxu0 0.0
        %508 = vmatpush1.msra.mxu0 0.0
        %509 = vmatprep.subr.mxu0 0.0
        %510 = vmatpush1.msra.mxu0 0.0
        %511 = vmatprep.subr.mxu0 0.0
        %512 = vmatpush1.msra.mxu0 0.0
        %513 = vmatprep.subr.mxu0 0.0
        %514 = vmatpush1.msra.mxu0 0.0
        %515 = vmatprep.subr.mxu0 0.0
        %516 = vmatpush1.msra.mxu0 0.0
        %517 = vmatprep.subr.mxu0 0.0
        %518 = vmatpush1.msra.mxu0 0.0
        %519 = vmatprep.subr.mxu0 0.0
        %520 = vmatpush1.msra.mxu0 0.0
        %521 = vmatprep.subr.mxu0 0.0
        %522 = vmatpush1.msra.mxu0 0.0
        %523 = vmatprep.subr.mxu0 0.0
        %524 = vmatpush1.msra.mxu0 0.0
        %525 = vmatprep.subr.mxu0 0.0
        %526 = vmatpush1.msra.mxu0 0.0
        %527 = vmatprep.subr.mxu0 0.0
        %528 = vmatpush1.msra.mxu0 0.0
        %529 = vmatprep.subr.mxu0 0.0
        %530 = vmatpush1.msra.mxu0 0.0
        %531 = vmatprep.subr.mxu0 0.0
        %532 = vmatpush1.msra.mxu0 0.0
        %533 = vmatprep.subr.mxu0 0.0
        %534 = vmatpush1.msra.mxu0 0.0
        %535 = vmatprep.subr.mxu0 0.0
        %536 = vmatpush1.msra.mxu0 0.0
        %537 = vmatprep.subr.mxu0 0.0
        %538 = vmatpush1.msra.mxu0 0.0
        %539 = vmatprep.subr.mxu0 0.0
        %540 = vmatpush1.msra.mxu0 0.0
        %541 = vmatprep.subr.mxu0 0.0
        %542 = vmatpush1.msra.mxu0 0.0
        %543 = vmatprep.subr.mxu0 0.0
        %544 = vmatpush1.msra.mxu0 0.0
        %545 = vmatprep.mubr.f32.mxu0 0.0
        %v546 = vand.u32 %v340, 4294901760
        %547 = vmatmul.mubr.f32.gmra.mrb[0].mxu0 %v546
        %v548 = vpop.f32.mrb[0].mxu0
        %v549 = vadd.f32 %v428, %v548
        %v550 = vpop.f32.mrb[0].mxu0
        %551 = vmatprep.mubr.f32.mxu0 0.0
        %v552 = vand.u32 %v343, 4294901760
        %553 = vmatmul.mubr.f32.gmra.mrb[0].mxu0 %v552
        %v554 = vpop.f32.mrb[0].mxu0
        %v555 = vadd.f32 %v438, %v554
        %v556 = vpop.f32.mrb[0].mxu0
        %557 = vmatprep.mubr.f32.mxu0 0.0
        %v558 = vand.u32 %v346, 4294901760
        %559 = vmatmul.mubr.f32.gmra.mrb[0].mxu0 %v558
        %v560 = vpop.f32.mrb[0].mxu0
        %v561 = vadd.f32 %v448, %v560
        %v562 = vpop.f32.mrb[0].mxu0
        %563 = vmatprep.mubr.f32.mxu0 0.0
        %v564 = vand.u32 %v349, 4294901760
        %565 = vmatmul.mubr.f32.gmra.mrb[0].mxu0 %v564
        %v566 = vpop.f32.mrb[0].mxu0
        %v567 = vadd.f32 %v458, %v566
        %v568 = vpop.f32.mrb[0].mxu0
        %569 = vmatprep.mubr.f32.mxu0 0.0
        %v570 = vand.u32 %v352, 4294901760
        %571 = vmatmul.mubr.f32.gmra.mrb[0].mxu0 %v570
        %v572 = vpop.f32.mrb[0].mxu0
        %v573 = vadd.f32 %v468, %v572
        %v574 = vpop.f32.mrb[0].mxu0
        %575 = vdwg.mxu0
        %576 = vmatprep.subr.mxu0 0.0
        %v577 = vand.u32 %v336, 4294901760
        %v578 = vsub.f32 %v336, %v577
        %579 = vmatpush1.msra.mxu0 %v578
        %580 = vmatprep.subr.mxu0 0.0
        %v581 = vand.u32 %v337, 4294901760
        %v582 = vsub.f32 %v337, %v581
        %583 = vmatpush1.msra.mxu0 %v582
        %584 = vmatprep.subr.mxu0 0.0
        %585 = vmatpush1.msra.mxu0 0.0
        %586 = vmatprep.subr.mxu0 0.0
        %587 = vmatpush1.msra.mxu0 0.0
        %588 = vmatprep.subr.mxu0 0.0
        %589 = vmatpush1.msra.mxu0 0.0
        %590 = vmatprep.subr.mxu0 0.0
        %591 = vmatpush1.msra.mxu0 0.0
        %592 = vmatprep.subr.mxu0 0.0
        %593 = vmatpush1.msra.mxu0 0.0
        %594 = vmatprep.subr.mxu0 0.0
        %595 = vmatpush1.msra.mxu0 0.0
        %596 = vmatprep.subr.mxu0 0.0
        %597 = vmatpush1.msra.mxu0 0.0
        %598 = vmatprep.subr.mxu0 0.0
        %599 = vmatpush1.msra.mxu0 0.0
        %600 = vmatprep.subr.mxu0 0.0
        %601 = vmatpush1.msra.mxu0 0.0
        %602 = vmatprep.subr.mxu0 0.0
        %603 = vmatpush1.msra.mxu0 0.0
        %604 = vmatprep.subr.mxu0 0.0
        %605 = vmatpush1.msra.mxu0 0.0
        %606 = vmatprep.subr.mxu0 0.0
        %607 = vmatpush1.msra.mxu0 0.0
        %608 = vmatprep.subr.mxu0 0.0
        %609 = vmatpush1.msra.mxu0 0.0
        %610 = vmatprep.subr.mxu0 0.0
        %611 = vmatpush1.msra.mxu0 0.0
        %612 = vmatprep.subr.mxu0 0.0
        %613 = vmatpush1.msra.mxu0 0.0
        %614 = vmatprep.subr.mxu0 0.0
        %615 = vmatpush1.msra.mxu0 0.0
        %616 = vmatprep.subr.mxu0 0.0
        %617 = vmatpush1.msra.mxu0 0.0
        %618 = vmatprep.subr.mxu0 0.0
        %619 = vmatpush1.msra.mxu0 0.0
        %620 = vmatprep.subr.mxu0 0.0
        %621 = vmatpush1.msra.mxu0 0.0
        %622 = vmatprep.subr.mxu0 0.0
        %623 = vmatpush1.msra.mxu0 0.0
        %624 = vmatprep.subr.mxu0 0.0
        %625 = vmatpush1.msra.mxu0 0.0
        %626 = vmatprep.subr.mxu0 0.0
        %627 = vmatpush1.msra.mxu0 0.0
        %628 = vmatprep.subr.mxu0 0.0
        %629 = vmatpush1.msra.mxu0 0.0
        %630 = vmatprep.subr.mxu0 0.0
        %631 = vmatpush1.msra.mxu0 0.0
        %632 = vmatprep.subr.mxu0 0.0
        %633 = vmatpush1.msra.mxu0 0.0
        %634 = vmatprep.subr.mxu0 0.0
        %635 = vmatpush1.msra.mxu0 0.0
        %636 = vmatprep.subr.mxu0 0.0
        %637 = vmatpush1.msra.mxu0 0.0
        %638 = vmatprep.subr.mxu0 0.0
        %639 = vmatpush1.msra.mxu0 0.0
        %640 = vmatprep.subr.mxu0 0.0
        %641 = vmatpush1.msra.mxu0 0.0
        %642 = vmatprep.subr.mxu0 0.0
        %643 = vmatpush1.msra.mxu0 0.0
        %644 = vmatprep.mubr.f32.mxu0 0.0
        %v645 = vand.u32 %v340, 4294901760
        %v646 = vsub.f32 %v340, %v645
        %647 = vmatmul.mubr.f32.gmra.mrb[0].mxu0 %v646
        %v648 = vpop.f32.mrb[0].mxu0
        %v649 = vadd.f32 %v549, %v648
        %v650 = vpop.f32.mrb[0].mxu0
        %651 = vmatprep.mubr.f32.mxu0 0.0
        %v652 = vand.u32 %v343, 4294901760
        %v653 = vsub.f32 %v343, %v652
        %654 = vmatmul.mubr.f32.gmra.mrb[0].mxu0 %v653
        %v655 = vpop.f32.mrb[0].mxu0
        %v656 = vadd.f32 %v555, %v655
        %v657 = vpop.f32.mrb[0].mxu0
        %658 = vmatprep.mubr.f32.mxu0 0.0
        %v659 = vand.u32 %v346, 4294901760
        %v660 = vsub.f32 %v346, %v659
        %661 = vmatmul.mubr.f32.gmra.mrb[0].mxu0 %v660
        %v662 = vpop.f32.mrb[0].mxu0
        %v663 = vadd.f32 %v561, %v662
        %v664 = vpop.f32.mrb[0].mxu0
        %665 = vmatprep.mubr.f32.mxu0 0.0
        %v666 = vand.u32 %v349, 4294901760
        %v667 = vsub.f32 %v349, %v666
        %668 = vmatmul.mubr.f32.gmra.mrb[0].mxu0 %v667
        %v669 = vpop.f32.mrb[0].mxu0
        %v670 = vadd.f32 %v567, %v669
        %v671 = vpop.f32.mrb[0].mxu0
        %672 = vmatprep.mubr.f32.mxu0 0.0
        %v673 = vand.u32 %v352, 4294901760
        %v674 = vsub.f32 %v352, %v673
        %675 = vmatmul.mubr.f32.gmra.mrb[0].mxu0 %v674
        %v676 = vpop.f32.mrb[0].mxu0
        %v677 = vadd.f32 %v573, %v676
        %v678 = vpop.f32.mrb[0].mxu0
        %679 = vdwg.mxu0
        %680 = vmatprep.subr.mxu0 0.0
        %v681 = vand.u32 %v336, 4294901760
        %682 = vmatpush1.msra.mxu0 %v681
        %683 = vmatprep.subr.mxu0 0.0
        %v684 = vand.u32 %v337, 4294901760
        %685 = vmatpush1.msra.mxu0 %v684
        %686 = vmatprep.subr.mxu0 0.0
        %687 = vmatpush1.msra.mxu0 0.0
        %688 = vmatprep.subr.mxu0 0.0
        %689 = vmatpush1.msra.mxu0 0.0
        %690 = vmatprep.subr.mxu0 0.0
        %691 = vmatpush1.msra.mxu0 0.0
        %692 = vmatprep.subr.mxu0 0.0
        %693 = vmatpush1.msra.mxu0 0.0
        %694 = vmatprep.subr.mxu0 0.0
        %695 = vmatpush1.msra.mxu0 0.0
        %696 = vmatprep.subr.mxu0 0.0
        %697 = vmatpush1.msra.mxu0 0.0
        %698 = vmatprep.subr.mxu0 0.0
        %699 = vmatpush1.msra.mxu0 0.0
        %700 = vmatprep.subr.mxu0 0.0
        %701 = vmatpush1.msra.mxu0 0.0
        %702 = vmatprep.subr.mxu0 0.0
        %703 = vmatpush1.msra.mxu0 0.0
        %704 = vmatprep.subr.mxu0 0.0
        %705 = vmatpush1.msra.mxu0 0.0
        %706 = vmatprep.subr.mxu0 0.0
        %707 = vmatpush1.msra.mxu0 0.0
        %708 = vmatprep.subr.mxu0 0.0
        %709 = vmatpush1.msra.mxu0 0.0
        %710 = vmatprep.subr.mxu0 0.0
        %711 = vmatpush1.msra.mxu0 0.0
        %712 = vmatprep.subr.mxu0 0.0
        %713 = vmatpush1.msra.mxu0 0.0
        %714 = vmatprep.subr.mxu0 0.0
        %715 = vmatpush1.msra.mxu0 0.0
        %716 = vmatprep.subr.mxu0 0.0
        %717 = vmatpush1.msra.mxu0 0.0
        %718 = vmatprep.subr.mxu0 0.0
        %719 = vmatpush1.msra.mxu0 0.0
        %720 = vmatprep.subr.mxu0 0.0
        %721 = vmatpush1.msra.mxu0 0.0
        %722 = vmatprep.subr.mxu0 0.0
        %723 = vmatpush1.msra.mxu0 0.0
        %724 = vmatprep.subr.mxu0 0.0
        %725 = vmatpush1.msra.mxu0 0.0
        %726 = vmatprep.subr.mxu0 0.0
        %727 = vmatpush1.msra.mxu0 0.0
        %728 = vmatprep.subr.mxu0 0.0
        %729 = vmatpush1.msra.mxu0 0.0
        %730 = vmatprep.subr.mxu0 0.0
        %731 = vmatpush1.msra.mxu0 0.0
        %732 = vmatprep.subr.mxu0 0.0
        %733 = vmatpush1.msra.mxu0 0.0
        %734 = vmatprep.subr.mxu0 0.0
        %735 = vmatpush1.msra.mxu0 0.0
        %736 = vmatprep.subr.mxu0 0.0
        %737 = vmatpush1.msra.mxu0 0.0
        %738 = vmatprep.subr.mxu0 0.0
        %739 = vmatpush1.msra.mxu0 0.0
        %740 = vmatprep.subr.mxu0 0.0
        %741 = vmatpush1.msra.mxu0 0.0
        %742 = vmatprep.subr.mxu0 0.0
        %743 = vmatpush1.msra.mxu0 0.0
        %744 = vmatprep.subr.mxu0 0.0
        %745 = vmatpush1.msra.mxu0 0.0
        %746 = vmatprep.mubr.f32.mxu0 0.0
        %v747 = vand.u32 %v340, 4294901760
        %v748 = vsub.f32 %v340, %v747
        %v749 = vand.u32 %v748, 4294901760
        %750 = vmatmul.mubr.f32.gmra.mrb[0].mxu0 %v749
        %v751 = vpop.f32.mrb[0].mxu0
        %v752 = vadd.f32 %v649, %v751
        %v753 = vpop.f32.mrb[0].mxu0
        %754 = vmatprep.mubr.f32.mxu0 0.0
        %v755 = vand.u32 %v343, 4294901760
        %v756 = vsub.f32 %v343, %v755
        %v757 = vand.u32 %v756, 4294901760
        %758 = vmatmul.mubr.f32.gmra.mrb[0].mxu0 %v757
        %v759 = vpop.f32.mrb[0].mxu0
        %v760 = vadd.f32 %v656, %v759
        %v761 = vpop.f32.mrb[0].mxu0
        %762 = vmatprep.mubr.f32.mxu0 0.0
        %v763 = vand.u32 %v346, 4294901760
        %v764 = vsub.f32 %v346, %v763
        %v765 = vand.u32 %v764, 4294901760
        %766 = vmatmul.mubr.f32.gmra.mrb[0].mxu0 %v765
        %v767 = vpop.f32.mrb[0].mxu0
        %v768 = vadd.f32 %v663, %v767
        %v769 = vpop.f32.mrb[0].mxu0
        %770 = vmatprep.mubr.f32.mxu0 0.0
        %v771 = vand.u32 %v349, 4294901760
        %v772 = vsub.f32 %v349, %v771
        %v773 = vand.u32 %v772, 4294901760
        %774 = vmatmul.mubr.f32.gmra.mrb[0].mxu0 %v773
        %v775 = vpop.f32.mrb[0].mxu0
        %v776 = vadd.f32 %v670, %v775
        %v777 = vpop.f32.mrb[0].mxu0
        %778 = vmatprep.mubr.f32.mxu0 0.0
        %v779 = vand.u32 %v352, 4294901760
        %v780 = vsub.f32 %v352, %v779
        %v781 = vand.u32 %v780, 4294901760
        %782 = vmatmul.mubr.f32.gmra.mrb[0].mxu0 %v781
        %v783 = vpop.f32.mrb[0].mxu0
        %v784 = vadd.f32 %v677, %v783
        %v785 = vpop.f32.mrb[0].mxu0
        %786 = vdwg.mxu0
        %787 = vmatprep.subr.mxu0 0.0
        %v788 = vand.u32 %v336, 4294901760
        %v789 = vsub.f32 %v336, %v788
        %v790 = vand.u32 %v789, 4294901760
        %791 = vmatpush1.msra.mxu0 %v790
        %792 = vmatprep.subr.mxu0 0.0
        %v793 = vand.u32 %v337, 4294901760
        %v794 = vsub.f32 %v337, %v793
        %v795 = vand.u32 %v794, 4294901760
        %796 = vmatpush1.msra.mxu0 %v795
        %797 = vmatprep.subr.mxu0 0.0
        %798 = vmatpush1.msra.mxu0 0.0
        %799 = vmatprep.subr.mxu0 0.0
        %800 = vmatpush1.msra.mxu0 0.0
        %801 = vmatprep.subr.mxu0 0.0
        %802 = vmatpush1.msra.mxu0 0.0
        %803 = vmatprep.subr.mxu0 0.0
        %804 = vmatpush1.msra.mxu0 0.0
        %805 = vmatprep.subr.mxu0 0.0
        %806 = vmatpush1.msra.mxu0 0.0
        %807 = vmatprep.subr.mxu0 0.0
        %808 = vmatpush1.msra.mxu0 0.0
        %809 = vmatprep.subr.mxu0 0.0
        %810 = vmatpush1.msra.mxu0 0.0
        %811 = vmatprep.subr.mxu0 0.0
        %812 = vmatpush1.msra.mxu0 0.0
        %813 = vmatprep.subr.mxu0 0.0
        %814 = vmatpush1.msra.mxu0 0.0
        %815 = vmatprep.subr.mxu0 0.0
        %816 = vmatpush1.msra.mxu0 0.0
        %817 = vmatprep.subr.mxu0 0.0
        %818 = vmatpush1.msra.mxu0 0.0
        %819 = vmatprep.subr.mxu0 0.0
        %820 = vmatpush1.msra.mxu0 0.0
        %821 = vmatprep.subr.mxu0 0.0
        %822 = vmatpush1.msra.mxu0 0.0
        %823 = vmatprep.subr.mxu0 0.0
        %824 = vmatpush1.msra.mxu0 0.0
        %825 = vmatprep.subr.mxu0 0.0
        %826 = vmatpush1.msra.mxu0 0.0
        %827 = vmatprep.subr.mxu0 0.0
        %828 = vmatpush1.msra.mxu0 0.0
        %829 = vmatprep.subr.mxu0 0.0
        %830 = vmatpush1.msra.mxu0 0.0
        %831 = vmatprep.subr.mxu0 0.0
        %832 = vmatpush1.msra.mxu0 0.0
        %833 = vmatprep.subr.mxu0 0.0
        %834 = vmatpush1.msra.mxu0 0.0
        %835 = vmatprep.subr.mxu0 0.0
        %836 = vmatpush1.msra.mxu0 0.0
        %837 = vmatprep.subr.mxu0 0.0
        %838 = vmatpush1.msra.mxu0 0.0
        %839 = vmatprep.subr.mxu0 0.0
        %840 = vmatpush1.msra.mxu0 0.0
        %841 = vmatprep.subr.mxu0 0.0
        %842 = vmatpush1.msra.mxu0 0.0
        %843 = vmatprep.subr.mxu0 0.0
        %844 = vmatpush1.msra.mxu0 0.0
        %845 = vmatprep.subr.mxu0 0.0
        %846 = vmatpush1.msra.mxu0 0.0
        %847 = vmatprep.subr.mxu0 0.0
        %848 = vmatpush1.msra.mxu0 0.0
        %849 = vmatprep.subr.mxu0 0.0
        %850 = vmatpush1.msra.mxu0 0.0
        %851 = vmatprep.subr.mxu0 0.0
        %852 = vmatpush1.msra.mxu0 0.0
        %853 = vmatprep.subr.mxu0 0.0
        %854 = vmatpush1.msra.mxu0 0.0
        %855 = vmatprep.subr.mxu0 0.0
        %856 = vmatpush1.msra.mxu0 0.0
        %857 = vmatprep.mubr.f32.mxu0 0.0
        %v858 = vand.u32 %v340, 4294901760
        %859 = vmatmul.mubr.f32.gmra.mrb[0].mxu0 %v858
        %v860 = vpop.f32.mrb[0].mxu0
        %v861 = vadd.f32 %v752, %v860
        %v862 = vpop.f32.mrb[0].mxu0
        %863 = vmatprep.mubr.f32.mxu0 0.0
        %v864 = vand.u32 %v343, 4294901760
        %865 = vmatmul.mubr.f32.gmra.mrb[0].mxu0 %v864
        %v866 = vpop.f32.mrb[0].mxu0
        %v867 = vadd.f32 %v760, %v866
        %v868 = vpop.f32.mrb[0].mxu0
        %869 = vmatprep.mubr.f32.mxu0 0.0
        %v870 = vand.u32 %v346, 4294901760
        %871 = vmatmul.mubr.f32.gmra.mrb[0].mxu0 %v870
        %v872 = vpop.f32.mrb[0].mxu0
        %v873 = vadd.f32 %v768, %v872
        %v874 = vpop.f32.mrb[0].mxu0
        %875 = vmatprep.mubr.f32.mxu0 0.0
        %v876 = vand.u32 %v349, 4294901760
        %877 = vmatmul.mubr.f32.gmra.mrb[0].mxu0 %v876
        %v878 = vpop.f32.mrb[0].mxu0
        %v879 = vadd.f32 %v776, %v878
        %v880 = vpop.f32.mrb[0].mxu0
        %881 = vmatprep.mubr.f32.mxu0 0.0
        %v882 = vand.u32 %v352, 4294901760
        %883 = vmatmul.mubr.f32.gmra.mrb[0].mxu0 %v882
        %v884 = vpop.f32.mrb[0].mxu0
        %v885 = vadd.f32 %v784, %v884
        %v886 = vpop.f32.mrb[0].mxu0
        %887 = vdwg.mxu0
        %888 = vmatprep.subr.mxu0 0.0
        %v889 = vand.u32 %v336, 4294901760
        %890 = vmatpush1.msra.mxu0 %v889
        %891 = vmatprep.subr.mxu0 0.0
        %v892 = vand.u32 %v337, 4294901760
        %893 = vmatpush1.msra.mxu0 %v892
        %894 = vmatprep.subr.mxu0 0.0
        %895 = vmatpush1.msra.mxu0 0.0
        %896 = vmatprep.subr.mxu0 0.0
        %897 = vmatpush1.msra.mxu0 0.0
        %898 = vmatprep.subr.mxu0 0.0
        %899 = vmatpush1.msra.mxu0 0.0
        %900 = vmatprep.subr.mxu0 0.0
        %901 = vmatpush1.msra.mxu0 0.0
        %902 = vmatprep.subr.mxu0 0.0
        %903 = vmatpush1.msra.mxu0 0.0
        %904 = vmatprep.subr.mxu0 0.0
        %905 = vmatpush1.msra.mxu0 0.0
        %906 = vmatprep.subr.mxu0 0.0
        %907 = vmatpush1.msra.mxu0 0.0
        %908 = vmatprep.subr.mxu0 0.0
        %909 = vmatpush1.msra.mxu0 0.0
        %910 = vmatprep.subr.mxu0 0.0
        %911 = vmatpush1.msra.mxu0 0.0
        %912 = vmatprep.subr.mxu0 0.0
        %913 = vmatpush1.msra.mxu0 0.0
        %914 = vmatprep.subr.mxu0 0.0
        %915 = vmatpush1.msra.mxu0 0.0
        %916 = vmatprep.subr.mxu0 0.0
        %917 = vmatpush1.msra.mxu0 0.0
        %918 = vmatprep.subr.mxu0 0.0
        %919 = vmatpush1.msra.mxu0 0.0
        %920 = vmatprep.subr.mxu0 0.0
        %921 = vmatpush1.msra.mxu0 0.0
        %922 = vmatprep.subr.mxu0 0.0
        %923 = vmatpush1.msra.mxu0 0.0
        %924 = vmatprep.subr.mxu0 0.0
        %925 = vmatpush1.msra.mxu0 0.0
        %926 = vmatprep.subr.mxu0 0.0
        %927 = vmatpush1.msra.mxu0 0.0
        %928 = vmatprep.subr.mxu0 0.0
        %929 = vmatpush1.msra.mxu0 0.0
        %930 = vmatprep.subr.mxu0 0.0
        %931 = vmatpush1.msra.mxu0 0.0
        %932 = vmatprep.subr.mxu0 0.0
        %933 = vmatpush1.msra.mxu0 0.0
        %934 = vmatprep.subr.mxu0 0.0
        %935 = vmatpush1.msra.mxu0 0.0
        %936 = vmatprep.subr.mxu0 0.0
        %937 = vmatpush1.msra.mxu0 0.0
        %938 = vmatprep.subr.mxu0 0.0
        %939 = vmatpush1.msra.mxu0 0.0
        %940 = vmatprep.subr.mxu0 0.0
        %941 = vmatpush1.msra.mxu0 0.0
        %942 = vmatprep.subr.mxu0 0.0
        %943 = vmatpush1.msra.mxu0 0.0
        %944 = vmatprep.subr.mxu0 0.0
        %945 = vmatpush1.msra.mxu0 0.0
        %946 = vmatprep.subr.mxu0 0.0
        %947 = vmatpush1.msra.mxu0 0.0
        %948 = vmatprep.subr.mxu0 0.0
        %949 = vmatpush1.msra.mxu0 0.0
        %950 = vmatprep.subr.mxu0 0.0
        %951 = vmatpush1.msra.mxu0 0.0
        %952 = vmatprep.subr.mxu0 0.0
        %953 = vmatpush1.msra.mxu0 0.0
        %954 = vmatprep.mubr.f32.mxu0 0.0
        %v955 = vand.u32 %v340, 4294901760
        %956 = vmatmul.mubr.f32.gmra.mrb[0].mxu0 %v955
        %v957 = vpop.f32.mrb[0].mxu0
        %v958 = vadd.f32 %v861, %v957
        %v959 = vpop.f32.mrb[0].mxu0
        %960 = vmatprep.mubr.f32.mxu0 0.0
        %v961 = vand.u32 %v343, 4294901760
        %962 = vmatmul.mubr.f32.gmra.mrb[0].mxu0 %v961
        %v963 = vpop.f32.mrb[0].mxu0
        %v964 = vadd.f32 %v867, %v963
        %v965 = vpop.f32.mrb[0].mxu0
        %966 = vmatprep.mubr.f32.mxu0 0.0
        %v967 = vand.u32 %v346, 4294901760
        %968 = vmatmul.mubr.f32.gmra.mrb[0].mxu0 %v967
        %v969 = vpop.f32.mrb[0].mxu0
        %v970 = vadd.f32 %v873, %v969
        %v971 = vpop.f32.mrb[0].mxu0
        %972 = vmatprep.mubr.f32.mxu0 0.0
        %v973 = vand.u32 %v349, 4294901760
        %974 = vmatmul.mubr.f32.gmra.mrb[0].mxu0 %v973
        %v975 = vpop.f32.mrb[0].mxu0
        %v976 = vadd.f32 %v879, %v975
        %v977 = vpop.f32.mrb[0].mxu0
        %978 = vmatprep.mubr.f32.mxu0 0.0
        %v979 = vand.u32 %v352, 4294901760
        %980 = vmatmul.mubr.f32.gmra.mrb[0].mxu0 %v979
        %v981 = vpop.f32.mrb[0].mxu0
        %v982 = vadd.f32 %v885, %v981
        %v983 = vpop.f32.mrb[0].mxu0
        %984 = vdwg.mxu0
        %v986 = vsel %vm338, %v958, 0
        %v989 = vsel %vm338, %v964, 0
        %v992 = vsel %vm338, %v970, 0
        %v995 = vsel %vm338, %v976, 0
        %v998 = vsel %vm338, %v982, 0
        %1000 = vmatprep.subr.mxu0 0.0
        %v1001 = vand.u32 %v334, 4294901760
        %1002 = vmatpush1.msra.mxu0 %v1001
        %1003 = vmatprep.subr.mxu0 0.0
        %v1004 = vand.u32 %v335, 4294901760
        %1005 = vmatpush1.msra.mxu0 %v1004
        %1006 = vmatprep.subr.mxu0 0.0
        %1007 = vmatpush1.msra.mxu0 0.0
        %1008 = vmatprep.subr.mxu0 0.0
        %1009 = vmatpush1.msra.mxu0 0.0
        %1010 = vmatprep.subr.mxu0 0.0
        %1011 = vmatpush1.msra.mxu0 0.0
        %1012 = vmatprep.subr.mxu0 0.0
        %1013 = vmatpush1.msra.mxu0 0.0
        %1014 = vmatprep.subr.mxu0 0.0
        %1015 = vmatpush1.msra.mxu0 0.0
        %1016 = vmatprep.subr.mxu0 0.0
        %1017 = vmatpush1.msra.mxu0 0.0
        %1018 = vmatprep.subr.mxu0 0.0
        %1019 = vmatpush1.msra.mxu0 0.0
        %1020 = vmatprep.subr.mxu0 0.0
        %1021 = vmatpush1.msra.mxu0 0.0
        %1022 = vmatprep.subr.mxu0 0.0
        %1023 = vmatpush1.msra.mxu0 0.0
        %1024 = vmatprep.subr.mxu0 0.0
        %1025 = vmatpush1.msra.mxu0 0.0
        %1026 = vmatprep.subr.mxu0 0.0
        %1027 = vmatpush1.msra.mxu0 0.0
        %1028 = vmatprep.subr.mxu0 0.0
        %1029 = vmatpush1.msra.mxu0 0.0
        %1030 = vmatprep.subr.mxu0 0.0
        %1031 = vmatpush1.msra.mxu0 0.0
        %1032 = vmatprep.subr.mxu0 0.0
        %1033 = vmatpush1.msra.mxu0 0.0
        %1034 = vmatprep.subr.mxu0 0.0
        %1035 = vmatpush1.msra.mxu0 0.0
        %1036 = vmatprep.subr.mxu0 0.0
        %1037 = vmatpush1.msra.mxu0 0.0
        %1038 = vmatprep.subr.mxu0 0.0
        %1039 = vmatpush1.msra.mxu0 0.0
        %1040 = vmatprep.subr.mxu0 0.0
        %1041 = vmatpush1.msra.mxu0 0.0
        %1042 = vmatprep.subr.mxu0 0.0
        %1043 = vmatpush1.msra.mxu0 0.0
        %1044 = vmatprep.subr.mxu0 0.0
        %1045 = vmatpush1.msra.mxu0 0.0
        %1046 = vmatprep.subr.mxu0 0.0
        %1047 = vmatpush1.msra.mxu0 0.0
        %1048 = vmatprep.subr.mxu0 0.0
        %1049 = vmatpush1.msra.mxu0 0.0
        %1050 = vmatprep.subr.mxu0 0.0
        %1051 = vmatpush1.msra.mxu0 0.0
        %1052 = vmatprep.subr.mxu0 0.0
        %1053 = vmatpush1.msra.mxu0 0.0
        %1054 = vmatprep.subr.mxu0 0.0
        %1055 = vmatpush1.msra.mxu0 0.0
        %1056 = vmatprep.subr.mxu0 0.0
        %1057 = vmatpush1.msra.mxu0 0.0
        %1058 = vmatprep.subr.mxu0 0.0
        %1059 = vmatpush1.msra.mxu0 0.0
        %1060 = vmatprep.subr.mxu0 0.0
        %1061 = vmatpush1.msra.mxu0 0.0
        %1062 = vmatprep.subr.mxu0 0.0
        %1063 = vmatpush1.msra.mxu0 0.0
        %1064 = vmatprep.subr.mxu0 0.0
        %1065 = vmatpush1.msra.mxu0 0.0
        %1066 = vmatprep.mubr.f32.mxu0 0.0
        %v1067 = vand.u32 %v986, 4294901760
        %v1068 = vsub.f32 %v986, %v1067
        %v1069 = vand.u32 %v1068, 4294901760
        %v1070 = vsub.f32 %v1068, %v1069
        %v1071 = vand.u32 %v1070, 4294901760
        %1072 = vmatmul.mubr.f32.gmra.mrb[0].mxu0 %v1071
        %v1073 = vpop.f32.mrb[0].mxu0
        %v1074 = vadd.f32 0.0, %v1073
        %v1075 = vpop.f32.mrb[0].mxu0
        %1076 = vmatprep.mubr.f32.mxu0 0.0
        %v1077 = vand.u32 %v989, 4294901760
        %v1078 = vsub.f32 %v989, %v1077
        %v1079 = vand.u32 %v1078, 4294901760
        %v1080 = vsub.f32 %v1078, %v1079
        %v1081 = vand.u32 %v1080, 4294901760
        %1082 = vmatmul.mubr.f32.gmra.mrb[0].mxu0 %v1081
        %v1083 = vpop.f32.mrb[0].mxu0
        %v1084 = vadd.f32 0.0, %v1083
        %v1085 = vpop.f32.mrb[0].mxu0
        %1086 = vmatprep.mubr.f32.mxu0 0.0
        %v1087 = vand.u32 %v992, 4294901760
        %v1088 = vsub.f32 %v992, %v1087
        %v1089 = vand.u32 %v1088, 4294901760
        %v1090 = vsub.f32 %v1088, %v1089
        %v1091 = vand.u32 %v1090, 4294901760
        %1092 = vmatmul.mubr.f32.gmra.mrb[0].mxu0 %v1091
        %v1093 = vpop.f32.mrb[0].mxu0
        %v1094 = vadd.f32 0.0, %v1093
        %v1095 = vpop.f32.mrb[0].mxu0
        %1096 = vmatprep.mubr.f32.mxu0 0.0
        %v1097 = vand.u32 %v995, 4294901760
        %v1098 = vsub.f32 %v995, %v1097
        %v1099 = vand.u32 %v1098, 4294901760
        %v1100 = vsub.f32 %v1098, %v1099
        %v1101 = vand.u32 %v1100, 4294901760
        %1102 = vmatmul.mubr.f32.gmra.mrb[0].mxu0 %v1101
        %v1103 = vpop.f32.mrb[0].mxu0
        %v1104 = vadd.f32 0.0, %v1103
        %v1105 = vpop.f32.mrb[0].mxu0
        %1106 = vmatprep.mubr.f32.mxu0 0.0
        %v1107 = vand.u32 %v998, 4294901760
        %v1108 = vsub.f32 %v998, %v1107
        %v1109 = vand.u32 %v1108, 4294901760
        %v1110 = vsub.f32 %v1108, %v1109
        %v1111 = vand.u32 %v1110, 4294901760
        %1112 = vmatmul.mubr.f32.gmra.mrb[0].mxu0 %v1111
        %v1113 = vpop.f32.mrb[0].mxu0
        %v1114 = vadd.f32 0.0, %v1113
        %v1115 = vpop.f32.mrb[0].mxu0
        %1116 = vdwg.mxu0
        %1117 = vmatprep.subr.mxu0 0.0
        %v1118 = vand.u32 %v334, 4294901760
        %v1119 = vsub.f32 %v334, %v1118
        %v1120 = vand.u32 %v1119, 4294901760
        %v1121 = vsub.f32 %v1119, %v1120
        %v1122 = vand.u32 %v1121, 4294901760
        %1123 = vmatpush1.msra.mxu0 %v1122
        %1124 = vmatprep.subr.mxu0 0.0
        %v1125 = vand.u32 %v335, 4294901760
        %v1126 = vsub.f32 %v335, %v1125
        %v1127 = vand.u32 %v1126, 4294901760
        %v1128 = vsub.f32 %v1126, %v1127
        %v1129 = vand.u32 %v1128, 4294901760
        %1130 = vmatpush1.msra.mxu0 %v1129
        %1131 = vmatprep.subr.mxu0 0.0
        %1132 = vmatpush1.msra.mxu0 0.0
        %1133 = vmatprep.subr.mxu0 0.0
        %1134 = vmatpush1.msra.mxu0 0.0
        %1135 = vmatprep.subr.mxu0 0.0
        %1136 = vmatpush1.msra.mxu0 0.0
        %1137 = vmatprep.subr.mxu0 0.0
        %1138 = vmatpush1.msra.mxu0 0.0
        %1139 = vmatprep.subr.mxu0 0.0
        %1140 = vmatpush1.msra.mxu0 0.0
        %1141 = vmatprep.subr.mxu0 0.0
        %1142 = vmatpush1.msra.mxu0 0.0
        %1143 = vmatprep.subr.mxu0 0.0
        %1144 = vmatpush1.msra.mxu0 0.0
        %1145 = vmatprep.subr.mxu0 0.0
        %1146 = vmatpush1.msra.mxu0 0.0
        %1147 = vmatprep.subr.mxu0 0.0
        %1148 = vmatpush1.msra.mxu0 0.0
        %1149 = vmatprep.subr.mxu0 0.0
        %1150 = vmatpush1.msra.mxu0 0.0
        %1151 = vmatprep.subr.mxu0 0.0
        %1152 = vmatpush1.msra.mxu0 0.0
        %1153 = vmatprep.subr.mxu0 0.0
        %1154 = vmatpush1.msra.mxu0 0.0
        %1155 = vmatprep.subr.mxu0 0.0
        %1156 = vmatpush1.msra.mxu0 0.0
        %1157 = vmatprep.subr.mxu0 0.0
        %1158 = vmatpush1.msra.mxu0 0.0
        %1159 = vmatprep.subr.mxu0 0.0
        %1160 = vmatpush1.msra.mxu0 0.0
        %1161 = vmatprep.subr.mxu0 0.0
        %1162 = vmatpush1.msra.mxu0 0.0
        %1163 = vmatprep.subr.mxu0 0.0
        %1164 = vmatpush1.msra.mxu0 0.0
        %1165 = vmatprep.subr.mxu0 0.0
        %1166 = vmatpush1.msra.mxu0 0.0
        %1167 = vmatprep.subr.mxu0 0.0
        %1168 = vmatpush1.msra.mxu0 0.0
        %1169 = vmatprep.subr.mxu0 0.0
        %1170 = vmatpush1.msra.mxu0 0.0
        %1171 = vmatprep.subr.mxu0 0.0
        %1172 = vmatpush1.msra.mxu0 0.0
        %1173 = vmatprep.subr.mxu0 0.0
        %1174 = vmatpush1.msra.mxu0 0.0
        %1175 = vmatprep.subr.mxu0 0.0
        %1176 = vmatpush1.msra.mxu0 0.0
        %1177 = vmatprep.subr.mxu0 0.0
        %1178 = vmatpush1.msra.mxu0 0.0
        %1179 = vmatprep.subr.mxu0 0.0
        %1180 = vmatpush1.msra.mxu0 0.0
        %1181 = vmatprep.subr.mxu0 0.0
        %1182 = vmatpush1.msra.mxu0 0.0
        %1183 = vmatprep.subr.mxu0 0.0
        %1184 = vmatpush1.msra.mxu0 0.0
        %1185 = vmatprep.subr.mxu0 0.0
        %1186 = vmatpush1.msra.mxu0 0.0
        %1187 = vmatprep.subr.mxu0 0.0
        %1188 = vmatpush1.msra.mxu0 0.0
        %1189 = vmatprep.subr.mxu0 0.0
        %1190 = vmatpush1.msra.mxu0 0.0
        %1191 = vmatprep.mubr.f32.mxu0 0.0
        %v1192 = vand.u32 %v986, 4294901760
        %1193 = vmatmul.mubr.f32.gmra.mrb[0].mxu0 %v1192
        %v1194 = vpop.f32.mrb[0].mxu0
        %v1195 = vadd.f32 %v1074, %v1194
        %v1196 = vpop.f32.mrb[0].mxu0
        %1197 = vmatprep.mubr.f32.mxu0 0.0
        %v1198 = vand.u32 %v989, 4294901760
        %1199 = vmatmul.mubr.f32.gmra.mrb[0].mxu0 %v1198
        %v1200 = vpop.f32.mrb[0].mxu0
        %v1201 = vadd.f32 %v1084, %v1200
        %v1202 = vpop.f32.mrb[0].mxu0
        %1203 = vmatprep.mubr.f32.mxu0 0.0
        %v1204 = vand.u32 %v992, 4294901760
        %1205 = vmatmul.mubr.f32.gmra.mrb[0].mxu0 %v1204
        %v1206 = vpop.f32.mrb[0].mxu0
        %v1207 = vadd.f32 %v1094, %v1206
        %v1208 = vpop.f32.mrb[0].mxu0
        %1209 = vmatprep.mubr.f32.mxu0 0.0
        %v1210 = vand.u32 %v995, 4294901760
        %1211 = vmatmul.mubr.f32.gmra.mrb[0].mxu0 %v1210
        %v1212 = vpop.f32.mrb[0].mxu0
        %v1213 = vadd.f32 %v1104, %v1212
        %v1214 = vpop.f32.mrb[0].mxu0
        %1215 = vmatprep.mubr.f32.mxu0 0.0
        %v1216 = vand.u32 %v998, 4294901760
        %1217 = vmatmul.mubr.f32.gmra.mrb[0].mxu0 %v1216
        %v1218 = vpop.f32.mrb[0].mxu0
        %v1219 = vadd.f32 %v1114, %v1218
        %v1220 = vpop.f32.mrb[0].mxu0
        %1221 = vdwg.mxu0
        %1222 = vmatprep.subr.mxu0 0.0
        %v1223 = vand.u32 %v334, 4294901760
        %v1224 = vsub.f32 %v334, %v1223
        %1225 = vmatpush1.msra.mxu0 %v1224
        %1226 = vmatprep.subr.mxu0 0.0
        %v1227 = vand.u32 %v335, 4294901760
        %v1228 = vsub.f32 %v335, %v1227
        %1229 = vmatpush1.msra.mxu0 %v1228
        %1230 = vmatprep.subr.mxu0 0.0
        %1231 = vmatpush1.msra.mxu0 0.0
        %1232 = vmatprep.subr.mxu0 0.0
        %1233 = vmatpush1.msra.mxu0 0.0
        %1234 = vmatprep.subr.mxu0 0.0
        %1235 = vmatpush1.msra.mxu0 0.0
        %1236 = vmatprep.subr.mxu0 0.0
        %1237 = vmatpush1.msra.mxu0 0.0
        %1238 = vmatprep.subr.mxu0 0.0
        %1239 = vmatpush1.msra.mxu0 0.0
        %1240 = vmatprep.subr.mxu0 0.0
        %1241 = vmatpush1.msra.mxu0 0.0
        %1242 = vmatprep.subr.mxu0 0.0
        %1243 = vmatpush1.msra.mxu0 0.0
        %1244 = vmatprep.subr.mxu0 0.0
        %1245 = vmatpush1.msra.mxu0 0.0
        %1246 = vmatprep.subr.mxu0 0.0
        %1247 = vmatpush1.msra.mxu0 0.0
        %1248 = vmatprep.subr.mxu0 0.0
        %1249 = vmatpush1.msra.mxu0 0.0
        %1250 = vmatprep.subr.mxu0 0.0
        %1251 = vmatpush1.msra.mxu0 0.0
        %1252 = vmatprep.subr.mxu0 0.0
        %1253 = vmatpush1.msra.mxu0 0.0
        %1254 = vmatprep.subr.mxu0 0.0
        %1255 = vmatpush1.msra.mxu0 0.0
        %1256 = vmatprep.subr.mxu0 0.0
        %1257 = vmatpush1.msra.mxu0 0.0
        %1258 = vmatprep.subr.mxu0 0.0
        %1259 = vmatpush1.msra.mxu0 0.0
        %1260 = vmatprep.subr.mxu0 0.0
        %1261 = vmatpush1.msra.mxu0 0.0
        %1262 = vmatprep.subr.mxu0 0.0
        %1263 = vmatpush1.msra.mxu0 0.0
        %1264 = vmatprep.subr.mxu0 0.0
        %1265 = vmatpush1.msra.mxu0 0.0
        %1266 = vmatprep.subr.mxu0 0.0
        %1267 = vmatpush1.msra.mxu0 0.0
        %1268 = vmatprep.subr.mxu0 0.0
        %1269 = vmatpush1.msra.mxu0 0.0
        %1270 = vmatprep.subr.mxu0 0.0
        %1271 = vmatpush1.msra.mxu0 0.0
        %1272 = vmatprep.subr.mxu0 0.0
        %1273 = vmatpush1.msra.mxu0 0.0
        %1274 = vmatprep.subr.mxu0 0.0
        %1275 = vmatpush1.msra.mxu0 0.0
        %1276 = vmatprep.subr.mxu0 0.0
        %1277 = vmatpush1.msra.mxu0 0.0
        %1278 = vmatprep.subr.mxu0 0.0
        %1279 = vmatpush1.msra.mxu0 0.0
        %1280 = vmatprep.subr.mxu0 0.0
        %1281 = vmatpush1.msra.mxu0 0.0
        %1282 = vmatprep.subr.mxu0 0.0
        %1283 = vmatpush1.msra.mxu0 0.0
        %1284 = vmatprep.subr.mxu0 0.0
        %1285 = vmatpush1.msra.mxu0 0.0
        %1286 = vmatprep.subr.mxu0 0.0
        %1287 = vmatpush1.msra.mxu0 0.0
        %1288 = vmatprep.subr.mxu0 0.0
        %1289 = vmatpush1.msra.mxu0 0.0
        %1290 = vmatprep.mubr.f32.mxu0 0.0
        %v1291 = vand.u32 %v986, 4294901760
        %v1292 = vsub.f32 %v986, %v1291
        %1293 = vmatmul.mubr.f32.gmra.mrb[0].mxu0 %v1292
        %v1294 = vpop.f32.mrb[0].mxu0
        %v1295 = vadd.f32 %v1195, %v1294
        %v1296 = vpop.f32.mrb[0].mxu0
        %1297 = vmatprep.mubr.f32.mxu0 0.0
        %v1298 = vand.u32 %v989, 4294901760
        %v1299 = vsub.f32 %v989, %v1298
        %1300 = vmatmul.mubr.f32.gmra.mrb[0].mxu0 %v1299
        %v1301 = vpop.f32.mrb[0].mxu0
        %v1302 = vadd.f32 %v1201, %v1301
        %v1303 = vpop.f32.mrb[0].mxu0
        %1304 = vmatprep.mubr.f32.mxu0 0.0
        %v1305 = vand.u32 %v992, 4294901760
        %v1306 = vsub.f32 %v992, %v1305
        %1307 = vmatmul.mubr.f32.gmra.mrb[0].mxu0 %v1306
        %v1308 = vpop.f32.mrb[0].mxu0
        %v1309 = vadd.f32 %v1207, %v1308
        %v1310 = vpop.f32.mrb[0].mxu0
        %1311 = vmatprep.mubr.f32.mxu0 0.0
        %v1312 = vand.u32 %v995, 4294901760
        %v1313 = vsub.f32 %v995, %v1312
        %1314 = vmatmul.mubr.f32.gmra.mrb[0].mxu0 %v1313
        %v1315 = vpop.f32.mrb[0].mxu0
        %v1316 = vadd.f32 %v1213, %v1315
        %v1317 = vpop.f32.mrb[0].mxu0
        %1318 = vmatprep.mubr.f32.mxu0 0.0
        %v1319 = vand.u32 %v998, 4294901760
        %v1320 = vsub.f32 %v998, %v1319
        %1321 = vmatmul.mubr.f32.gmra.mrb[0].mxu0 %v1320
        %v1322 = vpop.f32.mrb[0].mxu0
        %v1323 = vadd.f32 %v1219, %v1322
        %v1324 = vpop.f32.mrb[0].mxu0
        %1325 = vdwg.mxu0
        %1326 = vmatprep.subr.mxu0 0.0
        %v1327 = vand.u32 %v334, 4294901760
        %1328 = vmatpush1.msra.mxu0 %v1327
        %1329 = vmatprep.subr.mxu0 0.0
        %v1330 = vand.u32 %v335, 4294901760
        %1331 = vmatpush1.msra.mxu0 %v1330
        %1332 = vmatprep.subr.mxu0 0.0
        %1333 = vmatpush1.msra.mxu0 0.0
        %1334 = vmatprep.subr.mxu0 0.0
        %1335 = vmatpush1.msra.mxu0 0.0
        %1336 = vmatprep.subr.mxu0 0.0
        %1337 = vmatpush1.msra.mxu0 0.0
        %1338 = vmatprep.subr.mxu0 0.0
        %1339 = vmatpush1.msra.mxu0 0.0
        %1340 = vmatprep.subr.mxu0 0.0
        %1341 = vmatpush1.msra.mxu0 0.0
        %1342 = vmatprep.subr.mxu0 0.0
        %1343 = vmatpush1.msra.mxu0 0.0
        %1344 = vmatprep.subr.mxu0 0.0
        %1345 = vmatpush1.msra.mxu0 0.0
        %1346 = vmatprep.subr.mxu0 0.0
        %1347 = vmatpush1.msra.mxu0 0.0
        %1348 = vmatprep.subr.mxu0 0.0
        %1349 = vmatpush1.msra.mxu0 0.0
        %1350 = vmatprep.subr.mxu0 0.0
        %1351 = vmatpush1.msra.mxu0 0.0
        %1352 = vmatprep.subr.mxu0 0.0
        %1353 = vmatpush1.msra.mxu0 0.0
        %1354 = vmatprep.subr.mxu0 0.0
        %1355 = vmatpush1.msra.mxu0 0.0
        %1356 = vmatprep.subr.mxu0 0.0
        %1357 = vmatpush1.msra.mxu0 0.0
        %1358 = vmatprep.subr.mxu0 0.0
        %1359 = vmatpush1.msra.mxu0 0.0
        %1360 = vmatprep.subr.mxu0 0.0
        %1361 = vmatpush1.msra.mxu0 0.0
        %1362 = vmatprep.subr.mxu0 0.0
        %1363 = vmatpush1.msra.mxu0 0.0
        %1364 = vmatprep.subr.mxu0 0.0
        %1365 = vmatpush1.msra.mxu0 0.0
        %1366 = vmatprep.subr.mxu0 0.0
        %1367 = vmatpush1.msra.mxu0 0.0
        %1368 = vmatprep.subr.mxu0 0.0
        %1369 = vmatpush1.msra.mxu0 0.0
        %1370 = vmatprep.subr.mxu0 0.0
        %1371 = vmatpush1.msra.mxu0 0.0
        %1372 = vmatprep.subr.mxu0 0.0
        %1373 = vmatpush1.msra.mxu0 0.0
        %1374 = vmatprep.subr.mxu0 0.0
        %1375 = vmatpush1.msra.mxu0 0.0
        %1376 = vmatprep.subr.mxu0 0.0
        %1377 = vmatpush1.msra.mxu0 0.0
        %1378 = vmatprep.subr.mxu0 0.0
        %1379 = vmatpush1.msra.mxu0 0.0
        %1380 = vmatprep.subr.mxu0 0.0
        %1381 = vmatpush1.msra.mxu0 0.0
        %1382 = vmatprep.subr.mxu0 0.0
        %1383 = vmatpush1.msra.mxu0 0.0
        %1384 = vmatprep.subr.mxu0 0.0
        %1385 = vmatpush1.msra.mxu0 0.0
        %1386 = vmatprep.subr.mxu0 0.0
        %1387 = vmatpush1.msra.mxu0 0.0
        %1388 = vmatprep.subr.mxu0 0.0
        %1389 = vmatpush1.msra.mxu0 0.0
        %1390 = vmatprep.subr.mxu0 0.0
        %1391 = vmatpush1.msra.mxu0 0.0
        %1392 = vmatprep.mubr.f32.mxu0 0.0
        %v1393 = vand.u32 %v986, 4294901760
        %v1394 = vsub.f32 %v986, %v1393
        %v1395 = vand.u32 %v1394, 4294901760
        %1396 = vmatmul.mubr.f32.gmra.mrb[0].mxu0 %v1395
        %v1397 = vpop.f32.mrb[0].mxu0
        %v1398 = vadd.f32 %v1295, %v1397
        %v1399 = vpop.f32.mrb[0].mxu0
        %1400 = vmatprep.mubr.f32.mxu0 0.0
        %v1401 = vand.u32 %v989, 4294901760
        %v1402 = vsub.f32 %v989, %v1401
        %v1403 = vand.u32 %v1402, 4294901760
        %1404 = vmatmul.mubr.f32.gmra.mrb[0].mxu0 %v1403
        %v1405 = vpop.f32.mrb[0].mxu0
        %v1406 = vadd.f32 %v1302, %v1405
        %v1407 = vpop.f32.mrb[0].mxu0
        %1408 = vmatprep.mubr.f32.mxu0 0.0
        %v1409 = vand.u32 %v992, 4294901760
        %v1410 = vsub.f32 %v992, %v1409
        %v1411 = vand.u32 %v1410, 4294901760
        %1412 = vmatmul.mubr.f32.gmra.mrb[0].mxu0 %v1411
        %v1413 = vpop.f32.mrb[0].mxu0
        %v1414 = vadd.f32 %v1309, %v1413
        %v1415 = vpop.f32.mrb[0].mxu0
        %1416 = vmatprep.mubr.f32.mxu0 0.0
        %v1417 = vand.u32 %v995, 4294901760
        %v1418 = vsub.f32 %v995, %v1417
        %v1419 = vand.u32 %v1418, 4294901760
        %1420 = vmatmul.mubr.f32.gmra.mrb[0].mxu0 %v1419
        %v1421 = vpop.f32.mrb[0].mxu0
        %v1422 = vadd.f32 %v1316, %v1421
        %v1423 = vpop.f32.mrb[0].mxu0
        %1424 = vmatprep.mubr.f32.mxu0 0.0
        %v1425 = vand.u32 %v998, 4294901760
        %v1426 = vsub.f32 %v998, %v1425
        %v1427 = vand.u32 %v1426, 4294901760
        %1428 = vmatmul.mubr.f32.gmra.mrb[0].mxu0 %v1427
        %v1429 = vpop.f32.mrb[0].mxu0
        %v1430 = vadd.f32 %v1323, %v1429
        %v1431 = vpop.f32.mrb[0].mxu0
        %1432 = vdwg.mxu0
        %1433 = vmatprep.subr.mxu0 0.0
        %v1434 = vand.u32 %v334, 4294901760
        %v1435 = vsub.f32 %v334, %v1434
        %v1436 = vand.u32 %v1435, 4294901760
        %1437 = vmatpush1.msra.mxu0 %v1436
        %1438 = vmatprep.subr.mxu0 0.0
        %v1439 = vand.u32 %v335, 4294901760
        %v1440 = vsub.f32 %v335, %v1439
        %v1441 = vand.u32 %v1440, 4294901760
        %1442 = vmatpush1.msra.mxu0 %v1441
        %1443 = vmatprep.subr.mxu0 0.0
        %1444 = vmatpush1.msra.mxu0 0.0
        %1445 = vmatprep.subr.mxu0 0.0
        %1446 = vmatpush1.msra.mxu0 0.0
        %1447 = vmatprep.subr.mxu0 0.0
        %1448 = vmatpush1.msra.mxu0 0.0
        %1449 = vmatprep.subr.mxu0 0.0
        %1450 = vmatpush1.msra.mxu0 0.0
        %1451 = vmatprep.subr.mxu0 0.0
        %1452 = vmatpush1.msra.mxu0 0.0
        %1453 = vmatprep.subr.mxu0 0.0
        %1454 = vmatpush1.msra.mxu0 0.0
        %1455 = vmatprep.subr.mxu0 0.0
        %1456 = vmatpush1.msra.mxu0 0.0
        %1457 = vmatprep.subr.mxu0 0.0
        %1458 = vmatpush1.msra.mxu0 0.0
        %1459 = vmatprep.subr.mxu0 0.0
        %1460 = vmatpush1.msra.mxu0 0.0
        %1461 = vmatprep.subr.mxu0 0.0
        %1462 = vmatpush1.msra.mxu0 0.0
        %1463 = vmatprep.subr.mxu0 0.0
        %1464 = vmatpush1.msra.mxu0 0.0
        %1465 = vmatprep.subr.mxu0 0.0
        %1466 = vmatpush1.msra.mxu0 0.0
        %1467 = vmatprep.subr.mxu0 0.0
        %1468 = vmatpush1.msra.mxu0 0.0
        %1469 = vmatprep.subr.mxu0 0.0
        %1470 = vmatpush1.msra.mxu0 0.0
        %1471 = vmatprep.subr.mxu0 0.0
        %1472 = vmatpush1.msra.mxu0 0.0
        %1473 = vmatprep.subr.mxu0 0.0
        %1474 = vmatpush1.msra.mxu0 0.0
        %1475 = vmatprep.subr.mxu0 0.0
        %1476 = vmatpush1.msra.mxu0 0.0
        %1477 = vmatprep.subr.mxu0 0.0
        %1478 = vmatpush1.msra.mxu0 0.0
        %1479 = vmatprep.subr.mxu0 0.0
        %1480 = vmatpush1.msra.mxu0 0.0
        %1481 = vmatprep.subr.mxu0 0.0
        %1482 = vmatpush1.msra.mxu0 0.0
        %1483 = vmatprep.subr.mxu0 0.0
        %1484 = vmatpush1.msra.mxu0 0.0
        %1485 = vmatprep.subr.mxu0 0.0
        %1486 = vmatpush1.msra.mxu0 0.0
        %1487 = vmatprep.subr.mxu0 0.0
        %1488 = vmatpush1.msra.mxu0 0.0
        %1489 = vmatprep.subr.mxu0 0.0
        %1490 = vmatpush1.msra.mxu0 0.0
        %1491 = vmatprep.subr.mxu0 0.0
        %1492 = vmatpush1.msra.mxu0 0.0
        %1493 = vmatprep.subr.mxu0 0.0
        %1494 = vmatpush1.msra.mxu0 0.0
        %1495 = vmatprep.subr.mxu0 0.0
        %1496 = vmatpush1.msra.mxu0 0.0
        %1497 = vmatprep.subr.mxu0 0.0
        %1498 = vmatpush1.msra.mxu0 0.0
        %1499 = vmatprep.subr.mxu0 0.0
        %1500 = vmatpush1.msra.mxu0 0.0
        %1501 = vmatprep.subr.mxu0 0.0
        %1502 = vmatpush1.msra.mxu0 0.0
        %1503 = vmatprep.mubr.f32.mxu0 0.0
        %v1504 = vand.u32 %v986, 4294901760
        %1505 = vmatmul.mubr.f32.gmra.mrb[0].mxu0 %v1504
        %v1506 = vpop.f32.mrb[0].mxu0
        %v1507 = vadd.f32 %v1398, %v1506
        %v1508 = vpop.f32.mrb[0].mxu0
        %1509 = vmatprep.mubr.f32.mxu0 0.0
        %v1510 = vand.u32 %v989, 4294901760
        %1511 = vmatmul.mubr.f32.gmra.mrb[0].mxu0 %v1510
        %v1512 = vpop.f32.mrb[0].mxu0
        %v1513 = vadd.f32 %v1406, %v1512
        %v1514 = vpop.f32.mrb[0].mxu0
        %1515 = vmatprep.mubr.f32.mxu0 0.0
        %v1516 = vand.u32 %v992, 4294901760
        %1517 = vmatmul.mubr.f32.gmra.mrb[0].mxu0 %v1516
        %v1518 = vpop.f32.mrb[0].mxu0
        %v1519 = vadd.f32 %v1414, %v1518
        %v1520 = vpop.f32.mrb[0].mxu0
        %1521 = vmatprep.mubr.f32.mxu0 0.0
        %v1522 = vand.u32 %v995, 4294901760
        %1523 = vmatmul.mubr.f32.gmra.mrb[0].mxu0 %v1522
        %v1524 = vpop.f32.mrb[0].mxu0
        %v1525 = vadd.f32 %v1422, %v1524
        %v1526 = vpop.f32.mrb[0].mxu0
        %1527 = vmatprep.mubr.f32.mxu0 0.0
        %v1528 = vand.u32 %v998, 4294901760
        %1529 = vmatmul.mubr.f32.gmra.mrb[0].mxu0 %v1528
        %v1530 = vpop.f32.mrb[0].mxu0
        %v1531 = vadd.f32 %v1430, %v1530
        %v1532 = vpop.f32.mrb[0].mxu0
        %1533 = vdwg.mxu0
        %1534 = vmatprep.subr.mxu0 0.0
        %v1535 = vand.u32 %v334, 4294901760
        %1536 = vmatpush1.msra.mxu0 %v1535
        %1537 = vmatprep.subr.mxu0 0.0
        %v1538 = vand.u32 %v335, 4294901760
        %1539 = vmatpush1.msra.mxu0 %v1538
        %1540 = vmatprep.subr.mxu0 0.0
        %1541 = vmatpush1.msra.mxu0 0.0
        %1542 = vmatprep.subr.mxu0 0.0
        %1543 = vmatpush1.msra.mxu0 0.0
        %1544 = vmatprep.subr.mxu0 0.0
        %1545 = vmatpush1.msra.mxu0 0.0
        %1546 = vmatprep.subr.mxu0 0.0
        %1547 = vmatpush1.msra.mxu0 0.0
        %1548 = vmatprep.subr.mxu0 0.0
        %1549 = vmatpush1.msra.mxu0 0.0
        %1550 = vmatprep.subr.mxu0 0.0
        %1551 = vmatpush1.msra.mxu0 0.0
        %1552 = vmatprep.subr.mxu0 0.0
        %1553 = vmatpush1.msra.mxu0 0.0
        %1554 = vmatprep.subr.mxu0 0.0
        %1555 = vmatpush1.msra.mxu0 0.0
        %1556 = vmatprep.subr.mxu0 0.0
        %1557 = vmatpush1.msra.mxu0 0.0
        %1558 = vmatprep.subr.mxu0 0.0
        %1559 = vmatpush1.msra.mxu0 0.0
        %1560 = vmatprep.subr.mxu0 0.0
        %1561 = vmatpush1.msra.mxu0 0.0
        %1562 = vmatprep.subr.mxu0 0.0
        %1563 = vmatpush1.msra.mxu0 0.0
        %1564 = vmatprep.subr.mxu0 0.0
        %1565 = vmatpush1.msra.mxu0 0.0
        %1566 = vmatprep.subr.mxu0 0.0
        %1567 = vmatpush1.msra.mxu0 0.0
        %1568 = vmatprep.subr.mxu0 0.0
        %1569 = vmatpush1.msra.mxu0 0.0
        %1570 = vmatprep.subr.mxu0 0.0
        %1571 = vmatpush1.msra.mxu0 0.0
        %1572 = vmatprep.subr.mxu0 0.0
        %1573 = vmatpush1.msra.mxu0 0.0
        %1574 = vmatprep.subr.mxu0 0.0
        %1575 = vmatpush1.msra.mxu0 0.0
        %1576 = vmatprep.subr.mxu0 0.0
        %1577 = vmatpush1.msra.mxu0 0.0
        %1578 = vmatprep.subr.mxu0 0.0
        %1579 = vmatpush1.msra.mxu0 0.0
        %1580 = vmatprep.subr.mxu0 0.0
        %1581 = vmatpush1.msra.mxu0 0.0
        %1582 = vmatprep.subr.mxu0 0.0
        %1583 = vmatpush1.msra.mxu0 0.0
        %1584 = vmatprep.subr.mxu0 0.0
        %1585 = vmatpush1.msra.mxu0 0.0
        %1586 = vmatprep.subr.mxu0 0.0
        %1587 = vmatpush1.msra.mxu0 0.0
        %1588 = vmatprep.subr.mxu0 0.0
        %1589 = vmatpush1.msra.mxu0 0.0
        %1590 = vmatprep.subr.mxu0 0.0
        %1591 = vmatpush1.msra.mxu0 0.0
        %1592 = vmatprep.subr.mxu0 0.0
        %1593 = vmatpush1.msra.mxu0 0.0
        %1594 = vmatprep.subr.mxu0 0.0
        %1595 = vmatpush1.msra.mxu0 0.0
        %1596 = vmatprep.subr.mxu0 0.0
        %1597 = vmatpush1.msra.mxu0 0.0
        %1598 = vmatprep.subr.mxu0 0.0
        %1599 = vmatpush1.msra.mxu0 0.0
        %1600 = vmatprep.mubr.f32.mxu0 0.0
        %v1601 = vand.u32 %v986, 4294901760
        %1602 = vmatmul.mubr.f32.gmra.mrb[0].mxu0 %v1601
        %v1603 = vpop.f32.mrb[0].mxu0
        %v1604 = vadd.f32 %v1507, %v1603
        %v1605 = vpop.f32.mrb[0].mxu0
        %1606 = vmatprep.mubr.f32.mxu0 0.0
        %v1607 = vand.u32 %v989, 4294901760
        %1608 = vmatmul.mubr.f32.gmra.mrb[0].mxu0 %v1607
        %v1609 = vpop.f32.mrb[0].mxu0
        %v1610 = vadd.f32 %v1513, %v1609
        %v1611 = vpop.f32.mrb[0].mxu0
        %1612 = vmatprep.mubr.f32.mxu0 0.0
        %v1613 = vand.u32 %v992, 4294901760
        %1614 = vmatmul.mubr.f32.gmra.mrb[0].mxu0 %v1613
        %v1615 = vpop.f32.mrb[0].mxu0
        %v1616 = vadd.f32 %v1519, %v1615
        %v1617 = vpop.f32.mrb[0].mxu0
        %1618 = vmatprep.mubr.f32.mxu0 0.0
        %v1619 = vand.u32 %v995, 4294901760
        %1620 = vmatmul.mubr.f32.gmra.mrb[0].mxu0 %v1619
        %v1621 = vpop.f32.mrb[0].mxu0
        %v1622 = vadd.f32 %v1525, %v1621
        %v1623 = vpop.f32.mrb[0].mxu0
        %1624 = vmatprep.mubr.f32.mxu0 0.0
        %v1625 = vand.u32 %v998, 4294901760
        %1626 = vmatmul.mubr.f32.gmra.mrb[0].mxu0 %v1625
        %v1627 = vpop.f32.mrb[0].mxu0
        %v1628 = vadd.f32 %v1531, %v1627
        %v1629 = vpop.f32.mrb[0].mxu0
        %1630 = vdwg.mxu0
        %vm1631 = vcmask 293888
        %1632 = vst.msk [vmem:[#allocation2] sm:$0xff] %vm1631, %v1604
        %1633 = vst.msk [vmem:[#allocation2 + $0x8] sm:$0xff] %vm1631, %v1610
        %1634 = vst.msk [vmem:[#allocation2 + $0x10] sm:$0xff] %vm1631, %v1616
        %1635 = vst.msk [vmem:[#allocation2 + $0x18] sm:$0xff] %vm1631, %v1622
        %vm1636 = vcmask 289792
        %1637 = vst.msk [vmem:[#allocation2 + $0x20] sm:$0xf] %vm1636, %v1628
        %s1638 = scalar_lea.vmem %s328, 16
        %v1639 = vld [vmem:[%s1638] sm:$0xff]
        %v1640 = vld [vmem:[%s1638 + $0x8] sm:$0xff]
        %1641 = vmatprep.subr.mxu0 0.0
        %v1642 = vand.u32 %v1639, 4294901760
        %1643 = vmatpush1.msra.mxu0 %v1642
        %1644 = vmatprep.subr.mxu0 0.0
        %v1645 = vand.u32 %v1640, 4294901760
        %1646 = vmatpush1.msra.mxu0 %v1645
        %1647 = vmatprep.subr.mxu0 0.0
        %1648 = vmatpush1.msra.mxu0 0.0
        %1649 = vmatprep.subr.mxu0 0.0
        %1650 = vmatpush1.msra.mxu0 0.0
        %1651 = vmatprep.subr.mxu0 0.0
        %1652 = vmatpush1.msra.mxu0 0.0
        %1653 = vmatprep.subr.mxu0 0.0
        %1654 = vmatpush1.msra.mxu0 0.0
        %1655 = vmatprep.subr.mxu0 0.0
        %1656 = vmatpush1.msra.mxu0 0.0
        %1657 = vmatprep.subr.mxu0 0.0
        %1658 = vmatpush1.msra.mxu0 0.0
        %1659 = vmatprep.subr.mxu0 0.0
        %1660 = vmatpush1.msra.mxu0 0.0
        %1661 = vmatprep.subr.mxu0 0.0
        %1662 = vmatpush1.msra.mxu0 0.0
        %1663 = vmatprep.subr.mxu0 0.0
        %1664 = vmatpush1.msra.mxu0 0.0
        %1665 = vmatprep.subr.mxu0 0.0
        %1666 = vmatpush1.msra.mxu0 0.0
        %1667 = vmatprep.subr.mxu0 0.0
        %1668 = vmatpush1.msra.mxu0 0.0
        %1669 = vmatprep.subr.mxu0 0.0
        %1670 = vmatpush1.msra.mxu0 0.0
        %1671 = vmatprep.subr.mxu0 0.0
        %1672 = vmatpush1.msra.mxu0 0.0
        %1673 = vmatprep.subr.mxu0 0.0
        %1674 = vmatpush1.msra.mxu0 0.0
        %1675 = vmatprep.subr.mxu0 0.0
        %1676 = vmatpush1.msra.mxu0 0.0
        %1677 = vmatprep.subr.mxu0 0.0
        %1678 = vmatpush1.msra.mxu0 0.0
        %1679 = vmatprep.subr.mxu0 0.0
        %1680 = vmatpush1.msra.mxu0 0.0
        %1681 = vmatprep.subr.mxu0 0.0
        %1682 = vmatpush1.msra.mxu0 0.0
        %1683 = vmatprep.subr.mxu0 0.0
        %1684 = vmatpush1.msra.mxu0 0.0
        %1685 = vmatprep.subr.mxu0 0.0
        %1686 = vmatpush1.msra.mxu0 0.0
        %1687 = vmatprep.subr.mxu0 0.0
        %1688 = vmatpush1.msra.mxu0 0.0
        %1689 = vmatprep.subr.mxu0 0.0
        %1690 = vmatpush1.msra.mxu0 0.0
        %1691 = vmatprep.subr.mxu0 0.0
        %1692 = vmatpush1.msra.mxu0 0.0
        %1693 = vmatprep.subr.mxu0 0.0
        %1694 = vmatpush1.msra.mxu0 0.0
        %1695 = vmatprep.subr.mxu0 0.0
        %1696 = vmatpush1.msra.mxu0 0.0
        %1697 = vmatprep.subr.mxu0 0.0
        %1698 = vmatpush1.msra.mxu0 0.0
        %1699 = vmatprep.subr.mxu0 0.0
        %1700 = vmatpush1.msra.mxu0 0.0
        %1701 = vmatprep.subr.mxu0 0.0
        %1702 = vmatpush1.msra.mxu0 0.0
        %1703 = vmatprep.subr.mxu0 0.0
        %1704 = vmatpush1.msra.mxu0 0.0
        %1705 = vmatprep.subr.mxu0 0.0
        %1706 = vmatpush1.msra.mxu0 0.0
        %1707 = vmatprep.mubr.f32.mxu0 0.0
        %v1708 = vand.u32 %v340, 4294901760
        %v1709 = vsub.f32 %v340, %v1708
        %v1710 = vand.u32 %v1709, 4294901760
        %v1711 = vsub.f32 %v1709, %v1710
        %v1712 = vand.u32 %v1711, 4294901760
        %1713 = vmatmul.mubr.f32.gmra.mrb[0].mxu0 %v1712
        %v1714 = vpop.f32.mrb[0].mxu0
        %v1715 = vadd.f32 0.0, %v1714
        %v1716 = vpop.f32.mrb[0].mxu0
        %1717 = vmatprep.mubr.f32.mxu0 0.0
        %v1718 = vand.u32 %v343, 4294901760
        %v1719 = vsub.f32 %v343, %v1718
        %v1720 = vand.u32 %v1719, 4294901760
        %v1721 = vsub.f32 %v1719, %v1720
        %v1722 = vand.u32 %v1721, 4294901760
        %1723 = vmatmul.mubr.f32.gmra.mrb[0].mxu0 %v1722
        %v1724 = vpop.f32.mrb[0].mxu0
        %v1725 = vadd.f32 0.0, %v1724
        %v1726 = vpop.f32.mrb[0].mxu0
        %1727 = vmatprep.mubr.f32.mxu0 0.0
        %v1728 = vand.u32 %v346, 4294901760
        %v1729 = vsub.f32 %v346, %v1728
        %v1730 = vand.u32 %v1729, 4294901760
        %v1731 = vsub.f32 %v1729, %v1730
        %v1732 = vand.u32 %v1731, 4294901760
        %1733 = vmatmul.mubr.f32.gmra.mrb[0].mxu0 %v1732
        %v1734 = vpop.f32.mrb[0].mxu0
        %v1735 = vadd.f32 0.0, %v1734
        %v1736 = vpop.f32.mrb[0].mxu0
        %1737 = vmatprep.mubr.f32.mxu0 0.0
        %v1738 = vand.u32 %v349, 4294901760
        %v1739 = vsub.f32 %v349, %v1738
        %v1740 = vand.u32 %v1739, 4294901760
        %v1741 = vsub.f32 %v1739, %v1740
        %v1742 = vand.u32 %v1741, 4294901760
        %1743 = vmatmul.mubr.f32.gmra.mrb[0].mxu0 %v1742
        %v1744 = vpop.f32.mrb[0].mxu0
        %v1745 = vadd.f32 0.0, %v1744
        %v1746 = vpop.f32.mrb[0].mxu0
        %1747 = vmatprep.mubr.f32.mxu0 0.0
        %v1748 = vand.u32 %v352, 4294901760
        %v1749 = vsub.f32 %v352, %v1748
        %v1750 = vand.u32 %v1749, 4294901760
        %v1751 = vsub.f32 %v1749, %v1750
        %v1752 = vand.u32 %v1751, 4294901760
        %1753 = vmatmul.mubr.f32.gmra.mrb[0].mxu0 %v1752
        %v1754 = vpop.f32.mrb[0].mxu0
        %v1755 = vadd.f32 0.0, %v1754
        %v1756 = vpop.f32.mrb[0].mxu0
        %1757 = vdwg.mxu0
        %1758 = vmatprep.subr.mxu0 0.0
        %v1759 = vand.u32 %v1639, 4294901760
        %v1760 = vsub.f32 %v1639, %v1759
        %v1761 = vand.u32 %v1760, 4294901760
        %v1762 = vsub.f32 %v1760, %v1761
        %v1763 = vand.u32 %v1762, 4294901760
        %1764 = vmatpush1.msra.mxu0 %v1763
        %1765 = vmatprep.subr.mxu0 0.0
        %v1766 = vand.u32 %v1640, 4294901760
        %v1767 = vsub.f32 %v1640, %v1766
        %v1768 = vand.u32 %v1767, 4294901760
        %v1769 = vsub.f32 %v1767, %v1768
        %v1770 = vand.u32 %v1769, 4294901760
        %1771 = vmatpush1.msra.mxu0 %v1770
        %1772 = vmatprep.subr.mxu0 0.0
        %1773 = vmatpush1.msra.mxu0 0.0
        %1774 = vmatprep.subr.mxu0 0.0
        %1775 = vmatpush1.msra.mxu0 0.0
        %1776 = vmatprep.subr.mxu0 0.0
        %1777 = vmatpush1.msra.mxu0 0.0
        %1778 = vmatprep.subr.mxu0 0.0
        %1779 = vmatpush1.msra.mxu0 0.0
        %1780 = vmatprep.subr.mxu0 0.0
        %1781 = vmatpush1.msra.mxu0 0.0
        %1782 = vmatprep.subr.mxu0 0.0
        %1783 = vmatpush1.msra.mxu0 0.0
        %1784 = vmatprep.subr.mxu0 0.0
        %1785 = vmatpush1.msra.mxu0 0.0
        %1786 = vmatprep.subr.mxu0 0.0
        %1787 = vmatpush1.msra.mxu0 0.0
        %1788 = vmatprep.subr.mxu0 0.0
        %1789 = vmatpush1.msra.mxu0 0.0
        %1790 = vmatprep.subr.mxu0 0.0
        %1791 = vmatpush1.msra.mxu0 0.0
        %1792 = vmatprep.subr.mxu0 0.0
        %1793 = vmatpush1.msra.mxu0 0.0
        %1794 = vmatprep.subr.mxu0 0.0
        %1795 = vmatpush1.msra.mxu0 0.0
        %1796 = vmatprep.subr.mxu0 0.0
        %1797 = vmatpush1.msra.mxu0 0.0
        %1798 = vmatprep.subr.mxu0 0.0
        %1799 = vmatpush1.msra.mxu0 0.0
        %1800 = vmatprep.subr.mxu0 0.0
        %1801 = vmatpush1.msra.mxu0 0.0
        %1802 = vmatprep.subr.mxu0 0.0
        %1803 = vmatpush1.msra.mxu0 0.0
        %1804 = vmatprep.subr.mxu0 0.0
        %1805 = vmatpush1.msra.mxu0 0.0
        %1806 = vmatprep.subr.mxu0 0.0
        %1807 = vmatpush1.msra.mxu0 0.0
        %1808 = vmatprep.subr.mxu0 0.0
        %1809 = vmatpush1.msra.mxu0 0.0
        %1810 = vmatprep.subr.mxu0 0.0
        %1811 = vmatpush1.msra.mxu0 0.0
        %1812 = vmatprep.subr.mxu0 0.0
        %1813 = vmatpush1.msra.mxu0 0.0
        %1814 = vmatprep.subr.mxu0 0.0
        %1815 = vmatpush1.msra.mxu0 0.0
        %1816 = vmatprep.subr.mxu0 0.0
        %1817 = vmatpush1.msra.mxu0 0.0
        %1818 = vmatprep.subr.mxu0 0.0
        %1819 = vmatpush1.msra.mxu0 0.0
        %1820 = vmatprep.subr.mxu0 0.0
        %1821 = vmatpush1.msra.mxu0 0.0
        %1822 = vmatprep.subr.mxu0 0.0
        %1823 = vmatpush1.msra.mxu0 0.0
        %1824 = vmatprep.subr.mxu0 0.0
        %1825 = vmatpush1.msra.mxu0 0.0
        %1826 = vmatprep.subr.mxu0 0.0
        %1827 = vmatpush1.msra.mxu0 0.0
        %1828 = vmatprep.subr.mxu0 0.0
        %1829 = vmatpush1.msra.mxu0 0.0
        %1830 = vmatprep.subr.mxu0 0.0
        %1831 = vmatpush1.msra.mxu0 0.0
        %1832 = vmatprep.mubr.f32.mxu0 0.0
        %v1833 = vand.u32 %v340, 4294901760
        %1834 = vmatmul.mubr.f32.gmra.mrb[0].mxu0 %v1833
        %v1835 = vpop.f32.mrb[0].mxu0
        %v1836 = vadd.f32 %v1715, %v1835
        %v1837 = vpop.f32.mrb[0].mxu0
        %1838 = vmatprep.mubr.f32.mxu0 0.0
        %v1839 = vand.u32 %v343, 4294901760
        %1840 = vmatmul.mubr.f32.gmra.mrb[0].mxu0 %v1839
        %v1841 = vpop.f32.mrb[0].mxu0
        %v1842 = vadd.f32 %v1725, %v1841
        %v1843 = vpop.f32.mrb[0].mxu0
        %1844 = vmatprep.mubr.f32.mxu0 0.0
        %v1845 = vand.u32 %v346, 4294901760
        %1846 = vmatmul.mubr.f32.gmra.mrb[0].mxu0 %v1845
        %v1847 = vpop.f32.mrb[0].mxu0
        %v1848 = vadd.f32 %v1735, %v1847
        %v1849 = vpop.f32.mrb[0].mxu0
        %1850 = vmatprep.mubr.f32.mxu0 0.0
        %v1851 = vand.u32 %v349, 4294901760
        %1852 = vmatmul.mubr.f32.gmra.mrb[0].mxu0 %v1851
        %v1853 = vpop.f32.mrb[0].mxu0
        %v1854 = vadd.f32 %v1745, %v1853
        %v1855 = vpop.f32.mrb[0].mxu0
        %1856 = vmatprep.mubr.f32.mxu0 0.0
        %v1857 = vand.u32 %v352, 4294901760
        %1858 = vmatmul.mubr.f32.gmra.mrb[0].mxu0 %v1857
        %v1859 = vpop.f32.mrb[0].mxu0
        %v1860 = vadd.f32 %v1755, %v1859
        %v1861 = vpop.f32.mrb[0].mxu0
        %1862 = vdwg.mxu0
        %1863 = vmatprep.subr.mxu0 0.0
        %v1864 = vand.u32 %v1639, 4294901760
        %v1865 = vsub.f32 %v1639, %v1864
        %1866 = vmatpush1.msra.mxu0 %v1865
        %1867 = vmatprep.subr.mxu0 0.0
        %v1868 = vand.u32 %v1640, 4294901760
        %v1869 = vsub.f32 %v1640, %v1868
        %1870 = vmatpush1.msra.mxu0 %v1869
        %1871 = vmatprep.subr.mxu0 0.0
        %1872 = vmatpush1.msra.mxu0 0.0
        %1873 = vmatprep.subr.mxu0 0.0
        %1874 = vmatpush1.msra.mxu0 0.0
        %1875 = vmatprep.subr.mxu0 0.0
        %1876 = vmatpush1.msra.mxu0 0.0
        %1877 = vmatprep.subr.mxu0 0.0
        %1878 = vmatpush1.msra.mxu0 0.0
        %1879 = vmatprep.subr.mxu0 0.0
        %1880 = vmatpush1.msra.mxu0 0.0
        %1881 = vmatprep.subr.mxu0 0.0
        %1882 = vmatpush1.msra.mxu0 0.0
        %1883 = vmatprep.subr.mxu0 0.0
        %1884 = vmatpush1.msra.mxu0 0.0
        %1885 = vmatprep.subr.mxu0 0.0
        %1886 = vmatpush1.msra.mxu0 0.0
        %1887 = vmatprep.subr.mxu0 0.0
        %1888 = vmatpush1.msra.mxu0 0.0
        %1889 = vmatprep.subr.mxu0 0.0
        %1890 = vmatpush1.msra.mxu0 0.0
        %1891 = vmatprep.subr.mxu0 0.0
        %1892 = vmatpush1.msra.mxu0 0.0
        %1893 = vmatprep.subr.mxu0 0.0
        %1894 = vmatpush1.msra.mxu0 0.0
        %1895 = vmatprep.subr.mxu0 0.0
        %1896 = vmatpush1.msra.mxu0 0.0
        %1897 = vmatprep.subr.mxu0 0.0
        %1898 = vmatpush1.msra.mxu0 0.0
        %1899 = vmatprep.subr.mxu0 0.0
        %1900 = vmatpush1.msra.mxu0 0.0
        %1901 = vmatprep.subr.mxu0 0.0
        %1902 = vmatpush1.msra.mxu0 0.0
        %1903 = vmatprep.subr.mxu0 0.0
        %1904 = vmatpush1.msra.mxu0 0.0
        %1905 = vmatprep.subr.mxu0 0.0
        %1906 = vmatpush1.msra.mxu0 0.0
        %1907 = vmatprep.subr.mxu0 0.0
        %1908 = vmatpush1.msra.mxu0 0.0
        %1909 = vmatprep.subr.mxu0 0.0
        %1910 = vmatpush1.msra.mxu0 0.0
        %1911 = vmatprep.subr.mxu0 0.0
        %1912 = vmatpush1.msra.mxu0 0.0
        %1913 = vmatprep.subr.mxu0 0.0
        %1914 = vmatpush1.msra.mxu0 0.0
        %1915 = vmatprep.subr.mxu0 0.0
        %1916 = vmatpush1.msra.mxu0 0.0
        %1917 = vmatprep.subr.mxu0 0.0
        %1918 = vmatpush1.msra.mxu0 0.0
        %1919 = vmatprep.subr.mxu0 0.0
        %1920 = vmatpush1.msra.mxu0 0.0
        %1921 = vmatprep.subr.mxu0 0.0
        %1922 = vmatpush1.msra.mxu0 0.0
        %1923 = vmatprep.subr.mxu0 0.0
        %1924 = vmatpush1.msra.mxu0 0.0
        %1925 = vmatprep.subr.mxu0 0.0
        %1926 = vmatpush1.msra.mxu0 0.0
        %1927 = vmatprep.subr.mxu0 0.0
        %1928 = vmatpush1.msra.mxu0 0.0
        %1929 = vmatprep.subr.mxu0 0.0
        %1930 = vmatpush1.msra.mxu0 0.0
        %1931 = vmatprep.mubr.f32.mxu0 0.0
        %v1932 = vand.u32 %v340, 4294901760
        %v1933 = vsub.f32 %v340, %v1932
        %1934 = vmatmul.mubr.f32.gmra.mrb[0].mxu0 %v1933
        %v1935 = vpop.f32.mrb[0].mxu0
        %v1936 = vadd.f32 %v1836, %v1935
        %v1937 = vpop.f32.mrb[0].mxu0
        %1938 = vmatprep.mubr.f32.mxu0 0.0
        %v1939 = vand.u32 %v343, 4294901760
        %v1940 = vsub.f32 %v343, %v1939
        %1941 = vmatmul.mubr.f32.gmra.mrb[0].mxu0 %v1940
        %v1942 = vpop.f32.mrb[0].mxu0
        %v1943 = vadd.f32 %v1842, %v1942
        %v1944 = vpop.f32.mrb[0].mxu0
        %1945 = vmatprep.mubr.f32.mxu0 0.0
        %v1946 = vand.u32 %v346, 4294901760
        %v1947 = vsub.f32 %v346, %v1946
        %1948 = vmatmul.mubr.f32.gmra.mrb[0].mxu0 %v1947
        %v1949 = vpop.f32.mrb[0].mxu0
        %v1950 = vadd.f32 %v1848, %v1949
        %v1951 = vpop.f32.mrb[0].mxu0
        %1952 = vmatprep.mubr.f32.mxu0 0.0
        %v1953 = vand.u32 %v349, 4294901760
        %v1954 = vsub.f32 %v349, %v1953
        %1955 = vmatmul.mubr.f32.gmra.mrb[0].mxu0 %v1954
        %v1956 = vpop.f32.mrb[0].mxu0
        %v1957 = vadd.f32 %v1854, %v1956
        %v1958 = vpop.f32.mrb[0].mxu0
        %1959 = vmatprep.mubr.f32.mxu0 0.0
        %v1960 = vand.u32 %v352, 4294901760
        %v1961 = vsub.f32 %v352, %v1960
        %1962 = vmatmul.mubr.f32.gmra.mrb[0].mxu0 %v1961
        %v1963 = vpop.f32.mrb[0].mxu0
        %v1964 = vadd.f32 %v1860, %v1963
        %v1965 = vpop.f32.mrb[0].mxu0
        %1966 = vdwg.mxu0
        %1967 = vmatprep.subr.mxu0 0.0
        %v1968 = vand.u32 %v1639, 4294901760
        %1969 = vmatpush1.msra.mxu0 %v1968
        %1970 = vmatprep.subr.mxu0 0.0
        %v1971 = vand.u32 %v1640, 4294901760
        %1972 = vmatpush1.msra.mxu0 %v1971
        %1973 = vmatprep.subr.mxu0 0.0
        %1974 = vmatpush1.msra.mxu0 0.0
        %1975 = vmatprep.subr.mxu0 0.0
        %1976 = vmatpush1.msra.mxu0 0.0
        %1977 = vmatprep.subr.mxu0 0.0
        %1978 = vmatpush1.msra.mxu0 0.0
        %1979 = vmatprep.subr.mxu0 0.0
        %1980 = vmatpush1.msra.mxu0 0.0
        %1981 = vmatprep.subr.mxu0 0.0
        %1982 = vmatpush1.msra.mxu0 0.0
        %1983 = vmatprep.subr.mxu0 0.0
        %1984 = vmatpush1.msra.mxu0 0.0
        %1985 = vmatprep.subr.mxu0 0.0
        %1986 = vmatpush1.msra.mxu0 0.0
        %1987 = vmatprep.subr.mxu0 0.0
        %1988 = vmatpush1.msra.mxu0 0.0
        %1989 = vmatprep.subr.mxu0 0.0
        %1990 = vmatpush1.msra.mxu0 0.0
        %1991 = vmatprep.subr.mxu0 0.0
        %1992 = vmatpush1.msra.mxu0 0.0
        %1993 = vmatprep.subr.mxu0 0.0
        %1994 = vmatpush1.msra.mxu0 0.0
        %1995 = vmatprep.subr.mxu0 0.0
        %1996 = vmatpush1.msra.mxu0 0.0
        %1997 = vmatprep.subr.mxu0 0.0
        %1998 = vmatpush1.msra.mxu0 0.0
        %1999 = vmatprep.subr.mxu0 0.0
        %2000 = vmatpush1.msra.mxu0 0.0
        %2001 = vmatprep.subr.mxu0 0.0
        %2002 = vmatpush1.msra.mxu0 0.0
        %2003 = vmatprep.subr.mxu0 0.0
        %2004 = vmatpush1.msra.mxu0 0.0
        %2005 = vmatprep.subr.mxu0 0.0
        %2006 = vmatpush1.msra.mxu0 0.0
        %2007 = vmatprep.subr.mxu0 0.0
        %2008 = vmatpush1.msra.mxu0 0.0
        %2009 = vmatprep.subr.mxu0 0.0
        %2010 = vmatpush1.msra.mxu0 0.0
        %2011 = vmatprep.subr.mxu0 0.0
        %2012 = vmatpush1.msra.mxu0 0.0
        %2013 = vmatprep.subr.mxu0 0.0
        %2014 = vmatpush1.msra.mxu0 0.0
        %2015 = vmatprep.subr.mxu0 0.0
        %2016 = vmatpush1.msra.mxu0 0.0
        %2017 = vmatprep.subr.mxu0 0.0
        %2018 = vmatpush1.msra.mxu0 0.0
        %2019 = vmatprep.subr.mxu0 0.0
        %2020 = vmatpush1.msra.mxu0 0.0
        %2021 = vmatprep.subr.mxu0 0.0
        %2022 = vmatpush1.msra.mxu0 0.0
        %2023 = vmatprep.subr.mxu0 0.0
        %2024 = vmatpush1.msra.mxu0 0.0
        %2025 = vmatprep.subr.mxu0 0.0
        %2026 = vmatpush1.msra.mxu0 0.0
        %2027 = vmatprep.subr.mxu0 0.0
        %2028 = vmatpush1.msra.mxu0 0.0
        %2029 = vmatprep.subr.mxu0 0.0
        %2030 = vmatpush1.msra.mxu0 0.0
        %2031 = vmatprep.subr.mxu0 0.0
        %2032 = vmatpush1.msra.mxu0 0.0
        %2033 = vmatprep.mubr.f32.mxu0 0.0
        %v2034 = vand.u32 %v340, 4294901760
        %v2035 = vsub.f32 %v340, %v2034
        %v2036 = vand.u32 %v2035, 4294901760
        %2037 = vmatmul.mubr.f32.gmra.mrb[0].mxu0 %v2036
        %v2038 = vpop.f32.mrb[0].mxu0
        %v2039 = vadd.f32 %v1936, %v2038
        %v2040 = vpop.f32.mrb[0].mxu0
        %2041 = vmatprep.mubr.f32.mxu0 0.0
        %v2042 = vand.u32 %v343, 4294901760
        %v2043 = vsub.f32 %v343, %v2042
        %v2044 = vand.u32 %v2043, 4294901760
        %2045 = vmatmul.mubr.f32.gmra.mrb[0].mxu0 %v2044
        %v2046 = vpop.f32.mrb[0].mxu0
        %v2047 = vadd.f32 %v1943, %v2046
        %v2048 = vpop.f32.mrb[0].mxu0
        %2049 = vmatprep.mubr.f32.mxu0 0.0
        %v2050 = vand.u32 %v346, 4294901760
        %v2051 = vsub.f32 %v346, %v2050
        %v2052 = vand.u32 %v2051, 4294901760
        %2053 = vmatmul.mubr.f32.gmra.mrb[0].mxu0 %v2052
        %v2054 = vpop.f32.mrb[0].mxu0
        %v2055 = vadd.f32 %v1950, %v2054
        %v2056 = vpop.f32.mrb[0].mxu0
        %2057 = vmatprep.mubr.f32.mxu0 0.0
        %v2058 = vand.u32 %v349, 4294901760
        %v2059 = vsub.f32 %v349, %v2058
        %v2060 = vand.u32 %v2059, 4294901760
        %2061 = vmatmul.mubr.f32.gmra.mrb[0].mxu0 %v2060
        %v2062 = vpop.f32.mrb[0].mxu0
        %v2063 = vadd.f32 %v1957, %v2062
        %v2064 = vpop.f32.mrb[0].mxu0
        %2065 = vmatprep.mubr.f32.mxu0 0.0
        %v2066 = vand.u32 %v352, 4294901760
        %v2067 = vsub.f32 %v352, %v2066
        %v2068 = vand.u32 %v2067, 4294901760
        %2069 = vmatmul.mubr.f32.gmra.mrb[0].mxu0 %v2068
        %v2070 = vpop.f32.mrb[0].mxu0
        %v2071 = vadd.f32 %v1964, %v2070
        %v2072 = vpop.f32.mrb[0].mxu0
        %2073 = vdwg.mxu0
        %2074 = vmatprep.subr.mxu0 0.0
        %v2075 = vand.u32 %v1639, 4294901760
        %v2076 = vsub.f32 %v1639, %v2075
        %v2077 = vand.u32 %v2076, 4294901760
        %2078 = vmatpush1.msra.mxu0 %v2077
        %2079 = vmatprep.subr.mxu0 0.0
        %v2080 = vand.u32 %v1640, 4294901760
        %v2081 = vsub.f32 %v1640, %v2080
        %v2082 = vand.u32 %v2081, 4294901760
        %2083 = vmatpush1.msra.mxu0 %v2082
        %2084 = vmatprep.subr.mxu0 0.0
        %2085 = vmatpush1.msra.mxu0 0.0
        %2086 = vmatprep.subr.mxu0 0.0
        %2087 = vmatpush1.msra.mxu0 0.0
        %2088 = vmatprep.subr.mxu0 0.0
        %2089 = vmatpush1.msra.mxu0 0.0
        %2090 = vmatprep.subr.mxu0 0.0
        %2091 = vmatpush1.msra.mxu0 0.0
        %2092 = vmatprep.subr.mxu0 0.0
        %2093 = vmatpush1.msra.mxu0 0.0
        %2094 = vmatprep.subr.mxu0 0.0
        %2095 = vmatpush1.msra.mxu0 0.0
        %2096 = vmatprep.subr.mxu0 0.0
        %2097 = vmatpush1.msra.mxu0 0.0
        %2098 = vmatprep.subr.mxu0 0.0
        %2099 = vmatpush1.msra.mxu0 0.0
        %2100 = vmatprep.subr.mxu0 0.0
        %2101 = vmatpush1.msra.mxu0 0.0
        %2102 = vmatprep.subr.mxu0 0.0
        %2103 = vmatpush1.msra.mxu0 0.0
        %2104 = vmatprep.subr.mxu0 0.0
        %2105 = vmatpush1.msra.mxu0 0.0
        %2106 = vmatprep.subr.mxu0 0.0
        %2107 = vmatpush1.msra.mxu0 0.0
        %2108 = vmatprep.subr.mxu0 0.0
        %2109 = vmatpush1.msra.mxu0 0.0
        %2110 = vmatprep.subr.mxu0 0.0
        %2111 = vmatpush1.msra.mxu0 0.0
        %2112 = vmatprep.subr.mxu0 0.0
        %2113 = vmatpush1.msra.mxu0 0.0
        %2114 = vmatprep.subr.mxu0 0.0
        %2115 = vmatpush1.msra.mxu0 0.0
        %2116 = vmatprep.subr.mxu0 0.0
        %2117 = vmatpush1.msra.mxu0 0.0
        %2118 = vmatprep.subr.mxu0 0.0
        %2119 = vmatpush1.msra.mxu0 0.0
        %2120 = vmatprep.subr.mxu0 0.0
        %2121 = vmatpush1.msra.mxu0 0.0
        %2122 = vmatprep.subr.mxu0 0.0
        %2123 = vmatpush1.msra.mxu0 0.0
        %2124 = vmatprep.subr.mxu0 0.0
        %2125 = vmatpush1.msra.mxu0 0.0
        %2126 = vmatprep.subr.mxu0 0.0
        %2127 = vmatpush1.msra.mxu0 0.0
        %2128 = vmatprep.subr.mxu0 0.0
        %2129 = vmatpush1.msra.mxu0 0.0
        %2130 = vmatprep.subr.mxu0 0.0
        %2131 = vmatpush1.msra.mxu0 0.0
        %2132 = vmatprep.subr.mxu0 0.0
        %2133 = vmatpush1.msra.mxu0 0.0
        %2134 = vmatprep.subr.mxu0 0.0
        %2135 = vmatpush1.msra.mxu0 0.0
        %2136 = vmatprep.subr.mxu0 0.0
        %2137 = vmatpush1.msra.mxu0 0.0
        %2138 = vmatprep.subr.mxu0 0.0
        %2139 = vmatpush1.msra.mxu0 0.0
        %2140 = vmatprep.subr.mxu0 0.0
        %2141 = vmatpush1.msra.mxu0 0.0
        %2142 = vmatprep.subr.mxu0 0.0
        %2143 = vmatpush1.msra.mxu0 0.0
        %2144 = vmatprep.mubr.f32.mxu0 0.0
        %v2145 = vand.u32 %v340, 4294901760
        %2146 = vmatmul.mubr.f32.gmra.mrb[0].mxu0 %v2145
        %v2147 = vpop.f32.mrb[0].mxu0
        %v2148 = vadd.f32 %v2039, %v2147
        %v2149 = vpop.f32.mrb[0].mxu0
        %2150 = vmatprep.mubr.f32.mxu0 0.0
        %v2151 = vand.u32 %v343, 4294901760
        %2152 = vmatmul.mubr.f32.gmra.mrb[0].mxu0 %v2151
        %v2153 = vpop.f32.mrb[0].mxu0
        %v2154 = vadd.f32 %v2047, %v2153
        %v2155 = vpop.f32.mrb[0].mxu0
        %2156 = vmatprep.mubr.f32.mxu0 0.0
        %v2157 = vand.u32 %v346, 4294901760
        %2158 = vmatmul.mubr.f32.gmra.mrb[0].mxu0 %v2157
        %v2159 = vpop.f32.mrb[0].mxu0
        %v2160 = vadd.f32 %v2055, %v2159
        %v2161 = vpop.f32.mrb[0].mxu0
        %2162 = vmatprep.mubr.f32.mxu0 0.0
        %v2163 = vand.u32 %v349, 4294901760
        %2164 = vmatmul.mubr.f32.gmra.mrb[0].mxu0 %v2163
        %v2165 = vpop.f32.mrb[0].mxu0
        %v2166 = vadd.f32 %v2063, %v2165
        %v2167 = vpop.f32.mrb[0].mxu0
        %2168 = vmatprep.mubr.f32.mxu0 0.0
        %v2169 = vand.u32 %v352, 4294901760
        %2170 = vmatmul.mubr.f32.gmra.mrb[0].mxu0 %v2169
        %v2171 = vpop.f32.mrb[0].mxu0
        %v2172 = vadd.f32 %v2071, %v2171
        %v2173 = vpop.f32.mrb[0].mxu0
        %2174 = vdwg.mxu0
        %2175 = vmatprep.subr.mxu0 0.0
        %v2176 = vand.u32 %v1639, 4294901760
        %2177 = vmatpush1.msra.mxu0 %v2176
        %2178 = vmatprep.subr.mxu0 0.0
        %v2179 = vand.u32 %v1640, 4294901760
        %2180 = vmatpush1.msra.mxu0 %v2179
        %2181 = vmatprep.subr.mxu0 0.0
        %2182 = vmatpush1.msra.mxu0 0.0
        %2183 = vmatprep.subr.mxu0 0.0
        %2184 = vmatpush1.msra.mxu0 0.0
        %2185 = vmatprep.subr.mxu0 0.0
        %2186 = vmatpush1.msra.mxu0 0.0
        %2187 = vmatprep.subr.mxu0 0.0
        %2188 = vmatpush1.msra.mxu0 0.0
        %2189 = vmatprep.subr.mxu0 0.0
        %2190 = vmatpush1.msra.mxu0 0.0
        %2191 = vmatprep.subr.mxu0 0.0
        %2192 = vmatpush1.msra.mxu0 0.0
        %2193 = vmatprep.subr.mxu0 0.0
        %2194 = vmatpush1.msra.mxu0 0.0
        %2195 = vmatprep.subr.mxu0 0.0
        %2196 = vmatpush1.msra.mxu0 0.0
        %2197 = vmatprep.subr.mxu0 0.0
        %2198 = vmatpush1.msra.mxu0 0.0
        %2199 = vmatprep.subr.mxu0 0.0
        %2200 = vmatpush1.msra.mxu0 0.0
        %2201 = vmatprep.subr.mxu0 0.0
        %2202 = vmatpush1.msra.mxu0 0.0
        %2203 = vmatprep.subr.mxu0 0.0
        %2204 = vmatpush1.msra.mxu0 0.0
        %2205 = vmatprep.subr.mxu0 0.0
        %2206 = vmatpush1.msra.mxu0 0.0
        %2207 = vmatprep.subr.mxu0 0.0
        %2208 = vmatpush1.msra.mxu0 0.0
        %2209 = vmatprep.subr.mxu0 0.0
        %2210 = vmatpush1.msra.mxu0 0.0
        %2211 = vmatprep.subr.mxu0 0.0
        %2212 = vmatpush1.msra.mxu0 0.0
        %2213 = vmatprep.subr.mxu0 0.0
        %2214 = vmatpush1.msra.mxu0 0.0
        %2215 = vmatprep.subr.mxu0 0.0
        %2216 = vmatpush1.msra.mxu0 0.0
        %2217 = vmatprep.subr.mxu0 0.0
        %2218 = vmatpush1.msra.mxu0 0.0
        %2219 = vmatprep.subr.mxu0 0.0
        %2220 = vmatpush1.msra.mxu0 0.0
        %2221 = vmatprep.subr.mxu0 0.0
        %2222 = vmatpush1.msra.mxu0 0.0
        %2223 = vmatprep.subr.mxu0 0.0
        %2224 = vmatpush1.msra.mxu0 0.0
        %2225 = vmatprep.subr.mxu0 0.0
        %2226 = vmatpush1.msra.mxu0 0.0
        %2227 = vmatprep.subr.mxu0 0.0
        %2228 = vmatpush1.msra.mxu0 0.0
        %2229 = vmatprep.subr.mxu0 0.0
        %2230 = vmatpush1.msra.mxu0 0.0
        %2231 = vmatprep.subr.mxu0 0.0
        %2232 = vmatpush1.msra.mxu0 0.0
        %2233 = vmatprep.subr.mxu0 0.0
        %2234 = vmatpush1.msra.mxu0 0.0
        %2235 = vmatprep.subr.mxu0 0.0
        %2236 = vmatpush1.msra.mxu0 0.0
        %2237 = vmatprep.subr.mxu0 0.0
        %2238 = vmatpush1.msra.mxu0 0.0
        %2239 = vmatprep.subr.mxu0 0.0
        %2240 = vmatpush1.msra.mxu0 0.0
        %2241 = vmatprep.mubr.f32.mxu0 0.0
        %v2242 = vand.u32 %v340, 4294901760
        %2243 = vmatmul.mubr.f32.gmra.mrb[0].mxu0 %v2242
        %v2244 = vpop.f32.mrb[0].mxu0
        %v2245 = vadd.f32 %v2148, %v2244
        %v2246 = vpop.f32.mrb[0].mxu0
        %2247 = vmatprep.mubr.f32.mxu0 0.0
        %v2248 = vand.u32 %v343, 4294901760
        %2249 = vmatmul.mubr.f32.gmra.mrb[0].mxu0 %v2248
        %v2250 = vpop.f32.mrb[0].mxu0
        %v2251 = vadd.f32 %v2154, %v2250
        %v2252 = vpop.f32.mrb[0].mxu0
        %2253 = vmatprep.mubr.f32.mxu0 0.0
        %v2254 = vand.u32 %v346, 4294901760
        %2255 = vmatmul.mubr.f32.gmra.mrb[0].mxu0 %v2254
        %v2256 = vpop.f32.mrb[0].mxu0
        %v2257 = vadd.f32 %v2160, %v2256
        %v2258 = vpop.f32.mrb[0].mxu0
        %2259 = vmatprep.mubr.f32.mxu0 0.0
        %v2260 = vand.u32 %v349, 4294901760
        %2261 = vmatmul.mubr.f32.gmra.mrb[0].mxu0 %v2260
        %v2262 = vpop.f32.mrb[0].mxu0
        %v2263 = vadd.f32 %v2166, %v2262
        %v2264 = vpop.f32.mrb[0].mxu0
        %2265 = vmatprep.mubr.f32.mxu0 0.0
        %v2266 = vand.u32 %v352, 4294901760
        %2267 = vmatmul.mubr.f32.gmra.mrb[0].mxu0 %v2266
        %v2268 = vpop.f32.mrb[0].mxu0
        %v2269 = vadd.f32 %v2172, %v2268
        %v2270 = vpop.f32.mrb[0].mxu0
        %2271 = vdwg.mxu0
        %v2273 = vsel %vm338, %v2245, 0
        %v2276 = vsel %vm338, %v2251, 0
        %v2279 = vsel %vm338, %v2257, 0
        %v2282 = vsel %vm338, %v2263, 0
        %v2285 = vsel %vm338, %v2269, 0
        %2287 = vmatprep.subr.mxu0 0.0
        %v2288 = vand.u32 %v334, 4294901760
        %2289 = vmatpush1.msra.mxu0 %v2288
        %2290 = vmatprep.subr.mxu0 0.0
        %v2291 = vand.u32 %v335, 4294901760
        %2292 = vmatpush1.msra.mxu0 %v2291
        %2293 = vmatprep.subr.mxu0 0.0
        %2294 = vmatpush1.msra.mxu0 0.0
        %2295 = vmatprep.subr.mxu0 0.0
        %2296 = vmatpush1.msra.mxu0 0.0
        %2297 = vmatprep.subr.mxu0 0.0
        %2298 = vmatpush1.msra.mxu0 0.0
        %2299 = vmatprep.subr.mxu0 0.0
        %2300 = vmatpush1.msra.mxu0 0.0
        %2301 = vmatprep.subr.mxu0 0.0
        %2302 = vmatpush1.msra.mxu0 0.0
        %2303 = vmatprep.subr.mxu0 0.0
        %2304 = vmatpush1.msra.mxu0 0.0
        %2305 = vmatprep.subr.mxu0 0.0
        %2306 = vmatpush1.msra.mxu0 0.0
        %2307 = vmatprep.subr.mxu0 0.0
        %2308 = vmatpush1.msra.mxu0 0.0
        %2309 = vmatprep.subr.mxu0 0.0
        %2310 = vmatpush1.msra.mxu0 0.0
        %2311 = vmatprep.subr.mxu0 0.0
        %2312 = vmatpush1.msra.mxu0 0.0
        %2313 = vmatprep.subr.mxu0 0.0
        %2314 = vmatpush1.msra.mxu0 0.0
        %2315 = vmatprep.subr.mxu0 0.0
        %2316 = vmatpush1.msra.mxu0 0.0
        %2317 = vmatprep.subr.mxu0 0.0
        %2318 = vmatpush1.msra.mxu0 0.0
        %2319 = vmatprep.subr.mxu0 0.0
        %2320 = vmatpush1.msra.mxu0 0.0
        %2321 = vmatprep.subr.mxu0 0.0
        %2322 = vmatpush1.msra.mxu0 0.0
        %2323 = vmatprep.subr.mxu0 0.0
        %2324 = vmatpush1.msra.mxu0 0.0
        %2325 = vmatprep.subr.mxu0 0.0
        %2326 = vmatpush1.msra.mxu0 0.0
        %2327 = vmatprep.subr.mxu0 0.0
        %2328 = vmatpush1.msra.mxu0 0.0
        %2329 = vmatprep.subr.mxu0 0.0
        %2330 = vmatpush1.msra.mxu0 0.0
        %2331 = vmatprep.subr.mxu0 0.0
        %2332 = vmatpush1.msra.mxu0 0.0
        %2333 = vmatprep.subr.mxu0 0.0
        %2334 = vmatpush1.msra.mxu0 0.0
        %2335 = vmatprep.subr.mxu0 0.0
        %2336 = vmatpush1.msra.mxu0 0.0
        %2337 = vmatprep.subr.mxu0 0.0
        %2338 = vmatpush1.msra.mxu0 0.0
        %2339 = vmatprep.subr.mxu0 0.0
        %2340 = vmatpush1.msra.mxu0 0.0
        %2341 = vmatprep.subr.mxu0 0.0
        %2342 = vmatpush1.msra.mxu0 0.0
        %2343 = vmatprep.subr.mxu0 0.0
        %2344 = vmatpush1.msra.mxu0 0.0
        %2345 = vmatprep.subr.mxu0 0.0
        %2346 = vmatpush1.msra.mxu0 0.0
        %2347 = vmatprep.subr.mxu0 0.0
        %2348 = vmatpush1.msra.mxu0 0.0
        %2349 = vmatprep.subr.mxu0 0.0
        %2350 = vmatpush1.msra.mxu0 0.0
        %2351 = vmatprep.subr.mxu0 0.0
        %2352 = vmatpush1.msra.mxu0 0.0
        %2353 = vmatprep.mubr.f32.mxu0 0.0
        %v2354 = vand.u32 %v2273, 4294901760
        %v2355 = vsub.f32 %v2273, %v2354
        %v2356 = vand.u32 %v2355, 4294901760
        %v2357 = vsub.f32 %v2355, %v2356
        %v2358 = vand.u32 %v2357, 4294901760
        %2359 = vmatmul.mubr.f32.gmra.mrb[0].mxu0 %v2358
        %v2360 = vpop.f32.mrb[0].mxu0
        %v2361 = vadd.f32 0.0, %v2360
        %v2362 = vpop.f32.mrb[0].mxu0
        %2363 = vmatprep.mubr.f32.mxu0 0.0
        %v2364 = vand.u32 %v2276, 4294901760
        %v2365 = vsub.f32 %v2276, %v2364
        %v2366 = vand.u32 %v2365, 4294901760
        %v2367 = vsub.f32 %v2365, %v2366
        %v2368 = vand.u32 %v2367, 4294901760
        %2369 = vmatmul.mubr.f32.gmra.mrb[0].mxu0 %v2368
        %v2370 = vpop.f32.mrb[0].mxu0
        %v2371 = vadd.f32 0.0, %v2370
        %v2372 = vpop.f32.mrb[0].mxu0
        %2373 = vmatprep.mubr.f32.mxu0 0.0
        %v2374 = vand.u32 %v2279, 4294901760
        %v2375 = vsub.f32 %v2279, %v2374
        %v2376 = vand.u32 %v2375, 4294901760
        %v2377 = vsub.f32 %v2375, %v2376
        %v2378 = vand.u32 %v2377, 4294901760
        %2379 = vmatmul.mubr.f32.gmra.mrb[0].mxu0 %v2378
        %v2380 = vpop.f32.mrb[0].mxu0
        %v2381 = vadd.f32 0.0, %v2380
        %v2382 = vpop.f32.mrb[0].mxu0
        %2383 = vmatprep.mubr.f32.mxu0 0.0
        %v2384 = vand.u32 %v2282, 4294901760
        %v2385 = vsub.f32 %v2282, %v2384
        %v2386 = vand.u32 %v2385, 4294901760
        %v2387 = vsub.f32 %v2385, %v2386
        %v2388 = vand.u32 %v2387, 4294901760
        %2389 = vmatmul.mubr.f32.gmra.mrb[0].mxu0 %v2388
        %v2390 = vpop.f32.mrb[0].mxu0
        %v2391 = vadd.f32 0.0, %v2390
        %v2392 = vpop.f32.mrb[0].mxu0
        %2393 = vmatprep.mubr.f32.mxu0 0.0
        %v2394 = vand.u32 %v2285, 4294901760
        %v2395 = vsub.f32 %v2285, %v2394
        %v2396 = vand.u32 %v2395, 4294901760
        %v2397 = vsub.f32 %v2395, %v2396
        %v2398 = vand.u32 %v2397, 4294901760
        %2399 = vmatmul.mubr.f32.gmra.mrb[0].mxu0 %v2398
        %v2400 = vpop.f32.mrb[0].mxu0
        %v2401 = vadd.f32 0.0, %v2400
        %v2402 = vpop.f32.mrb[0].mxu0
        %2403 = vdwg.mxu0
        %2404 = vmatprep.subr.mxu0 0.0
        %v2405 = vand.u32 %v334, 4294901760
        %v2406 = vsub.f32 %v334, %v2405
        %v2407 = vand.u32 %v2406, 4294901760
        %v2408 = vsub.f32 %v2406, %v2407
        %v2409 = vand.u32 %v2408, 4294901760
        %2410 = vmatpush1.msra.mxu0 %v2409
        %2411 = vmatprep.subr.mxu0 0.0
        %v2412 = vand.u32 %v335, 4294901760
        %v2413 = vsub.f32 %v335, %v2412
        %v2414 = vand.u32 %v2413, 4294901760
        %v2415 = vsub.f32 %v2413, %v2414
        %v2416 = vand.u32 %v2415, 4294901760
        %2417 = vmatpush1.msra.mxu0 %v2416
        %2418 = vmatprep.subr.mxu0 0.0
        %2419 = vmatpush1.msra.mxu0 0.0
        %2420 = vmatprep.subr.mxu0 0.0
        %2421 = vmatpush1.msra.mxu0 0.0
        %2422 = vmatprep.subr.mxu0 0.0
        %2423 = vmatpush1.msra.mxu0 0.0
        %2424 = vmatprep.subr.mxu0 0.0
        %2425 = vmatpush1.msra.mxu0 0.0
        %2426 = vmatprep.subr.mxu0 0.0
        %2427 = vmatpush1.msra.mxu0 0.0
        %2428 = vmatprep.subr.mxu0 0.0
        %2429 = vmatpush1.msra.mxu0 0.0
        %2430 = vmatprep.subr.mxu0 0.0
        %2431 = vmatpush1.msra.mxu0 0.0
        %2432 = vmatprep.subr.mxu0 0.0
        %2433 = vmatpush1.msra.mxu0 0.0
        %2434 = vmatprep.subr.mxu0 0.0
        %2435 = vmatpush1.msra.mxu0 0.0
        %2436 = vmatprep.subr.mxu0 0.0
        %2437 = vmatpush1.msra.mxu0 0.0
        %2438 = vmatprep.subr.mxu0 0.0
        %2439 = vmatpush1.msra.mxu0 0.0
        %2440 = vmatprep.subr.mxu0 0.0
        %2441 = vmatpush1.msra.mxu0 0.0
        %2442 = vmatprep.subr.mxu0 0.0
        %2443 = vmatpush1.msra.mxu0 0.0
        %2444 = vmatprep.subr.mxu0 0.0
        %2445 = vmatpush1.msra.mxu0 0.0
        %2446 = vmatprep.subr.mxu0 0.0
        %2447 = vmatpush1.msra.mxu0 0.0
        %2448 = vmatprep.subr.mxu0 0.0
        %2449 = vmatpush1.msra.mxu0 0.0
        %2450 = vmatprep.subr.mxu0 0.0
        %2451 = vmatpush1.msra.mxu0 0.0
        %2452 = vmatprep.subr.mxu0 0.0
        %2453 = vmatpush1.msra.mxu0 0.0
        %2454 = vmatprep.subr.mxu0 0.0
        %2455 = vmatpush1.msra.mxu0 0.0
        %2456 = vmatprep.subr.mxu0 0.0
        %2457 = vmatpush1.msra.mxu0 0.0
        %2458 = vmatprep.subr.mxu0 0.0
        %2459 = vmatpush1.msra.mxu0 0.0
        %2460 = vmatprep.subr.mxu0 0.0
        %2461 = vmatpush1.msra.mxu0 0.0
        %2462 = vmatprep.subr.mxu0 0.0
        %2463 = vmatpush1.msra.mxu0 0.0
        %2464 = vmatprep.subr.mxu0 0.0
        %2465 = vmatpush1.msra.mxu0 0.0
        %2466 = vmatprep.subr.mxu0 0.0
        %2467 = vmatpush1.msra.mxu0 0.0
        %2468 = vmatprep.subr.mxu0 0.0
        %2469 = vmatpush1.msra.mxu0 0.0
        %2470 = vmatprep.subr.mxu0 0.0
        %2471 = vmatpush1.msra.mxu0 0.0
        %2472 = vmatprep.subr.mxu0 0.0
        %2473 = vmatpush1.msra.mxu0 0.0
        %2474 = vmatprep.subr.mxu0 0.0
        %2475 = vmatpush1.msra.mxu0 0.0
        %2476 = vmatprep.subr.mxu0 0.0
        %2477 = vmatpush1.msra.mxu0 0.0
        %2478 = vmatprep.mubr.f32.mxu0 0.0
        %v2479 = vand.u32 %v2273, 4294901760
        %2480 = vmatmul.mubr.f32.gmra.mrb[0].mxu0 %v2479
        %v2481 = vpop.f32.mrb[0].mxu0
        %v2482 = vadd.f32 %v2361, %v2481
        %v2483 = vpop.f32.mrb[0].mxu0
        %2484 = vmatprep.mubr.f32.mxu0 0.0
        %v2485 = vand.u32 %v2276, 4294901760
        %2486 = vmatmul.mubr.f32.gmra.mrb[0].mxu0 %v2485
        %v2487 = vpop.f32.mrb[0].mxu0
        %v2488 = vadd.f32 %v2371, %v2487
        %v2489 = vpop.f32.mrb[0].mxu0
        %2490 = vmatprep.mubr.f32.mxu0 0.0
        %v2491 = vand.u32 %v2279, 4294901760
        %2492 = vmatmul.mubr.f32.gmra.mrb[0].mxu0 %v2491
        %v2493 = vpop.f32.mrb[0].mxu0
        %v2494 = vadd.f32 %v2381, %v2493
        %v2495 = vpop.f32.mrb[0].mxu0
        %2496 = vmatprep.mubr.f32.mxu0 0.0
        %v2497 = vand.u32 %v2282, 4294901760
        %2498 = vmatmul.mubr.f32.gmra.mrb[0].mxu0 %v2497
        %v2499 = vpop.f32.mrb[0].mxu0
        %v2500 = vadd.f32 %v2391, %v2499
        %v2501 = vpop.f32.mrb[0].mxu0
        %2502 = vmatprep.mubr.f32.mxu0 0.0
        %v2503 = vand.u32 %v2285, 4294901760
        %2504 = vmatmul.mubr.f32.gmra.mrb[0].mxu0 %v2503
        %v2505 = vpop.f32.mrb[0].mxu0
        %v2506 = vadd.f32 %v2401, %v2505
        %v2507 = vpop.f32.mrb[0].mxu0
        %2508 = vdwg.mxu0
        %2509 = vmatprep.subr.mxu0 0.0
        %v2510 = vand.u32 %v334, 4294901760
        %v2511 = vsub.f32 %v334, %v2510
        %2512 = vmatpush1.msra.mxu0 %v2511
        %2513 = vmatprep.subr.mxu0 0.0
        %v2514 = vand.u32 %v335, 4294901760
        %v2515 = vsub.f32 %v335, %v2514
        %2516 = vmatpush1.msra.mxu0 %v2515
        %2517 = vmatprep.subr.mxu0 0.0
        %2518 = vmatpush1.msra.mxu0 0.0
        %2519 = vmatprep.subr.mxu0 0.0
        %2520 = vmatpush1.msra.mxu0 0.0
        %2521 = vmatprep.subr.mxu0 0.0
        %2522 = vmatpush1.msra.mxu0 0.0
        %2523 = vmatprep.subr.mxu0 0.0
        %2524 = vmatpush1.msra.mxu0 0.0
        %2525 = vmatprep.subr.mxu0 0.0
        %2526 = vmatpush1.msra.mxu0 0.0
        %2527 = vmatprep.subr.mxu0 0.0
        %2528 = vmatpush1.msra.mxu0 0.0
        %2529 = vmatprep.subr.mxu0 0.0
        %2530 = vmatpush1.msra.mxu0 0.0
        %2531 = vmatprep.subr.mxu0 0.0
        %2532 = vmatpush1.msra.mxu0 0.0
        %2533 = vmatprep.subr.mxu0 0.0
        %2534 = vmatpush1.msra.mxu0 0.0
        %2535 = vmatprep.subr.mxu0 0.0
        %2536 = vmatpush1.msra.mxu0 0.0
        %2537 = vmatprep.subr.mxu0 0.0
        %2538 = vmatpush1.msra.mxu0 0.0
        %2539 = vmatprep.subr.mxu0 0.0
        %2540 = vmatpush1.msra.mxu0 0.0
        %2541 = vmatprep.subr.mxu0 0.0
        %2542 = vmatpush1.msra.mxu0 0.0
        %2543 = vmatprep.subr.mxu0 0.0
        %2544 = vmatpush1.msra.mxu0 0.0
        %2545 = vmatprep.subr.mxu0 0.0
        %2546 = vmatpush1.msra.mxu0 0.0
        %2547 = vmatprep.subr.mxu0 0.0
        %2548 = vmatpush1.msra.mxu0 0.0
        %2549 = vmatprep.subr.mxu0 0.0
        %2550 = vmatpush1.msra.mxu0 0.0
        %2551 = vmatprep.subr.mxu0 0.0
        %2552 = vmatpush1.msra.mxu0 0.0
        %2553 = vmatprep.subr.mxu0 0.0
        %2554 = vmatpush1.msra.mxu0 0.0
        %2555 = vmatprep.subr.mxu0 0.0
        %2556 = vmatpush1.msra.mxu0 0.0
        %2557 = vmatprep.subr.mxu0 0.0
        %2558 = vmatpush1.msra.mxu0 0.0
        %2559 = vmatprep.subr.mxu0 0.0
        %2560 = vmatpush1.msra.mxu0 0.0
        %2561 = vmatprep.subr.mxu0 0.0
        %2562 = vmatpush1.msra.mxu0 0.0
        %2563 = vmatprep.subr.mxu0 0.0
        %2564 = vmatpush1.msra.mxu0 0.0
        %2565 = vmatprep.subr.mxu0 0.0
        %2566 = vmatpush1.msra.mxu0 0.0
        %2567 = vmatprep.subr.mxu0 0.0
        %2568 = vmatpush1.msra.mxu0 0.0
        %2569 = vmatprep.subr.mxu0 0.0
        %2570 = vmatpush1.msra.mxu0 0.0
        %2571 = vmatprep.subr.mxu0 0.0
        %2572 = vmatpush1.msra.mxu0 0.0
        %2573 = vmatprep.subr.mxu0 0.0
        %2574 = vmatpush1.msra.mxu0 0.0
        %2575 = vmatprep.subr.mxu0 0.0
        %2576 = vmatpush1.msra.mxu0 0.0
        %2577 = vmatprep.mubr.f32.mxu0 0.0
        %v2578 = vand.u32 %v2273, 4294901760
        %v2579 = vsub.f32 %v2273, %v2578
        %2580 = vmatmul.mubr.f32.gmra.mrb[0].mxu0 %v2579
        %v2581 = vpop.f32.mrb[0].mxu0
        %v2582 = vadd.f32 %v2482, %v2581
        %v2583 = vpop.f32.mrb[0].mxu0
        %2584 = vmatprep.mubr.f32.mxu0 0.0
        %v2585 = vand.u32 %v2276, 4294901760
        %v2586 = vsub.f32 %v2276, %v2585
        %2587 = vmatmul.mubr.f32.gmra.mrb[0].mxu0 %v2586
        %v2588 = vpop.f32.mrb[0].mxu0
        %v2589 = vadd.f32 %v2488, %v2588
        %v2590 = vpop.f32.mrb[0].mxu0
        %2591 = vmatprep.mubr.f32.mxu0 0.0
        %v2592 = vand.u32 %v2279, 4294901760
        %v2593 = vsub.f32 %v2279, %v2592
        %2594 = vmatmul.mubr.f32.gmra.mrb[0].mxu0 %v2593
        %v2595 = vpop.f32.mrb[0].mxu0
        %v2596 = vadd.f32 %v2494, %v2595
        %v2597 = vpop.f32.mrb[0].mxu0
        %2598 = vmatprep.mubr.f32.mxu0 0.0
        %v2599 = vand.u32 %v2282, 4294901760
        %v2600 = vsub.f32 %v2282, %v2599
        %2601 = vmatmul.mubr.f32.gmra.mrb[0].mxu0 %v2600
        %v2602 = vpop.f32.mrb[0].mxu0
        %v2603 = vadd.f32 %v2500, %v2602
        %v2604 = vpop.f32.mrb[0].mxu0
        %2605 = vmatprep.mubr.f32.mxu0 0.0
        %v2606 = vand.u32 %v2285, 4294901760
        %v2607 = vsub.f32 %v2285, %v2606
        %2608 = vmatmul.mubr.f32.gmra.mrb[0].mxu0 %v2607
        %v2609 = vpop.f32.mrb[0].mxu0
        %v2610 = vadd.f32 %v2506, %v2609
        %v2611 = vpop.f32.mrb[0].mxu0
        %2612 = vdwg.mxu0
        %2613 = vmatprep.subr.mxu0 0.0
        %v2614 = vand.u32 %v334, 4294901760
        %2615 = vmatpush1.msra.mxu0 %v2614
        %2616 = vmatprep.subr.mxu0 0.0
        %v2617 = vand.u32 %v335, 4294901760
        %2618 = vmatpush1.msra.mxu0 %v2617
        %2619 = vmatprep.subr.mxu0 0.0
        %2620 = vmatpush1.msra.mxu0 0.0
        %2621 = vmatprep.subr.mxu0 0.0
        %2622 = vmatpush1.msra.mxu0 0.0
        %2623 = vmatprep.subr.mxu0 0.0
        %2624 = vmatpush1.msra.mxu0 0.0
        %2625 = vmatprep.subr.mxu0 0.0
        %2626 = vmatpush1.msra.mxu0 0.0
        %2627 = vmatprep.subr.mxu0 0.0
        %2628 = vmatpush1.msra.mxu0 0.0
        %2629 = vmatprep.subr.mxu0 0.0
        %2630 = vmatpush1.msra.mxu0 0.0
        %2631 = vmatprep.subr.mxu0 0.0
        %2632 = vmatpush1.msra.mxu0 0.0
        %2633 = vmatprep.subr.mxu0 0.0
        %2634 = vmatpush1.msra.mxu0 0.0
        %2635 = vmatprep.subr.mxu0 0.0
        %2636 = vmatpush1.msra.mxu0 0.0
        %2637 = vmatprep.subr.mxu0 0.0
        %2638 = vmatpush1.msra.mxu0 0.0
        %2639 = vmatprep.subr.mxu0 0.0
        %2640 = vmatpush1.msra.mxu0 0.0
        %2641 = vmatprep.subr.mxu0 0.0
        %2642 = vmatpush1.msra.mxu0 0.0
        %2643 = vmatprep.subr.mxu0 0.0
        %2644 = vmatpush1.msra.mxu0 0.0
        %2645 = vmatprep.subr.mxu0 0.0
        %2646 = vmatpush1.msra.mxu0 0.0
        %2647 = vmatprep.subr.mxu0 0.0
        %2648 = vmatpush1.msra.mxu0 0.0
        %2649 = vmatprep.subr.mxu0 0.0
        %2650 = vmatpush1.msra.mxu0 0.0
        %2651 = vmatprep.subr.mxu0 0.0
        %2652 = vmatpush1.msra.mxu0 0.0
        %2653 = vmatprep.subr.mxu0 0.0
        %2654 = vmatpush1.msra.mxu0 0.0
        %2655 = vmatprep.subr.mxu0 0.0
        %2656 = vmatpush1.msra.mxu0 0.0
        %2657 = vmatprep.subr.mxu0 0.0
        %2658 = vmatpush1.msra.mxu0 0.0
        %2659 = vmatprep.subr.mxu0 0.0
        %2660 = vmatpush1.msra.mxu0 0.0
        %2661 = vmatprep.subr.mxu0 0.0
        %2662 = vmatpush1.msra.mxu0 0.0
        %2663 = vmatprep.subr.mxu0 0.0
        %2664 = vmatpush1.msra.mxu0 0.0
        %2665 = vmatprep.subr.mxu0 0.0
        %2666 = vmatpush1.msra.mxu0 0.0
        %2667 = vmatprep.subr.mxu0 0.0
        %2668 = vmatpush1.msra.mxu0 0.0
        %2669 = vmatprep.subr.mxu0 0.0
        %2670 = vmatpush1.msra.mxu0 0.0
        %2671 = vmatprep.subr.mxu0 0.0
        %2672 = vmatpush1.msra.mxu0 0.0
        %2673 = vmatprep.subr.mxu0 0.0
        %2674 = vmatpush1.msra.mxu0 0.0
        %2675 = vmatprep.subr.mxu0 0.0
        %2676 = vmatpush1.msra.mxu0 0.0
        %2677 = vmatprep.subr.mxu0 0.0
        %2678 = vmatpush1.msra.mxu0 0.0
        %2679 = vmatprep.mubr.f32.mxu0 0.0
        %v2680 = vand.u32 %v2273, 4294901760
        %v2681 = vsub.f32 %v2273, %v2680
        %v2682 = vand.u32 %v2681, 4294901760
        %2683 = vmatmul.mubr.f32.gmra.mrb[0].mxu0 %v2682
        %v2684 = vpop.f32.mrb[0].mxu0
        %v2685 = vadd.f32 %v2582, %v2684
        %v2686 = vpop.f32.mrb[0].mxu0
        %2687 = vmatprep.mubr.f32.mxu0 0.0
        %v2688 = vand.u32 %v2276, 4294901760
        %v2689 = vsub.f32 %v2276, %v2688
        %v2690 = vand.u32 %v2689, 4294901760
        %2691 = vmatmul.mubr.f32.gmra.mrb[0].mxu0 %v2690
        %v2692 = vpop.f32.mrb[0].mxu0
        %v2693 = vadd.f32 %v2589, %v2692
        %v2694 = vpop.f32.mrb[0].mxu0
        %2695 = vmatprep.mubr.f32.mxu0 0.0
        %v2696 = vand.u32 %v2279, 4294901760
        %v2697 = vsub.f32 %v2279, %v2696
        %v2698 = vand.u32 %v2697, 4294901760
        %2699 = vmatmul.mubr.f32.gmra.mrb[0].mxu0 %v2698
        %v2700 = vpop.f32.mrb[0].mxu0
        %v2701 = vadd.f32 %v2596, %v2700
        %v2702 = vpop.f32.mrb[0].mxu0
        %2703 = vmatprep.mubr.f32.mxu0 0.0
        %v2704 = vand.u32 %v2282, 4294901760
        %v2705 = vsub.f32 %v2282, %v2704
        %v2706 = vand.u32 %v2705, 4294901760
        %2707 = vmatmul.mubr.f32.gmra.mrb[0].mxu0 %v2706
        %v2708 = vpop.f32.mrb[0].mxu0
        %v2709 = vadd.f32 %v2603, %v2708
        %v2710 = vpop.f32.mrb[0].mxu0
        %2711 = vmatprep.mubr.f32.mxu0 0.0
        %v2712 = vand.u32 %v2285, 4294901760
        %v2713 = vsub.f32 %v2285, %v2712
        %v2714 = vand.u32 %v2713, 4294901760
        %2715 = vmatmul.mubr.f32.gmra.mrb[0].mxu0 %v2714
        %v2716 = vpop.f32.mrb[0].mxu0
        %v2717 = vadd.f32 %v2610, %v2716
        %v2718 = vpop.f32.mrb[0].mxu0
        %2719 = vdwg.mxu0
        %2720 = vmatprep.subr.mxu0 0.0
        %v2721 = vand.u32 %v334, 4294901760
        %v2722 = vsub.f32 %v334, %v2721
        %v2723 = vand.u32 %v2722, 4294901760
        %2724 = vmatpush1.msra.mxu0 %v2723
        %2725 = vmatprep.subr.mxu0 0.0
        %v2726 = vand.u32 %v335, 4294901760
        %v2727 = vsub.f32 %v335, %v2726
        %v2728 = vand.u32 %v2727, 4294901760
        %2729 = vmatpush1.msra.mxu0 %v2728
        %2730 = vmatprep.subr.mxu0 0.0
        %2731 = vmatpush1.msra.mxu0 0.0
        %2732 = vmatprep.subr.mxu0 0.0
        %2733 = vmatpush1.msra.mxu0 0.0
        %2734 = vmatprep.subr.mxu0 0.0
        %2735 = vmatpush1.msra.mxu0 0.0
        %2736 = vmatprep.subr.mxu0 0.0
        %2737 = vmatpush1.msra.mxu0 0.0
        %2738 = vmatprep.subr.mxu0 0.0
        %2739 = vmatpush1.msra.mxu0 0.0
        %2740 = vmatprep.subr.mxu0 0.0
        %2741 = vmatpush1.msra.mxu0 0.0
        %2742 = vmatprep.subr.mxu0 0.0
        %2743 = vmatpush1.msra.mxu0 0.0
        %2744 = vmatprep.subr.mxu0 0.0
        %2745 = vmatpush1.msra.mxu0 0.0
        %2746 = vmatprep.subr.mxu0 0.0
        %2747 = vmatpush1.msra.mxu0 0.0
        %2748 = vmatprep.subr.mxu0 0.0
        %2749 = vmatpush1.msra.mxu0 0.0
        %2750 = vmatprep.subr.mxu0 0.0
        %2751 = vmatpush1.msra.mxu0 0.0
        %2752 = vmatprep.subr.mxu0 0.0
        %2753 = vmatpush1.msra.mxu0 0.0
        %2754 = vmatprep.subr.mxu0 0.0
        %2755 = vmatpush1.msra.mxu0 0.0
        %2756 = vmatprep.subr.mxu0 0.0
        %2757 = vmatpush1.msra.mxu0 0.0
        %2758 = vmatprep.subr.mxu0 0.0
        %2759 = vmatpush1.msra.mxu0 0.0
        %2760 = vmatprep.subr.mxu0 0.0
        %2761 = vmatpush1.msra.mxu0 0.0
        %2762 = vmatprep.subr.mxu0 0.0
        %2763 = vmatpush1.msra.mxu0 0.0
        %2764 = vmatprep.subr.mxu0 0.0
        %2765 = vmatpush1.msra.mxu0 0.0
        %2766 = vmatprep.subr.mxu0 0.0
        %2767 = vmatpush1.msra.mxu0 0.0
        %2768 = vmatprep.subr.mxu0 0.0
        %2769 = vmatpush1.msra.mxu0 0.0
        %2770 = vmatprep.subr.mxu0 0.0
        %2771 = vmatpush1.msra.mxu0 0.0
        %2772 = vmatprep.subr.mxu0 0.0
        %2773 = vmatpush1.msra.mxu0 0.0
        %2774 = vmatprep.subr.mxu0 0.0
        %2775 = vmatpush1.msra.mxu0 0.0
        %2776 = vmatprep.subr.mxu0 0.0
        %2777 = vmatpush1.msra.mxu0 0.0
        %2778 = vmatprep.subr.mxu0 0.0
        %2779 = vmatpush1.msra.mxu0 0.0
        %2780 = vmatprep.subr.mxu0 0.0
        %2781 = vmatpush1.msra.mxu0 0.0
        %2782 = vmatprep.subr.mxu0 0.0
        %2783 = vmatpush1.msra.mxu0 0.0
        %2784 = vmatprep.subr.mxu0 0.0
        %2785 = vmatpush1.msra.mxu0 0.0
        %2786 = vmatprep.subr.mxu0 0.0
        %2787 = vmatpush1.msra.mxu0 0.0
        %2788 = vmatprep.subr.mxu0 0.0
        %2789 = vmatpush1.msra.mxu0 0.0
        %2790 = vmatprep.mubr.f32.mxu0 0.0
        %v2791 = vand.u32 %v2273, 4294901760
        %2792 = vmatmul.mubr.f32.gmra.mrb[0].mxu0 %v2791
        %v2793 = vpop.f32.mrb[0].mxu0
        %v2794 = vadd.f32 %v2685, %v2793
        %v2795 = vpop.f32.mrb[0].mxu0
        %2796 = vmatprep.mubr.f32.mxu0 0.0
        %v2797 = vand.u32 %v2276, 4294901760
        %2798 = vmatmul.mubr.f32.gmra.mrb[0].mxu0 %v2797
        %v2799 = vpop.f32.mrb[0].mxu0
        %v2800 = vadd.f32 %v2693, %v2799
        %v2801 = vpop.f32.mrb[0].mxu0
        %2802 = vmatprep.mubr.f32.mxu0 0.0
        %v2803 = vand.u32 %v2279, 4294901760
        %2804 = vmatmul.mubr.f32.gmra.mrb[0].mxu0 %v2803
        %v2805 = vpop.f32.mrb[0].mxu0
        %v2806 = vadd.f32 %v2701, %v2805
        %v2807 = vpop.f32.mrb[0].mxu0
        %2808 = vmatprep.mubr.f32.mxu0 0.0
        %v2809 = vand.u32 %v2282, 4294901760
        %2810 = vmatmul.mubr.f32.gmra.mrb[0].mxu0 %v2809
        %v2811 = vpop.f32.mrb[0].mxu0
        %v2812 = vadd.f32 %v2709, %v2811
        %v2813 = vpop.f32.mrb[0].mxu0
        %2814 = vmatprep.mubr.f32.mxu0 0.0
        %v2815 = vand.u32 %v2285, 4294901760
        %2816 = vmatmul.mubr.f32.gmra.mrb[0].mxu0 %v2815
        %v2817 = vpop.f32.mrb[0].mxu0
        %v2818 = vadd.f32 %v2717, %v2817
        %v2819 = vpop.f32.mrb[0].mxu0
        %2820 = vdwg.mxu0
        %2821 = vmatprep.subr.mxu0 0.0
        %v2822 = vand.u32 %v334, 4294901760
        %2823 = vmatpush1.msra.mxu0 %v2822
        %2824 = vmatprep.subr.mxu0 0.0
        %v2825 = vand.u32 %v335, 4294901760
        %2826 = vmatpush1.msra.mxu0 %v2825
        %2827 = vmatprep.subr.mxu0 0.0
        %2828 = vmatpush1.msra.mxu0 0.0
        %2829 = vmatprep.subr.mxu0 0.0
        %2830 = vmatpush1.msra.mxu0 0.0
        %2831 = vmatprep.subr.mxu0 0.0
        %2832 = vmatpush1.msra.mxu0 0.0
        %2833 = vmatprep.subr.mxu0 0.0
        %2834 = vmatpush1.msra.mxu0 0.0
        %2835 = vmatprep.subr.mxu0 0.0
        %2836 = vmatpush1.msra.mxu0 0.0
        %2837 = vmatprep.subr.mxu0 0.0
        %2838 = vmatpush1.msra.mxu0 0.0
        %2839 = vmatprep.subr.mxu0 0.0
        %2840 = vmatpush1.msra.mxu0 0.0
        %2841 = vmatprep.subr.mxu0 0.0
        %2842 = vmatpush1.msra.mxu0 0.0
        %2843 = vmatprep.subr.mxu0 0.0
        %2844 = vmatpush1.msra.mxu0 0.0
        %2845 = vmatprep.subr.mxu0 0.0
        %2846 = vmatpush1.msra.mxu0 0.0
        %2847 = vmatprep.subr.mxu0 0.0
        %2848 = vmatpush1.msra.mxu0 0.0
        %2849 = vmatprep.subr.mxu0 0.0
        %2850 = vmatpush1.msra.mxu0 0.0
        %2851 = vmatprep.subr.mxu0 0.0
        %2852 = vmatpush1.msra.mxu0 0.0
        %2853 = vmatprep.subr.mxu0 0.0
        %2854 = vmatpush1.msra.mxu0 0.0
        %2855 = vmatprep.subr.mxu0 0.0
        %2856 = vmatpush1.msra.mxu0 0.0
        %2857 = vmatprep.subr.mxu0 0.0
        %2858 = vmatpush1.msra.mxu0 0.0
        %2859 = vmatprep.subr.mxu0 0.0
        %2860 = vmatpush1.msra.mxu0 0.0
        %2861 = vmatprep.subr.mxu0 0.0
        %2862 = vmatpush1.msra.mxu0 0.0
        %2863 = vmatprep.subr.mxu0 0.0
        %2864 = vmatpush1.msra.mxu0 0.0
        %2865 = vmatprep.subr.mxu0 0.0
        %2866 = vmatpush1.msra.mxu0 0.0
        %2867 = vmatprep.subr.mxu0 0.0
        %2868 = vmatpush1.msra.mxu0 0.0
        %2869 = vmatprep.subr.mxu0 0.0
        %2870 = vmatpush1.msra.mxu0 0.0
        %2871 = vmatprep.subr.mxu0 0.0
        %2872 = vmatpush1.msra.mxu0 0.0
        %2873 = vmatprep.subr.mxu0 0.0
        %2874 = vmatpush1.msra.mxu0 0.0
        %2875 = vmatprep.subr.mxu0 0.0
        %2876 = vmatpush1.msra.mxu0 0.0
        %2877 = vmatprep.subr.mxu0 0.0
        %2878 = vmatpush1.msra.mxu0 0.0
        %2879 = vmatprep.subr.mxu0 0.0
        %2880 = vmatpush1.msra.mxu0 0.0
        %2881 = vmatprep.subr.mxu0 0.0
        %2882 = vmatpush1.msra.mxu0 0.0
        %2883 = vmatprep.subr.mxu0 0.0
        %2884 = vmatpush1.msra.mxu0 0.0
        %2885 = vmatprep.subr.mxu0 0.0
        %2886 = vmatpush1.msra.mxu0 0.0
        %2887 = vmatprep.mubr.f32.mxu0 0.0
        %v2888 = vand.u32 %v2273, 4294901760
        %2889 = vmatmul.mubr.f32.gmra.mrb[0].mxu0 %v2888
        %v2890 = vpop.f32.mrb[0].mxu0
        %v2891 = vadd.f32 %v2794, %v2890
        %v2892 = vpop.f32.mrb[0].mxu0
        %2893 = vmatprep.mubr.f32.mxu0 0.0
        %v2894 = vand.u32 %v2276, 4294901760
        %2895 = vmatmul.mubr.f32.gmra.mrb[0].mxu0 %v2894
        %v2896 = vpop.f32.mrb[0].mxu0
        %v2897 = vadd.f32 %v2800, %v2896
        %v2898 = vpop.f32.mrb[0].mxu0
        %2899 = vmatprep.mubr.f32.mxu0 0.0
        %v2900 = vand.u32 %v2279, 4294901760
        %2901 = vmatmul.mubr.f32.gmra.mrb[0].mxu0 %v2900
        %v2902 = vpop.f32.mrb[0].mxu0
        %v2903 = vadd.f32 %v2806, %v2902
        %v2904 = vpop.f32.mrb[0].mxu0
        %2905 = vmatprep.mubr.f32.mxu0 0.0
        %v2906 = vand.u32 %v2282, 4294901760
        %2907 = vmatmul.mubr.f32.gmra.mrb[0].mxu0 %v2906
        %v2908 = vpop.f32.mrb[0].mxu0
        %v2909 = vadd.f32 %v2812, %v2908
        %v2910 = vpop.f32.mrb[0].mxu0
        %2911 = vmatprep.mubr.f32.mxu0 0.0
        %v2912 = vand.u32 %v2285, 4294901760
        %2913 = vmatmul.mubr.f32.gmra.mrb[0].mxu0 %v2912
        %v2914 = vpop.f32.mrb[0].mxu0
        %v2915 = vadd.f32 %v2818, %v2914
        %v2916 = vpop.f32.mrb[0].mxu0
        %2917 = vdwg.mxu0
        %s2918 = scalar_lea.vmem [#allocation2], 40
        %2919 = vst.msk [vmem:[%s2918] sm:$0xff] %vm1631, %v2891
        %2920 = vst.msk [vmem:[%s2918 + $0x8] sm:$0xff] %vm1631, %v2897
        %2921 = vst.msk [vmem:[%s2918 + $0x10] sm:$0xff] %vm1631, %v2903
        %2922 = vst.msk [vmem:[%s2918 + $0x18] sm:$0xff] %vm1631, %v2909
        %2923 = vst.msk [vmem:[%s2918 + $0x20] sm:$0xf] %vm1636, %v2915
        %s2924 = scalar_lea.vmem %s328, 32
        %v2925 = vld [vmem:[%s2924] sm:$0xff]
        %v2926 = vld [vmem:[%s2924 + $0x8] sm:$0xff]
        %2927 = vmatprep.subr.mxu0 0.0
        %v2928 = vand.u32 %v2925, 4294901760
        %2929 = vmatpush1.msra.mxu0 %v2928
        %2930 = vmatprep.subr.mxu0 0.0
        %v2931 = vand.u32 %v2926, 4294901760
        %2932 = vmatpush1.msra.mxu0 %v2931
        %2933 = vmatprep.subr.mxu0 0.0
        %2934 = vmatpush1.msra.mxu0 0.0
        %2935 = vmatprep.subr.mxu0 0.0
        %2936 = vmatpush1.msra.mxu0 0.0
        %2937 = vmatprep.subr.mxu0 0.0
        %2938 = vmatpush1.msra.mxu0 0.0
        %2939 = vmatprep.subr.mxu0 0.0
        %2940 = vmatpush1.msra.mxu0 0.0
        %2941 = vmatprep.subr.mxu0 0.0
        %2942 = vmatpush1.msra.mxu0 0.0
        %2943 = vmatprep.subr.mxu0 0.0
        %2944 = vmatpush1.msra.mxu0 0.0
        %2945 = vmatprep.subr.mxu0 0.0
        %2946 = vmatpush1.msra.mxu0 0.0
        %2947 = vmatprep.subr.mxu0 0.0
        %2948 = vmatpush1.msra.mxu0 0.0
        %2949 = vmatprep.subr.mxu0 0.0
        %2950 = vmatpush1.msra.mxu0 0.0
        %2951 = vmatprep.subr.mxu0 0.0
        %2952 = vmatpush1.msra.mxu0 0.0
        %2953 = vmatprep.subr.mxu0 0.0
        %2954 = vmatpush1.msra.mxu0 0.0
        %2955 = vmatprep.subr.mxu0 0.0
        %2956 = vmatpush1.msra.mxu0 0.0
        %2957 = vmatprep.subr.mxu0 0.0
        %2958 = vmatpush1.msra.mxu0 0.0
        %2959 = vmatprep.subr.mxu0 0.0
        %2960 = vmatpush1.msra.mxu0 0.0
        %2961 = vmatprep.subr.mxu0 0.0
        %2962 = vmatpush1.msra.mxu0 0.0
        %2963 = vmatprep.subr.mxu0 0.0
        %2964 = vmatpush1.msra.mxu0 0.0
        %2965 = vmatprep.subr.mxu0 0.0
        %2966 = vmatpush1.msra.mxu0 0.0
        %2967 = vmatprep.subr.mxu0 0.0
        %2968 = vmatpush1.msra.mxu0 0.0
        %2969 = vmatprep.subr.mxu0 0.0
        %2970 = vmatpush1.msra.mxu0 0.0
        %2971 = vmatprep.subr.mxu0 0.0
        %2972 = vmatpush1.msra.mxu0 0.0
        %2973 = vmatprep.subr.mxu0 0.0
        %2974 = vmatpush1.msra.mxu0 0.0
        %2975 = vmatprep.subr.mxu0 0.0
        %2976 = vmatpush1.msra.mxu0 0.0
        %2977 = vmatprep.subr.mxu0 0.0
        %2978 = vmatpush1.msra.mxu0 0.0
        %2979 = vmatprep.subr.mxu0 0.0
        %2980 = vmatpush1.msra.mxu0 0.0
        %2981 = vmatprep.subr.mxu0 0.0
        %2982 = vmatpush1.msra.mxu0 0.0
        %2983 = vmatprep.subr.mxu0 0.0
        %2984 = vmatpush1.msra.mxu0 0.0
        %2985 = vmatprep.subr.mxu0 0.0
        %2986 = vmatpush1.msra.mxu0 0.0
        %2987 = vmatprep.subr.mxu0 0.0
        %2988 = vmatpush1.msra.mxu0 0.0
        %2989 = vmatprep.subr.mxu0 0.0
        %2990 = vmatpush1.msra.mxu0 0.0
        %2991 = vmatprep.subr.mxu0 0.0
        %2992 = vmatpush1.msra.mxu0 0.0
        %2993 = vmatprep.mubr.f32.mxu0 0.0
        %v2994 = vand.u32 %v340, 4294901760
        %v2995 = vsub.f32 %v340, %v2994
        %v2996 = vand.u32 %v2995, 4294901760
        %v2997 = vsub.f32 %v2995, %v2996
        %v2998 = vand.u32 %v2997, 4294901760
        %2999 = vmatmul.mubr.f32.gmra.mrb[0].mxu0 %v2998
        %v3000 = vpop.f32.mrb[0].mxu0
        %v3001 = vadd.f32 0.0, %v3000
        %v3002 = vpop.f32.mrb[0].mxu0
        %3003 = vmatprep.mubr.f32.mxu0 0.0
        %v3004 = vand.u32 %v343, 4294901760
        %v3005 = vsub.f32 %v343, %v3004
        %v3006 = vand.u32 %v3005, 4294901760
        %v3007 = vsub.f32 %v3005, %v3006
        %v3008 = vand.u32 %v3007, 4294901760
        %3009 = vmatmul.mubr.f32.gmra.mrb[0].mxu0 %v3008
        %v3010 = vpop.f32.mrb[0].mxu0
        %v3011 = vadd.f32 0.0, %v3010
        %v3012 = vpop.f32.mrb[0].mxu0
        %3013 = vmatprep.mubr.f32.mxu0 0.0
        %v3014 = vand.u32 %v346, 4294901760
        %v3015 = vsub.f32 %v346, %v3014
        %v3016 = vand.u32 %v3015, 4294901760
        %v3017 = vsub.f32 %v3015, %v3016
        %v3018 = vand.u32 %v3017, 4294901760
        %3019 = vmatmul.mubr.f32.gmra.mrb[0].mxu0 %v3018
        %v3020 = vpop.f32.mrb[0].mxu0
        %v3021 = vadd.f32 0.0, %v3020
        %v3022 = vpop.f32.mrb[0].mxu0
        %3023 = vmatprep.mubr.f32.mxu0 0.0
        %v3024 = vand.u32 %v349, 4294901760
        %v3025 = vsub.f32 %v349, %v3024
        %v3026 = vand.u32 %v3025, 4294901760
        %v3027 = vsub.f32 %v3025, %v3026
        %v3028 = vand.u32 %v3027, 4294901760
        %3029 = vmatmul.mubr.f32.gmra.mrb[0].mxu0 %v3028
        %v3030 = vpop.f32.mrb[0].mxu0
        %v3031 = vadd.f32 0.0, %v3030
        %v3032 = vpop.f32.mrb[0].mxu0
        %3033 = vmatprep.mubr.f32.mxu0 0.0
        %v3034 = vand.u32 %v352, 4294901760
        %v3035 = vsub.f32 %v352, %v3034
        %v3036 = vand.u32 %v3035, 4294901760
        %v3037 = vsub.f32 %v3035, %v3036
        %v3038 = vand.u32 %v3037, 4294901760
        %3039 = vmatmul.mubr.f32.gmra.mrb[0].mxu0 %v3038
        %v3040 = vpop.f32.mrb[0].mxu0
        %v3041 = vadd.f32 0.0, %v3040
        %v3042 = vpop.f32.mrb[0].mxu0
        %3043 = vdwg.mxu0
        %3044 = vmatprep.subr.mxu0 0.0
        %v3045 = vand.u32 %v2925, 4294901760
        %v3046 = vsub.f32 %v2925, %v3045
        %v3047 = vand.u32 %v3046, 4294901760
        %v3048 = vsub.f32 %v3046, %v3047
        %v3049 = vand.u32 %v3048, 4294901760
        %3050 = vmatpush1.msra.mxu0 %v3049
        %3051 = vmatprep.subr.mxu0 0.0
        %v3052 = vand.u32 %v2926, 4294901760
        %v3053 = vsub.f32 %v2926, %v3052
        %v3054 = vand.u32 %v3053, 4294901760
        %v3055 = vsub.f32 %v3053, %v3054
        %v3056 = vand.u32 %v3055, 4294901760
        %3057 = vmatpush1.msra.mxu0 %v3056
        %3058 = vmatprep.subr.mxu0 0.0
        %3059 = vmatpush1.msra.mxu0 0.0
        %3060 = vmatprep.subr.mxu0 0.0
        %3061 = vmatpush1.msra.mxu0 0.0
        %3062 = vmatprep.subr.mxu0 0.0
        %3063 = vmatpush1.msra.mxu0 0.0
        %3064 = vmatprep.subr.mxu0 0.0
        %3065 = vmatpush1.msra.mxu0 0.0
        %3066 = vmatprep.subr.mxu0 0.0
        %3067 = vmatpush1.msra.mxu0 0.0
        %3068 = vmatprep.subr.mxu0 0.0
        %3069 = vmatpush1.msra.mxu0 0.0
        %3070 = vmatprep.subr.mxu0 0.0
        %3071 = vmatpush1.msra.mxu0 0.0
        %3072 = vmatprep.subr.mxu0 0.0
        %3073 = vmatpush1.msra.mxu0 0.0
        %3074 = vmatprep.subr.mxu0 0.0
        %3075 = vmatpush1.msra.mxu0 0.0
        %3076 = vmatprep.subr.mxu0 0.0
        %3077 = vmatpush1.msra.mxu0 0.0
        %3078 = vmatprep.subr.mxu0 0.0
        %3079 = vmatpush1.msra.mxu0 0.0
        %3080 = vmatprep.subr.mxu0 0.0
        %3081 = vmatpush1.msra.mxu0 0.0
        %3082 = vmatprep.subr.mxu0 0.0
        %3083 = vmatpush1.msra.mxu0 0.0
        %3084 = vmatprep.subr.mxu0 0.0
        %3085 = vmatpush1.msra.mxu0 0.0
        %3086 = vmatprep.subr.mxu0 0.0
        %3087 = vmatpush1.msra.mxu0 0.0
        %3088 = vmatprep.subr.mxu0 0.0
        %3089 = vmatpush1.msra.mxu0 0.0
        %3090 = vmatprep.subr.mxu0 0.0
        %3091 = vmatpush1.msra.mxu0 0.0
        %3092 = vmatprep.subr.mxu0 0.0
        %3093 = vmatpush1.msra.mxu0 0.0
        %3094 = vmatprep.subr.mxu0 0.0
        %3095 = vmatpush1.msra.mxu0 0.0
        %3096 = vmatprep.subr.mxu0 0.0
        %3097 = vmatpush1.msra.mxu0 0.0
        %3098 = vmatprep.subr.mxu0 0.0
        %3099 = vmatpush1.msra.mxu0 0.0
        %3100 = vmatprep.subr.mxu0 0.0
        %3101 = vmatpush1.msra.mxu0 0.0
        %3102 = vmatprep.subr.mxu0 0.0
        %3103 = vmatpush1.msra.mxu0 0.0
        %3104 = vmatprep.subr.mxu0 0.0
        %3105 = vmatpush1.msra.mxu0 0.0
        %3106 = vmatprep.subr.mxu0 0.0
        %3107 = vmatpush1.msra.mxu0 0.0
        %3108 = vmatprep.subr.mxu0 0.0
        %3109 = vmatpush1.msra.mxu0 0.0
        %3110 = vmatprep.subr.mxu0 0.0
        %3111 = vmatpush1.msra.mxu0 0.0
        %3112 = vmatprep.subr.mxu0 0.0
        %3113 = vmatpush1.msra.mxu0 0.0
        %3114 = vmatprep.subr.mxu0 0.0
        %3115 = vmatpush1.msra.mxu0 0.0
        %3116 = vmatprep.subr.mxu0 0.0
        %3117 = vmatpush1.msra.mxu0 0.0
        %3118 = vmatprep.mubr.f32.mxu0 0.0
        %v3119 = vand.u32 %v340, 4294901760
        %3120 = vmatmul.mubr.f32.gmra.mrb[0].mxu0 %v3119
        %v3121 = vpop.f32.mrb[0].mxu0
        %v3122 = vadd.f32 %v3001, %v3121
        %v3123 = vpop.f32.mrb[0].mxu0
        %3124 = vmatprep.mubr.f32.mxu0 0.0
        %v3125 = vand.u32 %v343, 4294901760
        %3126 = vmatmul.mubr.f32.gmra.mrb[0].mxu0 %v3125
        %v3127 = vpop.f32.mrb[0].mxu0
        %v3128 = vadd.f32 %v3011, %v3127
        %v3129 = vpop.f32.mrb[0].mxu0
        %3130 = vmatprep.mubr.f32.mxu0 0.0
        %v3131 = vand.u32 %v346, 4294901760
        %3132 = vmatmul.mubr.f32.gmra.mrb[0].mxu0 %v3131
        %v3133 = vpop.f32.mrb[0].mxu0
        %v3134 = vadd.f32 %v3021, %v3133
        %v3135 = vpop.f32.mrb[0].mxu0
        %3136 = vmatprep.mubr.f32.mxu0 0.0
        %v3137 = vand.u32 %v349, 4294901760
        %3138 = vmatmul.mubr.f32.gmra.mrb[0].mxu0 %v3137
        %v3139 = vpop.f32.mrb[0].mxu0
        %v3140 = vadd.f32 %v3031, %v3139
        %v3141 = vpop.f32.mrb[0].mxu0
        %3142 = vmatprep.mubr.f32.mxu0 0.0
        %v3143 = vand.u32 %v352, 4294901760
        %3144 = vmatmul.mubr.f32.gmra.mrb[0].mxu0 %v3143
        %v3145 = vpop.f32.mrb[0].mxu0
        %v3146 = vadd.f32 %v3041, %v3145
        %v3147 = vpop.f32.mrb[0].mxu0
        %3148 = vdwg.mxu0
        %3149 = vmatprep.subr.mxu0 0.0
        %v3150 = vand.u32 %v2925, 4294901760
        %v3151 = vsub.f32 %v2925, %v3150
        %3152 = vmatpush1.msra.mxu0 %v3151
        %3153 = vmatprep.subr.mxu0 0.0
        %v3154 = vand.u32 %v2926, 4294901760
        %v3155 = vsub.f32 %v2926, %v3154
        %3156 = vmatpush1.msra.mxu0 %v3155
        %3157 = vmatprep.subr.mxu0 0.0
        %3158 = vmatpush1.msra.mxu0 0.0
        %3159 = vmatprep.subr.mxu0 0.0
        %3160 = vmatpush1.msra.mxu0 0.0
        %3161 = vmatprep.subr.mxu0 0.0
        %3162 = vmatpush1.msra.mxu0 0.0
        %3163 = vmatprep.subr.mxu0 0.0
        %3164 = vmatpush1.msra.mxu0 0.0
        %3165 = vmatprep.subr.mxu0 0.0
        %3166 = vmatpush1.msra.mxu0 0.0
        %3167 = vmatprep.subr.mxu0 0.0
        %3168 = vmatpush1.msra.mxu0 0.0
        %3169 = vmatprep.subr.mxu0 0.0
        %3170 = vmatpush1.msra.mxu0 0.0
        %3171 = vmatprep.subr.mxu0 0.0
        %3172 = vmatpush1.msra.mxu0 0.0
        %3173 = vmatprep.subr.mxu0 0.0
        %3174 = vmatpush1.msra.mxu0 0.0
        %3175 = vmatprep.subr.mxu0 0.0
        %3176 = vmatpush1.msra.mxu0 0.0
        %3177 = vmatprep.subr.mxu0 0.0
        %3178 = vmatpush1.msra.mxu0 0.0
        %3179 = vmatprep.subr.mxu0 0.0
        %3180 = vmatpush1.msra.mxu0 0.0
        %3181 = vmatprep.subr.mxu0 0.0
        %3182 = vmatpush1.msra.mxu0 0.0
        %3183 = vmatprep.subr.mxu0 0.0
        %3184 = vmatpush1.msra.mxu0 0.0
        %3185 = vmatprep.subr.mxu0 0.0
        %3186 = vmatpush1.msra.mxu0 0.0
        %3187 = vmatprep.subr.mxu0 0.0
        %3188 = vmatpush1.msra.mxu0 0.0
        %3189 = vmatprep.subr.mxu0 0.0
        %3190 = vmatpush1.msra.mxu0 0.0
        %3191 = vmatprep.subr.mxu0 0.0
        %3192 = vmatpush1.msra.mxu0 0.0
        %3193 = vmatprep.subr.mxu0 0.0
        %3194 = vmatpush1.msra.mxu0 0.0
        %3195 = vmatprep.subr.mxu0 0.0
        %3196 = vmatpush1.msra.mxu0 0.0
        %3197 = vmatprep.subr.mxu0 0.0
        %3198 = vmatpush1.msra.mxu0 0.0
        %3199 = vmatprep.subr.mxu0 0.0
        %3200 = vmatpush1.msra.mxu0 0.0
        %3201 = vmatprep.subr.mxu0 0.0
        %3202 = vmatpush1.msra.mxu0 0.0
        %3203 = vmatprep.subr.mxu0 0.0
        %3204 = vmatpush1.msra.mxu0 0.0
        %3205 = vmatprep.subr.mxu0 0.0
        %3206 = vmatpush1.msra.mxu0 0.0
        %3207 = vmatprep.subr.mxu0 0.0
        %3208 = vmatpush1.msra.mxu0 0.0
        %3209 = vmatprep.subr.mxu0 0.0
        %3210 = vmatpush1.msra.mxu0 0.0
        %3211 = vmatprep.subr.mxu0 0.0
        %3212 = vmatpush1.msra.mxu0 0.0
        %3213 = vmatprep.subr.mxu0 0.0
        %3214 = vmatpush1.msra.mxu0 0.0
        %3215 = vmatprep.subr.mxu0 0.0
        %3216 = vmatpush1.msra.mxu0 0.0
        %3217 = vmatprep.mubr.f32.mxu0 0.0
        %v3218 = vand.u32 %v340, 4294901760
        %v3219 = vsub.f32 %v340, %v3218
        %3220 = vmatmul.mubr.f32.gmra.mrb[0].mxu0 %v3219
        %v3221 = vpop.f32.mrb[0].mxu0
        %v3222 = vadd.f32 %v3122, %v3221
        %v3223 = vpop.f32.mrb[0].mxu0
        %3224 = vmatprep.mubr.f32.mxu0 0.0
        %v3225 = vand.u32 %v343, 4294901760
        %v3226 = vsub.f32 %v343, %v3225
        %3227 = vmatmul.mubr.f32.gmra.mrb[0].mxu0 %v3226
        %v3228 = vpop.f32.mrb[0].mxu0
        %v3229 = vadd.f32 %v3128, %v3228
        %v3230 = vpop.f32.mrb[0].mxu0
        %3231 = vmatprep.mubr.f32.mxu0 0.0
        %v3232 = vand.u32 %v346, 4294901760
        %v3233 = vsub.f32 %v346, %v3232
        %3234 = vmatmul.mubr.f32.gmra.mrb[0].mxu0 %v3233
        %v3235 = vpop.f32.mrb[0].mxu0
        %v3236 = vadd.f32 %v3134, %v3235
        %v3237 = vpop.f32.mrb[0].mxu0
        %3238 = vmatprep.mubr.f32.mxu0 0.0
        %v3239 = vand.u32 %v349, 4294901760
        %v3240 = vsub.f32 %v349, %v3239
        %3241 = vmatmul.mubr.f32.gmra.mrb[0].mxu0 %v3240
        %v3242 = vpop.f32.mrb[0].mxu0
        %v3243 = vadd.f32 %v3140, %v3242
        %v3244 = vpop.f32.mrb[0].mxu0
        %3245 = vmatprep.mubr.f32.mxu0 0.0
        %v3246 = vand.u32 %v352, 4294901760
        %v3247 = vsub.f32 %v352, %v3246
        %3248 = vmatmul.mubr.f32.gmra.mrb[0].mxu0 %v3247
        %v3249 = vpop.f32.mrb[0].mxu0
        %v3250 = vadd.f32 %v3146, %v3249
        %v3251 = vpop.f32.mrb[0].mxu0
        %3252 = vdwg.mxu0
        %3253 = vmatprep.subr.mxu0 0.0
        %v3254 = vand.u32 %v2925, 4294901760
        %3255 = vmatpush1.msra.mxu0 %v3254
        %3256 = vmatprep.subr.mxu0 0.0
        %v3257 = vand.u32 %v2926, 4294901760
        %3258 = vmatpush1.msra.mxu0 %v3257
        %3259 = vmatprep.subr.mxu0 0.0
        %3260 = vmatpush1.msra.mxu0 0.0
        %3261 = vmatprep.subr.mxu0 0.0
        %3262 = vmatpush1.msra.mxu0 0.0
        %3263 = vmatprep.subr.mxu0 0.0
        %3264 = vmatpush1.msra.mxu0 0.0
        %3265 = vmatprep.subr.mxu0 0.0
        %3266 = vmatpush1.msra.mxu0 0.0
        %3267 = vmatprep.subr.mxu0 0.0
        %3268 = vmatpush1.msra.mxu0 0.0
        %3269 = vmatprep.subr.mxu0 0.0
        %3270 = vmatpush1.msra.mxu0 0.0
        %3271 = vmatprep.subr.mxu0 0.0
        %3272 = vmatpush1.msra.mxu0 0.0
        %3273 = vmatprep.subr.mxu0 0.0
        %3274 = vmatpush1.msra.mxu0 0.0
        %3275 = vmatprep.subr.mxu0 0.0
        %3276 = vmatpush1.msra.mxu0 0.0
        %3277 = vmatprep.subr.mxu0 0.0
        %3278 = vmatpush1.msra.mxu0 0.0
        %3279 = vmatprep.subr.mxu0 0.0
        %3280 = vmatpush1.msra.mxu0 0.0
        %3281 = vmatprep.subr.mxu0 0.0
        %3282 = vmatpush1.msra.mxu0 0.0
        %3283 = vmatprep.subr.mxu0 0.0
        %3284 = vmatpush1.msra.mxu0 0.0
        %3285 = vmatprep.subr.mxu0 0.0
        %3286 = vmatpush1.msra.mxu0 0.0
        %3287 = vmatprep.subr.mxu0 0.0
        %3288 = vmatpush1.msra.mxu0 0.0
        %3289 = vmatprep.subr.mxu0 0.0
        %3290 = vmatpush1.msra.mxu0 0.0
        %3291 = vmatprep.subr.mxu0 0.0
        %3292 = vmatpush1.msra.mxu0 0.0
        %3293 = vmatprep.subr.mxu0 0.0
        %3294 = vmatpush1.msra.mxu0 0.0
        %3295 = vmatprep.subr.mxu0 0.0
        %3296 = vmatpush1.msra.mxu0 0.0
        %3297 = vmatprep.subr.mxu0 0.0
        %3298 = vmatpush1.msra.mxu0 0.0
        %3299 = vmatprep.subr.mxu0 0.0
        %3300 = vmatpush1.msra.mxu0 0.0
        %3301 = vmatprep.subr.mxu0 0.0
        %3302 = vmatpush1.msra.mxu0 0.0
        %3303 = vmatprep.subr.mxu0 0.0
        %3304 = vmatpush1.msra.mxu0 0.0
        %3305 = vmatprep.subr.mxu0 0.0
        %3306 = vmatpush1.msra.mxu0 0.0
        %3307 = vmatprep.subr.mxu0 0.0
        %3308 = vmatpush1.msra.mxu0 0.0
        %3309 = vmatprep.subr.mxu0 0.0
        %3310 = vmatpush1.msra.mxu0 0.0
        %3311 = vmatprep.subr.mxu0 0.0
        %3312 = vmatpush1.msra.mxu0 0.0
        %3313 = vmatprep.subr.mxu0 0.0
        %3314 = vmatpush1.msra.mxu0 0.0
        %3315 = vmatprep.subr.mxu0 0.0
        %3316 = vmatpush1.msra.mxu0 0.0
        %3317 = vmatprep.subr.mxu0 0.0
        %3318 = vmatpush1.msra.mxu0 0.0
        %3319 = vmatprep.mubr.f32.mxu0 0.0
        %v3320 = vand.u32 %v340, 4294901760
        %v3321 = vsub.f32 %v340, %v3320
        %v3322 = vand.u32 %v3321, 4294901760
        %3323 = vmatmul.mubr.f32.gmra.mrb[0].mxu0 %v3322
        %v3324 = vpop.f32.mrb[0].mxu0
        %v3325 = vadd.f32 %v3222, %v3324
        %v3326 = vpop.f32.mrb[0].mxu0
        %3327 = vmatprep.mubr.f32.mxu0 0.0
        %v3328 = vand.u32 %v343, 4294901760
        %v3329 = vsub.f32 %v343, %v3328
        %v3330 = vand.u32 %v3329, 4294901760
        %3331 = vmatmul.mubr.f32.gmra.mrb[0].mxu0 %v3330
        %v3332 = vpop.f32.mrb[0].mxu0
        %v3333 = vadd.f32 %v3229, %v3332
        %v3334 = vpop.f32.mrb[0].mxu0
        %3335 = vmatprep.mubr.f32.mxu0 0.0
        %v3336 = vand.u32 %v346, 4294901760
        %v3337 = vsub.f32 %v346, %v3336
        %v3338 = vand.u32 %v3337, 4294901760
        %3339 = vmatmul.mubr.f32.gmra.mrb[0].mxu0 %v3338
        %v3340 = vpop.f32.mrb[0].mxu0
        %v3341 = vadd.f32 %v3236, %v3340
        %v3342 = vpop.f32.mrb[0].mxu0
        %3343 = vmatprep.mubr.f32.mxu0 0.0
        %v3344 = vand.u32 %v349, 4294901760
        %v3345 = vsub.f32 %v349, %v3344
        %v3346 = vand.u32 %v3345, 4294901760
        %3347 = vmatmul.mubr.f32.gmra.mrb[0].mxu0 %v3346
        %v3348 = vpop.f32.mrb[0].mxu0
        %v3349 = vadd.f32 %v3243, %v3348
        %v3350 = vpop.f32.mrb[0].mxu0
        %3351 = vmatprep.mubr.f32.mxu0 0.0
        %v3352 = vand.u32 %v352, 4294901760
        %v3353 = vsub.f32 %v352, %v3352
        %v3354 = vand.u32 %v3353, 4294901760
        %3355 = vmatmul.mubr.f32.gmra.mrb[0].mxu0 %v3354
        %v3356 = vpop.f32.mrb[0].mxu0
        %v3357 = vadd.f32 %v3250, %v3356
        %v3358 = vpop.f32.mrb[0].mxu0
        %3359 = vdwg.mxu0
        %3360 = vmatprep.subr.mxu0 0.0
        %v3361 = vand.u32 %v2925, 4294901760
        %v3362 = vsub.f32 %v2925, %v3361
        %v3363 = vand.u32 %v3362, 4294901760
        %3364 = vmatpush1.msra.mxu0 %v3363
        %3365 = vmatprep.subr.mxu0 0.0
        %v3366 = vand.u32 %v2926, 4294901760
        %v3367 = vsub.f32 %v2926, %v3366
        %v3368 = vand.u32 %v3367, 4294901760
        %3369 = vmatpush1.msra.mxu0 %v3368
        %3370 = vmatprep.subr.mxu0 0.0
        %3371 = vmatpush1.msra.mxu0 0.0
        %3372 = vmatprep.subr.mxu0 0.0
        %3373 = vmatpush1.msra.mxu0 0.0
        %3374 = vmatprep.subr.mxu0 0.0
        %3375 = vmatpush1.msra.mxu0 0.0
        %3376 = vmatprep.subr.mxu0 0.0
        %3377 = vmatpush1.msra.mxu0 0.0
        %3378 = vmatprep.subr.mxu0 0.0
        %3379 = vmatpush1.msra.mxu0 0.0
        %3380 = vmatprep.subr.mxu0 0.0
        %3381 = vmatpush1.msra.mxu0 0.0
        %3382 = vmatprep.subr.mxu0 0.0
        %3383 = vmatpush1.msra.mxu0 0.0
        %3384 = vmatprep.subr.mxu0 0.0
        %3385 = vmatpush1.msra.mxu0 0.0
        %3386 = vmatprep.subr.mxu0 0.0
        %3387 = vmatpush1.msra.mxu0 0.0
        %3388 = vmatprep.subr.mxu0 0.0
        %3389 = vmatpush1.msra.mxu0 0.0
        %3390 = vmatprep.subr.mxu0 0.0
        %3391 = vmatpush1.msra.mxu0 0.0
        %3392 = vmatprep.subr.mxu0 0.0
        %3393 = vmatpush1.msra.mxu0 0.0
        %3394 = vmatprep.subr.mxu0 0.0
        %3395 = vmatpush1.msra.mxu0 0.0
        %3396 = vmatprep.subr.mxu0 0.0
        %3397 = vmatpush1.msra.mxu0 0.0
        %3398 = vmatprep.subr.mxu0 0.0
        %3399 = vmatpush1.msra.mxu0 0.0
        %3400 = vmatprep.subr.mxu0 0.0
        %3401 = vmatpush1.msra.mxu0 0.0
        %3402 = vmatprep.subr.mxu0 0.0
        %3403 = vmatpush1.msra.mxu0 0.0
        %3404 = vmatprep.subr.mxu0 0.0
        %3405 = vmatpush1.msra.mxu0 0.0
        %3406 = vmatprep.subr.mxu0 0.0
        %3407 = vmatpush1.msra.mxu0 0.0
        %3408 = vmatprep.subr.mxu0 0.0
        %3409 = vmatpush1.msra.mxu0 0.0
        %3410 = vmatprep.subr.mxu0 0.0
        %3411 = vmatpush1.msra.mxu0 0.0
        %3412 = vmatprep.subr.mxu0 0.0
        %3413 = vmatpush1.msra.mxu0 0.0
        %3414 = vmatprep.subr.mxu0 0.0
        %3415 = vmatpush1.msra.mxu0 0.0
        %3416 = vmatprep.subr.mxu0 0.0
        %3417 = vmatpush1.msra.mxu0 0.0
        %3418 = vmatprep.subr.mxu0 0.0
        %3419 = vmatpush1.msra.mxu0 0.0
        %3420 = vmatprep.subr.mxu0 0.0
        %3421 = vmatpush1.msra.mxu0 0.0
        %3422 = vmatprep.subr.mxu0 0.0
        %3423 = vmatpush1.msra.mxu0 0.0
        %3424 = vmatprep.subr.mxu0 0.0
        %3425 = vmatpush1.msra.mxu0 0.0
        %3426 = vmatprep.subr.mxu0 0.0
        %3427 = vmatpush1.msra.mxu0 0.0
        %3428 = vmatprep.subr.mxu0 0.0
        %3429 = vmatpush1.msra.mxu0 0.0
        %3430 = vmatprep.mubr.f32.mxu0 0.0
        %v3431 = vand.u32 %v340, 4294901760
        %3432 = vmatmul.mubr.f32.gmra.mrb[0].mxu0 %v3431
        %v3433 = vpop.f32.mrb[0].mxu0
        %v3434 = vadd.f32 %v3325, %v3433
        %v3435 = vpop.f32.mrb[0].mxu0
        %3436 = vmatprep.mubr.f32.mxu0 0.0
        %v3437 = vand.u32 %v343, 4294901760
        %3438 = vmatmul.mubr.f32.gmra.mrb[0].mxu0 %v3437
        %v3439 = vpop.f32.mrb[0].mxu0
        %v3440 = vadd.f32 %v3333, %v3439
        %v3441 = vpop.f32.mrb[0].mxu0
        %3442 = vmatprep.mubr.f32.mxu0 0.0
        %v3443 = vand.u32 %v346, 4294901760
        %3444 = vmatmul.mubr.f32.gmra.mrb[0].mxu0 %v3443
        %v3445 = vpop.f32.mrb[0].mxu0
        %v3446 = vadd.f32 %v3341, %v3445
        %v3447 = vpop.f32.mrb[0].mxu0
        %3448 = vmatprep.mubr.f32.mxu0 0.0
        %v3449 = vand.u32 %v349, 4294901760
        %3450 = vmatmul.mubr.f32.gmra.mrb[0].mxu0 %v3449
        %v3451 = vpop.f32.mrb[0].mxu0
        %v3452 = vadd.f32 %v3349, %v3451
        %v3453 = vpop.f32.mrb[0].mxu0
        %3454 = vmatprep.mubr.f32.mxu0 0.0
        %v3455 = vand.u32 %v352, 4294901760
        %3456 = vmatmul.mubr.f32.gmra.mrb[0].mxu0 %v3455
        %v3457 = vpop.f32.mrb[0].mxu0
        %v3458 = vadd.f32 %v3357, %v3457
        %v3459 = vpop.f32.mrb[0].mxu0
        %3460 = vdwg.mxu0
        %3461 = vmatprep.subr.mxu0 0.0
        %v3462 = vand.u32 %v2925, 4294901760
        %3463 = vmatpush1.msra.mxu0 %v3462
        %3464 = vmatprep.subr.mxu0 0.0
        %v3465 = vand.u32 %v2926, 4294901760
        %3466 = vmatpush1.msra.mxu0 %v3465
        %3467 = vmatprep.subr.mxu0 0.0
        %3468 = vmatpush1.msra.mxu0 0.0
        %3469 = vmatprep.subr.mxu0 0.0
        %3470 = vmatpush1.msra.mxu0 0.0
        %3471 = vmatprep.subr.mxu0 0.0
        %3472 = vmatpush1.msra.mxu0 0.0
        %3473 = vmatprep.subr.mxu0 0.0
        %3474 = vmatpush1.msra.mxu0 0.0
        %3475 = vmatprep.subr.mxu0 0.0
        %3476 = vmatpush1.msra.mxu0 0.0
        %3477 = vmatprep.subr.mxu0 0.0
        %3478 = vmatpush1.msra.mxu0 0.0
        %3479 = vmatprep.subr.mxu0 0.0
        %3480 = vmatpush1.msra.mxu0 0.0
        %3481 = vmatprep.subr.mxu0 0.0
        %3482 = vmatpush1.msra.mxu0 0.0
        %3483 = vmatprep.subr.mxu0 0.0
        %3484 = vmatpush1.msra.mxu0 0.0
        %3485 = vmatprep.subr.mxu0 0.0
        %3486 = vmatpush1.msra.mxu0 0.0
        %3487 = vmatprep.subr.mxu0 0.0
        %3488 = vmatpush1.msra.mxu0 0.0
        %3489 = vmatprep.subr.mxu0 0.0
        %3490 = vmatpush1.msra.mxu0 0.0
        %3491 = vmatprep.subr.mxu0 0.0
        %3492 = vmatpush1.msra.mxu0 0.0
        %3493 = vmatprep.subr.mxu0 0.0
        %3494 = vmatpush1.msra.mxu0 0.0
        %3495 = vmatprep.subr.mxu0 0.0
        %3496 = vmatpush1.msra.mxu0 0.0
        %3497 = vmatprep.subr.mxu0 0.0
        %3498 = vmatpush1.msra.mxu0 0.0
        %3499 = vmatprep.subr.mxu0 0.0
        %3500 = vmatpush1.msra.mxu0 0.0
        %3501 = vmatprep.subr.mxu0 0.0
        %3502 = vmatpush1.msra.mxu0 0.0
        %3503 = vmatprep.subr.mxu0 0.0
        %3504 = vmatpush1.msra.mxu0 0.0
        %3505 = vmatprep.subr.mxu0 0.0
        %3506 = vmatpush1.msra.mxu0 0.0
        %3507 = vmatprep.subr.mxu0 0.0
        %3508 = vmatpush1.msra.mxu0 0.0
        %3509 = vmatprep.subr.mxu0 0.0
        %3510 = vmatpush1.msra.mxu0 0.0
        %3511 = vmatprep.subr.mxu0 0.0
        %3512 = vmatpush1.msra.mxu0 0.0
        %3513 = vmatprep.subr.mxu0 0.0
        %3514 = vmatpush1.msra.mxu0 0.0
        %3515 = vmatprep.subr.mxu0 0.0
        %3516 = vmatpush1.msra.mxu0 0.0
        %3517 = vmatprep.subr.mxu0 0.0
        %3518 = vmatpush1.msra.mxu0 0.0
        %3519 = vmatprep.subr.mxu0 0.0
        %3520 = vmatpush1.msra.mxu0 0.0
        %3521 = vmatprep.subr.mxu0 0.0
        %3522 = vmatpush1.msra.mxu0 0.0
        %3523 = vmatprep.subr.mxu0 0.0
        %3524 = vmatpush1.msra.mxu0 0.0
        %3525 = vmatprep.subr.mxu0 0.0
        %3526 = vmatpush1.msra.mxu0 0.0
        %3527 = vmatprep.mubr.f32.mxu0 0.0
        %v3528 = vand.u32 %v340, 4294901760
        %3529 = vmatmul.mubr.f32.gmra.mrb[0].mxu0 %v3528
        %v3530 = vpop.f32.mrb[0].mxu0
        %v3531 = vadd.f32 %v3434, %v3530
        %v3532 = vpop.f32.mrb[0].mxu0
        %3533 = vmatprep.mubr.f32.mxu0 0.0
        %v3534 = vand.u32 %v343, 4294901760
        %3535 = vmatmul.mubr.f32.gmra.mrb[0].mxu0 %v3534
        %v3536 = vpop.f32.mrb[0].mxu0
        %v3537 = vadd.f32 %v3440, %v3536
        %v3538 = vpop.f32.mrb[0].mxu0
        %3539 = vmatprep.mubr.f32.mxu0 0.0
        %v3540 = vand.u32 %v346, 4294901760
        %3541 = vmatmul.mubr.f32.gmra.mrb[0].mxu0 %v3540
        %v3542 = vpop.f32.mrb[0].mxu0
        %v3543 = vadd.f32 %v3446, %v3542
        %v3544 = vpop.f32.mrb[0].mxu0
        %3545 = vmatprep.mubr.f32.mxu0 0.0
        %v3546 = vand.u32 %v349, 4294901760
        %3547 = vmatmul.mubr.f32.gmra.mrb[0].mxu0 %v3546
        %v3548 = vpop.f32.mrb[0].mxu0
        %v3549 = vadd.f32 %v3452, %v3548
        %v3550 = vpop.f32.mrb[0].mxu0
        %3551 = vmatprep.mubr.f32.mxu0 0.0
        %v3552 = vand.u32 %v352, 4294901760
        %3553 = vmatmul.mubr.f32.gmra.mrb[0].mxu0 %v3552
        %v3554 = vpop.f32.mrb[0].mxu0
        %v3555 = vadd.f32 %v3458, %v3554
        %v3556 = vpop.f32.mrb[0].mxu0
        %3557 = vdwg.mxu0
        %v3559 = vsel %vm338, %v3531, 0
        %v3562 = vsel %vm338, %v3537, 0
        %v3565 = vsel %vm338, %v3543, 0
        %v3568 = vsel %vm338, %v3549, 0
        %v3571 = vsel %vm338, %v3555, 0
        %3573 = vmatprep.subr.mxu0 0.0
        %v3574 = vand.u32 %v334, 4294901760
        %3575 = vmatpush1.msra.mxu0 %v3574
        %3576 = vmatprep.subr.mxu0 0.0
        %v3577 = vand.u32 %v335, 4294901760
        %3578 = vmatpush1.msra.mxu0 %v3577
        %3579 = vmatprep.subr.mxu0 0.0
        %3580 = vmatpush1.msra.mxu0 0.0
        %3581 = vmatprep.subr.mxu0 0.0
        %3582 = vmatpush1.msra.mxu0 0.0
        %3583 = vmatprep.subr.mxu0 0.0
        %3584 = vmatpush1.msra.mxu0 0.0
        %3585 = vmatprep.subr.mxu0 0.0
        %3586 = vmatpush1.msra.mxu0 0.0
        %3587 = vmatprep.subr.mxu0 0.0
        %3588 = vmatpush1.msra.mxu0 0.0
        %3589 = vmatprep.subr.mxu0 0.0
        %3590 = vmatpush1.msra.mxu0 0.0
        %3591 = vmatprep.subr.mxu0 0.0
        %3592 = vmatpush1.msra.mxu0 0.0
        %3593 = vmatprep.subr.mxu0 0.0
        %3594 = vmatpush1.msra.mxu0 0.0
        %3595 = vmatprep.subr.mxu0 0.0
        %3596 = vmatpush1.msra.mxu0 0.0
        %3597 = vmatprep.subr.mxu0 0.0
        %3598 = vmatpush1.msra.mxu0 0.0
        %3599 = vmatprep.subr.mxu0 0.0
        %3600 = vmatpush1.msra.mxu0 0.0
        %3601 = vmatprep.subr.mxu0 0.0
        %3602 = vmatpush1.msra.mxu0 0.0
        %3603 = vmatprep.subr.mxu0 0.0
        %3604 = vmatpush1.msra.mxu0 0.0
        %3605 = vmatprep.subr.mxu0 0.0
        %3606 = vmatpush1.msra.mxu0 0.0
        %3607 = vmatprep.subr.mxu0 0.0
        %3608 = vmatpush1.msra.mxu0 0.0
        %3609 = vmatprep.subr.mxu0 0.0
        %3610 = vmatpush1.msra.mxu0 0.0
        %3611 = vmatprep.subr.mxu0 0.0
        %3612 = vmatpush1.msra.mxu0 0.0
        %3613 = vmatprep.subr.mxu0 0.0
        %3614 = vmatpush1.msra.mxu0 0.0
        %3615 = vmatprep.subr.mxu0 0.0
        %3616 = vmatpush1.msra.mxu0 0.0
        %3617 = vmatprep.subr.mxu0 0.0
        %3618 = vmatpush1.msra.mxu0 0.0
        %3619 = vmatprep.subr.mxu0 0.0
        %3620 = vmatpush1.msra.mxu0 0.0
        %3621 = vmatprep.subr.mxu0 0.0
        %3622 = vmatpush1.msra.mxu0 0.0
        %3623 = vmatprep.subr.mxu0 0.0
        %3624 = vmatpush1.msra.mxu0 0.0
        %3625 = vmatprep.subr.mxu0 0.0
        %3626 = vmatpush1.msra.mxu0 0.0
        %3627 = vmatprep.subr.mxu0 0.0
        %3628 = vmatpush1.msra.mxu0 0.0
        %3629 = vmatprep.subr.mxu0 0.0
        %3630 = vmatpush1.msra.mxu0 0.0
        %3631 = vmatprep.subr.mxu0 0.0
        %3632 = vmatpush1.msra.mxu0 0.0
        %3633 = vmatprep.subr.mxu0 0.0
        %3634 = vmatpush1.msra.mxu0 0.0
        %3635 = vmatprep.subr.mxu0 0.0
        %3636 = vmatpush1.msra.mxu0 0.0
        %3637 = vmatprep.subr.mxu0 0.0
        %3638 = vmatpush1.msra.mxu0 0.0
        %3639 = vmatprep.mubr.f32.mxu0 0.0
        %v3640 = vand.u32 %v3559, 4294901760
        %v3641 = vsub.f32 %v3559, %v3640
        %v3642 = vand.u32 %v3641, 4294901760
        %v3643 = vsub.f32 %v3641, %v3642
        %v3644 = vand.u32 %v3643, 4294901760
        %3645 = vmatmul.mubr.f32.gmra.mrb[0].mxu0 %v3644
        %v3646 = vpop.f32.mrb[0].mxu0
        %v3647 = vadd.f32 0.0, %v3646
        %v3648 = vpop.f32.mrb[0].mxu0
        %3649 = vmatprep.mubr.f32.mxu0 0.0
        %v3650 = vand.u32 %v3562, 4294901760
        %v3651 = vsub.f32 %v3562, %v3650
        %v3652 = vand.u32 %v3651, 4294901760
        %v3653 = vsub.f32 %v3651, %v3652
        %v3654 = vand.u32 %v3653, 4294901760
        %3655 = vmatmul.mubr.f32.gmra.mrb[0].mxu0 %v3654
        %v3656 = vpop.f32.mrb[0].mxu0
        %v3657 = vadd.f32 0.0, %v3656
        %v3658 = vpop.f32.mrb[0].mxu0
        %3659 = vmatprep.mubr.f32.mxu0 0.0
        %v3660 = vand.u32 %v3565, 4294901760
        %v3661 = vsub.f32 %v3565, %v3660
        %v3662 = vand.u32 %v3661, 4294901760
        %v3663 = vsub.f32 %v3661, %v3662
        %v3664 = vand.u32 %v3663, 4294901760
        %3665 = vmatmul.mubr.f32.gmra.mrb[0].mxu0 %v3664
        %v3666 = vpop.f32.mrb[0].mxu0
        %v3667 = vadd.f32 0.0, %v3666
        %v3668 = vpop.f32.mrb[0].mxu0
        %3669 = vmatprep.mubr.f32.mxu0 0.0
        %v3670 = vand.u32 %v3568, 4294901760
        %v3671 = vsub.f32 %v3568, %v3670
        %v3672 = vand.u32 %v3671, 4294901760
        %v3673 = vsub.f32 %v3671, %v3672
        %v3674 = vand.u32 %v3673, 4294901760
        %3675 = vmatmul.mubr.f32.gmra.mrb[0].mxu0 %v3674
        %v3676 = vpop.f32.mrb[0].mxu0
        %v3677 = vadd.f32 0.0, %v3676
        %v3678 = vpop.f32.mrb[0].mxu0
        %3679 = vmatprep.mubr.f32.mxu0 0.0
        %v3680 = vand.u32 %v3571, 4294901760
        %v3681 = vsub.f32 %v3571, %v3680
        %v3682 = vand.u32 %v3681, 4294901760
        %v3683 = vsub.f32 %v3681, %v3682
        %v3684 = vand.u32 %v3683, 4294901760
        %3685 = vmatmul.mubr.f32.gmra.mrb[0].mxu0 %v3684
        %v3686 = vpop.f32.mrb[0].mxu0
        %v3687 = vadd.f32 0.0, %v3686
        %v3688 = vpop.f32.mrb[0].mxu0
        %3689 = vdwg.mxu0
        %3690 = vmatprep.subr.mxu0 0.0
        %v3691 = vand.u32 %v334, 4294901760
        %v3692 = vsub.f32 %v334, %v3691
        %v3693 = vand.u32 %v3692, 4294901760
        %v3694 = vsub.f32 %v3692, %v3693
        %v3695 = vand.u32 %v3694, 4294901760
        %3696 = vmatpush1.msra.mxu0 %v3695
        %3697 = vmatprep.subr.mxu0 0.0
        %v3698 = vand.u32 %v335, 4294901760
        %v3699 = vsub.f32 %v335, %v3698
        %v3700 = vand.u32 %v3699, 4294901760
        %v3701 = vsub.f32 %v3699, %v3700
        %v3702 = vand.u32 %v3701, 4294901760
        %3703 = vmatpush1.msra.mxu0 %v3702
        %3704 = vmatprep.subr.mxu0 0.0
        %3705 = vmatpush1.msra.mxu0 0.0
        %3706 = vmatprep.subr.mxu0 0.0
        %3707 = vmatpush1.msra.mxu0 0.0
        %3708 = vmatprep.subr.mxu0 0.0
        %3709 = vmatpush1.msra.mxu0 0.0
        %3710 = vmatprep.subr.mxu0 0.0
        %3711 = vmatpush1.msra.mxu0 0.0
        %3712 = vmatprep.subr.mxu0 0.0
        %3713 = vmatpush1.msra.mxu0 0.0
        %3714 = vmatprep.subr.mxu0 0.0
        %3715 = vmatpush1.msra.mxu0 0.0
        %3716 = vmatprep.subr.mxu0 0.0
        %3717 = vmatpush1.msra.mxu0 0.0
        %3718 = vmatprep.subr.mxu0 0.0
        %3719 = vmatpush1.msra.mxu0 0.0
        %3720 = vmatprep.subr.mxu0 0.0
        %3721 = vmatpush1.msra.mxu0 0.0
        %3722 = vmatprep.subr.mxu0 0.0
        %3723 = vmatpush1.msra.mxu0 0.0
        %3724 = vmatprep.subr.mxu0 0.0
        %3725 = vmatpush1.msra.mxu0 0.0
        %3726 = vmatprep.subr.mxu0 0.0
        %3727 = vmatpush1.msra.mxu0 0.0
        %3728 = vmatprep.subr.mxu0 0.0
        %3729 = vmatpush1.msra.mxu0 0.0
        %3730 = vmatprep.subr.mxu0 0.0
        %3731 = vmatpush1.msra.mxu0 0.0
        %3732 = vmatprep.subr.mxu0 0.0
        %3733 = vmatpush1.msra.mxu0 0.0
        %3734 = vmatprep.subr.mxu0 0.0
        %3735 = vmatpush1.msra.mxu0 0.0
        %3736 = vmatprep.subr.mxu0 0.0
        %3737 = vmatpush1.msra.mxu0 0.0
        %3738 = vmatprep.subr.mxu0 0.0
        %3739 = vmatpush1.msra.mxu0 0.0
        %3740 = vmatprep.subr.mxu0 0.0
        %3741 = vmatpush1.msra.mxu0 0.0
        %3742 = vmatprep.subr.mxu0 0.0
        %3743 = vmatpush1.msra.mxu0 0.0
        %3744 = vmatprep.subr.mxu0 0.0
        %3745 = vmatpush1.msra.mxu0 0.0
        %3746 = vmatprep.subr.mxu0 0.0
        %3747 = vmatpush1.msra.mxu0 0.0
        %3748 = vmatprep.subr.mxu0 0.0
        %3749 = vmatpush1.msra.mxu0 0.0
        %3750 = vmatprep.subr.mxu0 0.0
        %3751 = vmatpush1.msra.mxu0 0.0
        %3752 = vmatprep.subr.mxu0 0.0
        %3753 = vmatpush1.msra.mxu0 0.0
        %3754 = vmatprep.subr.mxu0 0.0
        %3755 = vmatpush1.msra.mxu0 0.0
        %3756 = vmatprep.subr.mxu0 0.0
        %3757 = vmatpush1.msra.mxu0 0.0
        %3758 = vmatprep.subr.mxu0 0.0
        %3759 = vmatpush1.msra.mxu0 0.0
        %3760 = vmatprep.subr.mxu0 0.0
        %3761 = vmatpush1.msra.mxu0 0.0
        %3762 = vmatprep.subr.mxu0 0.0
        %3763 = vmatpush1.msra.mxu0 0.0
        %3764 = vmatprep.mubr.f32.mxu0 0.0
        %v3765 = vand.u32 %v3559, 4294901760
        %3766 = vmatmul.mubr.f32.gmra.mrb[0].mxu0 %v3765
        %v3767 = vpop.f32.mrb[0].mxu0
        %v3768 = vadd.f32 %v3647, %v3767
        %v3769 = vpop.f32.mrb[0].mxu0
        %3770 = vmatprep.mubr.f32.mxu0 0.0
        %v3771 = vand.u32 %v3562, 4294901760
        %3772 = vmatmul.mubr.f32.gmra.mrb[0].mxu0 %v3771
        %v3773 = vpop.f32.mrb[0].mxu0
        %v3774 = vadd.f32 %v3657, %v3773
        %v3775 = vpop.f32.mrb[0].mxu0
        %3776 = vmatprep.mubr.f32.mxu0 0.0
        %v3777 = vand.u32 %v3565, 4294901760
        %3778 = vmatmul.mubr.f32.gmra.mrb[0].mxu0 %v3777
        %v3779 = vpop.f32.mrb[0].mxu0
        %v3780 = vadd.f32 %v3667, %v3779
        %v3781 = vpop.f32.mrb[0].mxu0
        %3782 = vmatprep.mubr.f32.mxu0 0.0
        %v3783 = vand.u32 %v3568, 4294901760
        %3784 = vmatmul.mubr.f32.gmra.mrb[0].mxu0 %v3783
        %v3785 = vpop.f32.mrb[0].mxu0
        %v3786 = vadd.f32 %v3677, %v3785
        %v3787 = vpop.f32.mrb[0].mxu0
        %3788 = vmatprep.mubr.f32.mxu0 0.0
        %v3789 = vand.u32 %v3571, 4294901760
        %3790 = vmatmul.mubr.f32.gmra.mrb[0].mxu0 %v3789
        %v3791 = vpop.f32.mrb[0].mxu0
        %v3792 = vadd.f32 %v3687, %v3791
        %v3793 = vpop.f32.mrb[0].mxu0
        %3794 = vdwg.mxu0
        %3795 = vmatprep.subr.mxu0 0.0
        %v3796 = vand.u32 %v334, 4294901760
        %v3797 = vsub.f32 %v334, %v3796
        %3798 = vmatpush1.msra.mxu0 %v3797
        %3799 = vmatprep.subr.mxu0 0.0
        %v3800 = vand.u32 %v335, 4294901760
        %v3801 = vsub.f32 %v335, %v3800
        %3802 = vmatpush1.msra.mxu0 %v3801
        %3803 = vmatprep.subr.mxu0 0.0
        %3804 = vmatpush1.msra.mxu0 0.0
        %3805 = vmatprep.subr.mxu0 0.0
        %3806 = vmatpush1.msra.mxu0 0.0
        %3807 = vmatprep.subr.mxu0 0.0
        %3808 = vmatpush1.msra.mxu0 0.0
        %3809 = vmatprep.subr.mxu0 0.0
        %3810 = vmatpush1.msra.mxu0 0.0
        %3811 = vmatprep.subr.mxu0 0.0
        %3812 = vmatpush1.msra.mxu0 0.0
        %3813 = vmatprep.subr.mxu0 0.0
        %3814 = vmatpush1.msra.mxu0 0.0
        %3815 = vmatprep.subr.mxu0 0.0
        %3816 = vmatpush1.msra.mxu0 0.0
        %3817 = vmatprep.subr.mxu0 0.0
        %3818 = vmatpush1.msra.mxu0 0.0
        %3819 = vmatprep.subr.mxu0 0.0
        %3820 = vmatpush1.msra.mxu0 0.0
        %3821 = vmatprep.subr.mxu0 0.0
        %3822 = vmatpush1.msra.mxu0 0.0
        %3823 = vmatprep.subr.mxu0 0.0
        %3824 = vmatpush1.msra.mxu0 0.0
        %3825 = vmatprep.subr.mxu0 0.0
        %3826 = vmatpush1.msra.mxu0 0.0
        %3827 = vmatprep.subr.mxu0 0.0
        %3828 = vmatpush1.msra.mxu0 0.0
        %3829 = vmatprep.subr.mxu0 0.0
        %3830 = vmatpush1.msra.mxu0 0.0
        %3831 = vmatprep.subr.mxu0 0.0
        %3832 = vmatpush1.msra.mxu0 0.0
        %3833 = vmatprep.subr.mxu0 0.0
        %3834 = vmatpush1.msra.mxu0 0.0
        %3835 = vmatprep.subr.mxu0 0.0
        %3836 = vmatpush1.msra.mxu0 0.0
        %3837 = vmatprep.subr.mxu0 0.0
        %3838 = vmatpush1.msra.mxu0 0.0
        %3839 = vmatprep.subr.mxu0 0.0
        %3840 = vmatpush1.msra.mxu0 0.0
        %3841 = vmatprep.subr.mxu0 0.0
        %3842 = vmatpush1.msra.mxu0 0.0
        %3843 = vmatprep.subr.mxu0 0.0
        %3844 = vmatpush1.msra.mxu0 0.0
        %3845 = vmatprep.subr.mxu0 0.0
        %3846 = vmatpush1.msra.mxu0 0.0
        %3847 = vmatprep.subr.mxu0 0.0
        %3848 = vmatpush1.msra.mxu0 0.0
        %3849 = vmatprep.subr.mxu0 0.0
        %3850 = vmatpush1.msra.mxu0 0.0
        %3851 = vmatprep.subr.mxu0 0.0
        %3852 = vmatpush1.msra.mxu0 0.0
        %3853 = vmatprep.subr.mxu0 0.0
        %3854 = vmatpush1.msra.mxu0 0.0
        %3855 = vmatprep.subr.mxu0 0.0
        %3856 = vmatpush1.msra.mxu0 0.0
        %3857 = vmatprep.subr.mxu0 0.0
        %3858 = vmatpush1.msra.mxu0 0.0
        %3859 = vmatprep.subr.mxu0 0.0
        %3860 = vmatpush1.msra.mxu0 0.0
        %3861 = vmatprep.subr.mxu0 0.0
        %3862 = vmatpush1.msra.mxu0 0.0
        %3863 = vmatprep.mubr.f32.mxu0 0.0
        %v3864 = vand.u32 %v3559, 4294901760
        %v3865 = vsub.f32 %v3559, %v3864
        %3866 = vmatmul.mubr.f32.gmra.mrb[0].mxu0 %v3865
        %v3867 = vpop.f32.mrb[0].mxu0
        %v3868 = vadd.f32 %v3768, %v3867
        %v3869 = vpop.f32.mrb[0].mxu0
        %3870 = vmatprep.mubr.f32.mxu0 0.0
        %v3871 = vand.u32 %v3562, 4294901760
        %v3872 = vsub.f32 %v3562, %v3871
        %3873 = vmatmul.mubr.f32.gmra.mrb[0].mxu0 %v3872
        %v3874 = vpop.f32.mrb[0].mxu0
        %v3875 = vadd.f32 %v3774, %v3874
        %v3876 = vpop.f32.mrb[0].mxu0
        %3877 = vmatprep.mubr.f32.mxu0 0.0
        %v3878 = vand.u32 %v3565, 4294901760
        %v3879 = vsub.f32 %v3565, %v3878
        %3880 = vmatmul.mubr.f32.gmra.mrb[0].mxu0 %v3879
        %v3881 = vpop.f32.mrb[0].mxu0
        %v3882 = vadd.f32 %v3780, %v3881
        %v3883 = vpop.f32.mrb[0].mxu0
        %3884 = vmatprep.mubr.f32.mxu0 0.0
        %v3885 = vand.u32 %v3568, 4294901760
        %v3886 = vsub.f32 %v3568, %v3885
        %3887 = vmatmul.mubr.f32.gmra.mrb[0].mxu0 %v3886
        %v3888 = vpop.f32.mrb[0].mxu0
        %v3889 = vadd.f32 %v3786, %v3888
        %v3890 = vpop.f32.mrb[0].mxu0
        %3891 = vmatprep.mubr.f32.mxu0 0.0
        %v3892 = vand.u32 %v3571, 4294901760
        %v3893 = vsub.f32 %v3571, %v3892
        %3894 = vmatmul.mubr.f32.gmra.mrb[0].mxu0 %v3893
        %v3895 = vpop.f32.mrb[0].mxu0
        %v3896 = vadd.f32 %v3792, %v3895
        %v3897 = vpop.f32.mrb[0].mxu0
        %3898 = vdwg.mxu0
        %3899 = vmatprep.subr.mxu0 0.0
        %v3900 = vand.u32 %v334, 4294901760
        %3901 = vmatpush1.msra.mxu0 %v3900
        %3902 = vmatprep.subr.mxu0 0.0
        %v3903 = vand.u32 %v335, 4294901760
        %3904 = vmatpush1.msra.mxu0 %v3903
        %3905 = vmatprep.subr.mxu0 0.0
        %3906 = vmatpush1.msra.mxu0 0.0
        %3907 = vmatprep.subr.mxu0 0.0
        %3908 = vmatpush1.msra.mxu0 0.0
        %3909 = vmatprep.subr.mxu0 0.0
        %3910 = vmatpush1.msra.mxu0 0.0
        %3911 = vmatprep.subr.mxu0 0.0
        %3912 = vmatpush1.msra.mxu0 0.0
        %3913 = vmatprep.subr.mxu0 0.0
        %3914 = vmatpush1.msra.mxu0 0.0
        %3915 = vmatprep.subr.mxu0 0.0
        %3916 = vmatpush1.msra.mxu0 0.0
        %3917 = vmatprep.subr.mxu0 0.0
        %3918 = vmatpush1.msra.mxu0 0.0
        %3919 = vmatprep.subr.mxu0 0.0
        %3920 = vmatpush1.msra.mxu0 0.0
        %3921 = vmatprep.subr.mxu0 0.0
        %3922 = vmatpush1.msra.mxu0 0.0
        %3923 = vmatprep.subr.mxu0 0.0
        %3924 = vmatpush1.msra.mxu0 0.0
        %3925 = vmatprep.subr.mxu0 0.0
        %3926 = vmatpush1.msra.mxu0 0.0
        %3927 = vmatprep.subr.mxu0 0.0
        %3928 = vmatpush1.msra.mxu0 0.0
        %3929 = vmatprep.subr.mxu0 0.0
        %3930 = vmatpush1.msra.mxu0 0.0
        %3931 = vmatprep.subr.mxu0 0.0
        %3932 = vmatpush1.msra.mxu0 0.0
        %3933 = vmatprep.subr.mxu0 0.0
        %3934 = vmatpush1.msra.mxu0 0.0
        %3935 = vmatprep.subr.mxu0 0.0
        %3936 = vmatpush1.msra.mxu0 0.0
        %3937 = vmatprep.subr.mxu0 0.0
        %3938 = vmatpush1.msra.mxu0 0.0
        %3939 = vmatprep.subr.mxu0 0.0
        %3940 = vmatpush1.msra.mxu0 0.0
        %3941 = vmatprep.subr.mxu0 0.0
        %3942 = vmatpush1.msra.mxu0 0.0
        %3943 = vmatprep.subr.mxu0 0.0
        %3944 = vmatpush1.msra.mxu0 0.0
        %3945 = vmatprep.subr.mxu0 0.0
        %3946 = vmatpush1.msra.mxu0 0.0
        %3947 = vmatprep.subr.mxu0 0.0
        %3948 = vmatpush1.msra.mxu0 0.0
        %3949 = vmatprep.subr.mxu0 0.0
        %3950 = vmatpush1.msra.mxu0 0.0
        %3951 = vmatprep.subr.mxu0 0.0
        %3952 = vmatpush1.msra.mxu0 0.0
        %3953 = vmatprep.subr.mxu0 0.0
        %3954 = vmatpush1.msra.mxu0 0.0
        %3955 = vmatprep.subr.mxu0 0.0
        %3956 = vmatpush1.msra.mxu0 0.0
        %3957 = vmatprep.subr.mxu0 0.0
        %3958 = vmatpush1.msra.mxu0 0.0
        %3959 = vmatprep.subr.mxu0 0.0
        %3960 = vmatpush1.msra.mxu0 0.0
        %3961 = vmatprep.subr.mxu0 0.0
        %3962 = vmatpush1.msra.mxu0 0.0
        %3963 = vmatprep.subr.mxu0 0.0
        %3964 = vmatpush1.msra.mxu0 0.0
        %3965 = vmatprep.mubr.f32.mxu0 0.0
        %v3966 = vand.u32 %v3559, 4294901760
        %v3967 = vsub.f32 %v3559, %v3966
        %v3968 = vand.u32 %v3967, 4294901760
        %3969 = vmatmul.mubr.f32.gmra.mrb[0].mxu0 %v3968
        %v3970 = vpop.f32.mrb[0].mxu0
        %v3971 = vadd.f32 %v3868, %v3970
        %v3972 = vpop.f32.mrb[0].mxu0
        %3973 = vmatprep.mubr.f32.mxu0 0.0
        %v3974 = vand.u32 %v3562, 4294901760
        %v3975 = vsub.f32 %v3562, %v3974
        %v3976 = vand.u32 %v3975, 4294901760
        %3977 = vmatmul.mubr.f32.gmra.mrb[0].mxu0 %v3976
        %v3978 = vpop.f32.mrb[0].mxu0
        %v3979 = vadd.f32 %v3875, %v3978
        %v3980 = vpop.f32.mrb[0].mxu0
        %3981 = vmatprep.mubr.f32.mxu0 0.0
        %v3982 = vand.u32 %v3565, 4294901760
        %v3983 = vsub.f32 %v3565, %v3982
        %v3984 = vand.u32 %v3983, 4294901760
        %3985 = vmatmul.mubr.f32.gmra.mrb[0].mxu0 %v3984
        %v3986 = vpop.f32.mrb[0].mxu0
        %v3987 = vadd.f32 %v3882, %v3986
        %v3988 = vpop.f32.mrb[0].mxu0
        %3989 = vmatprep.mubr.f32.mxu0 0.0
        %v3990 = vand.u32 %v3568, 4294901760
        %v3991 = vsub.f32 %v3568, %v3990
        %v3992 = vand.u32 %v3991, 4294901760
        %3993 = vmatmul.mubr.f32.gmra.mrb[0].mxu0 %v3992
        %v3994 = vpop.f32.mrb[0].mxu0
        %v3995 = vadd.f32 %v3889, %v3994
        %v3996 = vpop.f32.mrb[0].mxu0
        %3997 = vmatprep.mubr.f32.mxu0 0.0
        %v3998 = vand.u32 %v3571, 4294901760
        %v3999 = vsub.f32 %v3571, %v3998
        %v4000 = vand.u32 %v3999, 4294901760
        %4001 = vmatmul.mubr.f32.gmra.mrb[0].mxu0 %v4000
        %v4002 = vpop.f32.mrb[0].mxu0
        %v4003 = vadd.f32 %v3896, %v4002
        %v4004 = vpop.f32.mrb[0].mxu0
        %4005 = vdwg.mxu0
        %4006 = vmatprep.subr.mxu0 0.0
        %v4007 = vand.u32 %v334, 4294901760
        %v4008 = vsub.f32 %v334, %v4007
        %v4009 = vand.u32 %v4008, 4294901760
        %4010 = vmatpush1.msra.mxu0 %v4009
        %4011 = vmatprep.subr.mxu0 0.0
        %v4012 = vand.u32 %v335, 4294901760
        %v4013 = vsub.f32 %v335, %v4012
        %v4014 = vand.u32 %v4013, 4294901760
        %4015 = vmatpush1.msra.mxu0 %v4014
        %4016 = vmatprep.subr.mxu0 0.0
        %4017 = vmatpush1.msra.mxu0 0.0
        %4018 = vmatprep.subr.mxu0 0.0
        %4019 = vmatpush1.msra.mxu0 0.0
        %4020 = vmatprep.subr.mxu0 0.0
        %4021 = vmatpush1.msra.mxu0 0.0
        %4022 = vmatprep.subr.mxu0 0.0
        %4023 = vmatpush1.msra.mxu0 0.0
        %4024 = vmatprep.subr.mxu0 0.0
        %4025 = vmatpush1.msra.mxu0 0.0
        %4026 = vmatprep.subr.mxu0 0.0
        %4027 = vmatpush1.msra.mxu0 0.0
        %4028 = vmatprep.subr.mxu0 0.0
        %4029 = vmatpush1.msra.mxu0 0.0
        %4030 = vmatprep.subr.mxu0 0.0
        %4031 = vmatpush1.msra.mxu0 0.0
        %4032 = vmatprep.subr.mxu0 0.0
        %4033 = vmatpush1.msra.mxu0 0.0
        %4034 = vmatprep.subr.mxu0 0.0
        %4035 = vmatpush1.msra.mxu0 0.0
        %4036 = vmatprep.subr.mxu0 0.0
        %4037 = vmatpush1.msra.mxu0 0.0
        %4038 = vmatprep.subr.mxu0 0.0
        %4039 = vmatpush1.msra.mxu0 0.0
        %4040 = vmatprep.subr.mxu0 0.0
        %4041 = vmatpush1.msra.mxu0 0.0
        %4042 = vmatprep.subr.mxu0 0.0
        %4043 = vmatpush1.msra.mxu0 0.0
        %4044 = vmatprep.subr.mxu0 0.0
        %4045 = vmatpush1.msra.mxu0 0.0
        %4046 = vmatprep.subr.mxu0 0.0
        %4047 = vmatpush1.msra.mxu0 0.0
        %4048 = vmatprep.subr.mxu0 0.0
        %4049 = vmatpush1.msra.mxu0 0.0
        %4050 = vmatprep.subr.mxu0 0.0
        %4051 = vmatpush1.msra.mxu0 0.0
        %4052 = vmatprep.subr.mxu0 0.0
        %4053 = vmatpush1.msra.mxu0 0.0
        %4054 = vmatprep.subr.mxu0 0.0
        %4055 = vmatpush1.msra.mxu0 0.0
        %4056 = vmatprep.subr.mxu0 0.0
        %4057 = vmatpush1.msra.mxu0 0.0
        %4058 = vmatprep.subr.mxu0 0.0
        %4059 = vmatpush1.msra.mxu0 0.0
        %4060 = vmatprep.subr.mxu0 0.0
        %4061 = vmatpush1.msra.mxu0 0.0
        %4062 = vmatprep.subr.mxu0 0.0
        %4063 = vmatpush1.msra.mxu0 0.0
        %4064 = vmatprep.subr.mxu0 0.0
        %4065 = vmatpush1.msra.mxu0 0.0
        %4066 = vmatprep.subr.mxu0 0.0
        %4067 = vmatpush1.msra.mxu0 0.0
        %4068 = vmatprep.subr.mxu0 0.0
        %4069 = vmatpush1.msra.mxu0 0.0
        %4070 = vmatprep.subr.mxu0 0.0
        %4071 = vmatpush1.msra.mxu0 0.0
        %4072 = vmatprep.subr.mxu0 0.0
        %4073 = vmatpush1.msra.mxu0 0.0
        %4074 = vmatprep.subr.mxu0 0.0
        %4075 = vmatpush1.msra.mxu0 0.0
        %4076 = vmatprep.mubr.f32.mxu0 0.0
        %v4077 = vand.u32 %v3559, 4294901760
        %4078 = vmatmul.mubr.f32.gmra.mrb[0].mxu0 %v4077
        %v4079 = vpop.f32.mrb[0].mxu0
        %v4080 = vadd.f32 %v3971, %v4079
        %v4081 = vpop.f32.mrb[0].mxu0
        %4082 = vmatprep.mubr.f32.mxu0 0.0
        %v4083 = vand.u32 %v3562, 4294901760
        %4084 = vmatmul.mubr.f32.gmra.mrb[0].mxu0 %v4083
        %v4085 = vpop.f32.mrb[0].mxu0
        %v4086 = vadd.f32 %v3979, %v4085
        %v4087 = vpop.f32.mrb[0].mxu0
        %4088 = vmatprep.mubr.f32.mxu0 0.0
        %v4089 = vand.u32 %v3565, 4294901760
        %4090 = vmatmul.mubr.f32.gmra.mrb[0].mxu0 %v4089
        %v4091 = vpop.f32.mrb[0].mxu0
        %v4092 = vadd.f32 %v3987, %v4091
        %v4093 = vpop.f32.mrb[0].mxu0
        %4094 = vmatprep.mubr.f32.mxu0 0.0
        %v4095 = vand.u32 %v3568, 4294901760
        %4096 = vmatmul.mubr.f32.gmra.mrb[0].mxu0 %v4095
        %v4097 = vpop.f32.mrb[0].mxu0
        %v4098 = vadd.f32 %v3995, %v4097
        %v4099 = vpop.f32.mrb[0].mxu0
        %4100 = vmatprep.mubr.f32.mxu0 0.0
        %v4101 = vand.u32 %v3571, 4294901760
        %4102 = vmatmul.mubr.f32.gmra.mrb[0].mxu0 %v4101
        %v4103 = vpop.f32.mrb[0].mxu0
        %v4104 = vadd.f32 %v4003, %v4103
        %v4105 = vpop.f32.mrb[0].mxu0
        %4106 = vdwg.mxu0
        %4107 = vmatprep.subr.mxu0 0.0
        %v4108 = vand.u32 %v334, 4294901760
        %4109 = vmatpush1.msra.mxu0 %v4108
        %4110 = vmatprep.subr.mxu0 0.0
        %v4111 = vand.u32 %v335, 4294901760
        %4112 = vmatpush1.msra.mxu0 %v4111
        %4113 = vmatprep.subr.mxu0 0.0
        %4114 = vmatpush1.msra.mxu0 0.0
        %4115 = vmatprep.subr.mxu0 0.0
        %4116 = vmatpush1.msra.mxu0 0.0
        %4117 = vmatprep.subr.mxu0 0.0
        %4118 = vmatpush1.msra.mxu0 0.0
        %4119 = vmatprep.subr.mxu0 0.0
        %4120 = vmatpush1.msra.mxu0 0.0
        %4121 = vmatprep.subr.mxu0 0.0
        %4122 = vmatpush1.msra.mxu0 0.0
        %4123 = vmatprep.subr.mxu0 0.0
        %4124 = vmatpush1.msra.mxu0 0.0
        %4125 = vmatprep.subr.mxu0 0.0
        %4126 = vmatpush1.msra.mxu0 0.0
        %4127 = vmatprep.subr.mxu0 0.0
        %4128 = vmatpush1.msra.mxu0 0.0
        %4129 = vmatprep.subr.mxu0 0.0
        %4130 = vmatpush1.msra.mxu0 0.0
        %4131 = vmatprep.subr.mxu0 0.0
        %4132 = vmatpush1.msra.mxu0 0.0
        %4133 = vmatprep.subr.mxu0 0.0
        %4134 = vmatpush1.msra.mxu0 0.0
        %4135 = vmatprep.subr.mxu0 0.0
        %4136 = vmatpush1.msra.mxu0 0.0
        %4137 = vmatprep.subr.mxu0 0.0
        %4138 = vmatpush1.msra.mxu0 0.0
        %4139 = vmatprep.subr.mxu0 0.0
        %4140 = vmatpush1.msra.mxu0 0.0
        %4141 = vmatprep.subr.mxu0 0.0
        %4142 = vmatpush1.msra.mxu0 0.0
        %4143 = vmatprep.subr.mxu0 0.0
        %4144 = vmatpush1.msra.mxu0 0.0
        %4145 = vmatprep.subr.mxu0 0.0
        %4146 = vmatpush1.msra.mxu0 0.0
        %4147 = vmatprep.subr.mxu0 0.0
        %4148 = vmatpush1.msra.mxu0 0.0
        %4149 = vmatprep.subr.mxu0 0.0
        %4150 = vmatpush1.msra.mxu0 0.0
        %4151 = vmatprep.subr.mxu0 0.0
        %4152 = vmatpush1.msra.mxu0 0.0
        %4153 = vmatprep.subr.mxu0 0.0
        %4154 = vmatpush1.msra.mxu0 0.0
        %4155 = vmatprep.subr.mxu0 0.0
        %4156 = vmatpush1.msra.mxu0 0.0
        %4157 = vmatprep.subr.mxu0 0.0
        %4158 = vmatpush1.msra.mxu0 0.0
        %4159 = vmatprep.subr.mxu0 0.0
        %4160 = vmatpush1.msra.mxu0 0.0
        %4161 = vmatprep.subr.mxu0 0.0
        %4162 = vmatpush1.msra.mxu0 0.0
        %4163 = vmatprep.subr.mxu0 0.0
        %4164 = vmatpush1.msra.mxu0 0.0
        %4165 = vmatprep.subr.mxu0 0.0
        %4166 = vmatpush1.msra.mxu0 0.0
        %4167 = vmatprep.subr.mxu0 0.0
        %4168 = vmatpush1.msra.mxu0 0.0
        %4169 = vmatprep.subr.mxu0 0.0
        %4170 = vmatpush1.msra.mxu0 0.0
        %4171 = vmatprep.subr.mxu0 0.0
        %4172 = vmatpush1.msra.mxu0 0.0
        %4173 = vmatprep.mubr.f32.mxu0 0.0
        %v4174 = vand.u32 %v3559, 4294901760
        %4175 = vmatmul.mubr.f32.gmra.mrb[0].mxu0 %v4174
        %v4176 = vpop.f32.mrb[0].mxu0
        %v4177 = vadd.f32 %v4080, %v4176
        %v4178 = vpop.f32.mrb[0].mxu0
        %4179 = vmatprep.mubr.f32.mxu0 0.0
        %v4180 = vand.u32 %v3562, 4294901760
        %4181 = vmatmul.mubr.f32.gmra.mrb[0].mxu0 %v4180
        %v4182 = vpop.f32.mrb[0].mxu0
        %v4183 = vadd.f32 %v4086, %v4182
        %v4184 = vpop.f32.mrb[0].mxu0
        %4185 = vmatprep.mubr.f32.mxu0 0.0
        %v4186 = vand.u32 %v3565, 4294901760
        %4187 = vmatmul.mubr.f32.gmra.mrb[0].mxu0 %v4186
        %v4188 = vpop.f32.mrb[0].mxu0
        %v4189 = vadd.f32 %v4092, %v4188
        %v4190 = vpop.f32.mrb[0].mxu0
        %4191 = vmatprep.mubr.f32.mxu0 0.0
        %v4192 = vand.u32 %v3568, 4294901760
        %4193 = vmatmul.mubr.f32.gmra.mrb[0].mxu0 %v4192
        %v4194 = vpop.f32.mrb[0].mxu0
        %v4195 = vadd.f32 %v4098, %v4194
        %v4196 = vpop.f32.mrb[0].mxu0
        %4197 = vmatprep.mubr.f32.mxu0 0.0
        %v4198 = vand.u32 %v3571, 4294901760
        %4199 = vmatmul.mubr.f32.gmra.mrb[0].mxu0 %v4198
        %v4200 = vpop.f32.mrb[0].mxu0
        %v4201 = vadd.f32 %v4104, %v4200
        %v4202 = vpop.f32.mrb[0].mxu0
        %4203 = vdwg.mxu0
        %s4204 = scalar_lea.vmem [#allocation2], 80
        %4205 = vst.msk [vmem:[%s4204] sm:$0xff] %vm1631, %v4177
        %4206 = vst.msk [vmem:[%s4204 + $0x8] sm:$0xff] %vm1631, %v4183
        %4207 = vst.msk [vmem:[%s4204 + $0x10] sm:$0xff] %vm1631, %v4189
        %4208 = vst.msk [vmem:[%s4204 + $0x18] sm:$0xff] %vm1631, %v4195
        %4209 = vst.msk [vmem:[%s4204 + $0x20] sm:$0xf] %vm1636, %v4201
        %s4210 = scalar_lea.vmem %s328, 48
        %v4211 = vld [vmem:[%s4210] sm:$0xff]
        %v4212 = vld [vmem:[%s4210 + $0x8] sm:$0xff]
        %4213 = vmatprep.subr.mxu0 0.0
        %v4214 = vand.u32 %v4211, 4294901760
        %4215 = vmatpush1.msra.mxu0 %v4214
        %4216 = vmatprep.subr.mxu0 0.0
        %v4217 = vand.u32 %v4212, 4294901760
        %4218 = vmatpush1.msra.mxu0 %v4217
        %4219 = vmatprep.subr.mxu0 0.0
        %4220 = vmatpush1.msra.mxu0 0.0
        %4221 = vmatprep.subr.mxu0 0.0
        %4222 = vmatpush1.msra.mxu0 0.0
        %4223 = vmatprep.subr.mxu0 0.0
        %4224 = vmatpush1.msra.mxu0 0.0
        %4225 = vmatprep.subr.mxu0 0.0
        %4226 = vmatpush1.msra.mxu0 0.0
        %4227 = vmatprep.subr.mxu0 0.0
        %4228 = vmatpush1.msra.mxu0 0.0
        %4229 = vmatprep.subr.mxu0 0.0
        %4230 = vmatpush1.msra.mxu0 0.0
        %4231 = vmatprep.subr.mxu0 0.0
        %4232 = vmatpush1.msra.mxu0 0.0
        %4233 = vmatprep.subr.mxu0 0.0
        %4234 = vmatpush1.msra.mxu0 0.0
        %4235 = vmatprep.subr.mxu0 0.0
        %4236 = vmatpush1.msra.mxu0 0.0
        %4237 = vmatprep.subr.mxu0 0.0
        %4238 = vmatpush1.msra.mxu0 0.0
        %4239 = vmatprep.subr.mxu0 0.0
        %4240 = vmatpush1.msra.mxu0 0.0
        %4241 = vmatprep.subr.mxu0 0.0
        %4242 = vmatpush1.msra.mxu0 0.0
        %4243 = vmatprep.subr.mxu0 0.0
        %4244 = vmatpush1.msra.mxu0 0.0
        %4245 = vmatprep.subr.mxu0 0.0
        %4246 = vmatpush1.msra.mxu0 0.0
        %4247 = vmatprep.subr.mxu0 0.0
        %4248 = vmatpush1.msra.mxu0 0.0
        %4249 = vmatprep.subr.mxu0 0.0
        %4250 = vmatpush1.msra.mxu0 0.0
        %4251 = vmatprep.subr.mxu0 0.0
        %4252 = vmatpush1.msra.mxu0 0.0
        %4253 = vmatprep.subr.mxu0 0.0
        %4254 = vmatpush1.msra.mxu0 0.0
        %4255 = vmatprep.subr.mxu0 0.0
        %4256 = vmatpush1.msra.mxu0 0.0
        %4257 = vmatprep.subr.mxu0 0.0
        %4258 = vmatpush1.msra.mxu0 0.0
        %4259 = vmatprep.subr.mxu0 0.0
        %4260 = vmatpush1.msra.mxu0 0.0
        %4261 = vmatprep.subr.mxu0 0.0
        %4262 = vmatpush1.msra.mxu0 0.0
        %4263 = vmatprep.subr.mxu0 0.0
        %4264 = vmatpush1.msra.mxu0 0.0
        %4265 = vmatprep.subr.mxu0 0.0
        %4266 = vmatpush1.msra.mxu0 0.0
        %4267 = vmatprep.subr.mxu0 0.0
        %4268 = vmatpush1.msra.mxu0 0.0
        %4269 = vmatprep.subr.mxu0 0.0
        %4270 = vmatpush1.msra.mxu0 0.0
        %4271 = vmatprep.subr.mxu0 0.0
        %4272 = vmatpush1.msra.mxu0 0.0
        %4273 = vmatprep.subr.mxu0 0.0
        %4274 = vmatpush1.msra.mxu0 0.0
        %4275 = vmatprep.subr.mxu0 0.0
        %4276 = vmatpush1.msra.mxu0 0.0
        %4277 = vmatprep.subr.mxu0 0.0
        %4278 = vmatpush1.msra.mxu0 0.0
        %4279 = vmatprep.mubr.f32.mxu0 0.0
        %v4280 = vand.u32 %v340, 4294901760
        %v4281 = vsub.f32 %v340, %v4280
        %v4282 = vand.u32 %v4281, 4294901760
        %v4283 = vsub.f32 %v4281, %v4282
        %v4284 = vand.u32 %v4283, 4294901760
        %4285 = vmatmul.mubr.f32.gmra.mrb[0].mxu0 %v4284
        %v4286 = vpop.f32.mrb[0].mxu0
        %v4287 = vadd.f32 0.0, %v4286
        %v4288 = vpop.f32.mrb[0].mxu0
        %4289 = vmatprep.mubr.f32.mxu0 0.0
        %v4290 = vand.u32 %v343, 4294901760
        %v4291 = vsub.f32 %v343, %v4290
        %v4292 = vand.u32 %v4291, 4294901760
        %v4293 = vsub.f32 %v4291, %v4292
        %v4294 = vand.u32 %v4293, 4294901760
        %4295 = vmatmul.mubr.f32.gmra.mrb[0].mxu0 %v4294
        %v4296 = vpop.f32.mrb[0].mxu0
        %v4297 = vadd.f32 0.0, %v4296
        %v4298 = vpop.f32.mrb[0].mxu0
        %4299 = vmatprep.mubr.f32.mxu0 0.0
        %v4300 = vand.u32 %v346, 4294901760
        %v4301 = vsub.f32 %v346, %v4300
        %v4302 = vand.u32 %v4301, 4294901760
        %v4303 = vsub.f32 %v4301, %v4302
        %v4304 = vand.u32 %v4303, 4294901760
        %4305 = vmatmul.mubr.f32.gmra.mrb[0].mxu0 %v4304
        %v4306 = vpop.f32.mrb[0].mxu0
        %v4307 = vadd.f32 0.0, %v4306
        %v4308 = vpop.f32.mrb[0].mxu0
        %4309 = vmatprep.mubr.f32.mxu0 0.0
        %v4310 = vand.u32 %v349, 4294901760
        %v4311 = vsub.f32 %v349, %v4310
        %v4312 = vand.u32 %v4311, 4294901760
        %v4313 = vsub.f32 %v4311, %v4312
        %v4314 = vand.u32 %v4313, 4294901760
        %4315 = vmatmul.mubr.f32.gmra.mrb[0].mxu0 %v4314
        %v4316 = vpop.f32.mrb[0].mxu0
        %v4317 = vadd.f32 0.0, %v4316
        %v4318 = vpop.f32.mrb[0].mxu0
        %4319 = vmatprep.mubr.f32.mxu0 0.0
        %v4320 = vand.u32 %v352, 4294901760
        %v4321 = vsub.f32 %v352, %v4320
        %v4322 = vand.u32 %v4321, 4294901760
        %v4323 = vsub.f32 %v4321, %v4322
        %v4324 = vand.u32 %v4323, 4294901760
        %4325 = vmatmul.mubr.f32.gmra.mrb[0].mxu0 %v4324
        %v4326 = vpop.f32.mrb[0].mxu0
        %v4327 = vadd.f32 0.0, %v4326
        %v4328 = vpop.f32.mrb[0].mxu0
        %4329 = vdwg.mxu0
        %4330 = vmatprep.subr.mxu0 0.0
        %v4331 = vand.u32 %v4211, 4294901760
        %v4332 = vsub.f32 %v4211, %v4331
        %v4333 = vand.u32 %v4332, 4294901760
        %v4334 = vsub.f32 %v4332, %v4333
        %v4335 = vand.u32 %v4334, 4294901760
        %4336 = vmatpush1.msra.mxu0 %v4335
        %4337 = vmatprep.subr.mxu0 0.0
        %v4338 = vand.u32 %v4212, 4294901760
        %v4339 = vsub.f32 %v4212, %v4338
        %v4340 = vand.u32 %v4339, 4294901760
        %v4341 = vsub.f32 %v4339, %v4340
        %v4342 = vand.u32 %v4341, 4294901760
        %4343 = vmatpush1.msra.mxu0 %v4342
        %4344 = vmatprep.subr.mxu0 0.0
        %4345 = vmatpush1.msra.mxu0 0.0
        %4346 = vmatprep.subr.mxu0 0.0
        %4347 = vmatpush1.msra.mxu0 0.0
        %4348 = vmatprep.subr.mxu0 0.0
        %4349 = vmatpush1.msra.mxu0 0.0
        %4350 = vmatprep.subr.mxu0 0.0
        %4351 = vmatpush1.msra.mxu0 0.0
        %4352 = vmatprep.subr.mxu0 0.0
        %4353 = vmatpush1.msra.mxu0 0.0
        %4354 = vmatprep.subr.mxu0 0.0
        %4355 = vmatpush1.msra.mxu0 0.0
        %4356 = vmatprep.subr.mxu0 0.0
        %4357 = vmatpush1.msra.mxu0 0.0
        %4358 = vmatprep.subr.mxu0 0.0
        %4359 = vmatpush1.msra.mxu0 0.0
        %4360 = vmatprep.subr.mxu0 0.0
        %4361 = vmatpush1.msra.mxu0 0.0
        %4362 = vmatprep.subr.mxu0 0.0
        %4363 = vmatpush1.msra.mxu0 0.0
        %4364 = vmatprep.subr.mxu0 0.0
        %4365 = vmatpush1.msra.mxu0 0.0
        %4366 = vmatprep.subr.mxu0 0.0
        %4367 = vmatpush1.msra.mxu0 0.0
        %4368 = vmatprep.subr.mxu0 0.0
        %4369 = vmatpush1.msra.mxu0 0.0
        %4370 = vmatprep.subr.mxu0 0.0
        %4371 = vmatpush1.msra.mxu0 0.0
        %4372 = vmatprep.subr.mxu0 0.0
        %4373 = vmatpush1.msra.mxu0 0.0
        %4374 = vmatprep.subr.mxu0 0.0
        %4375 = vmatpush1.msra.mxu0 0.0
        %4376 = vmatprep.subr.mxu0 0.0
        %4377 = vmatpush1.msra.mxu0 0.0
        %4378 = vmatprep.subr.mxu0 0.0
        %4379 = vmatpush1.msra.mxu0 0.0
        %4380 = vmatprep.subr.mxu0 0.0
        %4381 = vmatpush1.msra.mxu0 0.0
        %4382 = vmatprep.subr.mxu0 0.0
        %4383 = vmatpush1.msra.mxu0 0.0
        %4384 = vmatprep.subr.mxu0 0.0
        %4385 = vmatpush1.msra.mxu0 0.0
        %4386 = vmatprep.subr.mxu0 0.0
        %4387 = vmatpush1.msra.mxu0 0.0
        %4388 = vmatprep.subr.mxu0 0.0
        %4389 = vmatpush1.msra.mxu0 0.0
        %4390 = vmatprep.subr.mxu0 0.0
        %4391 = vmatpush1.msra.mxu0 0.0
        %4392 = vmatprep.subr.mxu0 0.0
        %4393 = vmatpush1.msra.mxu0 0.0
        %4394 = vmatprep.subr.mxu0 0.0
        %4395 = vmatpush1.msra.mxu0 0.0
        %4396 = vmatprep.subr.mxu0 0.0
        %4397 = vmatpush1.msra.mxu0 0.0
        %4398 = vmatprep.subr.mxu0 0.0
        %4399 = vmatpush1.msra.mxu0 0.0
        %4400 = vmatprep.subr.mxu0 0.0
        %4401 = vmatpush1.msra.mxu0 0.0
        %4402 = vmatprep.subr.mxu0 0.0
        %4403 = vmatpush1.msra.mxu0 0.0
        %4404 = vmatprep.mubr.f32.mxu0 0.0
        %v4405 = vand.u32 %v340, 4294901760
        %4406 = vmatmul.mubr.f32.gmra.mrb[0].mxu0 %v4405
        %v4407 = vpop.f32.mrb[0].mxu0
        %v4408 = vadd.f32 %v4287, %v4407
        %v4409 = vpop.f32.mrb[0].mxu0
        %4410 = vmatprep.mubr.f32.mxu0 0.0
        %v4411 = vand.u32 %v343, 4294901760
        %4412 = vmatmul.mubr.f32.gmra.mrb[0].mxu0 %v4411
        %v4413 = vpop.f32.mrb[0].mxu0
        %v4414 = vadd.f32 %v4297, %v4413
        %v4415 = vpop.f32.mrb[0].mxu0
        %4416 = vmatprep.mubr.f32.mxu0 0.0
        %v4417 = vand.u32 %v346, 4294901760
        %4418 = vmatmul.mubr.f32.gmra.mrb[0].mxu0 %v4417
        %v4419 = vpop.f32.mrb[0].mxu0
        %v4420 = vadd.f32 %v4307, %v4419
        %v4421 = vpop.f32.mrb[0].mxu0
        %4422 = vmatprep.mubr.f32.mxu0 0.0
        %v4423 = vand.u32 %v349, 4294901760
        %4424 = vmatmul.mubr.f32.gmra.mrb[0].mxu0 %v4423
        %v4425 = vpop.f32.mrb[0].mxu0
        %v4426 = vadd.f32 %v4317, %v4425
        %v4427 = vpop.f32.mrb[0].mxu0
        %4428 = vmatprep.mubr.f32.mxu0 0.0
        %v4429 = vand.u32 %v352, 4294901760
        %4430 = vmatmul.mubr.f32.gmra.mrb[0].mxu0 %v4429
        %v4431 = vpop.f32.mrb[0].mxu0
        %v4432 = vadd.f32 %v4327, %v4431
        %v4433 = vpop.f32.mrb[0].mxu0
        %4434 = vdwg.mxu0
        %4435 = vmatprep.subr.mxu0 0.0
        %v4436 = vand.u32 %v4211, 4294901760
        %v4437 = vsub.f32 %v4211, %v4436
        %4438 = vmatpush1.msra.mxu0 %v4437
        %4439 = vmatprep.subr.mxu0 0.0
        %v4440 = vand.u32 %v4212, 4294901760
        %v4441 = vsub.f32 %v4212, %v4440
        %4442 = vmatpush1.msra.mxu0 %v4441
        %4443 = vmatprep.subr.mxu0 0.0
        %4444 = vmatpush1.msra.mxu0 0.0
        %4445 = vmatprep.subr.mxu0 0.0
        %4446 = vmatpush1.msra.mxu0 0.0
        %4447 = vmatprep.subr.mxu0 0.0
        %4448 = vmatpush1.msra.mxu0 0.0
        %4449 = vmatprep.subr.mxu0 0.0
        %4450 = vmatpush1.msra.mxu0 0.0
        %4451 = vmatprep.subr.mxu0 0.0
        %4452 = vmatpush1.msra.mxu0 0.0
        %4453 = vmatprep.subr.mxu0 0.0
        %4454 = vmatpush1.msra.mxu0 0.0
        %4455 = vmatprep.subr.mxu0 0.0
        %4456 = vmatpush1.msra.mxu0 0.0
        %4457 = vmatprep.subr.mxu0 0.0
        %4458 = vmatpush1.msra.mxu0 0.0
        %4459 = vmatprep.subr.mxu0 0.0
        %4460 = vmatpush1.msra.mxu0 0.0
        %4461 = vmatprep.subr.mxu0 0.0
        %4462 = vmatpush1.msra.mxu0 0.0
        %4463 = vmatprep.subr.mxu0 0.0
        %4464 = vmatpush1.msra.mxu0 0.0
        %4465 = vmatprep.subr.mxu0 0.0
        %4466 = vmatpush1.msra.mxu0 0.0
        %4467 = vmatprep.subr.mxu0 0.0
        %4468 = vmatpush1.msra.mxu0 0.0
        %4469 = vmatprep.subr.mxu0 0.0
        %4470 = vmatpush1.msra.mxu0 0.0
        %4471 = vmatprep.subr.mxu0 0.0
        %4472 = vmatpush1.msra.mxu0 0.0
        %4473 = vmatprep.subr.mxu0 0.0
        %4474 = vmatpush1.msra.mxu0 0.0
        %4475 = vmatprep.subr.mxu0 0.0
        %4476 = vmatpush1.msra.mxu0 0.0
        %4477 = vmatprep.subr.mxu0 0.0
        %4478 = vmatpush1.msra.mxu0 0.0
        %4479 = vmatprep.subr.mxu0 0.0
        %4480 = vmatpush1.msra.mxu0 0.0
        %4481 = vmatprep.subr.mxu0 0.0
        %4482 = vmatpush1.msra.mxu0 0.0
        %4483 = vmatprep.subr.mxu0 0.0
        %4484 = vmatpush1.msra.mxu0 0.0
        %4485 = vmatprep.subr.mxu0 0.0
        %4486 = vmatpush1.msra.mxu0 0.0
        %4487 = vmatprep.subr.mxu0 0.0
        %4488 = vmatpush1.msra.mxu0 0.0
        %4489 = vmatprep.subr.mxu0 0.0
        %4490 = vmatpush1.msra.mxu0 0.0
        %4491 = vmatprep.subr.mxu0 0.0
        %4492 = vmatpush1.msra.mxu0 0.0
        %4493 = vmatprep.subr.mxu0 0.0
        %4494 = vmatpush1.msra.mxu0 0.0
        %4495 = vmatprep.subr.mxu0 0.0
        %4496 = vmatpush1.msra.mxu0 0.0
        %4497 = vmatprep.subr.mxu0 0.0
        %4498 = vmatpush1.msra.mxu0 0.0
        %4499 = vmatprep.subr.mxu0 0.0
        %4500 = vmatpush1.msra.mxu0 0.0
        %4501 = vmatprep.subr.mxu0 0.0
        %4502 = vmatpush1.msra.mxu0 0.0
        %4503 = vmatprep.mubr.f32.mxu0 0.0
        %v4504 = vand.u32 %v340, 4294901760
        %v4505 = vsub.f32 %v340, %v4504
        %4506 = vmatmul.mubr.f32.gmra.mrb[0].mxu0 %v4505
        %v4507 = vpop.f32.mrb[0].mxu0
        %v4508 = vadd.f32 %v4408, %v4507
        %v4509 = vpop.f32.mrb[0].mxu0
        %4510 = vmatprep.mubr.f32.mxu0 0.0
        %v4511 = vand.u32 %v343, 4294901760
        %v4512 = vsub.f32 %v343, %v4511
        %4513 = vmatmul.mubr.f32.gmra.mrb[0].mxu0 %v4512
        %v4514 = vpop.f32.mrb[0].mxu0
        %v4515 = vadd.f32 %v4414, %v4514
        %v4516 = vpop.f32.mrb[0].mxu0
        %4517 = vmatprep.mubr.f32.mxu0 0.0
        %v4518 = vand.u32 %v346, 4294901760
        %v4519 = vsub.f32 %v346, %v4518
        %4520 = vmatmul.mubr.f32.gmra.mrb[0].mxu0 %v4519
        %v4521 = vpop.f32.mrb[0].mxu0
        %v4522 = vadd.f32 %v4420, %v4521
        %v4523 = vpop.f32.mrb[0].mxu0
        %4524 = vmatprep.mubr.f32.mxu0 0.0
        %v4525 = vand.u32 %v349, 4294901760
        %v4526 = vsub.f32 %v349, %v4525
        %4527 = vmatmul.mubr.f32.gmra.mrb[0].mxu0 %v4526
        %v4528 = vpop.f32.mrb[0].mxu0
        %v4529 = vadd.f32 %v4426, %v4528
        %v4530 = vpop.f32.mrb[0].mxu0
        %4531 = vmatprep.mubr.f32.mxu0 0.0
        %v4532 = vand.u32 %v352, 4294901760
        %v4533 = vsub.f32 %v352, %v4532
        %4534 = vmatmul.mubr.f32.gmra.mrb[0].mxu0 %v4533
        %v4535 = vpop.f32.mrb[0].mxu0
        %v4536 = vadd.f32 %v4432, %v4535
        %v4537 = vpop.f32.mrb[0].mxu0
        %4538 = vdwg.mxu0
        %4539 = vmatprep.subr.mxu0 0.0
        %v4540 = vand.u32 %v4211, 4294901760
        %4541 = vmatpush1.msra.mxu0 %v4540
        %4542 = vmatprep.subr.mxu0 0.0
        %v4543 = vand.u32 %v4212, 4294901760
        %4544 = vmatpush1.msra.mxu0 %v4543
        %4545 = vmatprep.subr.mxu0 0.0
        %4546 = vmatpush1.msra.mxu0 0.0
        %4547 = vmatprep.subr.mxu0 0.0
        %4548 = vmatpush1.msra.mxu0 0.0
        %4549 = vmatprep.subr.mxu0 0.0
        %4550 = vmatpush1.msra.mxu0 0.0
        %4551 = vmatprep.subr.mxu0 0.0
        %4552 = vmatpush1.msra.mxu0 0.0
        %4553 = vmatprep.subr.mxu0 0.0
        %4554 = vmatpush1.msra.mxu0 0.0
        %4555 = vmatprep.subr.mxu0 0.0
        %4556 = vmatpush1.msra.mxu0 0.0
        %4557 = vmatprep.subr.mxu0 0.0
        %4558 = vmatpush1.msra.mxu0 0.0
        %4559 = vmatprep.subr.mxu0 0.0
        %4560 = vmatpush1.msra.mxu0 0.0
        %4561 = vmatprep.subr.mxu0 0.0
        %4562 = vmatpush1.msra.mxu0 0.0
        %4563 = vmatprep.subr.mxu0 0.0
        %4564 = vmatpush1.msra.mxu0 0.0
        %4565 = vmatprep.subr.mxu0 0.0
        %4566 = vmatpush1.msra.mxu0 0.0
        %4567 = vmatprep.subr.mxu0 0.0
        %4568 = vmatpush1.msra.mxu0 0.0
        %4569 = vmatprep.subr.mxu0 0.0
        %4570 = vmatpush1.msra.mxu0 0.0
        %4571 = vmatprep.subr.mxu0 0.0
        %4572 = vmatpush1.msra.mxu0 0.0
        %4573 = vmatprep.subr.mxu0 0.0
        %4574 = vmatpush1.msra.mxu0 0.0
        %4575 = vmatprep.subr.mxu0 0.0
        %4576 = vmatpush1.msra.mxu0 0.0
        %4577 = vmatprep.subr.mxu0 0.0
        %4578 = vmatpush1.msra.mxu0 0.0
        %4579 = vmatprep.subr.mxu0 0.0
        %4580 = vmatpush1.msra.mxu0 0.0
        %4581 = vmatprep.subr.mxu0 0.0
        %4582 = vmatpush1.msra.mxu0 0.0
        %4583 = vmatprep.subr.mxu0 0.0
        %4584 = vmatpush1.msra.mxu0 0.0
        %4585 = vmatprep.subr.mxu0 0.0
        %4586 = vmatpush1.msra.mxu0 0.0
        %4587 = vmatprep.subr.mxu0 0.0
        %4588 = vmatpush1.msra.mxu0 0.0
        %4589 = vmatprep.subr.mxu0 0.0
        %4590 = vmatpush1.msra.mxu0 0.0
        %4591 = vmatprep.subr.mxu0 0.0
        %4592 = vmatpush1.msra.mxu0 0.0
        %4593 = vmatprep.subr.mxu0 0.0
        %4594 = vmatpush1.msra.mxu0 0.0
        %4595 = vmatprep.subr.mxu0 0.0
        %4596 = vmatpush1.msra.mxu0 0.0
        %4597 = vmatprep.subr.mxu0 0.0
        %4598 = vmatpush1.msra.mxu0 0.0
        %4599 = vmatprep.subr.mxu0 0.0
        %4600 = vmatpush1.msra.mxu0 0.0
        %4601 = vmatprep.subr.mxu0 0.0
        %4602 = vmatpush1.msra.mxu0 0.0
        %4603 = vmatprep.subr.mxu0 0.0
        %4604 = vmatpush1.msra.mxu0 0.0
        %4605 = vmatprep.mubr.f32.mxu0 0.0
        %v4606 = vand.u32 %v340, 4294901760
        %v4607 = vsub.f32 %v340, %v4606
        %v4608 = vand.u32 %v4607, 4294901760
        %4609 = vmatmul.mubr.f32.gmra.mrb[0].mxu0 %v4608
        %v4610 = vpop.f32.mrb[0].mxu0
        %v4611 = vadd.f32 %v4508, %v4610
        %v4612 = vpop.f32.mrb[0].mxu0
        %4613 = vmatprep.mubr.f32.mxu0 0.0
        %v4614 = vand.u32 %v343, 4294901760
        %v4615 = vsub.f32 %v343, %v4614
        %v4616 = vand.u32 %v4615, 4294901760
        %4617 = vmatmul.mubr.f32.gmra.mrb[0].mxu0 %v4616
        %v4618 = vpop.f32.mrb[0].mxu0
        %v4619 = vadd.f32 %v4515, %v4618
        %v4620 = vpop.f32.mrb[0].mxu0
        %4621 = vmatprep.mubr.f32.mxu0 0.0
        %v4622 = vand.u32 %v346, 4294901760
        %v4623 = vsub.f32 %v346, %v4622
        %v4624 = vand.u32 %v4623, 4294901760
        %4625 = vmatmul.mubr.f32.gmra.mrb[0].mxu0 %v4624
        %v4626 = vpop.f32.mrb[0].mxu0
        %v4627 = vadd.f32 %v4522, %v4626
        %v4628 = vpop.f32.mrb[0].mxu0
        %4629 = vmatprep.mubr.f32.mxu0 0.0
        %v4630 = vand.u32 %v349, 4294901760
        %v4631 = vsub.f32 %v349, %v4630
        %v4632 = vand.u32 %v4631, 4294901760
        %4633 = vmatmul.mubr.f32.gmra.mrb[0].mxu0 %v4632
        %v4634 = vpop.f32.mrb[0].mxu0
        %v4635 = vadd.f32 %v4529, %v4634
        %v4636 = vpop.f32.mrb[0].mxu0
        %4637 = vmatprep.mubr.f32.mxu0 0.0
        %v4638 = vand.u32 %v352, 4294901760
        %v4639 = vsub.f32 %v352, %v4638
        %v4640 = vand.u32 %v4639, 4294901760
        %4641 = vmatmul.mubr.f32.gmra.mrb[0].mxu0 %v4640
        %v4642 = vpop.f32.mrb[0].mxu0
        %v4643 = vadd.f32 %v4536, %v4642
        %v4644 = vpop.f32.mrb[0].mxu0
        %4645 = vdwg.mxu0
        %4646 = vmatprep.subr.mxu0 0.0
        %v4647 = vand.u32 %v4211, 4294901760
        %v4648 = vsub.f32 %v4211, %v4647
        %v4649 = vand.u32 %v4648, 4294901760
        %4650 = vmatpush1.msra.mxu0 %v4649
        %4651 = vmatprep.subr.mxu0 0.0
        %v4652 = vand.u32 %v4212, 4294901760
        %v4653 = vsub.f32 %v4212, %v4652
        %v4654 = vand.u32 %v4653, 4294901760
        %4655 = vmatpush1.msra.mxu0 %v4654
        %4656 = vmatprep.subr.mxu0 0.0
        %4657 = vmatpush1.msra.mxu0 0.0
        %4658 = vmatprep.subr.mxu0 0.0
        %4659 = vmatpush1.msra.mxu0 0.0
        %4660 = vmatprep.subr.mxu0 0.0
        %4661 = vmatpush1.msra.mxu0 0.0
        %4662 = vmatprep.subr.mxu0 0.0
        %4663 = vmatpush1.msra.mxu0 0.0
        %4664 = vmatprep.subr.mxu0 0.0
        %4665 = vmatpush1.msra.mxu0 0.0
        %4666 = vmatprep.subr.mxu0 0.0
        %4667 = vmatpush1.msra.mxu0 0.0
        %4668 = vmatprep.subr.mxu0 0.0
        %4669 = vmatpush1.msra.mxu0 0.0
        %4670 = vmatprep.subr.mxu0 0.0
        %4671 = vmatpush1.msra.mxu0 0.0
        %4672 = vmatprep.subr.mxu0 0.0
        %4673 = vmatpush1.msra.mxu0 0.0
        %4674 = vmatprep.subr.mxu0 0.0
        %4675 = vmatpush1.msra.mxu0 0.0
        %4676 = vmatprep.subr.mxu0 0.0
        %4677 = vmatpush1.msra.mxu0 0.0
        %4678 = vmatprep.subr.mxu0 0.0
        %4679 = vmatpush1.msra.mxu0 0.0
        %4680 = vmatprep.subr.mxu0 0.0
        %4681 = vmatpush1.msra.mxu0 0.0
        %4682 = vmatprep.subr.mxu0 0.0
        %4683 = vmatpush1.msra.mxu0 0.0
        %4684 = vmatprep.subr.mxu0 0.0
        %4685 = vmatpush1.msra.mxu0 0.0
        %4686 = vmatprep.subr.mxu0 0.0
        %4687 = vmatpush1.msra.mxu0 0.0
        %4688 = vmatprep.subr.mxu0 0.0
        %4689 = vmatpush1.msra.mxu0 0.0
        %4690 = vmatprep.subr.mxu0 0.0
        %4691 = vmatpush1.msra.mxu0 0.0
        %4692 = vmatprep.subr.mxu0 0.0
        %4693 = vmatpush1.msra.mxu0 0.0
        %4694 = vmatprep.subr.mxu0 0.0
        %4695 = vmatpush1.msra.mxu0 0.0
        %4696 = vmatprep.subr.mxu0 0.0
        %4697 = vmatpush1.msra.mxu0 0.0
        %4698 = vmatprep.subr.mxu0 0.0
        %4699 = vmatpush1.msra.mxu0 0.0
        %4700 = vmatprep.subr.mxu0 0.0
        %4701 = vmatpush1.msra.mxu0 0.0
        %4702 = vmatprep.subr.mxu0 0.0
        %4703 = vmatpush1.msra.mxu0 0.0
        %4704 = vmatprep.subr.mxu0 0.0
        %4705 = vmatpush1.msra.mxu0 0.0
        %4706 = vmatprep.subr.mxu0 0.0
        %4707 = vmatpush1.msra.mxu0 0.0
        %4708 = vmatprep.subr.mxu0 0.0
        %4709 = vmatpush1.msra.mxu0 0.0
        %4710 = vmatprep.subr.mxu0 0.0
        %4711 = vmatpush1.msra.mxu0 0.0
        %4712 = vmatprep.subr.mxu0 0.0
        %4713 = vmatpush1.msra.mxu0 0.0
        %4714 = vmatprep.subr.mxu0 0.0
        %4715 = vmatpush1.msra.mxu0 0.0
        %4716 = vmatprep.mubr.f32.mxu0 0.0
        %v4717 = vand.u32 %v340, 4294901760
        %4718 = vmatmul.mubr.f32.gmra.mrb[0].mxu0 %v4717
        %v4719 = vpop.f32.mrb[0].mxu0
        %v4720 = vadd.f32 %v4611, %v4719
        %v4721 = vpop.f32.mrb[0].mxu0
        %4722 = vmatprep.mubr.f32.mxu0 0.0
        %v4723 = vand.u32 %v343, 4294901760
        %4724 = vmatmul.mubr.f32.gmra.mrb[0].mxu0 %v4723
        %v4725 = vpop.f32.mrb[0].mxu0
        %v4726 = vadd.f32 %v4619, %v4725
        %v4727 = vpop.f32.mrb[0].mxu0
        %4728 = vmatprep.mubr.f32.mxu0 0.0
        %v4729 = vand.u32 %v346, 4294901760
        %4730 = vmatmul.mubr.f32.gmra.mrb[0].mxu0 %v4729
        %v4731 = vpop.f32.mrb[0].mxu0
        %v4732 = vadd.f32 %v4627, %v4731
        %v4733 = vpop.f32.mrb[0].mxu0
        %4734 = vmatprep.mubr.f32.mxu0 0.0
        %v4735 = vand.u32 %v349, 4294901760
        %4736 = vmatmul.mubr.f32.gmra.mrb[0].mxu0 %v4735
        %v4737 = vpop.f32.mrb[0].mxu0
        %v4738 = vadd.f32 %v4635, %v4737
        %v4739 = vpop.f32.mrb[0].mxu0
        %4740 = vmatprep.mubr.f32.mxu0 0.0
        %v4741 = vand.u32 %v352, 4294901760
        %4742 = vmatmul.mubr.f32.gmra.mrb[0].mxu0 %v4741
        %v4743 = vpop.f32.mrb[0].mxu0
        %v4744 = vadd.f32 %v4643, %v4743
        %v4745 = vpop.f32.mrb[0].mxu0
        %4746 = vdwg.mxu0
        %4747 = vmatprep.subr.mxu0 0.0
        %v4748 = vand.u32 %v4211, 4294901760
        %4749 = vmatpush1.msra.mxu0 %v4748
        %4750 = vmatprep.subr.mxu0 0.0
        %v4751 = vand.u32 %v4212, 4294901760
        %4752 = vmatpush1.msra.mxu0 %v4751
        %4753 = vmatprep.subr.mxu0 0.0
        %4754 = vmatpush1.msra.mxu0 0.0
        %4755 = vmatprep.subr.mxu0 0.0
        %4756 = vmatpush1.msra.mxu0 0.0
        %4757 = vmatprep.subr.mxu0 0.0
        %4758 = vmatpush1.msra.mxu0 0.0
        %4759 = vmatprep.subr.mxu0 0.0
        %4760 = vmatpush1.msra.mxu0 0.0
        %4761 = vmatprep.subr.mxu0 0.0
        %4762 = vmatpush1.msra.mxu0 0.0
        %4763 = vmatprep.subr.mxu0 0.0
        %4764 = vmatpush1.msra.mxu0 0.0
        %4765 = vmatprep.subr.mxu0 0.0
        %4766 = vmatpush1.msra.mxu0 0.0
        %4767 = vmatprep.subr.mxu0 0.0
        %4768 = vmatpush1.msra.mxu0 0.0
        %4769 = vmatprep.subr.mxu0 0.0
        %4770 = vmatpush1.msra.mxu0 0.0
        %4771 = vmatprep.subr.mxu0 0.0
        %4772 = vmatpush1.msra.mxu0 0.0
        %4773 = vmatprep.subr.mxu0 0.0
        %4774 = vmatpush1.msra.mxu0 0.0
        %4775 = vmatprep.subr.mxu0 0.0
        %4776 = vmatpush1.msra.mxu0 0.0
        %4777 = vmatprep.subr.mxu0 0.0
        %4778 = vmatpush1.msra.mxu0 0.0
        %4779 = vmatprep.subr.mxu0 0.0
        %4780 = vmatpush1.msra.mxu0 0.0
        %4781 = vmatprep.subr.mxu0 0.0
        %4782 = vmatpush1.msra.mxu0 0.0
        %4783 = vmatprep.subr.mxu0 0.0
        %4784 = vmatpush1.msra.mxu0 0.0
        %4785 = vmatprep.subr.mxu0 0.0
        %4786 = vmatpush1.msra.mxu0 0.0
        %4787 = vmatprep.subr.mxu0 0.0
        %4788 = vmatpush1.msra.mxu0 0.0
        %4789 = vmatprep.subr.mxu0 0.0
        %4790 = vmatpush1.msra.mxu0 0.0
        %4791 = vmatprep.subr.mxu0 0.0
        %4792 = vmatpush1.msra.mxu0 0.0
        %4793 = vmatprep.subr.mxu0 0.0
        %4794 = vmatpush1.msra.mxu0 0.0
        %4795 = vmatprep.subr.mxu0 0.0
        %4796 = vmatpush1.msra.mxu0 0.0
        %4797 = vmatprep.subr.mxu0 0.0
        %4798 = vmatpush1.msra.mxu0 0.0
        %4799 = vmatprep.subr.mxu0 0.0
        %4800 = vmatpush1.msra.mxu0 0.0
        %4801 = vmatprep.subr.mxu0 0.0
        %4802 = vmatpush1.msra.mxu0 0.0
        %4803 = vmatprep.subr.mxu0 0.0
        %4804 = vmatpush1.msra.mxu0 0.0
        %4805 = vmatprep.subr.mxu0 0.0
        %4806 = vmatpush1.msra.mxu0 0.0
        %4807 = vmatprep.subr.mxu0 0.0
        %4808 = vmatpush1.msra.mxu0 0.0
        %4809 = vmatprep.subr.mxu0 0.0
        %4810 = vmatpush1.msra.mxu0 0.0
        %4811 = vmatprep.subr.mxu0 0.0
        %4812 = vmatpush1.msra.mxu0 0.0
        %4813 = vmatprep.mubr.f32.mxu0 0.0
        %v4814 = vand.u32 %v340, 4294901760
        %4815 = vmatmul.mubr.f32.gmra.mrb[0].mxu0 %v4814
        %v4816 = vpop.f32.mrb[0].mxu0
        %v4817 = vadd.f32 %v4720, %v4816
        %v4818 = vpop.f32.mrb[0].mxu0
        %4819 = vmatprep.mubr.f32.mxu0 0.0
        %v4820 = vand.u32 %v343, 4294901760
        %4821 = vmatmul.mubr.f32.gmra.mrb[0].mxu0 %v4820
        %v4822 = vpop.f32.mrb[0].mxu0
        %v4823 = vadd.f32 %v4726, %v4822
        %v4824 = vpop.f32.mrb[0].mxu0
        %4825 = vmatprep.mubr.f32.mxu0 0.0
        %v4826 = vand.u32 %v346, 4294901760
        %4827 = vmatmul.mubr.f32.gmra.mrb[0].mxu0 %v4826
        %v4828 = vpop.f32.mrb[0].mxu0
        %v4829 = vadd.f32 %v4732, %v4828
        %v4830 = vpop.f32.mrb[0].mxu0
        %4831 = vmatprep.mubr.f32.mxu0 0.0
        %v4832 = vand.u32 %v349, 4294901760
        %4833 = vmatmul.mubr.f32.gmra.mrb[0].mxu0 %v4832
        %v4834 = vpop.f32.mrb[0].mxu0
        %v4835 = vadd.f32 %v4738, %v4834
        %v4836 = vpop.f32.mrb[0].mxu0
        %4837 = vmatprep.mubr.f32.mxu0 0.0
        %v4838 = vand.u32 %v352, 4294901760
        %4839 = vmatmul.mubr.f32.gmra.mrb[0].mxu0 %v4838
        %v4840 = vpop.f32.mrb[0].mxu0
        %v4841 = vadd.f32 %v4744, %v4840
        %v4842 = vpop.f32.mrb[0].mxu0
        %4843 = vdwg.mxu0
        %v4845 = vsel %vm338, %v4817, 0
        %v4848 = vsel %vm338, %v4823, 0
        %v4851 = vsel %vm338, %v4829, 0
        %v4854 = vsel %vm338, %v4835, 0
        %v4857 = vsel %vm338, %v4841, 0
        %4859 = vmatprep.subr.mxu0 0.0
        %v4860 = vand.u32 %v334, 4294901760
        %4861 = vmatpush1.msra.mxu0 %v4860
        %4862 = vmatprep.subr.mxu0 0.0
        %v4863 = vand.u32 %v335, 4294901760
        %4864 = vmatpush1.msra.mxu0 %v4863
        %4865 = vmatprep.subr.mxu0 0.0
        %4866 = vmatpush1.msra.mxu0 0.0
        %4867 = vmatprep.subr.mxu0 0.0
        %4868 = vmatpush1.msra.mxu0 0.0
        %4869 = vmatprep.subr.mxu0 0.0
        %4870 = vmatpush1.msra.mxu0 0.0
        %4871 = vmatprep.subr.mxu0 0.0
        %4872 = vmatpush1.msra.mxu0 0.0
        %4873 = vmatprep.subr.mxu0 0.0
        %4874 = vmatpush1.msra.mxu0 0.0
        %4875 = vmatprep.subr.mxu0 0.0
        %4876 = vmatpush1.msra.mxu0 0.0
        %4877 = vmatprep.subr.mxu0 0.0
        %4878 = vmatpush1.msra.mxu0 0.0
        %4879 = vmatprep.subr.mxu0 0.0
        %4880 = vmatpush1.msra.mxu0 0.0
        %4881 = vmatprep.subr.mxu0 0.0
        %4882 = vmatpush1.msra.mxu0 0.0
        %4883 = vmatprep.subr.mxu0 0.0
        %4884 = vmatpush1.msra.mxu0 0.0
        %4885 = vmatprep.subr.mxu0 0.0
        %4886 = vmatpush1.msra.mxu0 0.0
        %4887 = vmatprep.subr.mxu0 0.0
        %4888 = vmatpush1.msra.mxu0 0.0
        %4889 = vmatprep.subr.mxu0 0.0
        %4890 = vmatpush1.msra.mxu0 0.0
        %4891 = vmatprep.subr.mxu0 0.0
        %4892 = vmatpush1.msra.mxu0 0.0
        %4893 = vmatprep.subr.mxu0 0.0
        %4894 = vmatpush1.msra.mxu0 0.0
        %4895 = vmatprep.subr.mxu0 0.0
        %4896 = vmatpush1.msra.mxu0 0.0
        %4897 = vmatprep.subr.mxu0 0.0
        %4898 = vmatpush1.msra.mxu0 0.0
        %4899 = vmatprep.subr.mxu0 0.0
        %4900 = vmatpush1.msra.mxu0 0.0
        %4901 = vmatprep.subr.mxu0 0.0
        %4902 = vmatpush1.msra.mxu0 0.0
        %4903 = vmatprep.subr.mxu0 0.0
        %4904 = vmatpush1.msra.mxu0 0.0
        %4905 = vmatprep.subr.mxu0 0.0
        %4906 = vmatpush1.msra.mxu0 0.0
        %4907 = vmatprep.subr.mxu0 0.0
        %4908 = vmatpush1.msra.mxu0 0.0
        %4909 = vmatprep.subr.mxu0 0.0
        %4910 = vmatpush1.msra.mxu0 0.0
        %4911 = vmatprep.subr.mxu0 0.0
        %4912 = vmatpush1.msra.mxu0 0.0
        %4913 = vmatprep.subr.mxu0 0.0
        %4914 = vmatpush1.msra.mxu0 0.0
        %4915 = vmatprep.subr.mxu0 0.0
        %4916 = vmatpush1.msra.mxu0 0.0
        %4917 = vmatprep.subr.mxu0 0.0
        %4918 = vmatpush1.msra.mxu0 0.0
        %4919 = vmatprep.subr.mxu0 0.0
        %4920 = vmatpush1.msra.mxu0 0.0
        %4921 = vmatprep.subr.mxu0 0.0
        %4922 = vmatpush1.msra.mxu0 0.0
        %4923 = vmatprep.subr.mxu0 0.0
        %4924 = vmatpush1.msra.mxu0 0.0
        %4925 = vmatprep.mubr.f32.mxu0 0.0
        %v4926 = vand.u32 %v4845, 4294901760
        %v4927 = vsub.f32 %v4845, %v4926
        %v4928 = vand.u32 %v4927, 4294901760
        %v4929 = vsub.f32 %v4927, %v4928
        %v4930 = vand.u32 %v4929, 4294901760
        %4931 = vmatmul.mubr.f32.gmra.mrb[0].mxu0 %v4930
        %v4932 = vpop.f32.mrb[0].mxu0
        %v4933 = vadd.f32 0.0, %v4932
        %v4934 = vpop.f32.mrb[0].mxu0
        %4935 = vmatprep.mubr.f32.mxu0 0.0
        %v4936 = vand.u32 %v4848, 4294901760
        %v4937 = vsub.f32 %v4848, %v4936
        %v4938 = vand.u32 %v4937, 4294901760
        %v4939 = vsub.f32 %v4937, %v4938
        %v4940 = vand.u32 %v4939, 4294901760
        %4941 = vmatmul.mubr.f32.gmra.mrb[0].mxu0 %v4940
        %v4942 = vpop.f32.mrb[0].mxu0
        %v4943 = vadd.f32 0.0, %v4942
        %v4944 = vpop.f32.mrb[0].mxu0
        %4945 = vmatprep.mubr.f32.mxu0 0.0
        %v4946 = vand.u32 %v4851, 4294901760
        %v4947 = vsub.f32 %v4851, %v4946
        %v4948 = vand.u32 %v4947, 4294901760
        %v4949 = vsub.f32 %v4947, %v4948
        %v4950 = vand.u32 %v4949, 4294901760
        %4951 = vmatmul.mubr.f32.gmra.mrb[0].mxu0 %v4950
        %v4952 = vpop.f32.mrb[0].mxu0
        %v4953 = vadd.f32 0.0, %v4952
        %v4954 = vpop.f32.mrb[0].mxu0
        %4955 = vmatprep.mubr.f32.mxu0 0.0
        %v4956 = vand.u32 %v4854, 4294901760
        %v4957 = vsub.f32 %v4854, %v4956
        %v4958 = vand.u32 %v4957, 4294901760
        %v4959 = vsub.f32 %v4957, %v4958
        %v4960 = vand.u32 %v4959, 4294901760
        %4961 = vmatmul.mubr.f32.gmra.mrb[0].mxu0 %v4960
        %v4962 = vpop.f32.mrb[0].mxu0
        %v4963 = vadd.f32 0.0, %v4962
        %v4964 = vpop.f32.mrb[0].mxu0
        %4965 = vmatprep.mubr.f32.mxu0 0.0
        %v4966 = vand.u32 %v4857, 4294901760
        %v4967 = vsub.f32 %v4857, %v4966
        %v4968 = vand.u32 %v4967, 4294901760
        %v4969 = vsub.f32 %v4967, %v4968
        %v4970 = vand.u32 %v4969, 4294901760
        %4971 = vmatmul.mubr.f32.gmra.mrb[0].mxu0 %v4970
        %v4972 = vpop.f32.mrb[0].mxu0
        %v4973 = vadd.f32 0.0, %v4972
        %v4974 = vpop.f32.mrb[0].mxu0
        %4975 = vdwg.mxu0
        %4976 = vmatprep.subr.mxu0 0.0
        %v4977 = vand.u32 %v334, 4294901760
        %v4978 = vsub.f32 %v334, %v4977
        %v4979 = vand.u32 %v4978, 4294901760
        %v4980 = vsub.f32 %v4978, %v4979
        %v4981 = vand.u32 %v4980, 4294901760
        %4982 = vmatpush1.msra.mxu0 %v4981
        %4983 = vmatprep.subr.mxu0 0.0
        %v4984 = vand.u32 %v335, 4294901760
        %v4985 = vsub.f32 %v335, %v4984
        %v4986 = vand.u32 %v4985, 4294901760
        %v4987 = vsub.f32 %v4985, %v4986
        %v4988 = vand.u32 %v4987, 4294901760
        %4989 = vmatpush1.msra.mxu0 %v4988
        %4990 = vmatprep.subr.mxu0 0.0
        %4991 = vmatpush1.msra.mxu0 0.0
        %4992 = vmatprep.subr.mxu0 0.0
        %4993 = vmatpush1.msra.mxu0 0.0
        %4994 = vmatprep.subr.mxu0 0.0
        %4995 = vmatpush1.msra.mxu0 0.0
        %4996 = vmatprep.subr.mxu0 0.0
        %4997 = vmatpush1.msra.mxu0 0.0
        %4998 = vmatprep.subr.mxu0 0.0
        %4999 = vmatpush1.msra.mxu0 0.0
        %5000 = vmatprep.subr.mxu0 0.0
        %5001 = vmatpush1.msra.mxu0 0.0
        %5002 = vmatprep.subr.mxu0 0.0
        %5003 = vmatpush1.msra.mxu0 0.0
        %5004 = vmatprep.subr.mxu0 0.0
        %5005 = vmatpush1.msra.mxu0 0.0
        %5006 = vmatprep.subr.mxu0 0.0
        %5007 = vmatpush1.msra.mxu0 0.0
        %5008 = vmatprep.subr.mxu0 0.0
        %5009 = vmatpush1.msra.mxu0 0.0
        %5010 = vmatprep.subr.mxu0 0.0
        %5011 = vmatpush1.msra.mxu0 0.0
        %5012 = vmatprep.subr.mxu0 0.0
        %5013 = vmatpush1.msra.mxu0 0.0
        %5014 = vmatprep.subr.mxu0 0.0
        %5015 = vmatpush1.msra.mxu0 0.0
        %5016 = vmatprep.subr.mxu0 0.0
        %5017 = vmatpush1.msra.mxu0 0.0
        %5018 = vmatprep.subr.mxu0 0.0
        %5019 = vmatpush1.msra.mxu0 0.0
        %5020 = vmatprep.subr.mxu0 0.0
        %5021 = vmatpush1.msra.mxu0 0.0
        %5022 = vmatprep.subr.mxu0 0.0
        %5023 = vmatpush1.msra.mxu0 0.0
        %5024 = vmatprep.subr.mxu0 0.0
        %5025 = vmatpush1.msra.mxu0 0.0
        %5026 = vmatprep.subr.mxu0 0.0
        %5027 = vmatpush1.msra.mxu0 0.0
        %5028 = vmatprep.subr.mxu0 0.0
        %5029 = vmatpush1.msra.mxu0 0.0
        %5030 = vmatprep.subr.mxu0 0.0
        %5031 = vmatpush1.msra.mxu0 0.0
        %5032 = vmatprep.subr.mxu0 0.0
        %5033 = vmatpush1.msra.mxu0 0.0
        %5034 = vmatprep.subr.mxu0 0.0
        %5035 = vmatpush1.msra.mxu0 0.0
        %5036 = vmatprep.subr.mxu0 0.0
        %5037 = vmatpush1.msra.mxu0 0.0
        %5038 = vmatprep.subr.mxu0 0.0
        %5039 = vmatpush1.msra.mxu0 0.0
        %5040 = vmatprep.subr.mxu0 0.0
        %5041 = vmatpush1.msra.mxu0 0.0
        %5042 = vmatprep.subr.mxu0 0.0
        %5043 = vmatpush1.msra.mxu0 0.0
        %5044 = vmatprep.subr.mxu0 0.0
        %5045 = vmatpush1.msra.mxu0 0.0
        %5046 = vmatprep.subr.mxu0 0.0
        %5047 = vmatpush1.msra.mxu0 0.0
        %5048 = vmatprep.subr.mxu0 0.0
        %5049 = vmatpush1.msra.mxu0 0.0
        %5050 = vmatprep.mubr.f32.mxu0 0.0
        %v5051 = vand.u32 %v4845, 4294901760
        %5052 = vmatmul.mubr.f32.gmra.mrb[0].mxu0 %v5051
        %v5053 = vpop.f32.mrb[0].mxu0
        %v5054 = vadd.f32 %v4933, %v5053
        %v5055 = vpop.f32.mrb[0].mxu0
        %5056 = vmatprep.mubr.f32.mxu0 0.0
        %v5057 = vand.u32 %v4848, 4294901760
        %5058 = vmatmul.mubr.f32.gmra.mrb[0].mxu0 %v5057
        %v5059 = vpop.f32.mrb[0].mxu0
        %v5060 = vadd.f32 %v4943, %v5059
        %v5061 = vpop.f32.mrb[0].mxu0
        %5062 = vmatprep.mubr.f32.mxu0 0.0
        %v5063 = vand.u32 %v4851, 4294901760
        %5064 = vmatmul.mubr.f32.gmra.mrb[0].mxu0 %v5063
        %v5065 = vpop.f32.mrb[0].mxu0
        %v5066 = vadd.f32 %v4953, %v5065
        %v5067 = vpop.f32.mrb[0].mxu0
        %5068 = vmatprep.mubr.f32.mxu0 0.0
        %v5069 = vand.u32 %v4854, 4294901760
        %5070 = vmatmul.mubr.f32.gmra.mrb[0].mxu0 %v5069
        %v5071 = vpop.f32.mrb[0].mxu0
        %v5072 = vadd.f32 %v4963, %v5071
        %v5073 = vpop.f32.mrb[0].mxu0
        %5074 = vmatprep.mubr.f32.mxu0 0.0
        %v5075 = vand.u32 %v4857, 4294901760
        %5076 = vmatmul.mubr.f32.gmra.mrb[0].mxu0 %v5075
        %v5077 = vpop.f32.mrb[0].mxu0
        %v5078 = vadd.f32 %v4973, %v5077
        %v5079 = vpop.f32.mrb[0].mxu0
        %5080 = vdwg.mxu0
        %5081 = vmatprep.subr.mxu0 0.0
        %v5082 = vand.u32 %v334, 4294901760
        %v5083 = vsub.f32 %v334, %v5082
        %5084 = vmatpush1.msra.mxu0 %v5083
        %5085 = vmatprep.subr.mxu0 0.0
        %v5086 = vand.u32 %v335, 4294901760
        %v5087 = vsub.f32 %v335, %v5086
        %5088 = vmatpush1.msra.mxu0 %v5087
        %5089 = vmatprep.subr.mxu0 0.0
        %5090 = vmatpush1.msra.mxu0 0.0
        %5091 = vmatprep.subr.mxu0 0.0
        %5092 = vmatpush1.msra.mxu0 0.0
        %5093 = vmatprep.subr.mxu0 0.0
        %5094 = vmatpush1.msra.mxu0 0.0
        %5095 = vmatprep.subr.mxu0 0.0
        %5096 = vmatpush1.msra.mxu0 0.0
        %5097 = vmatprep.subr.mxu0 0.0
        %5098 = vmatpush1.msra.mxu0 0.0
        %5099 = vmatprep.subr.mxu0 0.0
        %5100 = vmatpush1.msra.mxu0 0.0
        %5101 = vmatprep.subr.mxu0 0.0
        %5102 = vmatpush1.msra.mxu0 0.0
        %5103 = vmatprep.subr.mxu0 0.0
        %5104 = vmatpush1.msra.mxu0 0.0
        %5105 = vmatprep.subr.mxu0 0.0
        %5106 = vmatpush1.msra.mxu0 0.0
        %5107 = vmatprep.subr.mxu0 0.0
        %5108 = vmatpush1.msra.mxu0 0.0
        %5109 = vmatprep.subr.mxu0 0.0
        %5110 = vmatpush1.msra.mxu0 0.0
        %5111 = vmatprep.subr.mxu0 0.0
        %5112 = vmatpush1.msra.mxu0 0.0
        %5113 = vmatprep.subr.mxu0 0.0
        %5114 = vmatpush1.msra.mxu0 0.0
        %5115 = vmatprep.subr.mxu0 0.0
        %5116 = vmatpush1.msra.mxu0 0.0
        %5117 = vmatprep.subr.mxu0 0.0
        %5118 = vmatpush1.msra.mxu0 0.0
        %5119 = vmatprep.subr.mxu0 0.0
        %5120 = vmatpush1.msra.mxu0 0.0
        %5121 = vmatprep.subr.mxu0 0.0
        %5122 = vmatpush1.msra.mxu0 0.0
        %5123 = vmatprep.subr.mxu0 0.0
        %5124 = vmatpush1.msra.mxu0 0.0
        %5125 = vmatprep.subr.mxu0 0.0
        %5126 = vmatpush1.msra.mxu0 0.0
        %5127 = vmatprep.subr.mxu0 0.0
        %5128 = vmatpush1.msra.mxu0 0.0
        %5129 = vmatprep.subr.mxu0 0.0
        %5130 = vmatpush1.msra.mxu0 0.0
        %5131 = vmatprep.subr.mxu0 0.0
        %5132 = vmatpush1.msra.mxu0 0.0
        %5133 = vmatprep.subr.mxu0 0.0
        %5134 = vmatpush1.msra.mxu0 0.0
        %5135 = vmatprep.subr.mxu0 0.0
        %5136 = vmatpush1.msra.mxu0 0.0
        %5137 = vmatprep.subr.mxu0 0.0
        %5138 = vmatpush1.msra.mxu0 0.0
        %5139 = vmatprep.subr.mxu0 0.0
        %5140 = vmatpush1.msra.mxu0 0.0
        %5141 = vmatprep.subr.mxu0 0.0
        %5142 = vmatpush1.msra.mxu0 0.0
        %5143 = vmatprep.subr.mxu0 0.0
        %5144 = vmatpush1.msra.mxu0 0.0
        %5145 = vmatprep.subr.mxu0 0.0
        %5146 = vmatpush1.msra.mxu0 0.0
        %5147 = vmatprep.subr.mxu0 0.0
        %5148 = vmatpush1.msra.mxu0 0.0
        %5149 = vmatprep.mubr.f32.mxu0 0.0
        %v5150 = vand.u32 %v4845, 4294901760
        %v5151 = vsub.f32 %v4845, %v5150
        %5152 = vmatmul.mubr.f32.gmra.mrb[0].mxu0 %v5151
        %v5153 = vpop.f32.mrb[0].mxu0
        %v5154 = vadd.f32 %v5054, %v5153
        %v5155 = vpop.f32.mrb[0].mxu0
        %5156 = vmatprep.mubr.f32.mxu0 0.0
        %v5157 = vand.u32 %v4848, 4294901760
        %v5158 = vsub.f32 %v4848, %v5157
        %5159 = vmatmul.mubr.f32.gmra.mrb[0].mxu0 %v5158
        %v5160 = vpop.f32.mrb[0].mxu0
        %v5161 = vadd.f32 %v5060, %v5160
        %v5162 = vpop.f32.mrb[0].mxu0
        %5163 = vmatprep.mubr.f32.mxu0 0.0
        %v5164 = vand.u32 %v4851, 4294901760
        %v5165 = vsub.f32 %v4851, %v5164
        %5166 = vmatmul.mubr.f32.gmra.mrb[0].mxu0 %v5165
        %v5167 = vpop.f32.mrb[0].mxu0
        %v5168 = vadd.f32 %v5066, %v5167
        %v5169 = vpop.f32.mrb[0].mxu0
        %5170 = vmatprep.mubr.f32.mxu0 0.0
        %v5171 = vand.u32 %v4854, 4294901760
        %v5172 = vsub.f32 %v4854, %v5171
        %5173 = vmatmul.mubr.f32.gmra.mrb[0].mxu0 %v5172
        %v5174 = vpop.f32.mrb[0].mxu0
        %v5175 = vadd.f32 %v5072, %v5174
        %v5176 = vpop.f32.mrb[0].mxu0
        %5177 = vmatprep.mubr.f32.mxu0 0.0
        %v5178 = vand.u32 %v4857, 4294901760
        %v5179 = vsub.f32 %v4857, %v5178
        %5180 = vmatmul.mubr.f32.gmra.mrb[0].mxu0 %v5179
        %v5181 = vpop.f32.mrb[0].mxu0
        %v5182 = vadd.f32 %v5078, %v5181
        %v5183 = vpop.f32.mrb[0].mxu0
        %5184 = vdwg.mxu0
        %5185 = vmatprep.subr.mxu0 0.0
        %v5186 = vand.u32 %v334, 4294901760
        %5187 = vmatpush1.msra.mxu0 %v5186
        %5188 = vmatprep.subr.mxu0 0.0
        %v5189 = vand.u32 %v335, 4294901760
        %5190 = vmatpush1.msra.mxu0 %v5189
        %5191 = vmatprep.subr.mxu0 0.0
        %5192 = vmatpush1.msra.mxu0 0.0
        %5193 = vmatprep.subr.mxu0 0.0
        %5194 = vmatpush1.msra.mxu0 0.0
        %5195 = vmatprep.subr.mxu0 0.0
        %5196 = vmatpush1.msra.mxu0 0.0
        %5197 = vmatprep.subr.mxu0 0.0
        %5198 = vmatpush1.msra.mxu0 0.0
        %5199 = vmatprep.subr.mxu0 0.0
        %5200 = vmatpush1.msra.mxu0 0.0
        %5201 = vmatprep.subr.mxu0 0.0
        %5202 = vmatpush1.msra.mxu0 0.0
        %5203 = vmatprep.subr.mxu0 0.0
        %5204 = vmatpush1.msra.mxu0 0.0
        %5205 = vmatprep.subr.mxu0 0.0
        %5206 = vmatpush1.msra.mxu0 0.0
        %5207 = vmatprep.subr.mxu0 0.0
        %5208 = vmatpush1.msra.mxu0 0.0
        %5209 = vmatprep.subr.mxu0 0.0
        %5210 = vmatpush1.msra.mxu0 0.0
        %5211 = vmatprep.subr.mxu0 0.0
        %5212 = vmatpush1.msra.mxu0 0.0
        %5213 = vmatprep.subr.mxu0 0.0
        %5214 = vmatpush1.msra.mxu0 0.0
        %5215 = vmatprep.subr.mxu0 0.0
        %5216 = vmatpush1.msra.mxu0 0.0
        %5217 = vmatprep.subr.mxu0 0.0
        %5218 = vmatpush1.msra.mxu0 0.0
        %5219 = vmatprep.subr.mxu0 0.0
        %5220 = vmatpush1.msra.mxu0 0.0
        %5221 = vmatprep.subr.mxu0 0.0
        %5222 = vmatpush1.msra.mxu0 0.0
        %5223 = vmatprep.subr.mxu0 0.0
        %5224 = vmatpush1.msra.mxu0 0.0
        %5225 = vmatprep.subr.mxu0 0.0
        %5226 = vmatpush1.msra.mxu0 0.0
        %5227 = vmatprep.subr.mxu0 0.0
        %5228 = vmatpush1.msra.mxu0 0.0
        %5229 = vmatprep.subr.mxu0 0.0
        %5230 = vmatpush1.msra.mxu0 0.0
        %5231 = vmatprep.subr.mxu0 0.0
        %5232 = vmatpush1.msra.mxu0 0.0
        %5233 = vmatprep.subr.mxu0 0.0
        %5234 = vmatpush1.msra.mxu0 0.0
        %5235 = vmatprep.subr.mxu0 0.0
        %5236 = vmatpush1.msra.mxu0 0.0
        %5237 = vmatprep.subr.mxu0 0.0
        %5238 = vmatpush1.msra.mxu0 0.0
        %5239 = vmatprep.subr.mxu0 0.0
        %5240 = vmatpush1.msra.mxu0 0.0
        %5241 = vmatprep.subr.mxu0 0.0
        %5242 = vmatpush1.msra.mxu0 0.0
        %5243 = vmatprep.subr.mxu0 0.0
        %5244 = vmatpush1.msra.mxu0 0.0
        %5245 = vmatprep.subr.mxu0 0.0
        %5246 = vmatpush1.msra.mxu0 0.0
        %5247 = vmatprep.subr.mxu0 0.0
        %5248 = vmatpush1.msra.mxu0 0.0
        %5249 = vmatprep.subr.mxu0 0.0
        %5250 = vmatpush1.msra.mxu0 0.0
        %5251 = vmatprep.mubr.f32.mxu0 0.0
        %v5252 = vand.u32 %v4845, 4294901760
        %v5253 = vsub.f32 %v4845, %v5252
        %v5254 = vand.u32 %v5253, 4294901760
        %5255 = vmatmul.mubr.f32.gmra.mrb[0].mxu0 %v5254
        %v5256 = vpop.f32.mrb[0].mxu0
        %v5257 = vadd.f32 %v5154, %v5256
        %v5258 = vpop.f32.mrb[0].mxu0
        %5259 = vmatprep.mubr.f32.mxu0 0.0
        %v5260 = vand.u32 %v4848, 4294901760
        %v5261 = vsub.f32 %v4848, %v5260
        %v5262 = vand.u32 %v5261, 4294901760
        %5263 = vmatmul.mubr.f32.gmra.mrb[0].mxu0 %v5262
        %v5264 = vpop.f32.mrb[0].mxu0
        %v5265 = vadd.f32 %v5161, %v5264
        %v5266 = vpop.f32.mrb[0].mxu0
        %5267 = vmatprep.mubr.f32.mxu0 0.0
        %v5268 = vand.u32 %v4851, 4294901760
        %v5269 = vsub.f32 %v4851, %v5268
        %v5270 = vand.u32 %v5269, 4294901760
        %5271 = vmatmul.mubr.f32.gmra.mrb[0].mxu0 %v5270
        %v5272 = vpop.f32.mrb[0].mxu0
        %v5273 = vadd.f32 %v5168, %v5272
        %v5274 = vpop.f32.mrb[0].mxu0
        %5275 = vmatprep.mubr.f32.mxu0 0.0
        %v5276 = vand.u32 %v4854, 4294901760
        %v5277 = vsub.f32 %v4854, %v5276
        %v5278 = vand.u32 %v5277, 4294901760
        %5279 = vmatmul.mubr.f32.gmra.mrb[0].mxu0 %v5278
        %v5280 = vpop.f32.mrb[0].mxu0
        %v5281 = vadd.f32 %v5175, %v5280
        %v5282 = vpop.f32.mrb[0].mxu0
        %5283 = vmatprep.mubr.f32.mxu0 0.0
        %v5284 = vand.u32 %v4857, 4294901760
        %v5285 = vsub.f32 %v4857, %v5284
        %v5286 = vand.u32 %v5285, 4294901760
        %5287 = vmatmul.mubr.f32.gmra.mrb[0].mxu0 %v5286
        %v5288 = vpop.f32.mrb[0].mxu0
        %v5289 = vadd.f32 %v5182, %v5288
        %v5290 = vpop.f32.mrb[0].mxu0
        %5291 = vdwg.mxu0
        %5292 = vmatprep.subr.mxu0 0.0
        %v5293 = vand.u32 %v334, 4294901760
        %v5294 = vsub.f32 %v334, %v5293
        %v5295 = vand.u32 %v5294, 4294901760
        %5296 = vmatpush1.msra.mxu0 %v5295
        %5297 = vmatprep.subr.mxu0 0.0
        %v5298 = vand.u32 %v335, 4294901760
        %v5299 = vsub.f32 %v335, %v5298
        %v5300 = vand.u32 %v5299, 4294901760
        %5301 = vmatpush1.msra.mxu0 %v5300
        %5302 = vmatprep.subr.mxu0 0.0
        %5303 = vmatpush1.msra.mxu0 0.0
        %5304 = vmatprep.subr.mxu0 0.0
        %5305 = vmatpush1.msra.mxu0 0.0
        %5306 = vmatprep.subr.mxu0 0.0
        %5307 = vmatpush1.msra.mxu0 0.0
        %5308 = vmatprep.subr.mxu0 0.0
        %5309 = vmatpush1.msra.mxu0 0.0
        %5310 = vmatprep.subr.mxu0 0.0
        %5311 = vmatpush1.msra.mxu0 0.0
        %5312 = vmatprep.subr.mxu0 0.0
        %5313 = vmatpush1.msra.mxu0 0.0
        %5314 = vmatprep.subr.mxu0 0.0
        %5315 = vmatpush1.msra.mxu0 0.0
        %5316 = vmatprep.subr.mxu0 0.0
        %5317 = vmatpush1.msra.mxu0 0.0
        %5318 = vmatprep.subr.mxu0 0.0
        %5319 = vmatpush1.msra.mxu0 0.0
        %5320 = vmatprep.subr.mxu0 0.0
        %5321 = vmatpush1.msra.mxu0 0.0
        %5322 = vmatprep.subr.mxu0 0.0
        %5323 = vmatpush1.msra.mxu0 0.0
        %5324 = vmatprep.subr.mxu0 0.0
        %5325 = vmatpush1.msra.mxu0 0.0
        %5326 = vmatprep.subr.mxu0 0.0
        %5327 = vmatpush1.msra.mxu0 0.0
        %5328 = vmatprep.subr.mxu0 0.0
        %5329 = vmatpush1.msra.mxu0 0.0
        %5330 = vmatprep.subr.mxu0 0.0
        %5331 = vmatpush1.msra.mxu0 0.0
        %5332 = vmatprep.subr.mxu0 0.0
        %5333 = vmatpush1.msra.mxu0 0.0
        %5334 = vmatprep.subr.mxu0 0.0
        %5335 = vmatpush1.msra.mxu0 0.0
        %5336 = vmatprep.subr.mxu0 0.0
        %5337 = vmatpush1.msra.mxu0 0.0
        %5338 = vmatprep.subr.mxu0 0.0
        %5339 = vmatpush1.msra.mxu0 0.0
        %5340 = vmatprep.subr.mxu0 0.0
        %5341 = vmatpush1.msra.mxu0 0.0
        %5342 = vmatprep.subr.mxu0 0.0
        %5343 = vmatpush1.msra.mxu0 0.0
        %5344 = vmatprep.subr.mxu0 0.0
        %5345 = vmatpush1.msra.mxu0 0.0
        %5346 = vmatprep.subr.mxu0 0.0
        %5347 = vmatpush1.msra.mxu0 0.0
        %5348 = vmatprep.subr.mxu0 0.0
        %5349 = vmatpush1.msra.mxu0 0.0
        %5350 = vmatprep.subr.mxu0 0.0
        %5351 = vmatpush1.msra.mxu0 0.0
        %5352 = vmatprep.subr.mxu0 0.0
        %5353 = vmatpush1.msra.mxu0 0.0
        %5354 = vmatprep.subr.mxu0 0.0
        %5355 = vmatpush1.msra.mxu0 0.0
        %5356 = vmatprep.subr.mxu0 0.0
        %5357 = vmatpush1.msra.mxu0 0.0
        %5358 = vmatprep.subr.mxu0 0.0
        %5359 = vmatpush1.msra.mxu0 0.0
        %5360 = vmatprep.subr.mxu0 0.0
        %5361 = vmatpush1.msra.mxu0 0.0
        %5362 = vmatprep.mubr.f32.mxu0 0.0
        %v5363 = vand.u32 %v4845, 4294901760
        %5364 = vmatmul.mubr.f32.gmra.mrb[0].mxu0 %v5363
        %v5365 = vpop.f32.mrb[0].mxu0
        %v5366 = vadd.f32 %v5257, %v5365
        %v5367 = vpop.f32.mrb[0].mxu0
        %5368 = vmatprep.mubr.f32.mxu0 0.0
        %v5369 = vand.u32 %v4848, 4294901760
        %5370 = vmatmul.mubr.f32.gmra.mrb[0].mxu0 %v5369
        %v5371 = vpop.f32.mrb[0].mxu0
        %v5372 = vadd.f32 %v5265, %v5371
        %v5373 = vpop.f32.mrb[0].mxu0
        %5374 = vmatprep.mubr.f32.mxu0 0.0
        %v5375 = vand.u32 %v4851, 4294901760
        %5376 = vmatmul.mubr.f32.gmra.mrb[0].mxu0 %v5375
        %v5377 = vpop.f32.mrb[0].mxu0
        %v5378 = vadd.f32 %v5273, %v5377
        %v5379 = vpop.f32.mrb[0].mxu0
        %5380 = vmatprep.mubr.f32.mxu0 0.0
        %v5381 = vand.u32 %v4854, 4294901760
        %5382 = vmatmul.mubr.f32.gmra.mrb[0].mxu0 %v5381
        %v5383 = vpop.f32.mrb[0].mxu0
        %v5384 = vadd.f32 %v5281, %v5383
        %v5385 = vpop.f32.mrb[0].mxu0
        %5386 = vmatprep.mubr.f32.mxu0 0.0
        %v5387 = vand.u32 %v4857, 4294901760
        %5388 = vmatmul.mubr.f32.gmra.mrb[0].mxu0 %v5387
        %v5389 = vpop.f32.mrb[0].mxu0
        %v5390 = vadd.f32 %v5289, %v5389
        %v5391 = vpop.f32.mrb[0].mxu0
        %5392 = vdwg.mxu0
        %5393 = vmatprep.subr.mxu0 0.0
        %v5394 = vand.u32 %v334, 4294901760
        %5395 = vmatpush1.msra.mxu0 %v5394
        %5396 = vmatprep.subr.mxu0 0.0
        %v5397 = vand.u32 %v335, 4294901760
        %5398 = vmatpush1.msra.mxu0 %v5397
        %5399 = vmatprep.subr.mxu0 0.0
        %5400 = vmatpush1.msra.mxu0 0.0
        %5401 = vmatprep.subr.mxu0 0.0
        %5402 = vmatpush1.msra.mxu0 0.0
        %5403 = vmatprep.subr.mxu0 0.0
        %5404 = vmatpush1.msra.mxu0 0.0
        %5405 = vmatprep.subr.mxu0 0.0
        %5406 = vmatpush1.msra.mxu0 0.0
        %5407 = vmatprep.subr.mxu0 0.0
        %5408 = vmatpush1.msra.mxu0 0.0
        %5409 = vmatprep.subr.mxu0 0.0
        %5410 = vmatpush1.msra.mxu0 0.0
        %5411 = vmatprep.subr.mxu0 0.0
        %5412 = vmatpush1.msra.mxu0 0.0
        %5413 = vmatprep.subr.mxu0 0.0
        %5414 = vmatpush1.msra.mxu0 0.0
        %5415 = vmatprep.subr.mxu0 0.0
        %5416 = vmatpush1.msra.mxu0 0.0
        %5417 = vmatprep.subr.mxu0 0.0
        %5418 = vmatpush1.msra.mxu0 0.0
        %5419 = vmatprep.subr.mxu0 0.0
        %5420 = vmatpush1.msra.mxu0 0.0
        %5421 = vmatprep.subr.mxu0 0.0
        %5422 = vmatpush1.msra.mxu0 0.0
        %5423 = vmatprep.subr.mxu0 0.0
        %5424 = vmatpush1.msra.mxu0 0.0
        %5425 = vmatprep.subr.mxu0 0.0
        %5426 = vmatpush1.msra.mxu0 0.0
        %5427 = vmatprep.subr.mxu0 0.0
        %5428 = vmatpush1.msra.mxu0 0.0
        %5429 = vmatprep.subr.mxu0 0.0
        %5430 = vmatpush1.msra.mxu0 0.0
        %5431 = vmatprep.subr.mxu0 0.0
        %5432 = vmatpush1.msra.mxu0 0.0
        %5433 = vmatprep.subr.mxu0 0.0
        %5434 = vmatpush1.msra.mxu0 0.0
        %5435 = vmatprep.subr.mxu0 0.0
        %5436 = vmatpush1.msra.mxu0 0.0
        %5437 = vmatprep.subr.mxu0 0.0
        %5438 = vmatpush1.msra.mxu0 0.0
        %5439 = vmatprep.subr.mxu0 0.0
        %5440 = vmatpush1.msra.mxu0 0.0
        %5441 = vmatprep.subr.mxu0 0.0
        %5442 = vmatpush1.msra.mxu0 0.0
        %5443 = vmatprep.subr.mxu0 0.0
        %5444 = vmatpush1.msra.mxu0 0.0
        %5445 = vmatprep.subr.mxu0 0.0
        %5446 = vmatpush1.msra.mxu0 0.0
        %5447 = vmatprep.subr.mxu0 0.0
        %5448 = vmatpush1.msra.mxu0 0.0
        %5449 = vmatprep.subr.mxu0 0.0
        %5450 = vmatpush1.msra.mxu0 0.0
        %5451 = vmatprep.subr.mxu0 0.0
        %5452 = vmatpush1.msra.mxu0 0.0
        %5453 = vmatprep.subr.mxu0 0.0
        %5454 = vmatpush1.msra.mxu0 0.0
        %5455 = vmatprep.subr.mxu0 0.0
        %5456 = vmatpush1.msra.mxu0 0.0
        %5457 = vmatprep.subr.mxu0 0.0
        %5458 = vmatpush1.msra.mxu0 0.0
        %5459 = vmatprep.mubr.f32.mxu0 0.0
        %v5460 = vand.u32 %v4845, 4294901760
        %5461 = vmatmul.mubr.f32.gmra.mrb[0].mxu0 %v5460
        %v5462 = vpop.f32.mrb[0].mxu0
        %v5463 = vadd.f32 %v5366, %v5462
        %v5464 = vpop.f32.mrb[0].mxu0
        %5465 = vmatprep.mubr.f32.mxu0 0.0
        %v5466 = vand.u32 %v4848, 4294901760
        %5467 = vmatmul.mubr.f32.gmra.mrb[0].mxu0 %v5466
        %v5468 = vpop.f32.mrb[0].mxu0
        %v5469 = vadd.f32 %v5372, %v5468
        %v5470 = vpop.f32.mrb[0].mxu0
        %5471 = vmatprep.mubr.f32.mxu0 0.0
        %v5472 = vand.u32 %v4851, 4294901760
        %5473 = vmatmul.mubr.f32.gmra.mrb[0].mxu0 %v5472
        %v5474 = vpop.f32.mrb[0].mxu0
        %v5475 = vadd.f32 %v5378, %v5474
        %v5476 = vpop.f32.mrb[0].mxu0
        %5477 = vmatprep.mubr.f32.mxu0 0.0
        %v5478 = vand.u32 %v4854, 4294901760
        %5479 = vmatmul.mubr.f32.gmra.mrb[0].mxu0 %v5478
        %v5480 = vpop.f32.mrb[0].mxu0
        %v5481 = vadd.f32 %v5384, %v5480
        %v5482 = vpop.f32.mrb[0].mxu0
        %5483 = vmatprep.mubr.f32.mxu0 0.0
        %v5484 = vand.u32 %v4857, 4294901760
        %5485 = vmatmul.mubr.f32.gmra.mrb[0].mxu0 %v5484
        %v5486 = vpop.f32.mrb[0].mxu0
        %v5487 = vadd.f32 %v5390, %v5486
        %v5488 = vpop.f32.mrb[0].mxu0
        %5489 = vdwg.mxu0
        %s5490 = scalar_lea.vmem [#allocation2], 120
        %5491 = vst.msk [vmem:[%s5490] sm:$0xff] %vm1631, %v5463
        %5492 = vst.msk [vmem:[%s5490 + $0x8] sm:$0xff] %vm1631, %v5469
        %5493 = vst.msk [vmem:[%s5490 + $0x10] sm:$0xff] %vm1631, %v5475
        %5494 = vst.msk [vmem:[%s5490 + $0x18] sm:$0xff] %vm1631, %v5481
        %5495 = vst.msk [vmem:[%s5490 + $0x20] sm:$0xf] %vm1636, %v5487
        %v5496 = vlaneseq
        %v5497 = vshrl.u32 %v5496, 7
        %v5498 = vadd.s32 %v5497, 8
        %v5499 = vadd.s32 %v5497, 16
        %v5500 = vadd.s32 %v5497, 24
        %v5501 = vadd.s32 %v5497, 32
        %v5502 = vlaneseq
        %v5503 = vand.u32 %v5502, 127
        %vm5504 = vcmp.ge.s32.totalorder %v5497, 1
        %vm5505 = vcmp.ge.s32.totalorder %v5498, 1
        %vm5506 = vcmp.ge.s32.totalorder %v5499, 1
        %vm5507 = vcmp.ge.s32.totalorder %v5500, 1
        %vm5508 = vcmp.ge.s32.totalorder %v5501, 1
        %vm5509 = vcmp.le.s32.totalorder %v5497, 32
        %vm5510 = vcmp.le.s32.totalorder %v5498, 32
        %vm5511 = vcmp.le.s32.totalorder %v5499, 32
        %vm5512 = vcmp.le.s32.totalorder %v5500, 32
        %vm5513 = vcmp.le.s32.totalorder %v5501, 32
        %vm5514 = vmand %vm5504, %vm5509
        %vm5515 = vmand %vm5505, %vm5510
        %vm5516 = vmand %vm5506, %vm5511
        %vm5517 = vmand %vm5507, %vm5512
        %vm5518 = vmand %vm5508, %vm5513
        %vm5519 = vcmp.ge.s32.totalorder %v5503, 1
        %vm5520 = vmand %vm5514, %vm5519
        %vm5521 = vmand %vm5515, %vm5519
        %vm5522 = vmand %vm5516, %vm5519
        %vm5523 = vmand %vm5517, %vm5519
        %vm5524 = vmand %vm5518, %vm5519
        %vm5525 = vcmp.le.s32.totalorder %v5503, 32
        %vm5526 = vmand %vm5520, %vm5525
        %vm5527 = vmand %vm5521, %vm5525
        %vm5528 = vmand %vm5522, %vm5525
        %vm5529 = vmand %vm5523, %vm5525
        %vm5530 = vmand %vm5524, %vm5525
        %v5531 = vsel %vm5526, 1, 0
        %v5532 = vsel %vm5527, 1, 0
        %v5533 = vsel %vm5528, 1, 0
        %v5534 = vsel %vm5529, 1, 0
        %v5535 = vsel %vm5530, 1, 0
        %v5536 = vcvt.s32.f32 %v5531
        %v5537 = vcvt.s32.f32 %v5532
        %v5538 = vcvt.s32.f32 %v5533
        %v5539 = vcvt.s32.f32 %v5534
        %v5540 = vcvt.s32.f32 %v5535
        %s5541 = sld [smem:[#allocation7]]
        %v5542 = vstv %s5541
        %s5543 = sld [smem:[#allocation7 + $0x1]]
        %v5544 = vstv %s5543
        %v5545 = vld [vmem:[#allocation2] sm:$0xff]
        %v5546 = vld [vmem:[#allocation2 + $0x8] sm:$0xff]
        %v5547 = vld [vmem:[#allocation2 + $0x10] sm:$0xff]
        %v5548 = vld [vmem:[#allocation2 + $0x18] sm:$0xff]
        %v5549 = vld [vmem:[#allocation2 + $0x20] sm:$0x3]
        %s5550 = sld [smem:[#allocation4]]
        %v5551 = vstv %s5550
        %v5552 = vmul.f32 %v5551, %v5545
        %v5553 = vmul.f32 %v5551, %v5546
        %v5554 = vmul.f32 %v5551, %v5547
        %v5555 = vmul.f32 %v5551, %v5548
        %v5556 = vmul.f32 %v5551, %v5549
        %v5557 = vadd.f32 %v5542, %v5552
        %v5558 = vadd.f32 %v5542, %v5553
        %v5559 = vadd.f32 %v5542, %v5554
        %v5560 = vadd.f32 %v5542, %v5555
        %v5561 = vadd.f32 %v5542, %v5556
        %s5562 = sld [smem:[#allocation4 + $0x24]]
        %v5563 = vstv %s5562
        %v5564 = vmul.f32 %v5563, %v5545
        %v5565 = vmul.f32 %v5563, %v5546
        %v5566 = vmul.f32 %v5563, %v5547
        %v5567 = vmul.f32 %v5563, %v5548
        %v5568 = vmul.f32 %v5563, %v5549
        %v5569 = vadd.f32 %v5544, %v5564
        %v5570 = vadd.f32 %v5544, %v5565
        %v5571 = vadd.f32 %v5544, %v5566
        %v5572 = vadd.f32 %v5544, %v5567
        %v5573 = vadd.f32 %v5544, %v5568
        %s5574 = sld [smem:[#allocation4 + $0x1]]
        %v5575 = vstv %s5574
        %v5576 = vmul.f32 %v5575, %v5545
        %v5577 = vmul.f32 %v5575, %v5546
        %v5578 = vmul.f32 %v5575, %v5547
        %v5579 = vmul.f32 %v5575, %v5548
        %v5580 = vmul.f32 %v5575, %v5549
        %5586 = vrot.lane.b32.xlu0 %v5576, 127
        %v5587 = vpop.permute.xlu0 %5586
        %5588 = vrot.lane.b32.xlu0 %v5577, 127
        %v5589 = vpop.permute.xlu0 %5588
        %5590 = vrot.lane.b32.xlu0 %v5578, 127
        %v5591 = vpop.permute.xlu0 %5590
        %5592 = vrot.lane.b32.xlu0 %v5579, 127
        %v5593 = vpop.permute.xlu0 %5592
        %5594 = vrot.lane.b32.xlu0 %v5580, 127
        %v5595 = vpop.permute.xlu0 %5594
        %v5601 = vadd.f32 %v5557, %v5587
        %v5602 = vadd.f32 %v5558, %v5589
        %v5603 = vadd.f32 %v5559, %v5591
        %v5604 = vadd.f32 %v5560, %v5593
        %v5605 = vadd.f32 %v5561, %v5595
        %s5606 = sld [smem:[#allocation4 + $0x25]]
        %v5607 = vstv %s5606
        %v5608 = vmul.f32 %v5607, %v5545
        %v5609 = vmul.f32 %v5607, %v5546
        %v5610 = vmul.f32 %v5607, %v5547
        %v5611 = vmul.f32 %v5607, %v5548
        %v5612 = vmul.f32 %v5607, %v5549
        %5618 = vrot.lane.b32.xlu0 %v5608, 127
        %v5619 = vpop.permute.xlu0 %5618
        %5620 = vrot.lane.b32.xlu0 %v5609, 127
        %v5621 = vpop.permute.xlu0 %5620
        %5622 = vrot.lane.b32.xlu0 %v5610, 127
        %v5623 = vpop.permute.xlu0 %5622
        %5624 = vrot.lane.b32.xlu0 %v5611, 127
        %v5625 = vpop.permute.xlu0 %5624
        %5626 = vrot.lane.b32.xlu0 %v5612, 127
        %v5627 = vpop.permute.xlu0 %5626
        %v5633 = vadd.f32 %v5569, %v5619
        %v5634 = vadd.f32 %v5570, %v5621
        %v5635 = vadd.f32 %v5571, %v5623
        %v5636 = vadd.f32 %v5572, %v5625
        %v5637 = vadd.f32 %v5573, %v5627
        %s5638 = sld [smem:[#allocation4 + $0x2]]
        %v5639 = vstv %s5638
        %v5640 = vmul.f32 %v5639, %v5545
        %v5641 = vmul.f32 %v5639, %v5546
        %v5642 = vmul.f32 %v5639, %v5547
        %v5643 = vmul.f32 %v5639, %v5548
        %v5644 = vmul.f32 %v5639, %v5549
        %5650 = vrot.lane.b32.xlu0 %v5640, 126
        %v5651 = vpop.permute.xlu0 %5650
        %5652 = vrot.lane.b32.xlu0 %v5641, 126
        %v5653 = vpop.permute.xlu0 %5652
        %5654 = vrot.lane.b32.xlu0 %v5642, 126
        %v5655 = vpop.permute.xlu0 %5654
        %5656 = vrot.lane.b32.xlu0 %v5643, 126
        %v5657 = vpop.permute.xlu0 %5656
        %5658 = vrot.lane.b32.xlu0 %v5644, 126
        %v5659 = vpop.permute.xlu0 %5658
        %v5665 = vadd.f32 %v5601, %v5651
        %v5666 = vadd.f32 %v5602, %v5653
        %v5667 = vadd.f32 %v5603, %v5655
        %v5668 = vadd.f32 %v5604, %v5657
        %v5669 = vadd.f32 %v5605, %v5659
        %s5670 = sld [smem:[#allocation4 + $0x26]]
        %v5671 = vstv %s5670
        %v5672 = vmul.f32 %v5671, %v5545
        %v5673 = vmul.f32 %v5671, %v5546
        %v5674 = vmul.f32 %v5671, %v5547
        %v5675 = vmul.f32 %v5671, %v5548
        %v5676 = vmul.f32 %v5671, %v5549
        %5682 = vrot.lane.b32.xlu0 %v5672, 126
        %v5683 = vpop.permute.xlu0 %5682
        %5684 = vrot.lane.b32.xlu0 %v5673, 126
        %v5685 = vpop.permute.xlu0 %5684
        %5686 = vrot.lane.b32.xlu0 %v5674, 126
        %v5687 = vpop.permute.xlu0 %5686
        %5688 = vrot.lane.b32.xlu0 %v5675, 126
        %v5689 = vpop.permute.xlu0 %5688
        %5690 = vrot.lane.b32.xlu0 %v5676, 126
        %v5691 = vpop.permute.xlu0 %5690
        %v5697 = vadd.f32 %v5633, %v5683
        %v5698 = vadd.f32 %v5634, %v5685
        %v5699 = vadd.f32 %v5635, %v5687
        %v5700 = vadd.f32 %v5636, %v5689
        %v5701 = vadd.f32 %v5637, %v5691
        %v5702 = vld [vmem:[#allocation2 + $0x1] sm:$0xff]
        %v5703 = vld [vmem:[#allocation2 + $0x9] sm:$0xff]
        %v5704 = vld [vmem:[#allocation2 + $0x11] sm:$0xff]
        %v5705 = vld [vmem:[#allocation2 + $0x19] sm:$0xff]
        %v5706 = vld [vmem:[#allocation2 + $0x21] sm:$0x3]
        %s5707 = sld [smem:[#allocation4 + $0x3]]
        %v5708 = vstv %s5707
        %v5709 = vmul.f32 %v5708, %v5702
        %v5710 = vmul.f32 %v5708, %v5703
        %v5711 = vmul.f32 %v5708, %v5704
        %v5712 = vmul.f32 %v5708, %v5705
        %v5713 = vmul.f32 %v5708, %v5706
        %v5714 = vadd.f32 %v5665, %v5709
        %v5715 = vadd.f32 %v5666, %v5710
        %v5716 = vadd.f32 %v5667, %v5711
        %v5717 = vadd.f32 %v5668, %v5712
        %v5718 = vadd.f32 %v5669, %v5713
        %s5719 = sld [smem:[#allocation4 + $0x27]]
        %v5720 = vstv %s5719
        %v5721 = vmul.f32 %v5720, %v5702
        %v5722 = vmul.f32 %v5720, %v5703
        %v5723 = vmul.f32 %v5720, %v5704
        %v5724 = vmul.f32 %v5720, %v5705
        %v5725 = vmul.f32 %v5720, %v5706
        %v5726 = vadd.f32 %v5697, %v5721
        %v5727 = vadd.f32 %v5698, %v5722
        %v5728 = vadd.f32 %v5699, %v5723
        %v5729 = vadd.f32 %v5700, %v5724
        %v5730 = vadd.f32 %v5701, %v5725
        %s5731 = sld [smem:[#allocation4 + $0x4]]
        %v5732 = vstv %s5731
        %v5733 = vmul.f32 %v5732, %v5702
        %v5734 = vmul.f32 %v5732, %v5703
        %v5735 = vmul.f32 %v5732, %v5704
        %v5736 = vmul.f32 %v5732, %v5705
        %v5737 = vmul.f32 %v5732, %v5706
        %5743 = vrot.lane.b32.xlu0 %v5733, 127
        %v5744 = vpop.permute.xlu0 %5743
        %5745 = vrot.lane.b32.xlu0 %v5734, 127
        %v5746 = vpop.permute.xlu0 %5745
        %5747 = vrot.lane.b32.xlu0 %v5735, 127
        %v5748 = vpop.permute.xlu0 %5747
        %5749 = vrot.lane.b32.xlu0 %v5736, 127
        %v5750 = vpop.permute.xlu0 %5749
        %5751 = vrot.lane.b32.xlu0 %v5737, 127
        %v5752 = vpop.permute.xlu0 %5751
        %v5758 = vadd.f32 %v5714, %v5744
        %v5759 = vadd.f32 %v5715, %v5746
        %v5760 = vadd.f32 %v5716, %v5748
        %v5761 = vadd.f32 %v5717, %v5750
        %v5762 = vadd.f32 %v5718, %v5752
        %s5763 = sld [smem:[#allocation4 + $0x28]]
        %v5764 = vstv %s5763
        %v5765 = vmul.f32 %v5764, %v5702
        %v5766 = vmul.f32 %v5764, %v5703
        %v5767 = vmul.f32 %v5764, %v5704
        %v5768 = vmul.f32 %v5764, %v5705
        %v5769 = vmul.f32 %v5764, %v5706
        %5775 = vrot.lane.b32.xlu0 %v5765, 127
        %v5776 = vpop.permute.xlu0 %5775
        %5777 = vrot.lane.b32.xlu0 %v5766, 127
        %v5778 = vpop.permute.xlu0 %5777
        %5779 = vrot.lane.b32.xlu0 %v5767, 127
        %v5780 = vpop.permute.xlu0 %5779
        %5781 = vrot.lane.b32.xlu0 %v5768, 127
        %v5782 = vpop.permute.xlu0 %5781
        %5783 = vrot.lane.b32.xlu0 %v5769, 127
        %v5784 = vpop.permute.xlu0 %5783
        %v5790 = vadd.f32 %v5726, %v5776
        %v5791 = vadd.f32 %v5727, %v5778
        %v5792 = vadd.f32 %v5728, %v5780
        %v5793 = vadd.f32 %v5729, %v5782
        %v5794 = vadd.f32 %v5730, %v5784
        %s5795 = sld [smem:[#allocation4 + $0x5]]
        %v5796 = vstv %s5795
        %v5797 = vmul.f32 %v5796, %v5702
        %v5798 = vmul.f32 %v5796, %v5703
        %v5799 = vmul.f32 %v5796, %v5704
        %v5800 = vmul.f32 %v5796, %v5705
        %v5801 = vmul.f32 %v5796, %v5706
        %5807 = vrot.lane.b32.xlu0 %v5797, 126
        %v5808 = vpop.permute.xlu0 %5807
        %5809 = vrot.lane.b32.xlu0 %v5798, 126
        %v5810 = vpop.permute.xlu0 %5809
        %5811 = vrot.lane.b32.xlu0 %v5799, 126
        %v5812 = vpop.permute.xlu0 %5811
        %5813 = vrot.lane.b32.xlu0 %v5800, 126
        %v5814 = vpop.permute.xlu0 %5813
        %5815 = vrot.lane.b32.xlu0 %v5801, 126
        %v5816 = vpop.permute.xlu0 %5815
        %v5822 = vadd.f32 %v5758, %v5808
        %v5823 = vadd.f32 %v5759, %v5810
        %v5824 = vadd.f32 %v5760, %v5812
        %v5825 = vadd.f32 %v5761, %v5814
        %v5826 = vadd.f32 %v5762, %v5816
        %s5827 = sld [smem:[#allocation4 + $0x29]]
        %v5828 = vstv %s5827
        %v5829 = vmul.f32 %v5828, %v5702
        %v5830 = vmul.f32 %v5828, %v5703
        %v5831 = vmul.f32 %v5828, %v5704
        %v5832 = vmul.f32 %v5828, %v5705
        %v5833 = vmul.f32 %v5828, %v5706
        %5839 = vrot.lane.b32.xlu0 %v5829, 126
        %v5840 = vpop.permute.xlu0 %5839
        %5841 = vrot.lane.b32.xlu0 %v5830, 126
        %v5842 = vpop.permute.xlu0 %5841
        %5843 = vrot.lane.b32.xlu0 %v5831, 126
        %v5844 = vpop.permute.xlu0 %5843
        %5845 = vrot.lane.b32.xlu0 %v5832, 126
        %v5846 = vpop.permute.xlu0 %5845
        %5847 = vrot.lane.b32.xlu0 %v5833, 126
        %v5848 = vpop.permute.xlu0 %5847
        %v5854 = vadd.f32 %v5790, %v5840
        %v5855 = vadd.f32 %v5791, %v5842
        %v5856 = vadd.f32 %v5792, %v5844
        %v5857 = vadd.f32 %v5793, %v5846
        %v5858 = vadd.f32 %v5794, %v5848
        %v5859 = vld [vmem:[#allocation2 + $0x2] sm:$0xff]
        %v5860 = vld [vmem:[#allocation2 + $0xa] sm:$0xff]
        %v5861 = vld [vmem:[#allocation2 + $0x12] sm:$0xff]
        %v5862 = vld [vmem:[#allocation2 + $0x1a] sm:$0xff]
        %v5863 = vld [vmem:[#allocation2 + $0x22] sm:$0x3]
        %s5864 = sld [smem:[#allocation4 + $0x6]]
        %v5865 = vstv %s5864
        %v5866 = vmul.f32 %v5865, %v5859
        %v5867 = vmul.f32 %v5865, %v5860
        %v5868 = vmul.f32 %v5865, %v5861
        %v5869 = vmul.f32 %v5865, %v5862
        %v5870 = vmul.f32 %v5865, %v5863
        %v5871 = vadd.f32 %v5822, %v5866
        %v5872 = vadd.f32 %v5823, %v5867
        %v5873 = vadd.f32 %v5824, %v5868
        %v5874 = vadd.f32 %v5825, %v5869
        %v5875 = vadd.f32 %v5826, %v5870
        %s5876 = sld [smem:[#allocation4 + $0x2a]]
        %v5877 = vstv %s5876
        %v5878 = vmul.f32 %v5877, %v5859
        %v5879 = vmul.f32 %v5877, %v5860
        %v5880 = vmul.f32 %v5877, %v5861
        %v5881 = vmul.f32 %v5877, %v5862
        %v5882 = vmul.f32 %v5877, %v5863
        %v5883 = vadd.f32 %v5854, %v5878
        %v5884 = vadd.f32 %v5855, %v5879
        %v5885 = vadd.f32 %v5856, %v5880
        %v5886 = vadd.f32 %v5857, %v5881
        %v5887 = vadd.f32 %v5858, %v5882
        %s5888 = sld [smem:[#allocation4 + $0x7]]
        %v5889 = vstv %s5888
        %v5890 = vmul.f32 %v5889, %v5859
        %v5891 = vmul.f32 %v5889, %v5860
        %v5892 = vmul.f32 %v5889, %v5861
        %v5893 = vmul.f32 %v5889, %v5862
        %v5894 = vmul.f32 %v5889, %v5863
        %5900 = vrot.lane.b32.xlu0 %v5890, 127
        %v5901 = vpop.permute.xlu0 %5900
        %5902 = vrot.lane.b32.xlu0 %v5891, 127
        %v5903 = vpop.permute.xlu0 %5902
        %5904 = vrot.lane.b32.xlu0 %v5892, 127
        %v5905 = vpop.permute.xlu0 %5904
        %5906 = vrot.lane.b32.xlu0 %v5893, 127
        %v5907 = vpop.permute.xlu0 %5906
        %5908 = vrot.lane.b32.xlu0 %v5894, 127
        %v5909 = vpop.permute.xlu0 %5908
        %v5915 = vadd.f32 %v5871, %v5901
        %v5916 = vadd.f32 %v5872, %v5903
        %v5917 = vadd.f32 %v5873, %v5905
        %v5918 = vadd.f32 %v5874, %v5907
        %v5919 = vadd.f32 %v5875, %v5909
        %s5920 = sld [smem:[#allocation4 + $0x2b]]
        %v5921 = vstv %s5920
        %v5922 = vmul.f32 %v5921, %v5859
        %v5923 = vmul.f32 %v5921, %v5860
        %v5924 = vmul.f32 %v5921, %v5861
        %v5925 = vmul.f32 %v5921, %v5862
        %v5926 = vmul.f32 %v5921, %v5863
        %5932 = vrot.lane.b32.xlu0 %v5922, 127
        %v5933 = vpop.permute.xlu0 %5932
        %5934 = vrot.lane.b32.xlu0 %v5923, 127
        %v5935 = vpop.permute.xlu0 %5934
        %5936 = vrot.lane.b32.xlu0 %v5924, 127
        %v5937 = vpop.permute.xlu0 %5936
        %5938 = vrot.lane.b32.xlu0 %v5925, 127
        %v5939 = vpop.permute.xlu0 %5938
        %5940 = vrot.lane.b32.xlu0 %v5926, 127
        %v5941 = vpop.permute.xlu0 %5940
        %v5947 = vadd.f32 %v5883, %v5933
        %v5948 = vadd.f32 %v5884, %v5935
        %v5949 = vadd.f32 %v5885, %v5937
        %v5950 = vadd.f32 %v5886, %v5939
        %v5951 = vadd.f32 %v5887, %v5941
        %s5952 = sld [smem:[#allocation4 + $0x8]]
        %v5953 = vstv %s5952
        %v5954 = vmul.f32 %v5953, %v5859
        %v5955 = vmul.f32 %v5953, %v5860
        %v5956 = vmul.f32 %v5953, %v5861
        %v5957 = vmul.f32 %v5953, %v5862
        %v5958 = vmul.f32 %v5953, %v5863
        %5964 = vrot.lane.b32.xlu0 %v5954, 126
        %v5965 = vpop.permute.xlu0 %5964
        %5966 = vrot.lane.b32.xlu0 %v5955, 126
        %v5967 = vpop.permute.xlu0 %5966
        %5968 = vrot.lane.b32.xlu0 %v5956, 126
        %v5969 = vpop.permute.xlu0 %5968
        %5970 = vrot.lane.b32.xlu0 %v5957, 126
        %v5971 = vpop.permute.xlu0 %5970
        %5972 = vrot.lane.b32.xlu0 %v5958, 126
        %v5973 = vpop.permute.xlu0 %5972
        %v5979 = vadd.f32 %v5915, %v5965
        %v5980 = vadd.f32 %v5916, %v5967
        %v5981 = vadd.f32 %v5917, %v5969
        %v5982 = vadd.f32 %v5918, %v5971
        %v5983 = vadd.f32 %v5919, %v5973
        %s5984 = sld [smem:[#allocation4 + $0x2c]]
        %v5985 = vstv %s5984
        %v5986 = vmul.f32 %v5985, %v5859
        %v5987 = vmul.f32 %v5985, %v5860
        %v5988 = vmul.f32 %v5985, %v5861
        %v5989 = vmul.f32 %v5985, %v5862
        %v5990 = vmul.f32 %v5985, %v5863
        %5996 = vrot.lane.b32.xlu0 %v5986, 126
        %v5997 = vpop.permute.xlu0 %5996
        %5998 = vrot.lane.b32.xlu0 %v5987, 126
        %v5999 = vpop.permute.xlu0 %5998
        %6000 = vrot.lane.b32.xlu0 %v5988, 126
        %v6001 = vpop.permute.xlu0 %6000
        %6002 = vrot.lane.b32.xlu0 %v5989, 126
        %v6003 = vpop.permute.xlu0 %6002
        %6004 = vrot.lane.b32.xlu0 %v5990, 126
        %v6005 = vpop.permute.xlu0 %6004
        %v6011 = vadd.f32 %v5947, %v5997
        %v6012 = vadd.f32 %v5948, %v5999
        %v6013 = vadd.f32 %v5949, %v6001
        %v6014 = vadd.f32 %v5950, %v6003
        %v6015 = vadd.f32 %v5951, %v6005
        %v6016 = vld [vmem:[%s2918] sm:$0xff]
        %v6017 = vld [vmem:[%s2918 + $0x8] sm:$0xff]
        %v6018 = vld [vmem:[%s2918 + $0x10] sm:$0xff]
        %v6019 = vld [vmem:[%s2918 + $0x18] sm:$0xff]
        %v6020 = vld [vmem:[%s2918 + $0x20] sm:$0x3]
        %s6021 = sld [smem:[#allocation4 + $0x9]]
        %v6022 = vstv %s6021
        %v6023 = vmul.f32 %v6022, %v6016
        %v6024 = vmul.f32 %v6022, %v6017
        %v6025 = vmul.f32 %v6022, %v6018
        %v6026 = vmul.f32 %v6022, %v6019
        %v6027 = vmul.f32 %v6022, %v6020
        %v6028 = vadd.f32 %v5979, %v6023
        %v6029 = vadd.f32 %v5980, %v6024
        %v6030 = vadd.f32 %v5981, %v6025
        %v6031 = vadd.f32 %v5982, %v6026
        %v6032 = vadd.f32 %v5983, %v6027
        %s6033 = sld [smem:[#allocation4 + $0x2d]]
        %v6034 = vstv %s6033
        %v6035 = vmul.f32 %v6034, %v6016
        %v6036 = vmul.f32 %v6034, %v6017
        %v6037 = vmul.f32 %v6034, %v6018
        %v6038 = vmul.f32 %v6034, %v6019
        %v6039 = vmul.f32 %v6034, %v6020
        %v6040 = vadd.f32 %v6011, %v6035
        %v6041 = vadd.f32 %v6012, %v6036
        %v6042 = vadd.f32 %v6013, %v6037
        %v6043 = vadd.f32 %v6014, %v6038
        %v6044 = vadd.f32 %v6015, %v6039
        %s6045 = sld [smem:[#allocation4 + $0xa]]
        %v6046 = vstv %s6045
        %v6047 = vmul.f32 %v6046, %v6016
        %v6048 = vmul.f32 %v6046, %v6017
        %v6049 = vmul.f32 %v6046, %v6018
        %v6050 = vmul.f32 %v6046, %v6019
        %v6051 = vmul.f32 %v6046, %v6020
        %6057 = vrot.lane.b32.xlu0 %v6047, 127
        %v6058 = vpop.permute.xlu0 %6057
        %6059 = vrot.lane.b32.xlu0 %v6048, 127
        %v6060 = vpop.permute.xlu0 %6059
        %6061 = vrot.lane.b32.xlu0 %v6049, 127
        %v6062 = vpop.permute.xlu0 %6061
        %6063 = vrot.lane.b32.xlu0 %v6050, 127
        %v6064 = vpop.permute.xlu0 %6063
        %6065 = vrot.lane.b32.xlu0 %v6051, 127
        %v6066 = vpop.permute.xlu0 %6065
        %v6072 = vadd.f32 %v6028, %v6058
        %v6073 = vadd.f32 %v6029, %v6060
        %v6074 = vadd.f32 %v6030, %v6062
        %v6075 = vadd.f32 %v6031, %v6064
        %v6076 = vadd.f32 %v6032, %v6066
        %s6077 = sld [smem:[#allocation4 + $0x2e]]
        %v6078 = vstv %s6077
        %v6079 = vmul.f32 %v6078, %v6016
        %v6080 = vmul.f32 %v6078, %v6017
        %v6081 = vmul.f32 %v6078, %v6018
        %v6082 = vmul.f32 %v6078, %v6019
        %v6083 = vmul.f32 %v6078, %v6020
        %6089 = vrot.lane.b32.xlu0 %v6079, 127
        %v6090 = vpop.permute.xlu0 %6089
        %6091 = vrot.lane.b32.xlu0 %v6080, 127
        %v6092 = vpop.permute.xlu0 %6091
        %6093 = vrot.lane.b32.xlu0 %v6081, 127
        %v6094 = vpop.permute.xlu0 %6093
        %6095 = vrot.lane.b32.xlu0 %v6082, 127
        %v6096 = vpop.permute.xlu0 %6095
        %6097 = vrot.lane.b32.xlu0 %v6083, 127
        %v6098 = vpop.permute.xlu0 %6097
        %v6104 = vadd.f32 %v6040, %v6090
        %v6105 = vadd.f32 %v6041, %v6092
        %v6106 = vadd.f32 %v6042, %v6094
        %v6107 = vadd.f32 %v6043, %v6096
        %v6108 = vadd.f32 %v6044, %v6098
        %s6109 = sld [smem:[#allocation4 + $0xb]]
        %v6110 = vstv %s6109
        %v6111 = vmul.f32 %v6110, %v6016
        %v6112 = vmul.f32 %v6110, %v6017
        %v6113 = vmul.f32 %v6110, %v6018
        %v6114 = vmul.f32 %v6110, %v6019
        %v6115 = vmul.f32 %v6110, %v6020
        %6121 = vrot.lane.b32.xlu0 %v6111, 126
        %v6122 = vpop.permute.xlu0 %6121
        %6123 = vrot.lane.b32.xlu0 %v6112, 126
        %v6124 = vpop.permute.xlu0 %6123
        %6125 = vrot.lane.b32.xlu0 %v6113, 126
        %v6126 = vpop.permute.xlu0 %6125
        %6127 = vrot.lane.b32.xlu0 %v6114, 126
        %v6128 = vpop.permute.xlu0 %6127
        %6129 = vrot.lane.b32.xlu0 %v6115, 126
        %v6130 = vpop.permute.xlu0 %6129
        %v6136 = vadd.f32 %v6072, %v6122
        %v6137 = vadd.f32 %v6073, %v6124
        %v6138 = vadd.f32 %v6074, %v6126
        %v6139 = vadd.f32 %v6075, %v6128
        %v6140 = vadd.f32 %v6076, %v6130
        %s6141 = sld [smem:[#allocation4 + $0x2f]]
        %v6142 = vstv %s6141
        %v6143 = vmul.f32 %v6142, %v6016
        %v6144 = vmul.f32 %v6142, %v6017
        %v6145 = vmul.f32 %v6142, %v6018
        %v6146 = vmul.f32 %v6142, %v6019
        %v6147 = vmul.f32 %v6142, %v6020
        %6153 = vrot.lane.b32.xlu0 %v6143, 126
        %v6154 = vpop.permute.xlu0 %6153
        %6155 = vrot.lane.b32.xlu0 %v6144, 126
        %v6156 = vpop.permute.xlu0 %6155
        %6157 = vrot.lane.b32.xlu0 %v6145, 126
        %v6158 = vpop.permute.xlu0 %6157
        %6159 = vrot.lane.b32.xlu0 %v6146, 126
        %v6160 = vpop.permute.xlu0 %6159
        %6161 = vrot.lane.b32.xlu0 %v6147, 126
        %v6162 = vpop.permute.xlu0 %6161
        %v6168 = vadd.f32 %v6104, %v6154
        %v6169 = vadd.f32 %v6105, %v6156
        %v6170 = vadd.f32 %v6106, %v6158
        %v6171 = vadd.f32 %v6107, %v6160
        %v6172 = vadd.f32 %v6108, %v6162
        %v6173 = vld [vmem:[%s2918 + $0x1] sm:$0xff]
        %v6174 = vld [vmem:[%s2918 + $0x9] sm:$0xff]
        %v6175 = vld [vmem:[%s2918 + $0x11] sm:$0xff]
        %v6176 = vld [vmem:[%s2918 + $0x19] sm:$0xff]
        %v6177 = vld [vmem:[%s2918 + $0x21] sm:$0x3]
        %s6178 = sld [smem:[#allocation4 + $0xc]]
        %v6179 = vstv %s6178
        %v6180 = vmul.f32 %v6179, %v6173
        %v6181 = vmul.f32 %v6179, %v6174
        %v6182 = vmul.f32 %v6179, %v6175
        %v6183 = vmul.f32 %v6179, %v6176
        %v6184 = vmul.f32 %v6179, %v6177
        %v6185 = vadd.f32 %v6136, %v6180
        %v6186 = vadd.f32 %v6137, %v6181
        %v6187 = vadd.f32 %v6138, %v6182
        %v6188 = vadd.f32 %v6139, %v6183
        %v6189 = vadd.f32 %v6140, %v6184
        %s6190 = sld [smem:[#allocation4 + $0x30]]
        %v6191 = vstv %s6190
        %v6192 = vmul.f32 %v6191, %v6173
        %v6193 = vmul.f32 %v6191, %v6174
        %v6194 = vmul.f32 %v6191, %v6175
        %v6195 = vmul.f32 %v6191, %v6176
        %v6196 = vmul.f32 %v6191, %v6177
        %v6197 = vadd.f32 %v6168, %v6192
        %v6198 = vadd.f32 %v6169, %v6193
        %v6199 = vadd.f32 %v6170, %v6194
        %v6200 = vadd.f32 %v6171, %v6195
        %v6201 = vadd.f32 %v6172, %v6196
        %s6202 = sld [smem:[#allocation4 + $0xd]]
        %v6203 = vstv %s6202
        %v6204 = vmul.f32 %v6203, %v6173
        %v6205 = vmul.f32 %v6203, %v6174
        %v6206 = vmul.f32 %v6203, %v6175
        %v6207 = vmul.f32 %v6203, %v6176
        %v6208 = vmul.f32 %v6203, %v6177
        %6214 = vrot.lane.b32.xlu0 %v6204, 127
        %v6215 = vpop.permute.xlu0 %6214
        %6216 = vrot.lane.b32.xlu0 %v6205, 127
        %v6217 = vpop.permute.xlu0 %6216
        %6218 = vrot.lane.b32.xlu0 %v6206, 127
        %v6219 = vpop.permute.xlu0 %6218
        %6220 = vrot.lane.b32.xlu0 %v6207, 127
        %v6221 = vpop.permute.xlu0 %6220
        %6222 = vrot.lane.b32.xlu0 %v6208, 127
        %v6223 = vpop.permute.xlu0 %6222
        %v6229 = vadd.f32 %v6185, %v6215
        %v6230 = vadd.f32 %v6186, %v6217
        %v6231 = vadd.f32 %v6187, %v6219
        %v6232 = vadd.f32 %v6188, %v6221
        %v6233 = vadd.f32 %v6189, %v6223
        %s6234 = sld [smem:[#allocation4 + $0x31]]
        %v6235 = vstv %s6234
        %v6236 = vmul.f32 %v6235, %v6173
        %v6237 = vmul.f32 %v6235, %v6174
        %v6238 = vmul.f32 %v6235, %v6175
        %v6239 = vmul.f32 %v6235, %v6176
        %v6240 = vmul.f32 %v6235, %v6177
        %6246 = vrot.lane.b32.xlu0 %v6236, 127
        %v6247 = vpop.permute.xlu0 %6246
        %6248 = vrot.lane.b32.xlu0 %v6237, 127
        %v6249 = vpop.permute.xlu0 %6248
        %6250 = vrot.lane.b32.xlu0 %v6238, 127
        %v6251 = vpop.permute.xlu0 %6250
        %6252 = vrot.lane.b32.xlu0 %v6239, 127
        %v6253 = vpop.permute.xlu0 %6252
        %6254 = vrot.lane.b32.xlu0 %v6240, 127
        %v6255 = vpop.permute.xlu0 %6254
        %v6261 = vadd.f32 %v6197, %v6247
        %v6262 = vadd.f32 %v6198, %v6249
        %v6263 = vadd.f32 %v6199, %v6251
        %v6264 = vadd.f32 %v6200, %v6253
        %v6265 = vadd.f32 %v6201, %v6255
        %s6266 = sld [smem:[#allocation4 + $0xe]]
        %v6267 = vstv %s6266
        %v6268 = vmul.f32 %v6267, %v6173
        %v6269 = vmul.f32 %v6267, %v6174
        %v6270 = vmul.f32 %v6267, %v6175
        %v6271 = vmul.f32 %v6267, %v6176
        %v6272 = vmul.f32 %v6267, %v6177
        %6278 = vrot.lane.b32.xlu0 %v6268, 126
        %v6279 = vpop.permute.xlu0 %6278
        %6280 = vrot.lane.b32.xlu0 %v6269, 126
        %v6281 = vpop.permute.xlu0 %6280
        %6282 = vrot.lane.b32.xlu0 %v6270, 126
        %v6283 = vpop.permute.xlu0 %6282
        %6284 = vrot.lane.b32.xlu0 %v6271, 126
        %v6285 = vpop.permute.xlu0 %6284
        %6286 = vrot.lane.b32.xlu0 %v6272, 126
        %v6287 = vpop.permute.xlu0 %6286
        %v6293 = vadd.f32 %v6229, %v6279
        %v6294 = vadd.f32 %v6230, %v6281
        %v6295 = vadd.f32 %v6231, %v6283
        %v6296 = vadd.f32 %v6232, %v6285
        %v6297 = vadd.f32 %v6233, %v6287
        %s6298 = sld [smem:[#allocation4 + $0x32]]
        %v6299 = vstv %s6298
        %v6300 = vmul.f32 %v6299, %v6173
        %v6301 = vmul.f32 %v6299, %v6174
        %v6302 = vmul.f32 %v6299, %v6175
        %v6303 = vmul.f32 %v6299, %v6176
        %v6304 = vmul.f32 %v6299, %v6177
        %6310 = vrot.lane.b32.xlu0 %v6300, 126
        %v6311 = vpop.permute.xlu0 %6310
        %6312 = vrot.lane.b32.xlu0 %v6301, 126
        %v6313 = vpop.permute.xlu0 %6312
        %6314 = vrot.lane.b32.xlu0 %v6302, 126
        %v6315 = vpop.permute.xlu0 %6314
        %6316 = vrot.lane.b32.xlu0 %v6303, 126
        %v6317 = vpop.permute.xlu0 %6316
        %6318 = vrot.lane.b32.xlu0 %v6304, 126
        %v6319 = vpop.permute.xlu0 %6318
        %v6325 = vadd.f32 %v6261, %v6311
        %v6326 = vadd.f32 %v6262, %v6313
        %v6327 = vadd.f32 %v6263, %v6315
        %v6328 = vadd.f32 %v6264, %v6317
        %v6329 = vadd.f32 %v6265, %v6319
        %v6330 = vld [vmem:[%s2918 + $0x2] sm:$0xff]
        %v6331 = vld [vmem:[%s2918 + $0xa] sm:$0xff]
        %v6332 = vld [vmem:[%s2918 + $0x12] sm:$0xff]
        %v6333 = vld [vmem:[%s2918 + $0x1a] sm:$0xff]
        %v6334 = vld [vmem:[%s2918 + $0x22] sm:$0x3]
        %s6335 = sld [smem:[#allocation4 + $0xf]]
        %v6336 = vstv %s6335
        %v6337 = vmul.f32 %v6336, %v6330
        %v6338 = vmul.f32 %v6336, %v6331
        %v6339 = vmul.f32 %v6336, %v6332
        %v6340 = vmul.f32 %v6336, %v6333
        %v6341 = vmul.f32 %v6336, %v6334
        %v6342 = vadd.f32 %v6293, %v6337
        %v6343 = vadd.f32 %v6294, %v6338
        %v6344 = vadd.f32 %v6295, %v6339
        %v6345 = vadd.f32 %v6296, %v6340
        %v6346 = vadd.f32 %v6297, %v6341
        %s6347 = sld [smem:[#allocation4 + $0x33]]
        %v6348 = vstv %s6347
        %v6349 = vmul.f32 %v6348, %v6330
        %v6350 = vmul.f32 %v6348, %v6331
        %v6351 = vmul.f32 %v6348, %v6332
        %v6352 = vmul.f32 %v6348, %v6333
        %v6353 = vmul.f32 %v6348, %v6334
        %v6354 = vadd.f32 %v6325, %v6349
        %v6355 = vadd.f32 %v6326, %v6350
        %v6356 = vadd.f32 %v6327, %v6351
        %v6357 = vadd.f32 %v6328, %v6352
        %v6358 = vadd.f32 %v6329, %v6353
        %s6359 = sld [smem:[#allocation4 + $0x10]]
        %v6360 = vstv %s6359
        %v6361 = vmul.f32 %v6360, %v6330
        %v6362 = vmul.f32 %v6360, %v6331
        %v6363 = vmul.f32 %v6360, %v6332
        %v6364 = vmul.f32 %v6360, %v6333
        %v6365 = vmul.f32 %v6360, %v6334
        %6371 = vrot.lane.b32.xlu0 %v6361, 127
        %v6372 = vpop.permute.xlu0 %6371
        %6373 = vrot.lane.b32.xlu0 %v6362, 127
        %v6374 = vpop.permute.xlu0 %6373
        %6375 = vrot.lane.b32.xlu0 %v6363, 127
        %v6376 = vpop.permute.xlu0 %6375
        %6377 = vrot.lane.b32.xlu0 %v6364, 127
        %v6378 = vpop.permute.xlu0 %6377
        %6379 = vrot.lane.b32.xlu0 %v6365, 127
        %v6380 = vpop.permute.xlu0 %6379
        %v6386 = vadd.f32 %v6342, %v6372
        %v6387 = vadd.f32 %v6343, %v6374
        %v6388 = vadd.f32 %v6344, %v6376
        %v6389 = vadd.f32 %v6345, %v6378
        %v6390 = vadd.f32 %v6346, %v6380
        %s6391 = sld [smem:[#allocation4 + $0x34]]
        %v6392 = vstv %s6391
        %v6393 = vmul.f32 %v6392, %v6330
        %v6394 = vmul.f32 %v6392, %v6331
        %v6395 = vmul.f32 %v6392, %v6332
        %v6396 = vmul.f32 %v6392, %v6333
        %v6397 = vmul.f32 %v6392, %v6334
        %6403 = vrot.lane.b32.xlu0 %v6393, 127
        %v6404 = vpop.permute.xlu0 %6403
        %6405 = vrot.lane.b32.xlu0 %v6394, 127
        %v6406 = vpop.permute.xlu0 %6405
        %6407 = vrot.lane.b32.xlu0 %v6395, 127
        %v6408 = vpop.permute.xlu0 %6407
        %6409 = vrot.lane.b32.xlu0 %v6396, 127
        %v6410 = vpop.permute.xlu0 %6409
        %6411 = vrot.lane.b32.xlu0 %v6397, 127
        %v6412 = vpop.permute.xlu0 %6411
        %v6418 = vadd.f32 %v6354, %v6404
        %v6419 = vadd.f32 %v6355, %v6406
        %v6420 = vadd.f32 %v6356, %v6408
        %v6421 = vadd.f32 %v6357, %v6410
        %v6422 = vadd.f32 %v6358, %v6412
        %s6423 = sld [smem:[#allocation4 + $0x11]]
        %v6424 = vstv %s6423
        %v6425 = vmul.f32 %v6424, %v6330
        %v6426 = vmul.f32 %v6424, %v6331
        %v6427 = vmul.f32 %v6424, %v6332
        %v6428 = vmul.f32 %v6424, %v6333
        %v6429 = vmul.f32 %v6424, %v6334
        %6435 = vrot.lane.b32.xlu0 %v6425, 126
        %v6436 = vpop.permute.xlu0 %6435
        %6437 = vrot.lane.b32.xlu0 %v6426, 126
        %v6438 = vpop.permute.xlu0 %6437
        %6439 = vrot.lane.b32.xlu0 %v6427, 126
        %v6440 = vpop.permute.xlu0 %6439
        %6441 = vrot.lane.b32.xlu0 %v6428, 126
        %v6442 = vpop.permute.xlu0 %6441
        %6443 = vrot.lane.b32.xlu0 %v6429, 126
        %v6444 = vpop.permute.xlu0 %6443
        %v6450 = vadd.f32 %v6386, %v6436
        %v6451 = vadd.f32 %v6387, %v6438
        %v6452 = vadd.f32 %v6388, %v6440
        %v6453 = vadd.f32 %v6389, %v6442
        %v6454 = vadd.f32 %v6390, %v6444
        %s6455 = sld [smem:[#allocation4 + $0x35]]
        %v6456 = vstv %s6455
        %v6457 = vmul.f32 %v6456, %v6330
        %v6458 = vmul.f32 %v6456, %v6331
        %v6459 = vmul.f32 %v6456, %v6332
        %v6460 = vmul.f32 %v6456, %v6333
        %v6461 = vmul.f32 %v6456, %v6334
        %6467 = vrot.lane.b32.xlu0 %v6457, 126
        %v6468 = vpop.permute.xlu0 %6467
        %6469 = vrot.lane.b32.xlu0 %v6458, 126
        %v6470 = vpop.permute.xlu0 %6469
        %6471 = vrot.lane.b32.xlu0 %v6459, 126
        %v6472 = vpop.permute.xlu0 %6471
        %6473 = vrot.lane.b32.xlu0 %v6460, 126
        %v6474 = vpop.permute.xlu0 %6473
        %6475 = vrot.lane.b32.xlu0 %v6461, 126
        %v6476 = vpop.permute.xlu0 %6475
        %v6482 = vadd.f32 %v6418, %v6468
        %v6483 = vadd.f32 %v6419, %v6470
        %v6484 = vadd.f32 %v6420, %v6472
        %v6485 = vadd.f32 %v6421, %v6474
        %v6486 = vadd.f32 %v6422, %v6476
        %v6487 = vld [vmem:[%s4204] sm:$0xff]
        %v6488 = vld [vmem:[%s4204 + $0x8] sm:$0xff]
        %v6489 = vld [vmem:[%s4204 + $0x10] sm:$0xff]
        %v6490 = vld [vmem:[%s4204 + $0x18] sm:$0xff]
        %v6491 = vld [vmem:[%s4204 + $0x20] sm:$0x3]
        %s6492 = sld [smem:[#allocation4 + $0x12]]
        %v6493 = vstv %s6492
        %v6494 = vmul.f32 %v6493, %v6487
        %v6495 = vmul.f32 %v6493, %v6488
        %v6496 = vmul.f32 %v6493, %v6489
        %v6497 = vmul.f32 %v6493, %v6490
        %v6498 = vmul.f32 %v6493, %v6491
        %v6499 = vadd.f32 %v6450, %v6494
        %v6500 = vadd.f32 %v6451, %v6495
        %v6501 = vadd.f32 %v6452, %v6496
        %v6502 = vadd.f32 %v6453, %v6497
        %v6503 = vadd.f32 %v6454, %v6498
        %s6504 = sld [smem:[#allocation4 + $0x36]]
        %v6505 = vstv %s6504
        %v6506 = vmul.f32 %v6505, %v6487
        %v6507 = vmul.f32 %v6505, %v6488
        %v6508 = vmul.f32 %v6505, %v6489
        %v6509 = vmul.f32 %v6505, %v6490
        %v6510 = vmul.f32 %v6505, %v6491
        %v6511 = vadd.f32 %v6482, %v6506
        %v6512 = vadd.f32 %v6483, %v6507
        %v6513 = vadd.f32 %v6484, %v6508
        %v6514 = vadd.f32 %v6485, %v6509
        %v6515 = vadd.f32 %v6486, %v6510
        %s6516 = sld [smem:[#allocation4 + $0x13]]
        %v6517 = vstv %s6516
        %v6518 = vmul.f32 %v6517, %v6487
        %v6519 = vmul.f32 %v6517, %v6488
        %v6520 = vmul.f32 %v6517, %v6489
        %v6521 = vmul.f32 %v6517, %v6490
        %v6522 = vmul.f32 %v6517, %v6491
        %6528 = vrot.lane.b32.xlu0 %v6518, 127
        %v6529 = vpop.permute.xlu0 %6528
        %6530 = vrot.lane.b32.xlu0 %v6519, 127
        %v6531 = vpop.permute.xlu0 %6530
        %6532 = vrot.lane.b32.xlu0 %v6520, 127
        %v6533 = vpop.permute.xlu0 %6532
        %6534 = vrot.lane.b32.xlu0 %v6521, 127
        %v6535 = vpop.permute.xlu0 %6534
        %6536 = vrot.lane.b32.xlu0 %v6522, 127
        %v6537 = vpop.permute.xlu0 %6536
        %v6543 = vadd.f32 %v6499, %v6529
        %v6544 = vadd.f32 %v6500, %v6531
        %v6545 = vadd.f32 %v6501, %v6533
        %v6546 = vadd.f32 %v6502, %v6535
        %v6547 = vadd.f32 %v6503, %v6537
        %s6548 = sld [smem:[#allocation4 + $0x37]]
        %v6549 = vstv %s6548
        %v6550 = vmul.f32 %v6549, %v6487
        %v6551 = vmul.f32 %v6549, %v6488
        %v6552 = vmul.f32 %v6549, %v6489
        %v6553 = vmul.f32 %v6549, %v6490
        %v6554 = vmul.f32 %v6549, %v6491
        %6560 = vrot.lane.b32.xlu0 %v6550, 127
        %v6561 = vpop.permute.xlu0 %6560
        %6562 = vrot.lane.b32.xlu0 %v6551, 127
        %v6563 = vpop.permute.xlu0 %6562
        %6564 = vrot.lane.b32.xlu0 %v6552, 127
        %v6565 = vpop.permute.xlu0 %6564
        %6566 = vrot.lane.b32.xlu0 %v6553, 127
        %v6567 = vpop.permute.xlu0 %6566
        %6568 = vrot.lane.b32.xlu0 %v6554, 127
        %v6569 = vpop.permute.xlu0 %6568
        %v6575 = vadd.f32 %v6511, %v6561
        %v6576 = vadd.f32 %v6512, %v6563
        %v6577 = vadd.f32 %v6513, %v6565
        %v6578 = vadd.f32 %v6514, %v6567
        %v6579 = vadd.f32 %v6515, %v6569
        %s6580 = sld [smem:[#allocation4 + $0x14]]
        %v6581 = vstv %s6580
        %v6582 = vmul.f32 %v6581, %v6487
        %v6583 = vmul.f32 %v6581, %v6488
        %v6584 = vmul.f32 %v6581, %v6489
        %v6585 = vmul.f32 %v6581, %v6490
        %v6586 = vmul.f32 %v6581, %v6491
        %6592 = vrot.lane.b32.xlu0 %v6582, 126
        %v6593 = vpop.permute.xlu0 %6592
        %6594 = vrot.lane.b32.xlu0 %v6583, 126
        %v6595 = vpop.permute.xlu0 %6594
        %6596 = vrot.lane.b32.xlu0 %v6584, 126
        %v6597 = vpop.permute.xlu0 %6596
        %6598 = vrot.lane.b32.xlu0 %v6585, 126
        %v6599 = vpop.permute.xlu0 %6598
        %6600 = vrot.lane.b32.xlu0 %v6586, 126
        %v6601 = vpop.permute.xlu0 %6600
        %v6607 = vadd.f32 %v6543, %v6593
        %v6608 = vadd.f32 %v6544, %v6595
        %v6609 = vadd.f32 %v6545, %v6597
        %v6610 = vadd.f32 %v6546, %v6599
        %v6611 = vadd.f32 %v6547, %v6601
        %s6612 = sld [smem:[#allocation4 + $0x38]]
        %v6613 = vstv %s6612
        %v6614 = vmul.f32 %v6613, %v6487
        %v6615 = vmul.f32 %v6613, %v6488
        %v6616 = vmul.f32 %v6613, %v6489
        %v6617 = vmul.f32 %v6613, %v6490
        %v6618 = vmul.f32 %v6613, %v6491
        %6624 = vrot.lane.b32.xlu0 %v6614, 126
        %v6625 = vpop.permute.xlu0 %6624
        %6626 = vrot.lane.b32.xlu0 %v6615, 126
        %v6627 = vpop.permute.xlu0 %6626
        %6628 = vrot.lane.b32.xlu0 %v6616, 126
        %v6629 = vpop.permute.xlu0 %6628
        %6630 = vrot.lane.b32.xlu0 %v6617, 126
        %v6631 = vpop.permute.xlu0 %6630
        %6632 = vrot.lane.b32.xlu0 %v6618, 126
        %v6633 = vpop.permute.xlu0 %6632
        %v6639 = vadd.f32 %v6575, %v6625
        %v6640 = vadd.f32 %v6576, %v6627
        %v6641 = vadd.f32 %v6577, %v6629
        %v6642 = vadd.f32 %v6578, %v6631
        %v6643 = vadd.f32 %v6579, %v6633
        %v6644 = vld [vmem:[%s4204 + $0x1] sm:$0xff]
        %v6645 = vld [vmem:[%s4204 + $0x9] sm:$0xff]
        %v6646 = vld [vmem:[%s4204 + $0x11] sm:$0xff]
        %v6647 = vld [vmem:[%s4204 + $0x19] sm:$0xff]
        %v6648 = vld [vmem:[%s4204 + $0x21] sm:$0x3]
        %s6649 = sld [smem:[#allocation4 + $0x15]]
        %v6650 = vstv %s6649
        %v6651 = vmul.f32 %v6650, %v6644
        %v6652 = vmul.f32 %v6650, %v6645
        %v6653 = vmul.f32 %v6650, %v6646
        %v6654 = vmul.f32 %v6650, %v6647
        %v6655 = vmul.f32 %v6650, %v6648
        %v6656 = vadd.f32 %v6607, %v6651
        %v6657 = vadd.f32 %v6608, %v6652
        %v6658 = vadd.f32 %v6609, %v6653
        %v6659 = vadd.f32 %v6610, %v6654
        %v6660 = vadd.f32 %v6611, %v6655
        %s6661 = sld [smem:[#allocation4 + $0x39]]
        %v6662 = vstv %s6661
        %v6663 = vmul.f32 %v6662, %v6644
        %v6664 = vmul.f32 %v6662, %v6645
        %v6665 = vmul.f32 %v6662, %v6646
        %v6666 = vmul.f32 %v6662, %v6647
        %v6667 = vmul.f32 %v6662, %v6648
        %v6668 = vadd.f32 %v6639, %v6663
        %v6669 = vadd.f32 %v6640, %v6664
        %v6670 = vadd.f32 %v6641, %v6665
        %v6671 = vadd.f32 %v6642, %v6666
        %v6672 = vadd.f32 %v6643, %v6667
        %s6673 = sld [smem:[#allocation4 + $0x16]]
        %v6674 = vstv %s6673
        %v6675 = vmul.f32 %v6674, %v6644
        %v6676 = vmul.f32 %v6674, %v6645
        %v6677 = vmul.f32 %v6674, %v6646
        %v6678 = vmul.f32 %v6674, %v6647
        %v6679 = vmul.f32 %v6674, %v6648
        %6685 = vrot.lane.b32.xlu0 %v6675, 127
        %v6686 = vpop.permute.xlu0 %6685
        %6687 = vrot.lane.b32.xlu0 %v6676, 127
        %v6688 = vpop.permute.xlu0 %6687
        %6689 = vrot.lane.b32.xlu0 %v6677, 127
        %v6690 = vpop.permute.xlu0 %6689
        %6691 = vrot.lane.b32.xlu0 %v6678, 127
        %v6692 = vpop.permute.xlu0 %6691
        %6693 = vrot.lane.b32.xlu0 %v6679, 127
        %v6694 = vpop.permute.xlu0 %6693
        %v6700 = vadd.f32 %v6656, %v6686
        %v6701 = vadd.f32 %v6657, %v6688
        %v6702 = vadd.f32 %v6658, %v6690
        %v6703 = vadd.f32 %v6659, %v6692
        %v6704 = vadd.f32 %v6660, %v6694
        %s6705 = sld [smem:[#allocation4 + $0x3a]]
        %v6706 = vstv %s6705
        %v6707 = vmul.f32 %v6706, %v6644
        %v6708 = vmul.f32 %v6706, %v6645
        %v6709 = vmul.f32 %v6706, %v6646
        %v6710 = vmul.f32 %v6706, %v6647
        %v6711 = vmul.f32 %v6706, %v6648
        %6717 = vrot.lane.b32.xlu0 %v6707, 127
        %v6718 = vpop.permute.xlu0 %6717
        %6719 = vrot.lane.b32.xlu0 %v6708, 127
        %v6720 = vpop.permute.xlu0 %6719
        %6721 = vrot.lane.b32.xlu0 %v6709, 127
        %v6722 = vpop.permute.xlu0 %6721
        %6723 = vrot.lane.b32.xlu0 %v6710, 127
        %v6724 = vpop.permute.xlu0 %6723
        %6725 = vrot.lane.b32.xlu0 %v6711, 127
        %v6726 = vpop.permute.xlu0 %6725
        %v6732 = vadd.f32 %v6668, %v6718
        %v6733 = vadd.f32 %v6669, %v6720
        %v6734 = vadd.f32 %v6670, %v6722
        %v6735 = vadd.f32 %v6671, %v6724
        %v6736 = vadd.f32 %v6672, %v6726
        %s6737 = sld [smem:[#allocation4 + $0x17]]
        %v6738 = vstv %s6737
        %v6739 = vmul.f32 %v6738, %v6644
        %v6740 = vmul.f32 %v6738, %v6645
        %v6741 = vmul.f32 %v6738, %v6646
        %v6742 = vmul.f32 %v6738, %v6647
        %v6743 = vmul.f32 %v6738, %v6648
        %6749 = vrot.lane.b32.xlu0 %v6739, 126
        %v6750 = vpop.permute.xlu0 %6749
        %6751 = vrot.lane.b32.xlu0 %v6740, 126
        %v6752 = vpop.permute.xlu0 %6751
        %6753 = vrot.lane.b32.xlu0 %v6741, 126
        %v6754 = vpop.permute.xlu0 %6753
        %6755 = vrot.lane.b32.xlu0 %v6742, 126
        %v6756 = vpop.permute.xlu0 %6755
        %6757 = vrot.lane.b32.xlu0 %v6743, 126
        %v6758 = vpop.permute.xlu0 %6757
        %v6764 = vadd.f32 %v6700, %v6750
        %v6765 = vadd.f32 %v6701, %v6752
        %v6766 = vadd.f32 %v6702, %v6754
        %v6767 = vadd.f32 %v6703, %v6756
        %v6768 = vadd.f32 %v6704, %v6758
        %s6769 = sld [smem:[#allocation4 + $0x3b]]
        %v6770 = vstv %s6769
        %v6771 = vmul.f32 %v6770, %v6644
        %v6772 = vmul.f32 %v6770, %v6645
        %v6773 = vmul.f32 %v6770, %v6646
        %v6774 = vmul.f32 %v6770, %v6647
        %v6775 = vmul.f32 %v6770, %v6648
        %6781 = vrot.lane.b32.xlu0 %v6771, 126
        %v6782 = vpop.permute.xlu0 %6781
        %6783 = vrot.lane.b32.xlu0 %v6772, 126
        %v6784 = vpop.permute.xlu0 %6783
        %6785 = vrot.lane.b32.xlu0 %v6773, 126
        %v6786 = vpop.permute.xlu0 %6785
        %6787 = vrot.lane.b32.xlu0 %v6774, 126
        %v6788 = vpop.permute.xlu0 %6787
        %6789 = vrot.lane.b32.xlu0 %v6775, 126
        %v6790 = vpop.permute.xlu0 %6789
        %v6796 = vadd.f32 %v6732, %v6782
        %v6797 = vadd.f32 %v6733, %v6784
        %v6798 = vadd.f32 %v6734, %v6786
        %v6799 = vadd.f32 %v6735, %v6788
        %v6800 = vadd.f32 %v6736, %v6790
        %v6801 = vld [vmem:[%s4204 + $0x2] sm:$0xff]
        %v6802 = vld [vmem:[%s4204 + $0xa] sm:$0xff]
        %v6803 = vld [vmem:[%s4204 + $0x12] sm:$0xff]
        %v6804 = vld [vmem:[%s4204 + $0x1a] sm:$0xff]
        %v6805 = vld [vmem:[%s4204 + $0x22] sm:$0x3]
        %s6806 = sld [smem:[#allocation4 + $0x18]]
        %v6807 = vstv %s6806
        %v6808 = vmul.f32 %v6807, %v6801
        %v6809 = vmul.f32 %v6807, %v6802
        %v6810 = vmul.f32 %v6807, %v6803
        %v6811 = vmul.f32 %v6807, %v6804
        %v6812 = vmul.f32 %v6807, %v6805
        %v6813 = vadd.f32 %v6764, %v6808
        %v6814 = vadd.f32 %v6765, %v6809
        %v6815 = vadd.f32 %v6766, %v6810
        %v6816 = vadd.f32 %v6767, %v6811
        %v6817 = vadd.f32 %v6768, %v6812
        %s6818 = sld [smem:[#allocation4 + $0x3c]]
        %v6819 = vstv %s6818
        %v6820 = vmul.f32 %v6819, %v6801
        %v6821 = vmul.f32 %v6819, %v6802
        %v6822 = vmul.f32 %v6819, %v6803
        %v6823 = vmul.f32 %v6819, %v6804
        %v6824 = vmul.f32 %v6819, %v6805
        %v6825 = vadd.f32 %v6796, %v6820
        %v6826 = vadd.f32 %v6797, %v6821
        %v6827 = vadd.f32 %v6798, %v6822
        %v6828 = vadd.f32 %v6799, %v6823
        %v6829 = vadd.f32 %v6800, %v6824
        %s6830 = sld [smem:[#allocation4 + $0x19]]
        %v6831 = vstv %s6830
        %v6832 = vmul.f32 %v6831, %v6801
        %v6833 = vmul.f32 %v6831, %v6802
        %v6834 = vmul.f32 %v6831, %v6803
        %v6835 = vmul.f32 %v6831, %v6804
        %v6836 = vmul.f32 %v6831, %v6805
        %6842 = vrot.lane.b32.xlu0 %v6832, 127
        %v6843 = vpop.permute.xlu0 %6842
        %6844 = vrot.lane.b32.xlu0 %v6833, 127
        %v6845 = vpop.permute.xlu0 %6844
        %6846 = vrot.lane.b32.xlu0 %v6834, 127
        %v6847 = vpop.permute.xlu0 %6846
        %6848 = vrot.lane.b32.xlu0 %v6835, 127
        %v6849 = vpop.permute.xlu0 %6848
        %6850 = vrot.lane.b32.xlu0 %v6836, 127
        %v6851 = vpop.permute.xlu0 %6850
        %v6857 = vadd.f32 %v6813, %v6843
        %v6858 = vadd.f32 %v6814, %v6845
        %v6859 = vadd.f32 %v6815, %v6847
        %v6860 = vadd.f32 %v6816, %v6849
        %v6861 = vadd.f32 %v6817, %v6851
        %s6862 = sld [smem:[#allocation4 + $0x3d]]
        %v6863 = vstv %s6862
        %v6864 = vmul.f32 %v6863, %v6801
        %v6865 = vmul.f32 %v6863, %v6802
        %v6866 = vmul.f32 %v6863, %v6803
        %v6867 = vmul.f32 %v6863, %v6804
        %v6868 = vmul.f32 %v6863, %v6805
        %6874 = vrot.lane.b32.xlu0 %v6864, 127
        %v6875 = vpop.permute.xlu0 %6874
        %6876 = vrot.lane.b32.xlu0 %v6865, 127
        %v6877 = vpop.permute.xlu0 %6876
        %6878 = vrot.lane.b32.xlu0 %v6866, 127
        %v6879 = vpop.permute.xlu0 %6878
        %6880 = vrot.lane.b32.xlu0 %v6867, 127
        %v6881 = vpop.permute.xlu0 %6880
        %6882 = vrot.lane.b32.xlu0 %v6868, 127
        %v6883 = vpop.permute.xlu0 %6882
        %v6889 = vadd.f32 %v6825, %v6875
        %v6890 = vadd.f32 %v6826, %v6877
        %v6891 = vadd.f32 %v6827, %v6879
        %v6892 = vadd.f32 %v6828, %v6881
        %v6893 = vadd.f32 %v6829, %v6883
        %s6894 = sld [smem:[#allocation4 + $0x1a]]
        %v6895 = vstv %s6894
        %v6896 = vmul.f32 %v6895, %v6801
        %v6897 = vmul.f32 %v6895, %v6802
        %v6898 = vmul.f32 %v6895, %v6803
        %v6899 = vmul.f32 %v6895, %v6804
        %v6900 = vmul.f32 %v6895, %v6805
        %6906 = vrot.lane.b32.xlu0 %v6896, 126
        %v6907 = vpop.permute.xlu0 %6906
        %6908 = vrot.lane.b32.xlu0 %v6897, 126
        %v6909 = vpop.permute.xlu0 %6908
        %6910 = vrot.lane.b32.xlu0 %v6898, 126
        %v6911 = vpop.permute.xlu0 %6910
        %6912 = vrot.lane.b32.xlu0 %v6899, 126
        %v6913 = vpop.permute.xlu0 %6912
        %6914 = vrot.lane.b32.xlu0 %v6900, 126
        %v6915 = vpop.permute.xlu0 %6914
        %v6921 = vadd.f32 %v6857, %v6907
        %v6922 = vadd.f32 %v6858, %v6909
        %v6923 = vadd.f32 %v6859, %v6911
        %v6924 = vadd.f32 %v6860, %v6913
        %v6925 = vadd.f32 %v6861, %v6915
        %s6926 = sld [smem:[#allocation4 + $0x3e]]
        %v6927 = vstv %s6926
        %v6928 = vmul.f32 %v6927, %v6801
        %v6929 = vmul.f32 %v6927, %v6802
        %v6930 = vmul.f32 %v6927, %v6803
        %v6931 = vmul.f32 %v6927, %v6804
        %v6932 = vmul.f32 %v6927, %v6805
        %6938 = vrot.lane.b32.xlu0 %v6928, 126
        %v6939 = vpop.permute.xlu0 %6938
        %6940 = vrot.lane.b32.xlu0 %v6929, 126
        %v6941 = vpop.permute.xlu0 %6940
        %6942 = vrot.lane.b32.xlu0 %v6930, 126
        %v6943 = vpop.permute.xlu0 %6942
        %6944 = vrot.lane.b32.xlu0 %v6931, 126
        %v6945 = vpop.permute.xlu0 %6944
        %6946 = vrot.lane.b32.xlu0 %v6932, 126
        %v6947 = vpop.permute.xlu0 %6946
        %v6953 = vadd.f32 %v6889, %v6939
        %v6954 = vadd.f32 %v6890, %v6941
        %v6955 = vadd.f32 %v6891, %v6943
        %v6956 = vadd.f32 %v6892, %v6945
        %v6957 = vadd.f32 %v6893, %v6947
        %v6958 = vld [vmem:[%s5490] sm:$0xff]
        %v6959 = vld [vmem:[%s5490 + $0x8] sm:$0xff]
        %v6960 = vld [vmem:[%s5490 + $0x10] sm:$0xff]
        %v6961 = vld [vmem:[%s5490 + $0x18] sm:$0xff]
        %v6962 = vld [vmem:[%s5490 + $0x20] sm:$0x3]
        %s6963 = sld [smem:[#allocation4 + $0x1b]]
        %v6964 = vstv %s6963
        %v6965 = vmul.f32 %v6964, %v6958
        %v6966 = vmul.f32 %v6964, %v6959
        %v6967 = vmul.f32 %v6964, %v6960
        %v6968 = vmul.f32 %v6964, %v6961
        %v6969 = vmul.f32 %v6964, %v6962
        %v6970 = vadd.f32 %v6921, %v6965
        %v6971 = vadd.f32 %v6922, %v6966
        %v6972 = vadd.f32 %v6923, %v6967
        %v6973 = vadd.f32 %v6924, %v6968
        %v6974 = vadd.f32 %v6925, %v6969
        %s6975 = sld [smem:[#allocation4 + $0x3f]]
        %v6976 = vstv %s6975
        %v6977 = vmul.f32 %v6976, %v6958
        %v6978 = vmul.f32 %v6976, %v6959
        %v6979 = vmul.f32 %v6976, %v6960
        %v6980 = vmul.f32 %v6976, %v6961
        %v6981 = vmul.f32 %v6976, %v6962
        %v6982 = vadd.f32 %v6953, %v6977
        %v6983 = vadd.f32 %v6954, %v6978
        %v6984 = vadd.f32 %v6955, %v6979
        %v6985 = vadd.f32 %v6956, %v6980
        %v6986 = vadd.f32 %v6957, %v6981
        %s6987 = sld [smem:[#allocation4 + $0x1c]]
        %v6988 = vstv %s6987
        %v6989 = vmul.f32 %v6988, %v6958
        %v6990 = vmul.f32 %v6988, %v6959
        %v6991 = vmul.f32 %v6988, %v6960
        %v6992 = vmul.f32 %v6988, %v6961
        %v6993 = vmul.f32 %v6988, %v6962
        %6999 = vrot.lane.b32.xlu0 %v6989, 127
        %v7000 = vpop.permute.xlu0 %6999
        %7001 = vrot.lane.b32.xlu0 %v6990, 127
        %v7002 = vpop.permute.xlu0 %7001
        %7003 = vrot.lane.b32.xlu0 %v6991, 127
        %v7004 = vpop.permute.xlu0 %7003
        %7005 = vrot.lane.b32.xlu0 %v6992, 127
        %v7006 = vpop.permute.xlu0 %7005
        %7007 = vrot.lane.b32.xlu0 %v6993, 127
        %v7008 = vpop.permute.xlu0 %7007
        %v7014 = vadd.f32 %v6970, %v7000
        %v7015 = vadd.f32 %v6971, %v7002
        %v7016 = vadd.f32 %v6972, %v7004
        %v7017 = vadd.f32 %v6973, %v7006
        %v7018 = vadd.f32 %v6974, %v7008
        %s7019 = sld [smem:[#allocation4 + $0x40]]
        %v7020 = vstv %s7019
        %v7021 = vmul.f32 %v7020, %v6958
        %v7022 = vmul.f32 %v7020, %v6959
        %v7023 = vmul.f32 %v7020, %v6960
        %v7024 = vmul.f32 %v7020, %v6961
        %v7025 = vmul.f32 %v7020, %v6962
        %7031 = vrot.lane.b32.xlu0 %v7021, 127
        %v7032 = vpop.permute.xlu0 %7031
        %7033 = vrot.lane.b32.xlu0 %v7022, 127
        %v7034 = vpop.permute.xlu0 %7033
        %7035 = vrot.lane.b32.xlu0 %v7023, 127
        %v7036 = vpop.permute.xlu0 %7035
        %7037 = vrot.lane.b32.xlu0 %v7024, 127
        %v7038 = vpop.permute.xlu0 %7037
        %7039 = vrot.lane.b32.xlu0 %v7025, 127
        %v7040 = vpop.permute.xlu0 %7039
        %v7046 = vadd.f32 %v6982, %v7032
        %v7047 = vadd.f32 %v6983, %v7034
        %v7048 = vadd.f32 %v6984, %v7036
        %v7049 = vadd.f32 %v6985, %v7038
        %v7050 = vadd.f32 %v6986, %v7040
        %s7051 = sld [smem:[#allocation4 + $0x1d]]
        %v7052 = vstv %s7051
        %v7053 = vmul.f32 %v7052, %v6958
        %v7054 = vmul.f32 %v7052, %v6959
        %v7055 = vmul.f32 %v7052, %v6960
        %v7056 = vmul.f32 %v7052, %v6961
        %v7057 = vmul.f32 %v7052, %v6962
        %7063 = vrot.lane.b32.xlu0 %v7053, 126
        %v7064 = vpop.permute.xlu0 %7063
        %7065 = vrot.lane.b32.xlu0 %v7054, 126
        %v7066 = vpop.permute.xlu0 %7065
        %7067 = vrot.lane.b32.xlu0 %v7055, 126
        %v7068 = vpop.permute.xlu0 %7067
        %7069 = vrot.lane.b32.xlu0 %v7056, 126
        %v7070 = vpop.permute.xlu0 %7069
        %7071 = vrot.lane.b32.xlu0 %v7057, 126
        %v7072 = vpop.permute.xlu0 %7071
        %v7078 = vadd.f32 %v7014, %v7064
        %v7079 = vadd.f32 %v7015, %v7066
        %v7080 = vadd.f32 %v7016, %v7068
        %v7081 = vadd.f32 %v7017, %v7070
        %v7082 = vadd.f32 %v7018, %v7072
        %s7083 = sld [smem:[#allocation4 + $0x41]]
        %v7084 = vstv %s7083
        %v7085 = vmul.f32 %v7084, %v6958
        %v7086 = vmul.f32 %v7084, %v6959
        %v7087 = vmul.f32 %v7084, %v6960
        %v7088 = vmul.f32 %v7084, %v6961
        %v7089 = vmul.f32 %v7084, %v6962
        %7095 = vrot.lane.b32.xlu0 %v7085, 126
        %v7096 = vpop.permute.xlu0 %7095
        %7097 = vrot.lane.b32.xlu0 %v7086, 126
        %v7098 = vpop.permute.xlu0 %7097
        %7099 = vrot.lane.b32.xlu0 %v7087, 126
        %v7100 = vpop.permute.xlu0 %7099
        %7101 = vrot.lane.b32.xlu0 %v7088, 126
        %v7102 = vpop.permute.xlu0 %7101
        %7103 = vrot.lane.b32.xlu0 %v7089, 126
        %v7104 = vpop.permute.xlu0 %7103
        %v7110 = vadd.f32 %v7046, %v7096
        %v7111 = vadd.f32 %v7047, %v7098
        %v7112 = vadd.f32 %v7048, %v7100
        %v7113 = vadd.f32 %v7049, %v7102
        %v7114 = vadd.f32 %v7050, %v7104
        %v7115 = vld [vmem:[%s5490 + $0x1] sm:$0xff]
        %v7116 = vld [vmem:[%s5490 + $0x9] sm:$0xff]
        %v7117 = vld [vmem:[%s5490 + $0x11] sm:$0xff]
        %v7118 = vld [vmem:[%s5490 + $0x19] sm:$0xff]
        %v7119 = vld [vmem:[%s5490 + $0x21] sm:$0x3]
        %s7120 = sld [smem:[#allocation4 + $0x1e]]
        %v7121 = vstv %s7120
        %v7122 = vmul.f32 %v7121, %v7115
        %v7123 = vmul.f32 %v7121, %v7116
        %v7124 = vmul.f32 %v7121, %v7117
        %v7125 = vmul.f32 %v7121, %v7118
        %v7126 = vmul.f32 %v7121, %v7119
        %v7127 = vadd.f32 %v7078, %v7122
        %v7128 = vadd.f32 %v7079, %v7123
        %v7129 = vadd.f32 %v7080, %v7124
        %v7130 = vadd.f32 %v7081, %v7125
        %v7131 = vadd.f32 %v7082, %v7126
        %s7132 = sld [smem:[#allocation4 + $0x42]]
        %v7133 = vstv %s7132
        %v7134 = vmul.f32 %v7133, %v7115
        %v7135 = vmul.f32 %v7133, %v7116
        %v7136 = vmul.f32 %v7133, %v7117
        %v7137 = vmul.f32 %v7133, %v7118
        %v7138 = vmul.f32 %v7133, %v7119
        %v7139 = vadd.f32 %v7110, %v7134
        %v7140 = vadd.f32 %v7111, %v7135
        %v7141 = vadd.f32 %v7112, %v7136
        %v7142 = vadd.f32 %v7113, %v7137
        %v7143 = vadd.f32 %v7114, %v7138
        %s7144 = sld [smem:[#allocation4 + $0x1f]]
        %v7145 = vstv %s7144
        %v7146 = vmul.f32 %v7145, %v7115
        %v7147 = vmul.f32 %v7145, %v7116
        %v7148 = vmul.f32 %v7145, %v7117
        %v7149 = vmul.f32 %v7145, %v7118
        %v7150 = vmul.f32 %v7145, %v7119
        %7156 = vrot.lane.b32.xlu0 %v7146, 127
        %v7157 = vpop.permute.xlu0 %7156
        %7158 = vrot.lane.b32.xlu0 %v7147, 127
        %v7159 = vpop.permute.xlu0 %7158
        %7160 = vrot.lane.b32.xlu0 %v7148, 127
        %v7161 = vpop.permute.xlu0 %7160
        %7162 = vrot.lane.b32.xlu0 %v7149, 127
        %v7163 = vpop.permute.xlu0 %7162
        %7164 = vrot.lane.b32.xlu0 %v7150, 127
        %v7165 = vpop.permute.xlu0 %7164
        %v7171 = vadd.f32 %v7127, %v7157
        %v7172 = vadd.f32 %v7128, %v7159
        %v7173 = vadd.f32 %v7129, %v7161
        %v7174 = vadd.f32 %v7130, %v7163
        %v7175 = vadd.f32 %v7131, %v7165
        %s7176 = sld [smem:[#allocation4 + $0x43]]
        %v7177 = vstv %s7176
        %v7178 = vmul.f32 %v7177, %v7115
        %v7179 = vmul.f32 %v7177, %v7116
        %v7180 = vmul.f32 %v7177, %v7117
        %v7181 = vmul.f32 %v7177, %v7118
        %v7182 = vmul.f32 %v7177, %v7119
        %7188 = vrot.lane.b32.xlu0 %v7178, 127
        %v7189 = vpop.permute.xlu0 %7188
        %7190 = vrot.lane.b32.xlu0 %v7179, 127
        %v7191 = vpop.permute.xlu0 %7190
        %7192 = vrot.lane.b32.xlu0 %v7180, 127
        %v7193 = vpop.permute.xlu0 %7192
        %7194 = vrot.lane.b32.xlu0 %v7181, 127
        %v7195 = vpop.permute.xlu0 %7194
        %7196 = vrot.lane.b32.xlu0 %v7182, 127
        %v7197 = vpop.permute.xlu0 %7196
        %v7203 = vadd.f32 %v7139, %v7189
        %v7204 = vadd.f32 %v7140, %v7191
        %v7205 = vadd.f32 %v7141, %v7193
        %v7206 = vadd.f32 %v7142, %v7195
        %v7207 = vadd.f32 %v7143, %v7197
        %s7208 = sld [smem:[#allocation4 + $0x20]]
        %v7209 = vstv %s7208
        %v7210 = vmul.f32 %v7209, %v7115
        %v7211 = vmul.f32 %v7209, %v7116
        %v7212 = vmul.f32 %v7209, %v7117
        %v7213 = vmul.f32 %v7209, %v7118
        %v7214 = vmul.f32 %v7209, %v7119
        %7220 = vrot.lane.b32.xlu0 %v7210, 126
        %v7221 = vpop.permute.xlu0 %7220
        %7222 = vrot.lane.b32.xlu0 %v7211, 126
        %v7223 = vpop.permute.xlu0 %7222
        %7224 = vrot.lane.b32.xlu0 %v7212, 126
        %v7225 = vpop.permute.xlu0 %7224
        %7226 = vrot.lane.b32.xlu0 %v7213, 126
        %v7227 = vpop.permute.xlu0 %7226
        %7228 = vrot.lane.b32.xlu0 %v7214, 126
        %v7229 = vpop.permute.xlu0 %7228
        %v7235 = vadd.f32 %v7171, %v7221
        %v7236 = vadd.f32 %v7172, %v7223
        %v7237 = vadd.f32 %v7173, %v7225
        %v7238 = vadd.f32 %v7174, %v7227
        %v7239 = vadd.f32 %v7175, %v7229
        %s7240 = sld [smem:[#allocation4 + $0x44]]
        %v7241 = vstv %s7240
        %v7242 = vmul.f32 %v7241, %v7115
        %v7243 = vmul.f32 %v7241, %v7116
        %v7244 = vmul.f32 %v7241, %v7117
        %v7245 = vmul.f32 %v7241, %v7118
        %v7246 = vmul.f32 %v7241, %v7119
        %7252 = vrot.lane.b32.xlu0 %v7242, 126
        %v7253 = vpop.permute.xlu0 %7252
        %7254 = vrot.lane.b32.xlu0 %v7243, 126
        %v7255 = vpop.permute.xlu0 %7254
        %7256 = vrot.lane.b32.xlu0 %v7244, 126
        %v7257 = vpop.permute.xlu0 %7256
        %7258 = vrot.lane.b32.xlu0 %v7245, 126
        %v7259 = vpop.permute.xlu0 %7258
        %7260 = vrot.lane.b32.xlu0 %v7246, 126
        %v7261 = vpop.permute.xlu0 %7260
        %v7267 = vadd.f32 %v7203, %v7253
        %v7268 = vadd.f32 %v7204, %v7255
        %v7269 = vadd.f32 %v7205, %v7257
        %v7270 = vadd.f32 %v7206, %v7259
        %v7271 = vadd.f32 %v7207, %v7261
        %v7272 = vld [vmem:[%s5490 + $0x2] sm:$0xff]
        %v7273 = vld [vmem:[%s5490 + $0xa] sm:$0xff]
        %v7274 = vld [vmem:[%s5490 + $0x12] sm:$0xff]
        %v7275 = vld [vmem:[%s5490 + $0x1a] sm:$0xff]
        %v7276 = vld [vmem:[%s5490 + $0x22] sm:$0x3]
        %s7277 = sld [smem:[#allocation4 + $0x21]]
        %v7278 = vstv %s7277
        %v7279 = vmul.f32 %v7278, %v7272
        %v7280 = vmul.f32 %v7278, %v7273
        %v7281 = vmul.f32 %v7278, %v7274
        %v7282 = vmul.f32 %v7278, %v7275
        %v7283 = vmul.f32 %v7278, %v7276
        %v7284 = vadd.f32 %v7235, %v7279
        %v7285 = vadd.f32 %v7236, %v7280
        %v7286 = vadd.f32 %v7237, %v7281
        %v7287 = vadd.f32 %v7238, %v7282
        %v7288 = vadd.f32 %v7239, %v7283
        %s7289 = sld [smem:[#allocation4 + $0x45]]
        %v7290 = vstv %s7289
        %v7291 = vmul.f32 %v7290, %v7272
        %v7292 = vmul.f32 %v7290, %v7273
        %v7293 = vmul.f32 %v7290, %v7274
        %v7294 = vmul.f32 %v7290, %v7275
        %v7295 = vmul.f32 %v7290, %v7276
        %v7296 = vadd.f32 %v7267, %v7291
        %v7297 = vadd.f32 %v7268, %v7292
        %v7298 = vadd.f32 %v7269, %v7293
        %v7299 = vadd.f32 %v7270, %v7294
        %v7300 = vadd.f32 %v7271, %v7295
        %s7301 = sld [smem:[#allocation4 + $0x22]]
        %v7302 = vstv %s7301
        %v7303 = vmul.f32 %v7302, %v7272
        %v7304 = vmul.f32 %v7302, %v7273
        %v7305 = vmul.f32 %v7302, %v7274
        %v7306 = vmul.f32 %v7302, %v7275
        %v7307 = vmul.f32 %v7302, %v7276
        %7313 = vrot.lane.b32.xlu0 %v7303, 127
        %v7314 = vpop.permute.xlu0 %7313
        %7315 = vrot.lane.b32.xlu0 %v7304, 127
        %v7316 = vpop.permute.xlu0 %7315
        %7317 = vrot.lane.b32.xlu0 %v7305, 127
        %v7318 = vpop.permute.xlu0 %7317
        %7319 = vrot.lane.b32.xlu0 %v7306, 127
        %v7320 = vpop.permute.xlu0 %7319
        %7321 = vrot.lane.b32.xlu0 %v7307, 127
        %v7322 = vpop.permute.xlu0 %7321
        %v7328 = vadd.f32 %v7284, %v7314
        %v7329 = vadd.f32 %v7285, %v7316
        %v7330 = vadd.f32 %v7286, %v7318
        %v7331 = vadd.f32 %v7287, %v7320
        %v7332 = vadd.f32 %v7288, %v7322
        %s7333 = sld [smem:[#allocation4 + $0x46]]
        %v7334 = vstv %s7333
        %v7335 = vmul.f32 %v7334, %v7272
        %v7336 = vmul.f32 %v7334, %v7273
        %v7337 = vmul.f32 %v7334, %v7274
        %v7338 = vmul.f32 %v7334, %v7275
        %v7339 = vmul.f32 %v7334, %v7276
        %7345 = vrot.lane.b32.xlu0 %v7335, 127
        %v7346 = vpop.permute.xlu0 %7345
        %7347 = vrot.lane.b32.xlu0 %v7336, 127
        %v7348 = vpop.permute.xlu0 %7347
        %7349 = vrot.lane.b32.xlu0 %v7337, 127
        %v7350 = vpop.permute.xlu0 %7349
        %7351 = vrot.lane.b32.xlu0 %v7338, 127
        %v7352 = vpop.permute.xlu0 %7351
        %7353 = vrot.lane.b32.xlu0 %v7339, 127
        %v7354 = vpop.permute.xlu0 %7353
        %v7360 = vadd.f32 %v7296, %v7346
        %v7361 = vadd.f32 %v7297, %v7348
        %v7362 = vadd.f32 %v7298, %v7350
        %v7363 = vadd.f32 %v7299, %v7352
        %v7364 = vadd.f32 %v7300, %v7354
        %s7365 = sld [smem:[#allocation4 + $0x23]]
        %v7366 = vstv %s7365
        %v7367 = vmul.f32 %v7366, %v7272
        %v7368 = vmul.f32 %v7366, %v7273
        %v7369 = vmul.f32 %v7366, %v7274
        %v7370 = vmul.f32 %v7366, %v7275
        %v7371 = vmul.f32 %v7366, %v7276
        %7377 = vrot.lane.b32.xlu0 %v7367, 126
        %v7378 = vpop.permute.xlu0 %7377
        %7379 = vrot.lane.b32.xlu0 %v7368, 126
        %v7380 = vpop.permute.xlu0 %7379
        %7381 = vrot.lane.b32.xlu0 %v7369, 126
        %v7382 = vpop.permute.xlu0 %7381
        %7383 = vrot.lane.b32.xlu0 %v7370, 126
        %v7384 = vpop.permute.xlu0 %7383
        %7385 = vrot.lane.b32.xlu0 %v7371, 126
        %v7386 = vpop.permute.xlu0 %7385
        %v7392 = vadd.f32 %v7328, %v7378
        %v7393 = vadd.f32 %v7329, %v7380
        %v7394 = vadd.f32 %v7330, %v7382
        %v7395 = vadd.f32 %v7331, %v7384
        %v7396 = vadd.f32 %v7332, %v7386
        %s7397 = sld [smem:[#allocation4 + $0x47]]
        %v7398 = vstv %s7397
        %v7399 = vmul.f32 %v7398, %v7272
        %v7400 = vmul.f32 %v7398, %v7273
        %v7401 = vmul.f32 %v7398, %v7274
        %v7402 = vmul.f32 %v7398, %v7275
        %v7403 = vmul.f32 %v7398, %v7276
        %7409 = vrot.lane.b32.xlu0 %v7399, 126
        %v7410 = vpop.permute.xlu0 %7409
        %7411 = vrot.lane.b32.xlu0 %v7400, 126
        %v7412 = vpop.permute.xlu0 %7411
        %7413 = vrot.lane.b32.xlu0 %v7401, 126
        %v7414 = vpop.permute.xlu0 %7413
        %7415 = vrot.lane.b32.xlu0 %v7402, 126
        %v7416 = vpop.permute.xlu0 %7415
        %7417 = vrot.lane.b32.xlu0 %v7403, 126
        %v7418 = vpop.permute.xlu0 %7417
        %v7424 = vadd.f32 %v7360, %v7410
        %v7425 = vadd.f32 %v7361, %v7412
        %v7426 = vadd.f32 %v7362, %v7414
        %v7427 = vadd.f32 %v7363, %v7416
        %v7428 = vadd.f32 %v7364, %v7418
        %v7429 = vmax.f32 %v7392, 0.0
        %v7430 = vmax.f32 %v7393, 0.0
        %v7431 = vmax.f32 %v7394, 0.0
        %v7432 = vmax.f32 %v7395, 0.0
        %v7433 = vmax.f32 %v7396, 0.0
        %v7434 = vmul.f32 %v7429, %v5536
        %v7435 = vmul.f32 %v7430, %v5537
        %v7436 = vmul.f32 %v7431, %v5538
        %v7437 = vmul.f32 %v7432, %v5539
        %v7438 = vmul.f32 %v7433, %v5540
        %vm7439 = vcmask 277504
        %7440 = vst.msk [vmem:[#allocation3] sm:$0xff] %vm7439, %v7434
        %7441 = vst.msk [vmem:[#allocation3 + $0x8] sm:$0xff] %vm7439, %v7435
        %7442 = vst.msk [vmem:[#allocation3 + $0x10] sm:$0xff] %vm7439, %v7436
        %7443 = vst.msk [vmem:[#allocation3 + $0x18] sm:$0xff] %vm7439, %v7437
        %vm7444 = vcmask 271360
        %7445 = vst.msk [vmem:[#allocation3 + $0x20] sm:$0x3] %vm7444, %v7438
        %v7446 = vmax.f32 %v7424, 0.0
        %v7447 = vmax.f32 %v7425, 0.0
        %v7448 = vmax.f32 %v7426, 0.0
        %v7449 = vmax.f32 %v7427, 0.0
        %v7450 = vmax.f32 %v7428, 0.0
        %v7451 = vmul.f32 %v7446, %v5536
        %v7452 = vmul.f32 %v7447, %v5537
        %v7453 = vmul.f32 %v7448, %v5538
        %v7454 = vmul.f32 %v7449, %v5539
        %v7455 = vmul.f32 %v7450, %v5540
        %s7456 = scalar_lea.vmem [#allocation3], 40
        %7457 = vst.msk [vmem:[%s7456] sm:$0xff] %vm7439, %v7451
        %7458 = vst.msk [vmem:[%s7456 + $0x8] sm:$0xff] %vm7439, %v7452
        %7459 = vst.msk [vmem:[%s7456 + $0x10] sm:$0xff] %vm7439, %v7453
        %7460 = vst.msk [vmem:[%s7456 + $0x18] sm:$0xff] %vm7439, %v7454
        %7461 = vst.msk [vmem:[%s7456 + $0x20] sm:$0x3] %vm7444, %v7455
        %s7462 = sld [smem:[#allocation10]]
        %v7463 = vstv %s7462
        %s7464 = sld [smem:[#allocation10 + $0x1]]
        %v7465 = vstv %s7464
        %s7466 = sld [smem:[#allocation10 + $0x2]]
        %v7467 = vstv %s7466
        %v7468 = vld [vmem:[#allocation3] sm:$0xff]
        %v7469 = vld [vmem:[#allocation3 + $0x8] sm:$0xff]
        %v7470 = vld [vmem:[#allocation3 + $0x10] sm:$0xff]
        %v7471 = vld [vmem:[#allocation3 + $0x18] sm:$0xff]
        %s7472 = sld [smem:[#allocation9]]
        %v7473 = vstv %s7472
        %v7474 = vmul.f32 %v7473, %v7468
        %v7475 = vmul.f32 %v7473, %v7469
        %v7476 = vmul.f32 %v7473, %v7470
        %v7477 = vmul.f32 %v7473, %v7471
        %v7478 = vadd.f32 %v7463, %v7474
        %v7479 = vadd.f32 %v7463, %v7475
        %v7480 = vadd.f32 %v7463, %v7476
        %v7481 = vadd.f32 %v7463, %v7477
        %s7482 = sld [smem:[#allocation9 + $0x12]]
        %v7483 = vstv %s7482
        %v7484 = vmul.f32 %v7483, %v7468
        %v7485 = vmul.f32 %v7483, %v7469
        %v7486 = vmul.f32 %v7483, %v7470
        %v7487 = vmul.f32 %v7483, %v7471
        %v7488 = vadd.f32 %v7465, %v7484
        %v7489 = vadd.f32 %v7465, %v7485
        %v7490 = vadd.f32 %v7465, %v7486
        %v7491 = vadd.f32 %v7465, %v7487
        %s7492 = sld [smem:[#allocation9 + $0x24]]
        %v7493 = vstv %s7492
        %v7494 = vmul.f32 %v7493, %v7468
        %v7495 = vmul.f32 %v7493, %v7469
        %v7496 = vmul.f32 %v7493, %v7470
        %v7497 = vmul.f32 %v7493, %v7471
        %v7498 = vadd.f32 %v7467, %v7494
        %v7499 = vadd.f32 %v7467, %v7495
        %v7500 = vadd.f32 %v7467, %v7496
        %v7501 = vadd.f32 %v7467, %v7497
        %s7502 = sld [smem:[#allocation9 + $0x1]]
        %v7503 = vstv %s7502
        %v7504 = vmul.f32 %v7503, %v7468
        %v7505 = vmul.f32 %v7503, %v7469
        %v7506 = vmul.f32 %v7503, %v7470
        %v7507 = vmul.f32 %v7503, %v7471
        %7512 = vrot.lane.b32.xlu0 %v7504, 127
        %v7513 = vpop.permute.xlu0 %7512
        %7514 = vrot.lane.b32.xlu0 %v7505, 127
        %v7515 = vpop.permute.xlu0 %7514
        %7516 = vrot.lane.b32.xlu0 %v7506, 127
        %v7517 = vpop.permute.xlu0 %7516
        %7518 = vrot.lane.b32.xlu0 %v7507, 127
        %v7519 = vpop.permute.xlu0 %7518
        %v7524 = vadd.f32 %v7478, %v7513
        %v7525 = vadd.f32 %v7479, %v7515
        %v7526 = vadd.f32 %v7480, %v7517
        %v7527 = vadd.f32 %v7481, %v7519
        %s7528 = sld [smem:[#allocation9 + $0x13]]
        %v7529 = vstv %s7528
        %v7530 = vmul.f32 %v7529, %v7468
        %v7531 = vmul.f32 %v7529, %v7469
        %v7532 = vmul.f32 %v7529, %v7470
        %v7533 = vmul.f32 %v7529, %v7471
        %7538 = vrot.lane.b32.xlu0 %v7530, 127
        %v7539 = vpop.permute.xlu0 %7538
        %7540 = vrot.lane.b32.xlu0 %v7531, 127
        %v7541 = vpop.permute.xlu0 %7540
        %7542 = vrot.lane.b32.xlu0 %v7532, 127
        %v7543 = vpop.permute.xlu0 %7542
        %7544 = vrot.lane.b32.xlu0 %v7533, 127
        %v7545 = vpop.permute.xlu0 %7544
        %v7550 = vadd.f32 %v7488, %v7539
        %v7551 = vadd.f32 %v7489, %v7541
        %v7552 = vadd.f32 %v7490, %v7543
        %v7553 = vadd.f32 %v7491, %v7545
        %s7554 = sld [smem:[#allocation9 + $0x25]]
        %v7555 = vstv %s7554
        %v7556 = vmul.f32 %v7555, %v7468
        %v7557 = vmul.f32 %v7555, %v7469
        %v7558 = vmul.f32 %v7555, %v7470
        %v7559 = vmul.f32 %v7555, %v7471
        %7564 = vrot.lane.b32.xlu0 %v7556, 127
        %v7565 = vpop.permute.xlu0 %7564
        %7566 = vrot.lane.b32.xlu0 %v7557, 127
        %v7567 = vpop.permute.xlu0 %7566
        %7568 = vrot.lane.b32.xlu0 %v7558, 127
        %v7569 = vpop.permute.xlu0 %7568
        %7570 = vrot.lane.b32.xlu0 %v7559, 127
        %v7571 = vpop.permute.xlu0 %7570
        %v7576 = vadd.f32 %v7498, %v7565
        %v7577 = vadd.f32 %v7499, %v7567
        %v7578 = vadd.f32 %v7500, %v7569
        %v7579 = vadd.f32 %v7501, %v7571
        %s7580 = sld [smem:[#allocation9 + $0x2]]
        %v7581 = vstv %s7580
        %v7582 = vmul.f32 %v7581, %v7468
        %v7583 = vmul.f32 %v7581, %v7469
        %v7584 = vmul.f32 %v7581, %v7470
        %v7585 = vmul.f32 %v7581, %v7471
        %7590 = vrot.lane.b32.xlu0 %v7582, 126
        %v7591 = vpop.permute.xlu0 %7590
        %7592 = vrot.lane.b32.xlu0 %v7583, 126
        %v7593 = vpop.permute.xlu0 %7592
        %7594 = vrot.lane.b32.xlu0 %v7584, 126
        %v7595 = vpop.permute.xlu0 %7594
        %7596 = vrot.lane.b32.xlu0 %v7585, 126
        %v7597 = vpop.permute.xlu0 %7596
        %v7602 = vadd.f32 %v7524, %v7591
        %v7603 = vadd.f32 %v7525, %v7593
        %v7604 = vadd.f32 %v7526, %v7595
        %v7605 = vadd.f32 %v7527, %v7597
        %s7606 = sld [smem:[#allocation9 + $0x14]]
        %v7607 = vstv %s7606
        %v7608 = vmul.f32 %v7607, %v7468
        %v7609 = vmul.f32 %v7607, %v7469
        %v7610 = vmul.f32 %v7607, %v7470
        %v7611 = vmul.f32 %v7607, %v7471
        %7616 = vrot.lane.b32.xlu0 %v7608, 126
        %v7617 = vpop.permute.xlu0 %7616
        %7618 = vrot.lane.b32.xlu0 %v7609, 126
        %v7619 = vpop.permute.xlu0 %7618
        %7620 = vrot.lane.b32.xlu0 %v7610, 126
        %v7621 = vpop.permute.xlu0 %7620
        %7622 = vrot.lane.b32.xlu0 %v7611, 126
        %v7623 = vpop.permute.xlu0 %7622
        %v7628 = vadd.f32 %v7550, %v7617
        %v7629 = vadd.f32 %v7551, %v7619
        %v7630 = vadd.f32 %v7552, %v7621
        %v7631 = vadd.f32 %v7553, %v7623
        %s7632 = sld [smem:[#allocation9 + $0x26]]
        %v7633 = vstv %s7632
        %v7634 = vmul.f32 %v7633, %v7468
        %v7635 = vmul.f32 %v7633, %v7469
        %v7636 = vmul.f32 %v7633, %v7470
        %v7637 = vmul.f32 %v7633, %v7471
        %7642 = vrot.lane.b32.xlu0 %v7634, 126
        %v7643 = vpop.permute.xlu0 %7642
        %7644 = vrot.lane.b32.xlu0 %v7635, 126
        %v7645 = vpop.permute.xlu0 %7644
        %7646 = vrot.lane.b32.xlu0 %v7636, 126
        %v7647 = vpop.permute.xlu0 %7646
        %7648 = vrot.lane.b32.xlu0 %v7637, 126
        %v7649 = vpop.permute.xlu0 %7648
        %v7654 = vadd.f32 %v7576, %v7643
        %v7655 = vadd.f32 %v7577, %v7645
        %v7656 = vadd.f32 %v7578, %v7647
        %v7657 = vadd.f32 %v7579, %v7649
        %v7658 = vld [vmem:[#allocation3 + $0x1] sm:$0xff]
        %v7659 = vld [vmem:[#allocation3 + $0x9] sm:$0xff]
        %v7660 = vld [vmem:[#allocation3 + $0x11] sm:$0xff]
        %v7661 = vld [vmem:[#allocation3 + $0x19] sm:$0xff]
        %s7662 = sld [smem:[#allocation9 + $0x3]]
        %v7663 = vstv %s7662
        %v7664 = vmul.f32 %v7663, %v7658
        %v7665 = vmul.f32 %v7663, %v7659
        %v7666 = vmul.f32 %v7663, %v7660
        %v7667 = vmul.f32 %v7663, %v7661
        %v7668 = vadd.f32 %v7602, %v7664
        %v7669 = vadd.f32 %v7603, %v7665
        %v7670 = vadd.f32 %v7604, %v7666
        %v7671 = vadd.f32 %v7605, %v7667
        %s7672 = sld [smem:[#allocation9 + $0x15]]
        %v7673 = vstv %s7672
        %v7674 = vmul.f32 %v7673, %v7658
        %v7675 = vmul.f32 %v7673, %v7659
        %v7676 = vmul.f32 %v7673, %v7660
        %v7677 = vmul.f32 %v7673, %v7661
        %v7678 = vadd.f32 %v7628, %v7674
        %v7679 = vadd.f32 %v7629, %v7675
        %v7680 = vadd.f32 %v7630, %v7676
        %v7681 = vadd.f32 %v7631, %v7677
        %s7682 = sld [smem:[#allocation9 + $0x27]]
        %v7683 = vstv %s7682
        %v7684 = vmul.f32 %v7683, %v7658
        %v7685 = vmul.f32 %v7683, %v7659
        %v7686 = vmul.f32 %v7683, %v7660
        %v7687 = vmul.f32 %v7683, %v7661
        %v7688 = vadd.f32 %v7654, %v7684
        %v7689 = vadd.f32 %v7655, %v7685
        %v7690 = vadd.f32 %v7656, %v7686
        %v7691 = vadd.f32 %v7657, %v7687
        %s7692 = sld [smem:[#allocation9 + $0x4]]
        %v7693 = vstv %s7692
        %v7694 = vmul.f32 %v7693, %v7658
        %v7695 = vmul.f32 %v7693, %v7659
        %v7696 = vmul.f32 %v7693, %v7660
        %v7697 = vmul.f32 %v7693, %v7661
        %7702 = vrot.lane.b32.xlu0 %v7694, 127
        %v7703 = vpop.permute.xlu0 %7702
        %7704 = vrot.lane.b32.xlu0 %v7695, 127
        %v7705 = vpop.permute.xlu0 %7704
        %7706 = vrot.lane.b32.xlu0 %v7696, 127
        %v7707 = vpop.permute.xlu0 %7706
        %7708 = vrot.lane.b32.xlu0 %v7697, 127
        %v7709 = vpop.permute.xlu0 %7708
        %v7714 = vadd.f32 %v7668, %v7703
        %v7715 = vadd.f32 %v7669, %v7705
        %v7716 = vadd.f32 %v7670, %v7707
        %v7717 = vadd.f32 %v7671, %v7709
        %s7718 = sld [smem:[#allocation9 + $0x16]]
        %v7719 = vstv %s7718
        %v7720 = vmul.f32 %v7719, %v7658
        %v7721 = vmul.f32 %v7719, %v7659
        %v7722 = vmul.f32 %v7719, %v7660
        %v7723 = vmul.f32 %v7719, %v7661
        %7728 = vrot.lane.b32.xlu0 %v7720, 127
        %v7729 = vpop.permute.xlu0 %7728
        %7730 = vrot.lane.b32.xlu0 %v7721, 127
        %v7731 = vpop.permute.xlu0 %7730
        %7732 = vrot.lane.b32.xlu0 %v7722, 127
        %v7733 = vpop.permute.xlu0 %7732
        %7734 = vrot.lane.b32.xlu0 %v7723, 127
        %v7735 = vpop.permute.xlu0 %7734
        %v7740 = vadd.f32 %v7678, %v7729
        %v7741 = vadd.f32 %v7679, %v7731
        %v7742 = vadd.f32 %v7680, %v7733
        %v7743 = vadd.f32 %v7681, %v7735
        %s7744 = sld [smem:[#allocation9 + $0x28]]
        %v7745 = vstv %s7744
        %v7746 = vmul.f32 %v7745, %v7658
        %v7747 = vmul.f32 %v7745, %v7659
        %v7748 = vmul.f32 %v7745, %v7660
        %v7749 = vmul.f32 %v7745, %v7661
        %7754 = vrot.lane.b32.xlu0 %v7746, 127
        %v7755 = vpop.permute.xlu0 %7754
        %7756 = vrot.lane.b32.xlu0 %v7747, 127
        %v7757 = vpop.permute.xlu0 %7756
        %7758 = vrot.lane.b32.xlu0 %v7748, 127
        %v7759 = vpop.permute.xlu0 %7758
        %7760 = vrot.lane.b32.xlu0 %v7749, 127
        %v7761 = vpop.permute.xlu0 %7760
        %v7766 = vadd.f32 %v7688, %v7755
        %v7767 = vadd.f32 %v7689, %v7757
        %v7768 = vadd.f32 %v7690, %v7759
        %v7769 = vadd.f32 %v7691, %v7761
        %s7770 = sld [smem:[#allocation9 + $0x5]]
        %v7771 = vstv %s7770
        %v7772 = vmul.f32 %v7771, %v7658
        %v7773 = vmul.f32 %v7771, %v7659
        %v7774 = vmul.f32 %v7771, %v7660
        %v7775 = vmul.f32 %v7771, %v7661
        %7780 = vrot.lane.b32.xlu0 %v7772, 126
        %v7781 = vpop.permute.xlu0 %7780
        %7782 = vrot.lane.b32.xlu0 %v7773, 126
        %v7783 = vpop.permute.xlu0 %7782
        %7784 = vrot.lane.b32.xlu0 %v7774, 126
        %v7785 = vpop.permute.xlu0 %7784
        %7786 = vrot.lane.b32.xlu0 %v7775, 126
        %v7787 = vpop.permute.xlu0 %7786
        %v7792 = vadd.f32 %v7714, %v7781
        %v7793 = vadd.f32 %v7715, %v7783
        %v7794 = vadd.f32 %v7716, %v7785
        %v7795 = vadd.f32 %v7717, %v7787
        %s7796 = sld [smem:[#allocation9 + $0x17]]
        %v7797 = vstv %s7796
        %v7798 = vmul.f32 %v7797, %v7658
        %v7799 = vmul.f32 %v7797, %v7659
        %v7800 = vmul.f32 %v7797, %v7660
        %v7801 = vmul.f32 %v7797, %v7661
        %7806 = vrot.lane.b32.xlu0 %v7798, 126
        %v7807 = vpop.permute.xlu0 %7806
        %7808 = vrot.lane.b32.xlu0 %v7799, 126
        %v7809 = vpop.permute.xlu0 %7808
        %7810 = vrot.lane.b32.xlu0 %v7800, 126
        %v7811 = vpop.permute.xlu0 %7810
        %7812 = vrot.lane.b32.xlu0 %v7801, 126
        %v7813 = vpop.permute.xlu0 %7812
        %v7818 = vadd.f32 %v7740, %v7807
        %v7819 = vadd.f32 %v7741, %v7809
        %v7820 = vadd.f32 %v7742, %v7811
        %v7821 = vadd.f32 %v7743, %v7813
        %s7822 = sld [smem:[#allocation9 + $0x29]]
        %v7823 = vstv %s7822
        %v7824 = vmul.f32 %v7823, %v7658
        %v7825 = vmul.f32 %v7823, %v7659
        %v7826 = vmul.f32 %v7823, %v7660
        %v7827 = vmul.f32 %v7823, %v7661
        %7832 = vrot.lane.b32.xlu0 %v7824, 126
        %v7833 = vpop.permute.xlu0 %7832
        %7834 = vrot.lane.b32.xlu0 %v7825, 126
        %v7835 = vpop.permute.xlu0 %7834
        %7836 = vrot.lane.b32.xlu0 %v7826, 126
        %v7837 = vpop.permute.xlu0 %7836
        %7838 = vrot.lane.b32.xlu0 %v7827, 126
        %v7839 = vpop.permute.xlu0 %7838
        %v7844 = vadd.f32 %v7766, %v7833
        %v7845 = vadd.f32 %v7767, %v7835
        %v7846 = vadd.f32 %v7768, %v7837
        %v7847 = vadd.f32 %v7769, %v7839
        %v7848 = vld [vmem:[#allocation3 + $0x2] sm:$0xff]
        %v7849 = vld [vmem:[#allocation3 + $0xa] sm:$0xff]
        %v7850 = vld [vmem:[#allocation3 + $0x12] sm:$0xff]
        %v7851 = vld [vmem:[#allocation3 + $0x1a] sm:$0xff]
        %s7852 = sld [smem:[#allocation9 + $0x6]]
        %v7853 = vstv %s7852
        %v7854 = vmul.f32 %v7853, %v7848
        %v7855 = vmul.f32 %v7853, %v7849
        %v7856 = vmul.f32 %v7853, %v7850
        %v7857 = vmul.f32 %v7853, %v7851
        %v7858 = vadd.f32 %v7792, %v7854
        %v7859 = vadd.f32 %v7793, %v7855
        %v7860 = vadd.f32 %v7794, %v7856
        %v7861 = vadd.f32 %v7795, %v7857
        %s7862 = sld [smem:[#allocation9 + $0x18]]
        %v7863 = vstv %s7862
        %v7864 = vmul.f32 %v7863, %v7848
        %v7865 = vmul.f32 %v7863, %v7849
        %v7866 = vmul.f32 %v7863, %v7850
        %v7867 = vmul.f32 %v7863, %v7851
        %v7868 = vadd.f32 %v7818, %v7864
        %v7869 = vadd.f32 %v7819, %v7865
        %v7870 = vadd.f32 %v7820, %v7866
        %v7871 = vadd.f32 %v7821, %v7867
        %s7872 = sld [smem:[#allocation9 + $0x2a]]
        %v7873 = vstv %s7872
        %v7874 = vmul.f32 %v7873, %v7848
        %v7875 = vmul.f32 %v7873, %v7849
        %v7876 = vmul.f32 %v7873, %v7850
        %v7877 = vmul.f32 %v7873, %v7851
        %v7878 = vadd.f32 %v7844, %v7874
        %v7879 = vadd.f32 %v7845, %v7875
        %v7880 = vadd.f32 %v7846, %v7876
        %v7881 = vadd.f32 %v7847, %v7877
        %s7882 = sld [smem:[#allocation9 + $0x7]]
        %v7883 = vstv %s7882
        %v7884 = vmul.f32 %v7883, %v7848
        %v7885 = vmul.f32 %v7883, %v7849
        %v7886 = vmul.f32 %v7883, %v7850
        %v7887 = vmul.f32 %v7883, %v7851
        %7892 = vrot.lane.b32.xlu0 %v7884, 127
        %v7893 = vpop.permute.xlu0 %7892
        %7894 = vrot.lane.b32.xlu0 %v7885, 127
        %v7895 = vpop.permute.xlu0 %7894
        %7896 = vrot.lane.b32.xlu0 %v7886, 127
        %v7897 = vpop.permute.xlu0 %7896
        %7898 = vrot.lane.b32.xlu0 %v7887, 127
        %v7899 = vpop.permute.xlu0 %7898
        %v7904 = vadd.f32 %v7858, %v7893
        %v7905 = vadd.f32 %v7859, %v7895
        %v7906 = vadd.f32 %v7860, %v7897
        %v7907 = vadd.f32 %v7861, %v7899
        %s7908 = sld [smem:[#allocation9 + $0x19]]
        %v7909 = vstv %s7908
        %v7910 = vmul.f32 %v7909, %v7848
        %v7911 = vmul.f32 %v7909, %v7849
        %v7912 = vmul.f32 %v7909, %v7850
        %v7913 = vmul.f32 %v7909, %v7851
        %7918 = vrot.lane.b32.xlu0 %v7910, 127
        %v7919 = vpop.permute.xlu0 %7918
        %7920 = vrot.lane.b32.xlu0 %v7911, 127
        %v7921 = vpop.permute.xlu0 %7920
        %7922 = vrot.lane.b32.xlu0 %v7912, 127
        %v7923 = vpop.permute.xlu0 %7922
        %7924 = vrot.lane.b32.xlu0 %v7913, 127
        %v7925 = vpop.permute.xlu0 %7924
        %v7930 = vadd.f32 %v7868, %v7919
        %v7931 = vadd.f32 %v7869, %v7921
        %v7932 = vadd.f32 %v7870, %v7923
        %v7933 = vadd.f32 %v7871, %v7925
        %s7934 = sld [smem:[#allocation9 + $0x2b]]
        %v7935 = vstv %s7934
        %v7936 = vmul.f32 %v7935, %v7848
        %v7937 = vmul.f32 %v7935, %v7849
        %v7938 = vmul.f32 %v7935, %v7850
        %v7939 = vmul.f32 %v7935, %v7851
        %7944 = vrot.lane.b32.xlu0 %v7936, 127
        %v7945 = vpop.permute.xlu0 %7944
        %7946 = vrot.lane.b32.xlu0 %v7937, 127
        %v7947 = vpop.permute.xlu0 %7946
        %7948 = vrot.lane.b32.xlu0 %v7938, 127
        %v7949 = vpop.permute.xlu0 %7948
        %7950 = vrot.lane.b32.xlu0 %v7939, 127
        %v7951 = vpop.permute.xlu0 %7950
        %v7956 = vadd.f32 %v7878, %v7945
        %v7957 = vadd.f32 %v7879, %v7947
        %v7958 = vadd.f32 %v7880, %v7949
        %v7959 = vadd.f32 %v7881, %v7951
        %s7960 = sld [smem:[#allocation9 + $0x8]]
        %v7961 = vstv %s7960
        %v7962 = vmul.f32 %v7961, %v7848
        %v7963 = vmul.f32 %v7961, %v7849
        %v7964 = vmul.f32 %v7961, %v7850
        %v7965 = vmul.f32 %v7961, %v7851
        %7970 = vrot.lane.b32.xlu0 %v7962, 126
        %v7971 = vpop.permute.xlu0 %7970
        %7972 = vrot.lane.b32.xlu0 %v7963, 126
        %v7973 = vpop.permute.xlu0 %7972
        %7974 = vrot.lane.b32.xlu0 %v7964, 126
        %v7975 = vpop.permute.xlu0 %7974
        %7976 = vrot.lane.b32.xlu0 %v7965, 126
        %v7977 = vpop.permute.xlu0 %7976
        %v7982 = vadd.f32 %v7904, %v7971
        %v7983 = vadd.f32 %v7905, %v7973
        %v7984 = vadd.f32 %v7906, %v7975
        %v7985 = vadd.f32 %v7907, %v7977
        %s7986 = sld [smem:[#allocation9 + $0x1a]]
        %v7987 = vstv %s7986
        %v7988 = vmul.f32 %v7987, %v7848
        %v7989 = vmul.f32 %v7987, %v7849
        %v7990 = vmul.f32 %v7987, %v7850
        %v7991 = vmul.f32 %v7987, %v7851
        %7996 = vrot.lane.b32.xlu0 %v7988, 126
        %v7997 = vpop.permute.xlu0 %7996
        %7998 = vrot.lane.b32.xlu0 %v7989, 126
        %v7999 = vpop.permute.xlu0 %7998
        %8000 = vrot.lane.b32.xlu0 %v7990, 126
        %v8001 = vpop.permute.xlu0 %8000
        %8002 = vrot.lane.b32.xlu0 %v7991, 126
        %v8003 = vpop.permute.xlu0 %8002
        %v8008 = vadd.f32 %v7930, %v7997
        %v8009 = vadd.f32 %v7931, %v7999
        %v8010 = vadd.f32 %v7932, %v8001
        %v8011 = vadd.f32 %v7933, %v8003
        %s8012 = sld [smem:[#allocation9 + $0x2c]]
        %v8013 = vstv %s8012
        %v8014 = vmul.f32 %v8013, %v7848
        %v8015 = vmul.f32 %v8013, %v7849
        %v8016 = vmul.f32 %v8013, %v7850
        %v8017 = vmul.f32 %v8013, %v7851
        %8022 = vrot.lane.b32.xlu0 %v8014, 126
        %v8023 = vpop.permute.xlu0 %8022
        %8024 = vrot.lane.b32.xlu0 %v8015, 126
        %v8025 = vpop.permute.xlu0 %8024
        %8026 = vrot.lane.b32.xlu0 %v8016, 126
        %v8027 = vpop.permute.xlu0 %8026
        %8028 = vrot.lane.b32.xlu0 %v8017, 126
        %v8029 = vpop.permute.xlu0 %8028
        %v8034 = vadd.f32 %v7956, %v8023
        %v8035 = vadd.f32 %v7957, %v8025
        %v8036 = vadd.f32 %v7958, %v8027
        %v8037 = vadd.f32 %v7959, %v8029
        %v8038 = vld [vmem:[%s7456] sm:$0xff]
        %v8039 = vld [vmem:[%s7456 + $0x8] sm:$0xff]
        %v8040 = vld [vmem:[%s7456 + $0x10] sm:$0xff]
        %v8041 = vld [vmem:[%s7456 + $0x18] sm:$0xff]
        %s8042 = sld [smem:[#allocation9 + $0x9]]
        %v8043 = vstv %s8042
        %v8044 = vmul.f32 %v8043, %v8038
        %v8045 = vmul.f32 %v8043, %v8039
        %v8046 = vmul.f32 %v8043, %v8040
        %v8047 = vmul.f32 %v8043, %v8041
        %v8048 = vadd.f32 %v7982, %v8044
        %v8049 = vadd.f32 %v7983, %v8045
        %v8050 = vadd.f32 %v7984, %v8046
        %v8051 = vadd.f32 %v7985, %v8047
        %s8052 = sld [smem:[#allocation9 + $0x1b]]
        %v8053 = vstv %s8052
        %v8054 = vmul.f32 %v8053, %v8038
        %v8055 = vmul.f32 %v8053, %v8039
        %v8056 = vmul.f32 %v8053, %v8040
        %v8057 = vmul.f32 %v8053, %v8041
        %v8058 = vadd.f32 %v8008, %v8054
        %v8059 = vadd.f32 %v8009, %v8055
        %v8060 = vadd.f32 %v8010, %v8056
        %v8061 = vadd.f32 %v8011, %v8057
        %s8062 = sld [smem:[#allocation9 + $0x2d]]
        %v8063 = vstv %s8062
        %v8064 = vmul.f32 %v8063, %v8038
        %v8065 = vmul.f32 %v8063, %v8039
        %v8066 = vmul.f32 %v8063, %v8040
        %v8067 = vmul.f32 %v8063, %v8041
        %v8068 = vadd.f32 %v8034, %v8064
        %v8069 = vadd.f32 %v8035, %v8065
        %v8070 = vadd.f32 %v8036, %v8066
        %v8071 = vadd.f32 %v8037, %v8067
        %s8072 = sld [smem:[#allocation9 + $0xa]]
        %v8073 = vstv %s8072
        %v8074 = vmul.f32 %v8073, %v8038
        %v8075 = vmul.f32 %v8073, %v8039
        %v8076 = vmul.f32 %v8073, %v8040
        %v8077 = vmul.f32 %v8073, %v8041
        %8082 = vrot.lane.b32.xlu0 %v8074, 127
        %v8083 = vpop.permute.xlu0 %8082
        %8084 = vrot.lane.b32.xlu0 %v8075, 127
        %v8085 = vpop.permute.xlu0 %8084
        %8086 = vrot.lane.b32.xlu0 %v8076, 127
        %v8087 = vpop.permute.xlu0 %8086
        %8088 = vrot.lane.b32.xlu0 %v8077, 127
        %v8089 = vpop.permute.xlu0 %8088
        %v8094 = vadd.f32 %v8048, %v8083
        %v8095 = vadd.f32 %v8049, %v8085
        %v8096 = vadd.f32 %v8050, %v8087
        %v8097 = vadd.f32 %v8051, %v8089
        %s8098 = sld [smem:[#allocation9 + $0x1c]]
        %v8099 = vstv %s8098
        %v8100 = vmul.f32 %v8099, %v8038
        %v8101 = vmul.f32 %v8099, %v8039
        %v8102 = vmul.f32 %v8099, %v8040
        %v8103 = vmul.f32 %v8099, %v8041
        %8108 = vrot.lane.b32.xlu0 %v8100, 127
        %v8109 = vpop.permute.xlu0 %8108
        %8110 = vrot.lane.b32.xlu0 %v8101, 127
        %v8111 = vpop.permute.xlu0 %8110
        %8112 = vrot.lane.b32.xlu0 %v8102, 127
        %v8113 = vpop.permute.xlu0 %8112
        %8114 = vrot.lane.b32.xlu0 %v8103, 127
        %v8115 = vpop.permute.xlu0 %8114
        %v8120 = vadd.f32 %v8058, %v8109
        %v8121 = vadd.f32 %v8059, %v8111
        %v8122 = vadd.f32 %v8060, %v8113
        %v8123 = vadd.f32 %v8061, %v8115
        %s8124 = sld [smem:[#allocation9 + $0x2e]]
        %v8125 = vstv %s8124
        %v8126 = vmul.f32 %v8125, %v8038
        %v8127 = vmul.f32 %v8125, %v8039
        %v8128 = vmul.f32 %v8125, %v8040
        %v8129 = vmul.f32 %v8125, %v8041
        %8134 = vrot.lane.b32.xlu0 %v8126, 127
        %v8135 = vpop.permute.xlu0 %8134
        %8136 = vrot.lane.b32.xlu0 %v8127, 127
        %v8137 = vpop.permute.xlu0 %8136
        %8138 = vrot.lane.b32.xlu0 %v8128, 127
        %v8139 = vpop.permute.xlu0 %8138
        %8140 = vrot.lane.b32.xlu0 %v8129, 127
        %v8141 = vpop.permute.xlu0 %8140
        %v8146 = vadd.f32 %v8068, %v8135
        %v8147 = vadd.f32 %v8069, %v8137
        %v8148 = vadd.f32 %v8070, %v8139
        %v8149 = vadd.f32 %v8071, %v8141
        %s8150 = sld [smem:[#allocation9 + $0xb]]
        %v8151 = vstv %s8150
        %v8152 = vmul.f32 %v8151, %v8038
        %v8153 = vmul.f32 %v8151, %v8039
        %v8154 = vmul.f32 %v8151, %v8040
        %v8155 = vmul.f32 %v8151, %v8041
        %8160 = vrot.lane.b32.xlu0 %v8152, 126
        %v8161 = vpop.permute.xlu0 %8160
        %8162 = vrot.lane.b32.xlu0 %v8153, 126
        %v8163 = vpop.permute.xlu0 %8162
        %8164 = vrot.lane.b32.xlu0 %v8154, 126
        %v8165 = vpop.permute.xlu0 %8164
        %8166 = vrot.lane.b32.xlu0 %v8155, 126
        %v8167 = vpop.permute.xlu0 %8166
        %v8172 = vadd.f32 %v8094, %v8161
        %v8173 = vadd.f32 %v8095, %v8163
        %v8174 = vadd.f32 %v8096, %v8165
        %v8175 = vadd.f32 %v8097, %v8167
        %s8176 = sld [smem:[#allocation9 + $0x1d]]
        %v8177 = vstv %s8176
        %v8178 = vmul.f32 %v8177, %v8038
        %v8179 = vmul.f32 %v8177, %v8039
        %v8180 = vmul.f32 %v8177, %v8040
        %v8181 = vmul.f32 %v8177, %v8041
        %8186 = vrot.lane.b32.xlu0 %v8178, 126
        %v8187 = vpop.permute.xlu0 %8186
        %8188 = vrot.lane.b32.xlu0 %v8179, 126
        %v8189 = vpop.permute.xlu0 %8188
        %8190 = vrot.lane.b32.xlu0 %v8180, 126
        %v8191 = vpop.permute.xlu0 %8190
        %8192 = vrot.lane.b32.xlu0 %v8181, 126
        %v8193 = vpop.permute.xlu0 %8192
        %v8198 = vadd.f32 %v8120, %v8187
        %v8199 = vadd.f32 %v8121, %v8189
        %v8200 = vadd.f32 %v8122, %v8191
        %v8201 = vadd.f32 %v8123, %v8193
        %s8202 = sld [smem:[#allocation9 + $0x2f]]
        %v8203 = vstv %s8202
        %v8204 = vmul.f32 %v8203, %v8038
        %v8205 = vmul.f32 %v8203, %v8039
        %v8206 = vmul.f32 %v8203, %v8040
        %v8207 = vmul.f32 %v8203, %v8041
        %8212 = vrot.lane.b32.xlu0 %v8204, 126
        %v8213 = vpop.permute.xlu0 %8212
        %8214 = vrot.lane.b32.xlu0 %v8205, 126
        %v8215 = vpop.permute.xlu0 %8214
        %8216 = vrot.lane.b32.xlu0 %v8206, 126
        %v8217 = vpop.permute.xlu0 %8216
        %8218 = vrot.lane.b32.xlu0 %v8207, 126
        %v8219 = vpop.permute.xlu0 %8218
        %v8224 = vadd.f32 %v8146, %v8213
        %v8225 = vadd.f32 %v8147, %v8215
        %v8226 = vadd.f32 %v8148, %v8217
        %v8227 = vadd.f32 %v8149, %v8219
        %v8228 = vld [vmem:[%s7456 + $0x1] sm:$0xff]
        %v8229 = vld [vmem:[%s7456 + $0x9] sm:$0xff]
        %v8230 = vld [vmem:[%s7456 + $0x11] sm:$0xff]
        %v8231 = vld [vmem:[%s7456 + $0x19] sm:$0xff]
        %s8232 = sld [smem:[#allocation9 + $0xc]]
        %v8233 = vstv %s8232
        %v8234 = vmul.f32 %v8233, %v8228
        %v8235 = vmul.f32 %v8233, %v8229
        %v8236 = vmul.f32 %v8233, %v8230
        %v8237 = vmul.f32 %v8233, %v8231
        %v8238 = vadd.f32 %v8172, %v8234
        %v8239 = vadd.f32 %v8173, %v8235
        %v8240 = vadd.f32 %v8174, %v8236
        %v8241 = vadd.f32 %v8175, %v8237
        %s8242 = sld [smem:[#allocation9 + $0x1e]]
        %v8243 = vstv %s8242
        %v8244 = vmul.f32 %v8243, %v8228
        %v8245 = vmul.f32 %v8243, %v8229
        %v8246 = vmul.f32 %v8243, %v8230
        %v8247 = vmul.f32 %v8243, %v8231
        %v8248 = vadd.f32 %v8198, %v8244
        %v8249 = vadd.f32 %v8199, %v8245
        %v8250 = vadd.f32 %v8200, %v8246
        %v8251 = vadd.f32 %v8201, %v8247
        %s8252 = sld [smem:[#allocation9 + $0x30]]
        %v8253 = vstv %s8252
        %v8254 = vmul.f32 %v8253, %v8228
        %v8255 = vmul.f32 %v8253, %v8229
        %v8256 = vmul.f32 %v8253, %v8230
        %v8257 = vmul.f32 %v8253, %v8231
        %v8258 = vadd.f32 %v8224, %v8254
        %v8259 = vadd.f32 %v8225, %v8255
        %v8260 = vadd.f32 %v8226, %v8256
        %v8261 = vadd.f32 %v8227, %v8257
        %s8262 = sld [smem:[#allocation9 + $0xd]]
        %v8263 = vstv %s8262
        %v8264 = vmul.f32 %v8263, %v8228
        %v8265 = vmul.f32 %v8263, %v8229
        %v8266 = vmul.f32 %v8263, %v8230
        %v8267 = vmul.f32 %v8263, %v8231
        %8272 = vrot.lane.b32.xlu0 %v8264, 127
        %v8273 = vpop.permute.xlu0 %8272
        %8274 = vrot.lane.b32.xlu0 %v8265, 127
        %v8275 = vpop.permute.xlu0 %8274
        %8276 = vrot.lane.b32.xlu0 %v8266, 127
        %v8277 = vpop.permute.xlu0 %8276
        %8278 = vrot.lane.b32.xlu0 %v8267, 127
        %v8279 = vpop.permute.xlu0 %8278
        %v8284 = vadd.f32 %v8238, %v8273
        %v8285 = vadd.f32 %v8239, %v8275
        %v8286 = vadd.f32 %v8240, %v8277
        %v8287 = vadd.f32 %v8241, %v8279
        %s8288 = sld [smem:[#allocation9 + $0x1f]]
        %v8289 = vstv %s8288
        %v8290 = vmul.f32 %v8289, %v8228
        %v8291 = vmul.f32 %v8289, %v8229
        %v8292 = vmul.f32 %v8289, %v8230
        %v8293 = vmul.f32 %v8289, %v8231
        %8298 = vrot.lane.b32.xlu0 %v8290, 127
        %v8299 = vpop.permute.xlu0 %8298
        %8300 = vrot.lane.b32.xlu0 %v8291, 127
        %v8301 = vpop.permute.xlu0 %8300
        %8302 = vrot.lane.b32.xlu0 %v8292, 127
        %v8303 = vpop.permute.xlu0 %8302
        %8304 = vrot.lane.b32.xlu0 %v8293, 127
        %v8305 = vpop.permute.xlu0 %8304
        %v8310 = vadd.f32 %v8248, %v8299
        %v8311 = vadd.f32 %v8249, %v8301
        %v8312 = vadd.f32 %v8250, %v8303
        %v8313 = vadd.f32 %v8251, %v8305
        %s8314 = sld [smem:[#allocation9 + $0x31]]
        %v8315 = vstv %s8314
        %v8316 = vmul.f32 %v8315, %v8228
        %v8317 = vmul.f32 %v8315, %v8229
        %v8318 = vmul.f32 %v8315, %v8230
        %v8319 = vmul.f32 %v8315, %v8231
        %8324 = vrot.lane.b32.xlu0 %v8316, 127
        %v8325 = vpop.permute.xlu0 %8324
        %8326 = vrot.lane.b32.xlu0 %v8317, 127
        %v8327 = vpop.permute.xlu0 %8326
        %8328 = vrot.lane.b32.xlu0 %v8318, 127
        %v8329 = vpop.permute.xlu0 %8328
        %8330 = vrot.lane.b32.xlu0 %v8319, 127
        %v8331 = vpop.permute.xlu0 %8330
        %v8336 = vadd.f32 %v8258, %v8325
        %v8337 = vadd.f32 %v8259, %v8327
        %v8338 = vadd.f32 %v8260, %v8329
        %v8339 = vadd.f32 %v8261, %v8331
        %s8340 = sld [smem:[#allocation9 + $0xe]]
        %v8341 = vstv %s8340
        %v8342 = vmul.f32 %v8341, %v8228
        %v8343 = vmul.f32 %v8341, %v8229
        %v8344 = vmul.f32 %v8341, %v8230
        %v8345 = vmul.f32 %v8341, %v8231
        %8350 = vrot.lane.b32.xlu0 %v8342, 126
        %v8351 = vpop.permute.xlu0 %8350
        %8352 = vrot.lane.b32.xlu0 %v8343, 126
        %v8353 = vpop.permute.xlu0 %8352
        %8354 = vrot.lane.b32.xlu0 %v8344, 126
        %v8355 = vpop.permute.xlu0 %8354
        %8356 = vrot.lane.b32.xlu0 %v8345, 126
        %v8357 = vpop.permute.xlu0 %8356
        %v8362 = vadd.f32 %v8284, %v8351
        %v8363 = vadd.f32 %v8285, %v8353
        %v8364 = vadd.f32 %v8286, %v8355
        %v8365 = vadd.f32 %v8287, %v8357
        %s8366 = sld [smem:[#allocation9 + $0x20]]
        %v8367 = vstv %s8366
        %v8368 = vmul.f32 %v8367, %v8228
        %v8369 = vmul.f32 %v8367, %v8229
        %v8370 = vmul.f32 %v8367, %v8230
        %v8371 = vmul.f32 %v8367, %v8231
        %8376 = vrot.lane.b32.xlu0 %v8368, 126
        %v8377 = vpop.permute.xlu0 %8376
        %8378 = vrot.lane.b32.xlu0 %v8369, 126
        %v8379 = vpop.permute.xlu0 %8378
        %8380 = vrot.lane.b32.xlu0 %v8370, 126
        %v8381 = vpop.permute.xlu0 %8380
        %8382 = vrot.lane.b32.xlu0 %v8371, 126
        %v8383 = vpop.permute.xlu0 %8382
        %v8388 = vadd.f32 %v8310, %v8377
        %v8389 = vadd.f32 %v8311, %v8379
        %v8390 = vadd.f32 %v8312, %v8381
        %v8391 = vadd.f32 %v8313, %v8383
        %s8392 = sld [smem:[#allocation9 + $0x32]]
        %v8393 = vstv %s8392
        %v8394 = vmul.f32 %v8393, %v8228
        %v8395 = vmul.f32 %v8393, %v8229
        %v8396 = vmul.f32 %v8393, %v8230
        %v8397 = vmul.f32 %v8393, %v8231
        %8402 = vrot.lane.b32.xlu0 %v8394, 126
        %v8403 = vpop.permute.xlu0 %8402
        %8404 = vrot.lane.b32.xlu0 %v8395, 126
        %v8405 = vpop.permute.xlu0 %8404
        %8406 = vrot.lane.b32.xlu0 %v8396, 126
        %v8407 = vpop.permute.xlu0 %8406
        %8408 = vrot.lane.b32.xlu0 %v8397, 126
        %v8409 = vpop.permute.xlu0 %8408
        %v8414 = vadd.f32 %v8336, %v8403
        %v8415 = vadd.f32 %v8337, %v8405
        %v8416 = vadd.f32 %v8338, %v8407
        %v8417 = vadd.f32 %v8339, %v8409
        %v8418 = vld [vmem:[%s7456 + $0x2] sm:$0xff]
        %v8419 = vld [vmem:[%s7456 + $0xa] sm:$0xff]
        %v8420 = vld [vmem:[%s7456 + $0x12] sm:$0xff]
        %v8421 = vld [vmem:[%s7456 + $0x1a] sm:$0xff]
        %s8422 = sld [smem:[#allocation9 + $0xf]]
        %v8423 = vstv %s8422
        %v8424 = vmul.f32 %v8423, %v8418
        %v8425 = vmul.f32 %v8423, %v8419
        %v8426 = vmul.f32 %v8423, %v8420
        %v8427 = vmul.f32 %v8423, %v8421
        %v8428 = vadd.f32 %v8362, %v8424
        %v8429 = vadd.f32 %v8363, %v8425
        %v8430 = vadd.f32 %v8364, %v8426
        %v8431 = vadd.f32 %v8365, %v8427
        %s8432 = sld [smem:[#allocation9 + $0x21]]
        %v8433 = vstv %s8432
        %v8434 = vmul.f32 %v8433, %v8418
        %v8435 = vmul.f32 %v8433, %v8419
        %v8436 = vmul.f32 %v8433, %v8420
        %v8437 = vmul.f32 %v8433, %v8421
        %v8438 = vadd.f32 %v8388, %v8434
        %v8439 = vadd.f32 %v8389, %v8435
        %v8440 = vadd.f32 %v8390, %v8436
        %v8441 = vadd.f32 %v8391, %v8437
        %s8442 = sld [smem:[#allocation9 + $0x33]]
        %v8443 = vstv %s8442
        %v8444 = vmul.f32 %v8443, %v8418
        %v8445 = vmul.f32 %v8443, %v8419
        %v8446 = vmul.f32 %v8443, %v8420
        %v8447 = vmul.f32 %v8443, %v8421
        %v8448 = vadd.f32 %v8414, %v8444
        %v8449 = vadd.f32 %v8415, %v8445
        %v8450 = vadd.f32 %v8416, %v8446
        %v8451 = vadd.f32 %v8417, %v8447
        %s8452 = sld [smem:[#allocation9 + $0x10]]
        %v8453 = vstv %s8452
        %v8454 = vmul.f32 %v8453, %v8418
        %v8455 = vmul.f32 %v8453, %v8419
        %v8456 = vmul.f32 %v8453, %v8420
        %v8457 = vmul.f32 %v8453, %v8421
        %8462 = vrot.lane.b32.xlu0 %v8454, 127
        %v8463 = vpop.permute.xlu0 %8462
        %8464 = vrot.lane.b32.xlu0 %v8455, 127
        %v8465 = vpop.permute.xlu0 %8464
        %8466 = vrot.lane.b32.xlu0 %v8456, 127
        %v8467 = vpop.permute.xlu0 %8466
        %8468 = vrot.lane.b32.xlu0 %v8457, 127
        %v8469 = vpop.permute.xlu0 %8468
        %v8474 = vadd.f32 %v8428, %v8463
        %v8475 = vadd.f32 %v8429, %v8465
        %v8476 = vadd.f32 %v8430, %v8467
        %v8477 = vadd.f32 %v8431, %v8469
        %s8478 = sld [smem:[#allocation9 + $0x22]]
        %v8479 = vstv %s8478
        %v8480 = vmul.f32 %v8479, %v8418
        %v8481 = vmul.f32 %v8479, %v8419
        %v8482 = vmul.f32 %v8479, %v8420
        %v8483 = vmul.f32 %v8479, %v8421
        %8488 = vrot.lane.b32.xlu0 %v8480, 127
        %v8489 = vpop.permute.xlu0 %8488
        %8490 = vrot.lane.b32.xlu0 %v8481, 127
        %v8491 = vpop.permute.xlu0 %8490
        %8492 = vrot.lane.b32.xlu0 %v8482, 127
        %v8493 = vpop.permute.xlu0 %8492
        %8494 = vrot.lane.b32.xlu0 %v8483, 127
        %v8495 = vpop.permute.xlu0 %8494
        %v8500 = vadd.f32 %v8438, %v8489
        %v8501 = vadd.f32 %v8439, %v8491
        %v8502 = vadd.f32 %v8440, %v8493
        %v8503 = vadd.f32 %v8441, %v8495
        %s8504 = sld [smem:[#allocation9 + $0x34]]
        %v8505 = vstv %s8504
        %v8506 = vmul.f32 %v8505, %v8418
        %v8507 = vmul.f32 %v8505, %v8419
        %v8508 = vmul.f32 %v8505, %v8420
        %v8509 = vmul.f32 %v8505, %v8421
        %8514 = vrot.lane.b32.xlu0 %v8506, 127
        %v8515 = vpop.permute.xlu0 %8514
        %8516 = vrot.lane.b32.xlu0 %v8507, 127
        %v8517 = vpop.permute.xlu0 %8516
        %8518 = vrot.lane.b32.xlu0 %v8508, 127
        %v8519 = vpop.permute.xlu0 %8518
        %8520 = vrot.lane.b32.xlu0 %v8509, 127
        %v8521 = vpop.permute.xlu0 %8520
        %v8526 = vadd.f32 %v8448, %v8515
        %v8527 = vadd.f32 %v8449, %v8517
        %v8528 = vadd.f32 %v8450, %v8519
        %v8529 = vadd.f32 %v8451, %v8521
        %s8530 = sld [smem:[#allocation9 + $0x11]]
        %v8531 = vstv %s8530
        %v8532 = vmul.f32 %v8531, %v8418
        %v8533 = vmul.f32 %v8531, %v8419
        %v8534 = vmul.f32 %v8531, %v8420
        %v8535 = vmul.f32 %v8531, %v8421
        %8540 = vrot.lane.b32.xlu0 %v8532, 126
        %v8541 = vpop.permute.xlu0 %8540
        %8542 = vrot.lane.b32.xlu0 %v8533, 126
        %v8543 = vpop.permute.xlu0 %8542
        %8544 = vrot.lane.b32.xlu0 %v8534, 126
        %v8545 = vpop.permute.xlu0 %8544
        %8546 = vrot.lane.b32.xlu0 %v8535, 126
        %v8547 = vpop.permute.xlu0 %8546
        %v8552 = vadd.f32 %v8474, %v8541
        %v8553 = vadd.f32 %v8475, %v8543
        %v8554 = vadd.f32 %v8476, %v8545
        %v8555 = vadd.f32 %v8477, %v8547
        %s8556 = sld [smem:[#allocation9 + $0x23]]
        %v8557 = vstv %s8556
        %v8558 = vmul.f32 %v8557, %v8418
        %v8559 = vmul.f32 %v8557, %v8419
        %v8560 = vmul.f32 %v8557, %v8420
        %v8561 = vmul.f32 %v8557, %v8421
        %8566 = vrot.lane.b32.xlu0 %v8558, 126
        %v8567 = vpop.permute.xlu0 %8566
        %8568 = vrot.lane.b32.xlu0 %v8559, 126
        %v8569 = vpop.permute.xlu0 %8568
        %8570 = vrot.lane.b32.xlu0 %v8560, 126
        %v8571 = vpop.permute.xlu0 %8570
        %8572 = vrot.lane.b32.xlu0 %v8561, 126
        %v8573 = vpop.permute.xlu0 %8572
        %v8578 = vadd.f32 %v8500, %v8567
        %v8579 = vadd.f32 %v8501, %v8569
        %v8580 = vadd.f32 %v8502, %v8571
        %v8581 = vadd.f32 %v8503, %v8573
        %s8582 = sld [smem:[#allocation9 + $0x35]]
        %v8583 = vstv %s8582
        %v8584 = vmul.f32 %v8583, %v8418
        %v8585 = vmul.f32 %v8583, %v8419
        %v8586 = vmul.f32 %v8583, %v8420
        %v8587 = vmul.f32 %v8583, %v8421
        %8592 = vrot.lane.b32.xlu0 %v8584, 126
        %v8593 = vpop.permute.xlu0 %8592
        %8594 = vrot.lane.b32.xlu0 %v8585, 126
        %v8595 = vpop.permute.xlu0 %8594
        %8596 = vrot.lane.b32.xlu0 %v8586, 126
        %v8597 = vpop.permute.xlu0 %8596
        %8598 = vrot.lane.b32.xlu0 %v8587, 126
        %v8599 = vpop.permute.xlu0 %8598
        %v8604 = vadd.f32 %v8526, %v8593
        %v8605 = vadd.f32 %v8527, %v8595
        %v8606 = vadd.f32 %v8528, %v8597
        %v8607 = vadd.f32 %v8529, %v8599
        %v8608 = vmax.f32 %v8552, 0.0
        %v8609 = vmax.f32 %v8553, 0.0
        %v8610 = vmax.f32 %v8554, 0.0
        %v8611 = vmax.f32 %v8555, 0.0
        %vm8612 = vcmask 261120
        %8613 = vst.msk [vmem:[%s323] sm:$0xff] %vm8612, %v8608
        %8614 = vst.msk [vmem:[%s323 + $0x8] sm:$0xff] %vm8612, %v8609
        %8615 = vst.msk [vmem:[%s323 + $0x10] sm:$0xff] %vm8612, %v8610
        %8616 = vst.msk [vmem:[%s323 + $0x18] sm:$0xff] %vm8612, %v8611
        %v8617 = vmax.f32 %v8578, 0.0
        %v8618 = vmax.f32 %v8579, 0.0
        %v8619 = vmax.f32 %v8580, 0.0
        %v8620 = vmax.f32 %v8581, 0.0
        %s8621 = scalar_lea.vmem %s323, 32 [#allocation12]
        %8622 = vst.msk [vmem:[%s8621] sm:$0xff] %vm8612, %v8617
        %8623 = vst.msk [vmem:[%s8621 + $0x8] sm:$0xff] %vm8612, %v8618
        %8624 = vst.msk [vmem:[%s8621 + $0x10] sm:$0xff] %vm8612, %v8619
        %8625 = vst.msk [vmem:[%s8621 + $0x18] sm:$0xff] %vm8612, %v8620
        %v8626 = vmax.f32 %v8604, 0.0
        %v8627 = vmax.f32 %v8605, 0.0
        %v8628 = vmax.f32 %v8606, 0.0
        %v8629 = vmax.f32 %v8607, 0.0
        %s8630 = scalar_lea.vmem %s323, 64 [#allocation12]
        %8631 = vst.msk [vmem:[%s8630] sm:$0xff] %vm8612, %v8626
        %8632 = vst.msk [vmem:[%s8630 + $0x8] sm:$0xff] %vm8612, %v8627
        %8633 = vst.msk [vmem:[%s8630 + $0x10] sm:$0xff] %vm8612, %v8628
        %8634 = vst.msk [vmem:[%s8630 + $0x18] sm:$0xff] %vm8612, %v8629
        %s8635 = sand.u32 %s184, 1
        %s8636 = scalar_lea.sflag [#allocation5], %s8635
        %s8637 = sand.u32 %s184, 1
        %s8638 = smul.addr %s8637, 96
        %s8639 = scalar_lea.vmem [#allocation12], %s8638
        // Predicated region
        $region65: #{up_forward.1} parent=47 // pred_check
          %p8640 = pneg %p194
        $region66: #{up_forward.1} parent=47 // pred_check_branch
          %8642 = sbr.rel (%p8640) target = $region68
        $region67: #{up_forward.1} parent=47 // pred_region
          %s8644 = ssub.s32 1536, 1536
          %8645 = vsyncadd %s8636, %s8644
          %s8646 = smul.addr %s24, 12
          %s8647 = smul.addr %s8646, 128
          %s8648 = scalar_lea.hbm %s7, %s8647
          %s8649 = sshll.u32 %s8639, 4
          %s8650 = int_to_ptr.vmem [resolvable:$true] %s8649
          %8655 = dma.vmem_to_hbm [thread:$0]  %s8650, 1536, %s8648, %s8636, 128, 128, 8
        $region68: #{up_forward.1} parent=47 // pred_fallthru
          _
      $region48: #{up_forward.1} parent=5 // pred_fallthru
        _
      %p8656 = scmp.le.s32.totalorder 2, %s19
      // Predicated region
      $region69: #{up_forward.1} parent=5 // pred_check
        %p8657 = pneg %p8656
      $region70: #{up_forward.1} parent=5 // pred_check_branch
        %8659 = sbr.rel (%p8657) target = $region72
      $region71: #{up_forward.1} parent=5 // pred_region
        %s8660 = ssub.s32 %s19, 2
        // Predicated region
        $region73: #{up_forward.1} parent=71 // pred_check
          %p8661 = pneg %p200
        $region74: #{up_forward.1} parent=71 // pred_check_branch
          %8663 = sbr.rel (%p8661) target = $region76
        $region75: #{up_forward.1} parent=71 // pred_region
          %s8664 = sand.u32 %s185, 1
          %s8665 = scalar_lea.sflag [#allocation5], %s8664
          %s8666 = sand.u32 %s185, 1
          %s8667 = smul.addr %s8666, 96
          %s8668 = scalar_lea.vmem [#allocation12], %s8667
          %8669 = dma.done %s8665, 1536
        $region76: #{up_forward.1} parent=71 // pred_fallthru
          _
      $region72: #{up_forward.1} parent=5 // pred_fallthru
        _
    $region6: #{up_forward.1} parent=1 // loop_footer
      %s23 = sadd.s32 1, %s19
    $region7: #{up_forward.1} parent=1 // loop_footer_branch
      %18 = sbr.rel target = $region3
    $region8: #{up_forward.1} parent=1 // loop_exit
      _
    %8670 = vsyncpa [#allocation5], 1
    %s8671 = scalar_lea.sflag [#allocation5], 1
    %8672 = vsyncpa %s8671, 1
    %8673 = vsyncpa [#allocation6], 1
    %s8674 = scalar_lea.sflag [#allocation6], 1
    %8675 = vsyncpa %s8674, 1
    %8676 = vsyncpa [#allocation8], 1
    %8677 = vsyncpa [#allocation11], 1

</llo_original>
